<compile_context>
chip_gen: v6e
topology: v6e:2x2x1
jax: 0.10.0
libtpu: 0.0.40
codegen_flags: <defaults>
</compile_context>

<pallas_src>
import functools
import math

import jax
import jax.numpy as jnp
from jax.experimental import pallas as pl
from jax.experimental.pallas import tpu as pltpu


# ----------------------------- in-kernel helpers ---------------------------

def _layernorm(h, g, b, eps=1e-5):
    mu = jnp.mean(h, axis=-1, keepdims=True)
    var = jnp.mean(jnp.square(h - mu), axis=-1, keepdims=True)
    return (h - mu) * jax.lax.rsqrt(var + eps) * g + b


def _mha_heads(q, k, v, wo, nhead):
    """Multi-head attention core for one sequence.

    q: (Sq, D) bf16, already scaled by 1/sqrt(Dh).  k, v: (Sk, D) bf16.
    wo: (D, D) bf16 out-projection.  Each head's output is accumulated directly
    into the out-projection (MXU), so the result stays lane-dense (Sq, D) f32
    and there is no per-head lane concat.
    """
    D = wo.shape[0]
    Dh = D // nhead
    acc = None
    for h in range(nhead):                         # static unroll
        cs = slice(h * Dh, (h + 1) * Dh)
        s = jnp.einsum("qd,kd->qk", q[:, cs], k[:, cs],
                       preferred_element_type=jnp.float32)          # (Sq, Sk)
        m = jnp.max(s, axis=-1, keepdims=True)
        p = jnp.exp(s - m)
        p = p * pl.reciprocal(jnp.sum(p, axis=-1, keepdims=True), approx=True)
        hv = jnp.dot(p.astype(jnp.bfloat16), v[:, cs],
                     preferred_element_type=jnp.float32)             # (Sq, Dh)
        c = jnp.dot(hv.astype(jnp.bfloat16), wo[cs, :],
                    preferred_element_type=jnp.float32)              # (Sq, D)
        acc = c if acc is None else acc + c
    return acc


# ------------------------------ linear kernel ------------------------------

def _linear_kernel(x_ref, w_ref, b_ref, o_ref):
    o_ref[...] = jnp.dot(x_ref[...].astype(jnp.bfloat16), w_ref[...],
                         preferred_element_type=jnp.float32) + b_ref[...]


def linear(x2d, w_bf16, b_f32):
    """x2d: (M, K) f32 @ w: (K, N) bf16 + b: (1, N) f32 -> (M, N) f32.

    Shapes here are tiny (M <= 32); a single grid step avoids serial grid-step
    overhead on v5e/v6e and costs nothing meaningful on v7x.
    """
    M, K = x2d.shape
    N = w_bf16.shape[1]
    cost = pl.CostEstimate(flops=2 * M * K * N, transcendentals=0,
                           bytes_accessed=4 * M * K + 2 * K * N + 4 * (M * N + N))
    return pl.pallas_call(
        _linear_kernel,
        out_shape=jax.ShapeDtypeStruct((M, N), jnp.float32),
        grid=(1,),
        in_specs=[pl.BlockSpec((M, K), lambda i: (0, 0)),
                  pl.BlockSpec((K, N), lambda i: (0, 0)),
                  pl.BlockSpec((1, N), lambda i: (0, 0))],
        out_specs=pl.BlockSpec((M, N), lambda i: (0, 0)),
        cost_estimate=cost,
    )(x2d, w_bf16, b_f32)


# --------------------------- fused encoder stack ----------------------------
# One pallas_call runs BOTH modal encoder stacks (all layers, whole batch).
# grid = (modality, L); activation carried in VMEM scratch across L; only the
# time-pooled mean is written to HBM at the last layer.

def _encoder_stack_kernel(x_ref, wqkv_ref, wo_ref, w1_ref, w2_ref, vec_ref,
                          pooled_ref, h_ref, *, nhead, scale, d_model, dff,
                          batch, seq):
    D, F, B, T = d_model, dff, batch, seq
    l = pl.program_id(1)

    @pl.when(l == 0)
    def _():
        for b in range(B):
            h_ref[b * T:(b + 1) * T, :] = x_ref[b]

    x = h_ref[...]                                  # (B*T, D) f32
    vec = vec_ref[...]                              # (8, W)   f32
    wqkv = wqkv_ref[...]                            # (D, 3D)  bf16
    wo = wo_ref[...]                                # (D, D)   bf16
    w1 = w1_ref[...]                                # (D, F)   bf16
    w2 = w2_ref[...]                                # (F, D)   bf16

    bqkv = vec[0:1, :3 * D]
    bo = vec[1:2, :D]
    b1 = vec[2:3, :F]
    b2 = vec[3:4, :D]
    ln1g, ln1b = vec[4:5, :D], vec[5:6, :D]
    ln2g, ln2b = vec[6:7, :D], vec[7:8, :D]

    # fused QKV projection over the whole batch (B*T rows -> better MXU fill)
    qkv = jnp.dot(x.astype(jnp.bfloat16), wqkv,
                  preferred_element_type=jnp.float32) + bqkv        # (B*T, 3D)
    q = (qkv[:, :D] * scale).astype(jnp.bfloat16)
    k = qkv[:, D:2 * D].astype(jnp.bfloat16)
    v = qkv[:, 2 * D:].astype(jnp.bfloat16)

    # attention scores must not mix batch elements -> static per-batch loop
    attn = []
    for b in range(B):
        rows = slice(b * T, (b + 1) * T)
        attn.append(_mha_heads(q[rows], k[rows], v[rows], wo, nhead))
    a = jnp.concatenate(attn, axis=0) + bo                          # (B*T, D)

    h1 = _layernorm(x + a, ln1g, ln1b)
    f = jnp.maximum(jnp.dot(h1.astype(jnp.bfloat16), w1,
                            preferred_element_type=jnp.float32) + b1, 0.0)
    ffn = jnp.dot(f.astype(jnp.bfloat16), w2,
                  preferred_element_type=jnp.float32) + b2
    h2 = _layernorm(h1 + ffn, ln2g, ln2b)
    h_ref[...] = h2

    @pl.when(l == pl.num_programs(1) - 1)
    def _():
        pooled = jnp.concatenate(
            [jnp.mean(h2[b * T:(b + 1) * T], axis=0, keepdims=True)
             for b in range(B)], axis=0)                            # (B, D)
        pooled_ref[...] = pooled


def encoder_stack(x, p, *, nhead):
    """x: (Mmod, B, T, D) f32.  p leaves stacked as (Mmod, L, ...).
    Returns time-pooled encoder outputs: (Mmod, B, D) f32."""
    Mmod, B, T, D = x.shape
    L = p["wqkv"].shape[1]
    F = p["w1"].shape[3]
    W = p["vec"].shape[3]
    scale = 1.0 / math.sqrt(D // nhead)
    kernel = functools.partial(_encoder_stack_kernel, nhead=nhead, scale=scale,
                               d_model=D, dff=F, batch=B, seq=T)

    flops = Mmod * L * B * (6 * T * D * D + 4 * T * T * D + 2 * T * D * D
                            + 4 * T * D * F)
    wbytes = Mmod * L * (2 * (3 * D * D + D * D + 2 * D * F) + 4 * 8 * W)
    cost = pl.CostEstimate(flops=flops,
                           transcendentals=Mmod * L * B * nhead * T * T,
                           bytes_accessed=4 * Mmod * B * T * D + wbytes
                                          + 4 * Mmod * B * D)

    return pl.pallas_call(
        kernel,
        out_shape=jax.ShapeDtypeStruct((Mmod, B, D), jnp.float32),
        grid=(Mmod, L),
        in_specs=[
            pl.BlockSpec((None, B, T, D), lambda m, l: (m, 0, 0, 0)),
            pl.BlockSpec((None, None, D, 3 * D), lambda m, l: (m, l, 0, 0)),
            pl.BlockSpec((None, None, D, D), lambda m, l: (m, l, 0, 0)),
            pl.BlockSpec((None, None, D, F), lambda m, l: (m, l, 0, 0)),
            pl.BlockSpec((None, None, F, D), lambda m, l: (m, l, 0, 0)),
            pl.BlockSpec((None, None, 8, W), lambda m, l: (m, l, 0, 0)),
        ],
        out_specs=pl.BlockSpec((None, B, D), lambda m, l: (m, 0, 0)),
        scratch_shapes=[pltpu.VMEM((B * T, D), jnp.float32)],
        compiler_params=pltpu.CompilerParams(
            dimension_semantics=("parallel", "arbitrary")),
        cost_estimate=cost,
    )(x, p["wqkv"], p["wo"], p["w1"], p["w2"], p["vec"])


# --------------------------- fused decoder stack ----------------------------
# One pallas_call runs the whole decoder stack, grid = (B, L).  Output head is
# fused into the last layer's epilogue; hidden states never leave VMEM.

def _decoder_stack_kernel(x_ref, mem_ref, swqkv_ref, swo_ref, cwq_ref, cwkv_ref,
                          cwo_ref, w1_ref, w2_ref, vec_ref, wout_ref, bout_ref,
                          logits_ref, h_ref, *, nhead, scale, d_model, dff):
    D, F = d_model, dff
    l = pl.program_id(1)

    @pl.when(l == 0)
    def _():
        h_ref[...] = x_ref[...]

    x = h_ref[...]                                  # (S, D)  f32
    mem = mem_ref[...]                              # (Tm, D) f32
    vec = vec_ref[...]                              # (13, W) f32

    sbqkv = vec[0:1, :3 * D]
    sbo = vec[1:2, :D]
    cbq = vec[2:3, :D]
    cbkv = vec[3:4, :2 * D]
    cbo = vec[4:5, :D]
    b1 = vec[5:6, :F]
    b2 = vec[6:7, :D]
    ln1g, ln1b = vec[7:8, :D], vec[8:9, :D]
    ln2g, ln2b = vec[9:10, :D], vec[10:11, :D]
    ln3g, ln3b = vec[11:12, :D], vec[12:13, :D]

    # ---- self-attention (reference passes tgt_mask=None -> unmasked) ----
    # TODO(synk): add a causal mask here if the module is ever called with tgt_mask.
    qkv = jnp.dot(x.astype(jnp.bfloat16), swqkv_ref[...],
                  preferred_element_type=jnp.float32) + sbqkv
    q = (qkv[:, :D] * scale).astype(jnp.bfloat16)
    k = qkv[:, D:2 * D].astype(jnp.bfloat16)
    v = qkv[:, 2 * D:].astype(jnp.bfloat16)
    a = _mha_heads(q, k, v, swo_ref[...], nhead) + sbo
    h1 = _layernorm(x + a, ln1g, ln1b)

    # ---- cross-attention over the (pooled video, pooled audio) memory ----
    h1b = h1.astype(jnp.bfloat16)
    qc = ((jnp.dot(h1b, cwq_ref[...], preferred_element_type=jnp.float32) + cbq)
          * scale).astype(jnp.bfloat16)
    kvc = jnp.dot(mem.astype(jnp.bfloat16), cwkv_ref[...],
                  preferred_element_type=jnp.float32) + cbkv
    kc = kvc[:, :D].astype(jnp.bfloat16)
    vc = kvc[:, D:].astype(jnp.bfloat16)
    c = _mha_heads(qc, kc, vc, cwo_ref[...], nhead) + cbo
    h2 = _layernorm(h1 + c, ln2g, ln2b)

    # ---- FFN ----
    f = jnp.maximum(jnp.dot(h2.astype(jnp.bfloat16), w1_ref[...],
                            preferred_element_type=jnp.float32) + b1, 0.0)
    ffn = jnp.dot(f.astype(jnp.bfloat16), w2_ref[...],
                  preferred_element_type=jnp.float32) + b2
    h3 = _layernorm(h2 + ffn, ln2g * 0 + ln3g, ln3b)  # ln3
    h_ref[...] = h3

    # ---- output head fused into the last layer's epilogue ----
    @pl.when(l == pl.num_programs(1) - 1)
    def _():
        logits_ref[...] = (jnp.dot(h3.astype(jnp.bfloat16), wout_ref[...],
                                   preferred_element_type=jnp.float32)
                           + bout_ref[...])


def decoder_stack(x, memory, p, out_fc, *, nhead):
    """x: (B, S, D) f32, memory: (B, Tm, D) f32.  p leaves stacked as (L, ...).
    Returns logits (B, S, V) f32 (output head fused in)."""
    B, S, D = x.shape
    Tm = memory.shape[1]
    L = p["s_wqkv"].shape[0]
    F = p["w1"].shape[2]
    W = p["vec"].shape[2]
    wout, bout = out_fc
    V = wout.shape[1]
    scale = 1.0 / math.sqrt(D // nhead)
    kernel = functools.partial(_decoder_stack_kernel, nhead=nhead, scale=scale,
                               d_model=D, dff=F)

    flops = B * L * (6 * S * D * D + 4 * S * S * D + 2 * S * D * D
                     + 2 * S * D * D + 4 * Tm * D * D + 4 * S * Tm * D
                     + 2 * S * D * D + 4 * S * D * F) + 2 * B * S * D * V
    wbytes = L * (2 * (3 * D * D + D * D + D * D + 2 * D * D + D * D + 2 * D * F)
                  + 4 * 13 * W) + 2 * D * V + 4 * V
    cost = pl.CostEstimate(
        flops=flops,
        transcendentals=B * L * nhead * (S * S + S * Tm),
        bytes_accessed=4 * B * S * D + 4 * B * Tm * D + B * wbytes + 4 * B * S * V)

    return pl.pallas_call(
        kernel,
        out_shape=jax.ShapeDtypeStruct((B, S, V), jnp.float32),
        grid=(B, L),
        in_specs=[
            pl.BlockSpec((None, S, D), lambda b, l: (b, 0, 0)),
            pl.BlockSpec((None, Tm, D), lambda b, l: (b, 0, 0)),
            pl.BlockSpec((None, D, 3 * D), lambda b, l: (l, 0, 0)),
            pl.BlockSpec((None, D, D), lambda b, l: (l, 0, 0)),
            pl.BlockSpec((None, D, D), lambda b, l: (l, 0, 0)),
            pl.BlockSpec((None, D, 2 * D), lambda b, l: (l, 0, 0)),
            pl.BlockSpec((None, D, D), lambda b, l: (l, 0, 0)),
            pl.BlockSpec((None, D, F), lambda b, l: (l, 0, 0)),
            pl.BlockSpec((None, F, D), lambda b, l: (l, 0, 0)),
            pl.BlockSpec((None, 13, W), lambda b, l: (l, 0, 0)),
            pl.BlockSpec((D, V), lambda b, l: (0, 0)),
            pl.BlockSpec((1, V), lambda b, l: (0, 0)),
        ],
        out_specs=pl.BlockSpec((None, S, V), lambda b, l: (b, 0, 0)),
        scratch_shapes=[pltpu.VMEM((S, D), jnp.float32)],
        compiler_params=pltpu.CompilerParams(
            dimension_semantics=("parallel", "arbitrary")),
        cost_estimate=cost,
    )(x, memory, p["s_wqkv"], p["s_wo"], p["c_wq"], p["c_wkv"], p["c_wo"],
      p["w1"], p["w2"], p["vec"], wout, bout)


# ------------------------------ parameters ---------------------------------

def _rand(key, shape, scale=0.02):
    return jax.random.normal(key, shape, jnp.float32) * scale


def _pad_row(v, width):
    v = jnp.asarray(v, jnp.float32).reshape(1, -1)
    return jnp.pad(v, ((0, 0), (0, width - v.shape[1])))


def _enc_layer_params(key, D, F, W):
    ks = jax.random.split(key, 8)
    wqkv = _rand(ks[0], (D, 3 * D)); bqkv = _rand(ks[1], (3 * D,))
    wo = _rand(ks[2], (D, D)); bo = _rand(ks[3], (D,))
    w1 = _rand(ks[4], (D, F)); b1 = _rand(ks[5], (F,))
    w2 = _rand(ks[6], (F, D)); b2 = _rand(ks[7], (D,))
    ones = jnp.ones((D,), jnp.float32); zeros = jnp.zeros((D,), jnp.float32)
    vec = jnp.concatenate(
        [_pad_row(bqkv, W), _pad_row(bo, W), _pad_row(b1, W), _pad_row(b2, W),
         _pad_row(ones, W), _pad_row(zeros, W),   # ln1 gamma/beta
         _pad_row(ones, W), _pad_row(zeros, W)],  # ln2 gamma/beta
        axis=0)
    return dict(wqkv=wqkv.astype(jnp.bfloat16), wo=wo.astype(jnp.bfloat16),
                w1=w1.astype(jnp.bfloat16), w2=w2.astype(jnp.bfloat16), vec=vec)


def _dec_layer_params(key, D, F, W):
    ks = jax.random.split(key, 14)
    s_wqkv = _rand(ks[0], (D, 3 * D)); s_bqkv = _rand(ks[1], (3 * D,))
    s_wo = _rand(ks[2], (D, D)); s_bo = _rand(ks[3], (D,))
    c_wq = _rand(ks[4], (D, D)); c_bq = _rand(ks[5], (D,))
    c_wkv = _rand(ks[6], (D, 2 * D)); c_bkv = _rand(ks[7], (2 * D,))
    c_wo = _rand(ks[8], (D, D)); c_bo = _rand(ks[9], (D,))
    w1 = _rand(ks[10], (D, F)); b1 = _rand(ks[11], (F,))
    w2 = _rand(ks[12], (F, D)); b2 = _rand(ks[13], (D,))
    ones = jnp.ones((D,), jnp.float32); zeros = jnp.zeros((D,), jnp.float32)
    vec = jnp.concatenate(
        [_pad_row(s_bqkv, W), _pad_row(s_bo, W), _pad_row(c_bq, W),
         _pad_row(c_bkv, W), _pad_row(c_bo, W), _pad_row(b1, W), _pad_row(b2, W),
         _pad_row(ones, W), _pad_row(zeros, W),   # ln1
         _pad_row(ones, W), _pad_row(zeros, W),   # ln2
         _pad_row(ones, W), _pad_row(zeros, W)],  # ln3
        axis=0)
    return dict(s_wqkv=s_wqkv.astype(jnp.bfloat16), s_wo=s_wo.astype(jnp.bfloat16),
                c_wq=c_wq.astype(jnp.bfloat16), c_wkv=c_wkv.astype(jnp.bfloat16),
                c_wo=c_wo.astype(jnp.bfloat16),
                w1=w1.astype(jnp.bfloat16), w2=w2.astype(jnp.bfloat16), vec=vec)


def _stack_trees(trees):
    return jax.tree_util.tree_map(lambda *xs: jnp.stack(xs, axis=0), *trees)


def init_multimodal_params(key, *, vocab_size, d_model, video_feature_dim,
                           audio_feature_dim, num_encoder_layers,
                           num_decoder_layers, dim_feedforward):
    D, F = d_model, dim_feedforward
    W = max(3 * D, 2 * D, F)
    W = ((W + 127) // 128) * 128                  # lane-align the vector slab

    ks = jax.random.split(key, 10)
    vp_w = _rand(ks[0], (video_feature_dim, D)); vp_b = _rand(ks[1], (1, D))
    ap_w = _rand(ks[2], (audio_feature_dim, D)); ap_b = _rand(ks[3], (1, D))
    out_w = _rand(ks[4], (D, vocab_size)); out_b = _rand(ks[5], (1, vocab_size))

    venc = _stack_trees([_enc_layer_params(k, D, F, W)
                         for k in jax.random.split(ks[6], num_encoder_layers)])
    aenc = _stack_trees([_enc_layer_params(k, D, F, W)
                         for k in jax.random.split(ks[7], num_encoder_layers)])
    encoder = _stack_trees([venc, aenc])          # leaves: (2, L, ...)

    decoder = _stack_trees([_dec_layer_params(k, D, F, W)
                            for k in jax.random.split(ks[8], num_decoder_layers)])

    k_tok, k_pos = jax.random.split(ks[9])
    tok_emb = _rand(k_tok, (vocab_size, D))
    pos_emb = _rand(k_pos, (1000, D))

    return dict(video_proj=(vp_w.astype(jnp.bfloat16), vp_b),
                audio_proj=(ap_w.astype(jnp.bfloat16), ap_b),
                encoder=encoder, decoder=decoder,
                tok_emb=tok_emb, pos_emb=pos_emb,
                output_fc=(out_w.astype(jnp.bfloat16), out_b))


# ------------------------------ full forward --------------------------------

def multimodal_forward(params, video_feats, audio_feats, text_tokens, *, nhead):
    B, Tv, Fv = video_feats.shape
    _, Ta, Fa = audio_feats.shape
    _, Lt = text_tokens.shape
    D = params["video_proj"][0].shape[1]

    # modal projections (single-step whole-array linear kernels, bf16 weights)
    vw, vb = params["video_proj"]
    aw, ab = params["audio_proj"]
    vid = linear(video_feats.reshape(B * Tv, Fv), vw, vb).reshape(B, Tv, D)
    aud = linear(audio_feats.reshape(B * Ta, Fa), aw, ab).reshape(B, Ta, D)

    enc = params["encoder"]                       # leaves: (2, L, ...) = [video, audio]
    if Tv == Ta:
        # both modal encoder stacks in ONE call; modality axis feeds both v7x TCs
        x = jnp.stack([vid, aud], axis=0)                         # (2, B, T, D)  glue
        pooled = encoder_stack(x, enc, nhead=nhead)               # (2, B, D)
        memory = jnp.transpose(pooled, (1, 0, 2))                 # (B, 2, D)     glue
    else:
        take = lambda i: jax.tree_util.tree_map(lambda a: a[i:i + 1], enc)
        pv = encoder_stack(vid[None], take(0), nhead=nhead)[0]    # (B, D)
        pa = encoder_stack(aud[None], take(1), nhead=nhead)[0]    # (B, D)
        memory = jnp.stack([pv, pa], axis=1)                      # (B, 2, D)

    # text decoder: token + positional embedding (gathers = glue JAX)
    tok = jnp.take(params["tok_emb"], text_tokens, axis=0)        # (B, Lt, D)
    pos = params["pos_emb"][:Lt][None]                            # (1, Lt, D)
    h = tok + pos

    # whole decoder stack + fused output head in one call
    logits = decoder_stack(h, memory, params["decoder"], params["output_fc"],
                           nhead=nhead)                           # (B, Lt, V)
    return logits


# --------------------------------- main --------------------------------------

if __name__ == "__main__":
    vocab_size = 512
    d_model = 128
    nhead = 4
    num_encoder_layers = 2
    num_decoder_layers = 2
    dim_feedforward = 256
    video_feature_dim = 256
    audio_feature_dim = 128

    B, T_vid, T_aud, tgt_len = 2, 16, 16, 8

    key = jax.random.PRNGKey(0)
    kp, kv, ka, kt = jax.random.split(key, 4)

    params = init_multimodal_params(
        kp, vocab_size=vocab_size, d_model=d_model,
        video_feature_dim=video_feature_dim, audio_feature_dim=audio_feature_dim,
        num_encoder_layers=num_encoder_layers, num_decoder_layers=num_decoder_layers,
        dim_feedforward=dim_feedforward)

    video_feats = jax.random.normal(kv, (B, T_vid, video_feature_dim), jnp.float32)
    audio_feats = jax.random.normal(ka, (B, T_aud, audio_feature_dim), jnp.float32)
    text_tokens = jax.random.randint(kt, (B, tgt_len), 0, vocab_size)

    fwd = jax.jit(functools.partial(multimodal_forward, nhead=nhead))
    logits = fwd(params, video_feats, audio_feats, text_tokens)
    jax.block_until_ready(logits)

    assert logits.shape == (B, tgt_len, vocab_size)
    assert bool(jnp.all(jnp.isfinite(logits)))
    print("KERNEL_OK")
</pallas_src>

<mosaic_0001>
module attributes {stable_mosaic.version = 11 : i64} {
  func.func @_linear_kernel(%arg0: i32, %arg1: memref<32x128xf32, #tpu.memory_space<vmem>>, %arg2: memref<128x128xbf16, #tpu.memory_space<vmem>>, %arg3: memref<1x128xf32, #tpu.memory_space<vmem>>, %arg4: memref<32x128xf32, #tpu.memory_space<vmem>>) attributes {dimension_semantics = [#tpu.dimension_semantics<arbitrary>], iteration_bounds = array<i64: 1>, scalar_prefetch = 0 : i64, scratch_operands = 0 : i64, tpu.core_type = #tpu.core_type<tc>, window_params = [{pipeline_mode = #tpu.pipeline_mode<synchronous>, transform_indices = @transform_0, window_bounds = array<i64: 32, 128>}, {pipeline_mode = #tpu.pipeline_mode<synchronous>, transform_indices = @transform_1, window_bounds = array<i64: 128, 128>}, {pipeline_mode = #tpu.pipeline_mode<synchronous>, transform_indices = @transform_2, window_bounds = array<i64: 1, 128>}, {pipeline_mode = #tpu.pipeline_mode<synchronous>, transform_indices = @transform_3, window_bounds = array<i64: 32, 128>}]} {
    %c0 = arith.constant 0 : index
    %c0_0 = arith.constant 0 : index
    %0 = vector.load %arg1[%c0, %c0_0] : memref<32x128xf32, #tpu.memory_space<vmem>>, vector<32x128xf32>
    %1 = arith.truncf %0 : vector<32x128xf32> to vector<32x128xbf16>
    %c0_1 = arith.constant 0 : index
    %c0_2 = arith.constant 0 : index
    %2 = vector.load %arg2[%c0_1, %c0_2] : memref<128x128xbf16, #tpu.memory_space<vmem>>, vector<128x128xbf16>
    %cst = arith.constant dense<0.000000e+00> : vector<32x128xf32>
    %3 = tpu.matmul %1, %2, %cst {dimension_numbers = #tpu.dot_dimension_numbers<[1], [0], [0], [1], [0, 0, 1, 1], [], []>} : vector<32x128xbf16>, vector<128x128xbf16>, vector<32x128xf32> -> vector<32x128xf32>
    %c0_3 = arith.constant 0 : index
    %c0_4 = arith.constant 0 : index
    %4 = vector.load %arg3[%c0_3, %c0_4] : memref<1x128xf32, #tpu.memory_space<vmem>>, vector<1x128xf32>
    %5 = vector.broadcast %4 : vector<1x128xf32> to vector<32x128xf32>
    %6 = arith.addf %3, %5 : vector<32x128xf32>
    %c0_5 = arith.constant 0 : index
    %c0_6 = arith.constant 0 : index
    %7 = vector.load %arg4[%c0_5, %c0_6] : memref<32x128xf32, #tpu.memory_space<vmem>>, vector<32x128xf32>
    tpu.vector_store %arg4[%c0_5, %c0_6], %6 {strides = array<i32>} : memref<32x128xf32, #tpu.memory_space<vmem>>, vector<32x128xf32>,
    return
  }
  func.func @transform_0(%arg0: i32) -> (i32, i32) {
    %c0_i32 = arith.constant 0 : i32
    %c0_i32_0 = arith.constant 0 : i32
    %c0_i32_1 = arith.constant 0 : i32
    return %c0_i32, %c0_i32_0 : i32, i32
  }
  func.func @transform_1(%arg0: i32) -> (i32, i32) {
    %c0_i32 = arith.constant 0 : i32
    %c0_i32_0 = arith.constant 0 : i32
    %c0_i32_1 = arith.constant 0 : i32
    return %c0_i32, %c0_i32_0 : i32, i32
  }
  func.func @transform_2(%arg0: i32) -> (i32, i32) {
    %c0_i32 = arith.constant 0 : i32
    %c0_i32_0 = arith.constant 0 : i32
    %c0_i32_1 = arith.constant 0 : i32
    return %c0_i32, %c0_i32_0 : i32, i32
  }
  func.func @transform_3(%arg0: i32) -> (i32, i32) {
    %c0_i32 = arith.constant 0 : i32
    %c0_i32_0 = arith.constant 0 : i32
    %c0_i32_1 = arith.constant 0 : i32
    return %c0_i32, %c0_i32_0 : i32, i32
  }
}

module attributes {stable_mosaic.version = 11 : i64} {
  func.func @_linear_kernel(%arg0: i32, %arg1: memref<32x256xf32, #tpu.memory_space<vmem>>, %arg2: memref<256x128xbf16, #tpu.memory_space<vmem>>, %arg3: memref<1x128xf32, #tpu.memory_space<vmem>>, %arg4: memref<32x128xf32, #tpu.memory_space<vmem>>) attributes {dimension_semantics = [#tpu.dimension_semantics<arbitrary>], iteration_bounds = array<i64: 1>, scalar_prefetch = 0 : i64, scratch_operands = 0 : i64, tpu.core_type = #tpu.core_type<tc>, window_params = [{pipeline_mode = #tpu.pipeline_mode<synchronous>, transform_indices = @transform_0, window_bounds = array<i64: 32, 256>}, {pipeline_mode = #tpu.pipeline_mode<synchronous>, transform_indices = @transform_1, window_bounds = array<i64: 256, 128>}, {pipeline_mode = #tpu.pipeline_mode<synchronous>, transform_indices = @transform_2, window_bounds = array<i64: 1, 128>}, {pipeline_mode = #tpu.pipeline_mode<synchronous>, transform_indices = @transform_3, window_bounds = array<i64: 32, 128>}]} {
    %c0 = arith.constant 0 : index
    %c0_0 = arith.constant 0 : index
    %0 = vector.load %arg1[%c0, %c0_0] : memref<32x256xf32, #tpu.memory_space<vmem>>, vector<32x256xf32>
    %1 = arith.truncf %0 : vector<32x256xf32> to vector<32x256xbf16>
    %c0_1 = arith.constant 0 : index
    %c0_2 = arith.constant 0 : index
    %2 = vector.load %arg2[%c0_1, %c0_2] : memref<256x128xbf16, #tpu.memory_space<vmem>>, vector<256x128xbf16>
    %cst = arith.constant dense<0.000000e+00> : vector<32x128xf32>
    %3 = tpu.matmul %1, %2, %cst {dimension_numbers = #tpu.dot_dimension_numbers<[1], [0], [0], [1], [0, 0, 1, 1], [], []>} : vector<32x256xbf16>, vector<256x128xbf16>, vector<32x128xf32> -> vector<32x128xf32>
    %c0_3 = arith.constant 0 : index
    %c0_4 = arith.constant 0 : index
    %4 = vector.load %arg3[%c0_3, %c0_4] : memref<1x128xf32, #tpu.memory_space<vmem>>, vector<1x128xf32>
    %5 = vector.broadcast %4 : vector<1x128xf32> to vector<32x128xf32>
    %6 = arith.addf %3, %5 : vector<32x128xf32>
    %c0_5 = arith.constant 0 : index
    %c0_6 = arith.constant 0 : index
    %7 = vector.load %arg4[%c0_5, %c0_6] : memref<32x128xf32, #tpu.memory_space<vmem>>, vector<32x128xf32>
    tpu.vector_store %arg4[%c0_5, %c0_6], %6 {strides = array<i32>} : memref<32x128xf32, #tpu.memory_space<vmem>>, vector<32x128xf32>,
    return
  }
  func.func @transform_0(%arg0: i32) -> (i32, i32) {
    %c0_i32 = arith.constant 0 : i32
    %c0_i32_0 = arith.constant 0 : i32
    %c0_i32_1 = arith.constant 0 : i32
    return %c0_i32, %c0_i32_0 : i32, i32
  }
  func.func @transform_1(%arg0: i32) -> (i32, i32) {
    %c0_i32 = arith.constant 0 : i32
    %c0_i32_0 = arith.constant 0 : i32
    %c0_i32_1 = arith.constant 0 : i32
    return %c0_i32, %c0_i32_0 : i32, i32
  }
  func.func @transform_2(%arg0: i32) -> (i32, i32) {
    %c0_i32 = arith.constant 0 : i32
    %c0_i32_0 = arith.constant 0 : i32
    %c0_i32_1 = arith.constant 0 : i32
    return %c0_i32, %c0_i32_0 : i32, i32
  }
  func.func @transform_3(%arg0: i32) -> (i32, i32) {
    %c0_i32 = arith.constant 0 : i32
    %c0_i32_0 = arith.constant 0 : i32
    %c0_i32_1 = arith.constant 0 : i32
    return %c0_i32, %c0_i32_0 : i32, i32
  }
}

module attributes {stable_mosaic.version = 11 : i64} {
  func.func @_encoder_stack_kernel(%arg0: i32, %arg1: i32, %arg2: memref<1x2x16x128xf32, #tpu.memory_space<vmem>>, %arg3: memref<1x1x128x384xbf16, #tpu.memory_space<vmem>>, %arg4: memref<1x1x128x128xbf16, #tpu.memory_space<vmem>>, %arg5: memref<1x1x128x256xbf16, #tpu.memory_space<vmem>>, %arg6: memref<1x1x256x128xbf16, #tpu.memory_space<vmem>>, %arg7: memref<1x1x8x384xf32, #tpu.memory_space<vmem>>, %arg8: memref<1x2x128xf32, #tpu.memory_space<vmem>>, %arg9: memref<32x128xf32, #tpu.memory_space<vmem>>) attributes {dimension_semantics = [#tpu.dimension_semantics<parallel>, #tpu.dimension_semantics<arbitrary>], iteration_bounds = array<i64: 2, 2>, scalar_prefetch = 0 : i64, scratch_operands = 1 : i64, tpu.core_type = #tpu.core_type<tc>, window_params = [{transform_indices = @transform_0, window_bounds = array<i64: 1, 2, 16, 128>}, {transform_indices = @transform_1, window_bounds = array<i64: 1, 1, 128, 384>}, {transform_indices = @transform_2, window_bounds = array<i64: 1, 1, 128, 128>}, {transform_indices = @transform_3, window_bounds = array<i64: 1, 1, 128, 256>}, {transform_indices = @transform_4, window_bounds = array<i64: 1, 1, 256, 128>}, {transform_indices = @transform_5, window_bounds = array<i64: 1, 1, 8, 384>}, {transform_indices = @transform_6, window_bounds = array<i64: 1, 2, 128>}]} {
    %c0_i32 = arith.constant 0 : i32
    %0 = arith.cmpi eq, %arg1, %c0_i32 : i32
    %1 = arith.extui %0 : i1 to i32
    %c0_i32_0 = arith.constant 0 : i32
    %2 = arith.cmpi ne, %1, %c0_i32_0 : i32
    scf.if %2 {
      %c0_79 = arith.constant 0 : index
      %c0_80 = arith.constant 0 : index
      %c0_81 = arith.constant 0 : index
      %c0_82 = arith.constant 0 : index
      %261 = vector.load %arg2[%c0_79, %c0_80, %c0_81, %c0_82] : memref<1x2x16x128xf32, #tpu.memory_space<vmem>>, vector<1x1x16x128xf32>
      %262 = vector.shape_cast %261 : vector<1x1x16x128xf32> to vector<16x128xf32>
      %c0_83 = arith.constant 0 : index
      %c0_84 = arith.constant 0 : index
      %263 = vector.load %arg9[%c0_83, %c0_84] : memref<32x128xf32, #tpu.memory_space<vmem>>, vector<16x128xf32>
      tpu.vector_store %arg9[%c0_83, %c0_84], %262 {strides = array<i32>} : memref<32x128xf32, #tpu.memory_space<vmem>>, vector<16x128xf32>,
      %c0_85 = arith.constant 0 : index
      %c1 = arith.constant 1 : index
      %c0_86 = arith.constant 0 : index
      %c0_87 = arith.constant 0 : index
      %264 = vector.load %arg2[%c0_85, %c1, %c0_86, %c0_87] : memref<1x2x16x128xf32, #tpu.memory_space<vmem>>, vector<1x1x16x128xf32>
      %265 = vector.shape_cast %264 : vector<1x1x16x128xf32> to vector<16x128xf32>
      %c16 = arith.constant 16 : index
      %c0_88 = arith.constant 0 : index
      %266 = vector.load %arg9[%c16, %c0_88] : memref<32x128xf32, #tpu.memory_space<vmem>>, vector<16x128xf32>
      tpu.vector_store %arg9[%c16, %c0_88], %265 {strides = array<i32>} : memref<32x128xf32, #tpu.memory_space<vmem>>, vector<16x128xf32>,
    } else {
    }
    %c0 = arith.constant 0 : index
    %c0_1 = arith.constant 0 : index
    %3 = vector.load %arg9[%c0, %c0_1] : memref<32x128xf32, #tpu.memory_space<vmem>>, vector<32x128xf32>
    %c0_2 = arith.constant 0 : index
    %c0_3 = arith.constant 0 : index
    %c0_4 = arith.constant 0 : index
    %c0_5 = arith.constant 0 : index
    %4 = vector.load %arg7[%c0_2, %c0_3, %c0_4, %c0_5] : memref<1x1x8x384xf32, #tpu.memory_space<vmem>>, vector<1x1x8x384xf32>
    %5 = vector.shape_cast %4 : vector<1x1x8x384xf32> to vector<8x384xf32>
    %c0_6 = arith.constant 0 : index
    %c0_7 = arith.constant 0 : index
    %c0_8 = arith.constant 0 : index
    %c0_9 = arith.constant 0 : index
    %6 = vector.load %arg3[%c0_6, %c0_7, %c0_8, %c0_9] : memref<1x1x128x384xbf16, #tpu.memory_space<vmem>>, vector<1x1x128x384xbf16>
    %7 = vector.shape_cast %6 : vector<1x1x128x384xbf16> to vector<128x384xbf16>
    %c0_10 = arith.constant 0 : index
    %c0_11 = arith.constant 0 : index
    %c0_12 = arith.constant 0 : index
    %c0_13 = arith.constant 0 : index
    %8 = vector.load %arg4[%c0_10, %c0_11, %c0_12, %c0_13] : memref<1x1x128x128xbf16, #tpu.memory_space<vmem>>, vector<1x1x128x128xbf16>
    %9 = vector.shape_cast %8 : vector<1x1x128x128xbf16> to vector<128x128xbf16>
    %c0_14 = arith.constant 0 : index
    %c0_15 = arith.constant 0 : index
    %c0_16 = arith.constant 0 : index
    %c0_17 = arith.constant 0 : index
    %10 = vector.load %arg5[%c0_14, %c0_15, %c0_16, %c0_17] : memref<1x1x128x256xbf16, #tpu.memory_space<vmem>>, vector<1x1x128x256xbf16>
    %11 = vector.shape_cast %10 : vector<1x1x128x256xbf16> to vector<128x256xbf16>
    %c0_18 = arith.constant 0 : index
    %c0_19 = arith.constant 0 : index
    %c0_20 = arith.constant 0 : index
    %c0_21 = arith.constant 0 : index
    %12 = vector.load %arg6[%c0_18, %c0_19, %c0_20, %c0_21] : memref<1x1x256x128xbf16, #tpu.memory_space<vmem>>, vector<1x1x256x128xbf16>
    %13 = vector.shape_cast %12 : vector<1x1x256x128xbf16> to vector<256x128xbf16>
    %14 = vector.extract_strided_slice %5 {offsets = [0, 0], sizes = [1, 384], strides = [1, 1]} : vector<8x384xf32> to vector<1x384xf32>
    %15 = vector.extract_strided_slice %5 {offsets = [1, 0], sizes = [1, 128], strides = [1, 1]} : vector<8x384xf32> to vector<1x128xf32>
    %16 = vector.extract_strided_slice %5 {offsets = [2, 0], sizes = [1, 256], strides = [1, 1]} : vector<8x384xf32> to vector<1x256xf32>
    %17 = vector.extract_strided_slice %5 {offsets = [3, 0], sizes = [1, 128], strides = [1, 1]} : vector<8x384xf32> to vector<1x128xf32>
    %18 = vector.extract_strided_slice %5 {offsets = [4, 0], sizes = [1, 128], strides = [1, 1]} : vector<8x384xf32> to vector<1x128xf32>
    %19 = vector.extract_strided_slice %5 {offsets = [5, 0], sizes = [1, 128], strides = [1, 1]} : vector<8x384xf32> to vector<1x128xf32>
    %20 = vector.extract_strided_slice %5 {offsets = [6, 0], sizes = [1, 128], strides = [1, 1]} : vector<8x384xf32> to vector<1x128xf32>
    %21 = vector.extract_strided_slice %5 {offsets = [7, 0], sizes = [1, 128], strides = [1, 1]} : vector<8x384xf32> to vector<1x128xf32>
    %22 = arith.truncf %3 : vector<32x128xf32> to vector<32x128xbf16>
    %cst = arith.constant dense<0.000000e+00> : vector<32x384xf32>
    %23 = tpu.matmul %22, %7, %cst {dimension_numbers = #tpu.dot_dimension_numbers<[1], [0], [0], [1], [0, 0, 1, 1], [], []>} : vector<32x128xbf16>, vector<128x384xbf16>, vector<32x384xf32> -> vector<32x384xf32>
    %24 = vector.broadcast %14 : vector<1x384xf32> to vector<32x384xf32>
    %25 = arith.addf %23, %24 : vector<32x384xf32>
    %26 = vector.extract_strided_slice %25 {offsets = [0, 0], sizes = [32, 128], strides = [1, 1]} : vector<32x384xf32> to vector<32x128xf32>
    %cst_22 = arith.constant 0.176776692 : f32
    %27 = vector.broadcast %cst_22 : f32 to vector<32x128xf32>
    %28 = arith.mulf %26, %27 : vector<32x128xf32>
    %29 = arith.truncf %28 : vector<32x128xf32> to vector<32x128xbf16>
    %30 = vector.extract_strided_slice %25 {offsets = [0, 128], sizes = [32, 128], strides = [1, 1]} : vector<32x384xf32> to vector<32x128xf32>
    %31 = arith.truncf %30 : vector<32x128xf32> to vector<32x128xbf16>
    %32 = vector.extract_strided_slice %25 {offsets = [0, 256], sizes = [32, 128], strides = [1, 1]} : vector<32x384xf32> to vector<32x128xf32>
    %33 = arith.truncf %32 : vector<32x128xf32> to vector<32x128xbf16>
    %34 = vector.extract_strided_slice %29 {offsets = [0, 0], sizes = [16, 128], strides = [1, 1]} : vector<32x128xbf16> to vector<16x128xbf16>
    %35 = vector.extract_strided_slice %31 {offsets = [0, 0], sizes = [16, 128], strides = [1, 1]} : vector<32x128xbf16> to vector<16x128xbf16>
    %36 = vector.extract_strided_slice %33 {offsets = [0, 0], sizes = [16, 128], strides = [1, 1]} : vector<32x128xbf16> to vector<16x128xbf16>
    %37 = vector.extract_strided_slice %34 {offsets = [0, 0], sizes = [16, 32], strides = [1, 1]} : vector<16x128xbf16> to vector<16x32xbf16>
    %38 = vector.extract_strided_slice %35 {offsets = [0, 0], sizes = [16, 32], strides = [1, 1]} : vector<16x128xbf16> to vector<16x32xbf16>
    "tpu.trace_start"() <{level = 10 : i32, message = "qd,kd->qk"}> : () -> ()
    %cst_23 = arith.constant dense<0.000000e+00> : vector<16x16xf32>
    %39 = tpu.matmul %37, %38, %cst_23 {dimension_numbers = #tpu.dot_dimension_numbers<[1], [1], [0], [0], [0, 0, 1, 0], [], []>} : vector<16x32xbf16>, vector<16x32xbf16>, vector<16x16xf32> -> vector<16x16xf32>
    "tpu.trace_stop"() : () -> ()
    %cst_24 = arith.constant dense<0xFF800000> : vector<16xf32>
    %40 = vector.multi_reduction <maximumf>, %39, %cst_24 [1] : vector<16x16xf32> to vector<16xf32>
    %41 = vector.shape_cast %40 : vector<16xf32> to vector<16x1xf32>
    %42 = vector.broadcast %41 : vector<16x1xf32> to vector<16x16xf32>
    %43 = arith.subf %39, %42 : vector<16x16xf32>
    %44 = math.exp %43 : vector<16x16xf32>
    %cst_25 = arith.constant dense<0.000000e+00> : vector<16xf32>
    %45 = vector.multi_reduction <add>, %44, %cst_25 [1] : vector<16x16xf32> to vector<16xf32>
    %46 = vector.shape_cast %45 : vector<16xf32> to vector<16x1xf32>
    %47 = tpu.reciprocal %46 {approx = true} : vector<16x1xf32> -> vector<16x1xf32>
    %48 = vector.broadcast %47 : vector<16x1xf32> to vector<16x16xf32>
    %49 = arith.mulf %44, %48 : vector<16x16xf32>
    %50 = arith.truncf %49 : vector<16x16xf32> to vector<16x16xbf16>
    %51 = vector.extract_strided_slice %36 {offsets = [0, 0], sizes = [16, 32], strides = [1, 1]} : vector<16x128xbf16> to vector<16x32xbf16>
    %cst_26 = arith.constant dense<0.000000e+00> : vector<16x32xf32>
    %52 = tpu.matmul %50, %51, %cst_26 {dimension_numbers = #tpu.dot_dimension_numbers<[1], [0], [0], [1], [0, 0, 1, 1], [], []>} : vector<16x16xbf16>, vector<16x32xbf16>, vector<16x32xf32> -> vector<16x32xf32>
    %53 = arith.truncf %52 : vector<16x32xf32> to vector<16x32xbf16>
    %54 = vector.extract_strided_slice %9 {offsets = [0, 0], sizes = [32, 128], strides = [1, 1]} : vector<128x128xbf16> to vector<32x128xbf16>
    %cst_27 = arith.constant dense<0.000000e+00> : vector<16x128xf32>
    %55 = tpu.matmul %53, %54, %cst_27 {dimension_numbers = #tpu.dot_dimension_numbers<[1], [0], [0], [1], [0, 0, 1, 1], [], []>} : vector<16x32xbf16>, vector<32x128xbf16>, vector<16x128xf32> -> vector<16x128xf32>
    %56 = vector.extract_strided_slice %34 {offsets = [0, 32], sizes = [16, 32], strides = [1, 1]} : vector<16x128xbf16> to vector<16x32xbf16>
    %57 = vector.extract_strided_slice %35 {offsets = [0, 32], sizes = [16, 32], strides = [1, 1]} : vector<16x128xbf16> to vector<16x32xbf16>
    "tpu.trace_start"() <{level = 10 : i32, message = "qd,kd->qk"}> : () -> ()
    %cst_28 = arith.constant dense<0.000000e+00> : vector<16x16xf32>
    %58 = tpu.matmul %56, %57, %cst_28 {dimension_numbers = #tpu.dot_dimension_numbers<[1], [1], [0], [0], [0, 0, 1, 0], [], []>} : vector<16x32xbf16>, vector<16x32xbf16>, vector<16x16xf32> -> vector<16x16xf32>
    "tpu.trace_stop"() : () -> ()
    %cst_29 = arith.constant dense<0xFF800000> : vector<16xf32>
    %59 = vector.multi_reduction <maximumf>, %58, %cst_29 [1] : vector<16x16xf32> to vector<16xf32>
    %60 = vector.shape_cast %59 : vector<16xf32> to vector<16x1xf32>
    %61 = vector.broadcast %60 : vector<16x1xf32> to vector<16x16xf32>
    %62 = arith.subf %58, %61 : vector<16x16xf32>
    %63 = math.exp %62 : vector<16x16xf32>
    %cst_30 = arith.constant dense<0.000000e+00> : vector<16xf32>
    %64 = vector.multi_reduction <add>, %63, %cst_30 [1] : vector<16x16xf32> to vector<16xf32>
    %65 = vector.shape_cast %64 : vector<16xf32> to vector<16x1xf32>
    %66 = tpu.reciprocal %65 {approx = true} : vector<16x1xf32> -> vector<16x1xf32>
    %67 = vector.broadcast %66 : vector<16x1xf32> to vector<16x16xf32>
    %68 = arith.mulf %63, %67 : vector<16x16xf32>
    %69 = arith.truncf %68 : vector<16x16xf32> to vector<16x16xbf16>
    %70 = vector.extract_strided_slice %36 {offsets = [0, 32], sizes = [16, 32], strides = [1, 1]} : vector<16x128xbf16> to vector<16x32xbf16>
    %cst_31 = arith.constant dense<0.000000e+00> : vector<16x32xf32>
    %71 = tpu.matmul %69, %70, %cst_31 {dimension_numbers = #tpu.dot_dimension_numbers<[1], [0], [0], [1], [0, 0, 1, 1], [], []>} : vector<16x16xbf16>, vector<16x32xbf16>, vector<16x32xf32> -> vector<16x32xf32>
    %72 = arith.truncf %71 : vector<16x32xf32> to vector<16x32xbf16>
    %73 = vector.extract_strided_slice %9 {offsets = [32, 0], sizes = [32, 128], strides = [1, 1]} : vector<128x128xbf16> to vector<32x128xbf16>
    %cst_32 = arith.constant dense<0.000000e+00> : vector<16x128xf32>
    %74 = tpu.matmul %72, %73, %cst_32 {dimension_numbers = #tpu.dot_dimension_numbers<[1], [0], [0], [1], [0, 0, 1, 1], [], []>} : vector<16x32xbf16>, vector<32x128xbf16>, vector<16x128xf32> -> vector<16x128xf32>
    %75 = arith.addf %55, %74 : vector<16x128xf32>
    %76 = vector.extract_strided_slice %34 {offsets = [0, 64], sizes = [16, 32], strides = [1, 1]} : vector<16x128xbf16> to vector<16x32xbf16>
    %77 = vector.extract_strided_slice %35 {offsets = [0, 64], sizes = [16, 32], strides = [1, 1]} : vector<16x128xbf16> to vector<16x32xbf16>
    "tpu.trace_start"() <{level = 10 : i32, message = "qd,kd->qk"}> : () -> ()
    %cst_33 = arith.constant dense<0.000000e+00> : vector<16x16xf32>
    %78 = tpu.matmul %76, %77, %cst_33 {dimension_numbers = #tpu.dot_dimension_numbers<[1], [1], [0], [0], [0, 0, 1, 0], [], []>} : vector<16x32xbf16>, vector<16x32xbf16>, vector<16x16xf32> -> vector<16x16xf32>
    "tpu.trace_stop"() : () -> ()
    %cst_34 = arith.constant dense<0xFF800000> : vector<16xf32>
    %79 = vector.multi_reduction <maximumf>, %78, %cst_34 [1] : vector<16x16xf32> to vector<16xf32>
    %80 = vector.shape_cast %79 : vector<16xf32> to vector<16x1xf32>
    %81 = vector.broadcast %80 : vector<16x1xf32> to vector<16x16xf32>
    %82 = arith.subf %78, %81 : vector<16x16xf32>
    %83 = math.exp %82 : vector<16x16xf32>
    %cst_35 = arith.constant dense<0.000000e+00> : vector<16xf32>
    %84 = vector.multi_reduction <add>, %83, %cst_35 [1] : vector<16x16xf32> to vector<16xf32>
    %85 = vector.shape_cast %84 : vector<16xf32> to vector<16x1xf32>
    %86 = tpu.reciprocal %85 {approx = true} : vector<16x1xf32> -> vector<16x1xf32>
    %87 = vector.broadcast %86 : vector<16x1xf32> to vector<16x16xf32>
    %88 = arith.mulf %83, %87 : vector<16x16xf32>
    %89 = arith.truncf %88 : vector<16x16xf32> to vector<16x16xbf16>
    %90 = vector.extract_strided_slice %36 {offsets = [0, 64], sizes = [16, 32], strides = [1, 1]} : vector<16x128xbf16> to vector<16x32xbf16>
    %cst_36 = arith.constant dense<0.000000e+00> : vector<16x32xf32>
    %91 = tpu.matmul %89, %90, %cst_36 {dimension_numbers = #tpu.dot_dimension_numbers<[1], [0], [0], [1], [0, 0, 1, 1], [], []>} : vector<16x16xbf16>, vector<16x32xbf16>, vector<16x32xf32> -> vector<16x32xf32>
    %92 = arith.truncf %91 : vector<16x32xf32> to vector<16x32xbf16>
    %93 = vector.extract_strided_slice %9 {offsets = [64, 0], sizes = [32, 128], strides = [1, 1]} : vector<128x128xbf16> to vector<32x128xbf16>
    %cst_37 = arith.constant dense<0.000000e+00> : vector<16x128xf32>
    %94 = tpu.matmul %92, %93, %cst_37 {dimension_numbers = #tpu.dot_dimension_numbers<[1], [0], [0], [1], [0, 0, 1, 1], [], []>} : vector<16x32xbf16>, vector<32x128xbf16>, vector<16x128xf32> -> vector<16x128xf32>
    %95 = arith.addf %75, %94 : vector<16x128xf32>
    %96 = vector.extract_strided_slice %34 {offsets = [0, 96], sizes = [16, 32], strides = [1, 1]} : vector<16x128xbf16> to vector<16x32xbf16>
    %97 = vector.extract_strided_slice %35 {offsets = [0, 96], sizes = [16, 32], strides = [1, 1]} : vector<16x128xbf16> to vector<16x32xbf16>
    "tpu.trace_start"() <{level = 10 : i32, message = "qd,kd->qk"}> : () -> ()
    %cst_38 = arith.constant dense<0.000000e+00> : vector<16x16xf32>
    %98 = tpu.matmul %96, %97, %cst_38 {dimension_numbers = #tpu.dot_dimension_numbers<[1], [1], [0], [0], [0, 0, 1, 0], [], []>} : vector<16x32xbf16>, vector<16x32xbf16>, vector<16x16xf32> -> vector<16x16xf32>
    "tpu.trace_stop"() : () -> ()
    %cst_39 = arith.constant dense<0xFF800000> : vector<16xf32>
    %99 = vector.multi_reduction <maximumf>, %98, %cst_39 [1] : vector<16x16xf32> to vector<16xf32>
    %100 = vector.shape_cast %99 : vector<16xf32> to vector<16x1xf32>
    %101 = vector.broadcast %100 : vector<16x1xf32> to vector<16x16xf32>
    %102 = arith.subf %98, %101 : vector<16x16xf32>
    %103 = math.exp %102 : vector<16x16xf32>
    %cst_40 = arith.constant dense<0.000000e+00> : vector<16xf32>
    %104 = vector.multi_reduction <add>, %103, %cst_40 [1] : vector<16x16xf32> to vector<16xf32>
    %105 = vector.shape_cast %104 : vector<16xf32> to vector<16x1xf32>
    %106 = tpu.reciprocal %105 {approx = true} : vector<16x1xf32> -> vector<16x1xf32>
    %107 = vector.broadcast %106 : vector<16x1xf32> to vector<16x16xf32>
    %108 = arith.mulf %103, %107 : vector<16x16xf32>
    %109 = arith.truncf %108 : vector<16x16xf32> to vector<16x16xbf16>
    %110 = vector.extract_strided_slice %36 {offsets = [0, 96], sizes = [16, 32], strides = [1, 1]} : vector<16x128xbf16> to vector<16x32xbf16>
    %cst_41 = arith.constant dense<0.000000e+00> : vector<16x32xf32>
    %111 = tpu.matmul %109, %110, %cst_41 {dimension_numbers = #tpu.dot_dimension_numbers<[1], [0], [0], [1], [0, 0, 1, 1], [], []>} : vector<16x16xbf16>, vector<16x32xbf16>, vector<16x32xf32> -> vector<16x32xf32>
    %112 = arith.truncf %111 : vector<16x32xf32> to vector<16x32xbf16>
    %113 = vector.extract_strided_slice %9 {offsets = [96, 0], sizes = [32, 128], strides = [1, 1]} : vector<128x128xbf16> to vector<32x128xbf16>
    %cst_42 = arith.constant dense<0.000000e+00> : vector<16x128xf32>
    %114 = tpu.matmul %112, %113, %cst_42 {dimension_numbers = #tpu.dot_dimension_numbers<[1], [0], [0], [1], [0, 0, 1, 1], [], []>} : vector<16x32xbf16>, vector<32x128xbf16>, vector<16x128xf32> -> vector<16x128xf32>
    %115 = arith.addf %95, %114 : vector<16x128xf32>
    %116 = vector.extract_strided_slice %29 {offsets = [16, 0], sizes = [16, 128], strides = [1, 1]} : vector<32x128xbf16> to vector<16x128xbf16>
    %117 = vector.extract_strided_slice %31 {offsets = [16, 0], sizes = [16, 128], strides = [1, 1]} : vector<32x128xbf16> to vector<16x128xbf16>
    %118 = vector.extract_strided_slice %33 {offsets = [16, 0], sizes = [16, 128], strides = [1, 1]} : vector<32x128xbf16> to vector<16x128xbf16>
    %119 = vector.extract_strided_slice %116 {offsets = [0, 0], sizes = [16, 32], strides = [1, 1]} : vector<16x128xbf16> to vector<16x32xbf16>
    %120 = vector.extract_strided_slice %117 {offsets = [0, 0], sizes = [16, 32], strides = [1, 1]} : vector<16x128xbf16> to vector<16x32xbf16>
    "tpu.trace_start"() <{level = 10 : i32, message = "qd,kd->qk"}> : () -> ()
    %cst_43 = arith.constant dense<0.000000e+00> : vector<16x16xf32>
    %121 = tpu.matmul %119, %120, %cst_43 {dimension_numbers = #tpu.dot_dimension_numbers<[1], [1], [0], [0], [0, 0, 1, 0], [], []>} : vector<16x32xbf16>, vector<16x32xbf16>, vector<16x16xf32> -> vector<16x16xf32>
    "tpu.trace_stop"() : () -> ()
    %cst_44 = arith.constant dense<0xFF800000> : vector<16xf32>
    %122 = vector.multi_reduction <maximumf>, %121, %cst_44 [1] : vector<16x16xf32> to vector<16xf32>
    %123 = vector.shape_cast %122 : vector<16xf32> to vector<16x1xf32>
    %124 = vector.broadcast %123 : vector<16x1xf32> to vector<16x16xf32>
    %125 = arith.subf %121, %124 : vector<16x16xf32>
    %126 = math.exp %125 : vector<16x16xf32>
    %cst_45 = arith.constant dense<0.000000e+00> : vector<16xf32>
    %127 = vector.multi_reduction <add>, %126, %cst_45 [1] : vector<16x16xf32> to vector<16xf32>
    %128 = vector.shape_cast %127 : vector<16xf32> to vector<16x1xf32>
    %129 = tpu.reciprocal %128 {approx = true} : vector<16x1xf32> -> vector<16x1xf32>
    %130 = vector.broadcast %129 : vector<16x1xf32> to vector<16x16xf32>
    %131 = arith.mulf %126, %130 : vector<16x16xf32>
    %132 = arith.truncf %131 : vector<16x16xf32> to vector<16x16xbf16>
    %133 = vector.extract_strided_slice %118 {offsets = [0, 0], sizes = [16, 32], strides = [1, 1]} : vector<16x128xbf16> to vector<16x32xbf16>
    %cst_46 = arith.constant dense<0.000000e+00> : vector<16x32xf32>
    %134 = tpu.matmul %132, %133, %cst_46 {dimension_numbers = #tpu.dot_dimension_numbers<[1], [0], [0], [1], [0, 0, 1, 1], [], []>} : vector<16x16xbf16>, vector<16x32xbf16>, vector<16x32xf32> -> vector<16x32xf32>
    %135 = arith.truncf %134 : vector<16x32xf32> to vector<16x32xbf16>
    %136 = vector.extract_strided_slice %9 {offsets = [0, 0], sizes = [32, 128], strides = [1, 1]} : vector<128x128xbf16> to vector<32x128xbf16>
    %cst_47 = arith.constant dense<0.000000e+00> : vector<16x128xf32>
    %137 = tpu.matmul %135, %136, %cst_47 {dimension_numbers = #tpu.dot_dimension_numbers<[1], [0], [0], [1], [0, 0, 1, 1], [], []>} : vector<16x32xbf16>, vector<32x128xbf16>, vector<16x128xf32> -> vector<16x128xf32>
    %138 = vector.extract_strided_slice %116 {offsets = [0, 32], sizes = [16, 32], strides = [1, 1]} : vector<16x128xbf16> to vector<16x32xbf16>
    %139 = vector.extract_strided_slice %117 {offsets = [0, 32], sizes = [16, 32], strides = [1, 1]} : vector<16x128xbf16> to vector<16x32xbf16>
    "tpu.trace_start"() <{level = 10 : i32, message = "qd,kd->qk"}> : () -> ()
    %cst_48 = arith.constant dense<0.000000e+00> : vector<16x16xf32>
    %140 = tpu.matmul %138, %139, %cst_48 {dimension_numbers = #tpu.dot_dimension_numbers<[1], [1], [0], [0], [0, 0, 1, 0], [], []>} : vector<16x32xbf16>, vector<16x32xbf16>, vector<16x16xf32> -> vector<16x16xf32>
    "tpu.trace_stop"() : () -> ()
    %cst_49 = arith.constant dense<0xFF800000> : vector<16xf32>
    %141 = vector.multi_reduction <maximumf>, %140, %cst_49 [1] : vector<16x16xf32> to vector<16xf32>
    %142 = vector.shape_cast %141 : vector<16xf32> to vector<16x1xf32>
    %143 = vector.broadcast %142 : vector<16x1xf32> to vector<16x16xf32>
    %144 = arith.subf %140, %143 : vector<16x16xf32>
    %145 = math.exp %144 : vector<16x16xf32>
    %cst_50 = arith.constant dense<0.000000e+00> : vector<16xf32>
    %146 = vector.multi_reduction <add>, %145, %cst_50 [1] : vector<16x16xf32> to vector<16xf32>
    %147 = vector.shape_cast %146 : vector<16xf32> to vector<16x1xf32>
    %148 = tpu.reciprocal %147 {approx = true} : vector<16x1xf32> -> vector<16x1xf32>
    %149 = vector.broadcast %148 : vector<16x1xf32> to vector<16x16xf32>
    %150 = arith.mulf %145, %149 : vector<16x16xf32>
    %151 = arith.truncf %150 : vector<16x16xf32> to vector<16x16xbf16>
    %152 = vector.extract_strided_slice %118 {offsets = [0, 32], sizes = [16, 32], strides = [1, 1]} : vector<16x128xbf16> to vector<16x32xbf16>
    %cst_51 = arith.constant dense<0.000000e+00> : vector<16x32xf32>
    %153 = tpu.matmul %151, %152, %cst_51 {dimension_numbers = #tpu.dot_dimension_numbers<[1], [0], [0], [1], [0, 0, 1, 1], [], []>} : vector<16x16xbf16>, vector<16x32xbf16>, vector<16x32xf32> -> vector<16x32xf32>
    %154 = arith.truncf %153 : vector<16x32xf32> to vector<16x32xbf16>
    %155 = vector.extract_strided_slice %9 {offsets = [32, 0], sizes = [32, 128], strides = [1, 1]} : vector<128x128xbf16> to vector<32x128xbf16>
    %cst_52 = arith.constant dense<0.000000e+00> : vector<16x128xf32>
    %156 = tpu.matmul %154, %155, %cst_52 {dimension_numbers = #tpu.dot_dimension_numbers<[1], [0], [0], [1], [0, 0, 1, 1], [], []>} : vector<16x32xbf16>, vector<32x128xbf16>, vector<16x128xf32> -> vector<16x128xf32>
    %157 = arith.addf %137, %156 : vector<16x128xf32>
    %158 = vector.extract_strided_slice %116 {offsets = [0, 64], sizes = [16, 32], strides = [1, 1]} : vector<16x128xbf16> to vector<16x32xbf16>
    %159 = vector.extract_strided_slice %117 {offsets = [0, 64], sizes = [16, 32], strides = [1, 1]} : vector<16x128xbf16> to vector<16x32xbf16>
    "tpu.trace_start"() <{level = 10 : i32, message = "qd,kd->qk"}> : () -> ()
    %cst_53 = arith.constant dense<0.000000e+00> : vector<16x16xf32>
    %160 = tpu.matmul %158, %159, %cst_53 {dimension_numbers = #tpu.dot_dimension_numbers<[1], [1], [0], [0], [0, 0, 1, 0], [], []>} : vector<16x32xbf16>, vector<16x32xbf16>, vector<16x16xf32> -> vector<16x16xf32>
    "tpu.trace_stop"() : () -> ()
    %cst_54 = arith.constant dense<0xFF800000> : vector<16xf32>
    %161 = vector.multi_reduction <maximumf>, %160, %cst_54 [1] : vector<16x16xf32> to vector<16xf32>
    %162 = vector.shape_cast %161 : vector<16xf32> to vector<16x1xf32>
    %163 = vector.broadcast %162 : vector<16x1xf32> to vector<16x16xf32>
    %164 = arith.subf %160, %163 : vector<16x16xf32>
    %165 = math.exp %164 : vector<16x16xf32>
    %cst_55 = arith.constant dense<0.000000e+00> : vector<16xf32>
    %166 = vector.multi_reduction <add>, %165, %cst_55 [1] : vector<16x16xf32> to vector<16xf32>
    %167 = vector.shape_cast %166 : vector<16xf32> to vector<16x1xf32>
    %168 = tpu.reciprocal %167 {approx = true} : vector<16x1xf32> -> vector<16x1xf32>
    %169 = vector.broadcast %168 : vector<16x1xf32> to vector<16x16xf32>
    %170 = arith.mulf %165, %169 : vector<16x16xf32>
    %171 = arith.truncf %170 : vector<16x16xf32> to vector<16x16xbf16>
    %172 = vector.extract_strided_slice %118 {offsets = [0, 64], sizes = [16, 32], strides = [1, 1]} : vector<16x128xbf16> to vector<16x32xbf16>
    %cst_56 = arith.constant dense<0.000000e+00> : vector<16x32xf32>
    %173 = tpu.matmul %171, %172, %cst_56 {dimension_numbers = #tpu.dot_dimension_numbers<[1], [0], [0], [1], [0, 0, 1, 1], [], []>} : vector<16x16xbf16>, vector<16x32xbf16>, vector<16x32xf32> -> vector<16x32xf32>
    %174 = arith.truncf %173 : vector<16x32xf32> to vector<16x32xbf16>
    %175 = vector.extract_strided_slice %9 {offsets = [64, 0], sizes = [32, 128], strides = [1, 1]} : vector<128x128xbf16> to vector<32x128xbf16>
    %cst_57 = arith.constant dense<0.000000e+00> : vector<16x128xf32>
    %176 = tpu.matmul %174, %175, %cst_57 {dimension_numbers = #tpu.dot_dimension_numbers<[1], [0], [0], [1], [0, 0, 1, 1], [], []>} : vector<16x32xbf16>, vector<32x128xbf16>, vector<16x128xf32> -> vector<16x128xf32>
    %177 = arith.addf %157, %176 : vector<16x128xf32>
    %178 = vector.extract_strided_slice %116 {offsets = [0, 96], sizes = [16, 32], strides = [1, 1]} : vector<16x128xbf16> to vector<16x32xbf16>
    %179 = vector.extract_strided_slice %117 {offsets = [0, 96], sizes = [16, 32], strides = [1, 1]} : vector<16x128xbf16> to vector<16x32xbf16>
    "tpu.trace_start"() <{level = 10 : i32, message = "qd,kd->qk"}> : () -> ()
    %cst_58 = arith.constant dense<0.000000e+00> : vector<16x16xf32>
    %180 = tpu.matmul %178, %179, %cst_58 {dimension_numbers = #tpu.dot_dimension_numbers<[1], [1], [0], [0], [0, 0, 1, 0], [], []>} : vector<16x32xbf16>, vector<16x32xbf16>, vector<16x16xf32> -> vector<16x16xf32>
    "tpu.trace_stop"() : () -> ()
    %cst_59 = arith.constant dense<0xFF800000> : vector<16xf32>
    %181 = vector.multi_reduction <maximumf>, %180, %cst_59 [1] : vector<16x16xf32> to vector<16xf32>
    %182 = vector.shape_cast %181 : vector<16xf32> to vector<16x1xf32>
    %183 = vector.broadcast %182 : vector<16x1xf32> to vector<16x16xf32>
    %184 = arith.subf %180, %183 : vector<16x16xf32>
    %185 = math.exp %184 : vector<16x16xf32>
    %cst_60 = arith.constant dense<0.000000e+00> : vector<16xf32>
    %186 = vector.multi_reduction <add>, %185, %cst_60 [1] : vector<16x16xf32> to vector<16xf32>
    %187 = vector.shape_cast %186 : vector<16xf32> to vector<16x1xf32>
    %188 = tpu.reciprocal %187 {approx = true} : vector<16x1xf32> -> vector<16x1xf32>
    %189 = vector.broadcast %188 : vector<16x1xf32> to vector<16x16xf32>
    %190 = arith.mulf %185, %189 : vector<16x16xf32>
    %191 = arith.truncf %190 : vector<16x16xf32> to vector<16x16xbf16>
    %192 = vector.extract_strided_slice %118 {offsets = [0, 96], sizes = [16, 32], strides = [1, 1]} : vector<16x128xbf16> to vector<16x32xbf16>
    %cst_61 = arith.constant dense<0.000000e+00> : vector<16x32xf32>
    %193 = tpu.matmul %191, %192, %cst_61 {dimension_numbers = #tpu.dot_dimension_numbers<[1], [0], [0], [1], [0, 0, 1, 1], [], []>} : vector<16x16xbf16>, vector<16x32xbf16>, vector<16x32xf32> -> vector<16x32xf32>
    %194 = arith.truncf %193 : vector<16x32xf32> to vector<16x32xbf16>
    %195 = vector.extract_strided_slice %9 {offsets = [96, 0], sizes = [32, 128], strides = [1, 1]} : vector<128x128xbf16> to vector<32x128xbf16>
    %cst_62 = arith.constant dense<0.000000e+00> : vector<16x128xf32>
    %196 = tpu.matmul %194, %195, %cst_62 {dimension_numbers = #tpu.dot_dimension_numbers<[1], [0], [0], [1], [0, 0, 1, 1], [], []>} : vector<16x32xbf16>, vector<32x128xbf16>, vector<16x128xf32> -> vector<16x128xf32>
    %197 = arith.addf %177, %196 : vector<16x128xf32>
    %198 = tpu.concatenate %115, %197 in 0 : vector<16x128xf32>, vector<16x128xf32> -> vector<32x128xf32>
    %199 = vector.broadcast %15 : vector<1x128xf32> to vector<32x128xf32>
    %200 = arith.addf %198, %199 : vector<32x128xf32>
    %201 = arith.addf %3, %200 : vector<32x128xf32>
    %cst_63 = arith.constant dense<0.000000e+00> : vector<32xf32>
    %202 = vector.multi_reduction <add>, %201, %cst_63 [1] : vector<32x128xf32> to vector<32xf32>
    %203 = vector.shape_cast %202 : vector<32xf32> to vector<32x1xf32>
    %cst_64 = arith.constant 1.280000e+02 : f32
    %204 = vector.broadcast %cst_64 : f32 to vector<32x1xf32>
    %205 = arith.divf %203, %204 : vector<32x1xf32>
    %206 = vector.broadcast %205 : vector<32x1xf32> to vector<32x128xf32>
    %207 = arith.subf %201, %206 : vector<32x128xf32>
    %208 = arith.mulf %207, %207 : vector<32x128xf32>
    %cst_65 = arith.constant dense<0.000000e+00> : vector<32xf32>
    %209 = vector.multi_reduction <add>, %208, %cst_65 [1] : vector<32x128xf32> to vector<32xf32>
    %210 = vector.shape_cast %209 : vector<32xf32> to vector<32x1xf32>
    %cst_66 = arith.constant 1.280000e+02 : f32
    %211 = vector.broadcast %cst_66 : f32 to vector<32x1xf32>
    %212 = arith.divf %210, %211 : vector<32x1xf32>
    %213 = vector.broadcast %205 : vector<32x1xf32> to vector<32x128xf32>
    %214 = arith.subf %201, %213 : vector<32x128xf32>
    %cst_67 = arith.constant 9.99999974E-6 : f32
    %215 = vector.broadcast %cst_67 : f32 to vector<32x1xf32>
    %216 = arith.addf %212, %215 : vector<32x1xf32>
    %217 = math.rsqrt %216 : vector<32x1xf32>
    %218 = vector.broadcast %217 : vector<32x1xf32> to vector<32x128xf32>
    %219 = arith.mulf %214, %218 : vector<32x128xf32>
    %220 = vector.broadcast %18 : vector<1x128xf32> to vector<32x128xf32>
    %221 = arith.mulf %219, %220 : vector<32x128xf32>
    %222 = vector.broadcast %19 : vector<1x128xf32> to vector<32x128xf32>
    %223 = arith.addf %221, %222 : vector<32x128xf32>
    %224 = arith.truncf %223 : vector<32x128xf32> to vector<32x128xbf16>
    %cst_68 = arith.constant dense<0.000000e+00> : vector<32x256xf32>
    %225 = tpu.matmul %224, %11, %cst_68 {dimension_numbers = #tpu.dot_dimension_numbers<[1], [0], [0], [1], [0, 0, 1, 1], [], []>} : vector<32x128xbf16>, vector<128x256xbf16>, vector<32x256xf32> -> vector<32x256xf32>
    %226 = vector.broadcast %16 : vector<1x256xf32> to vector<32x256xf32>
    %227 = arith.addf %225, %226 : vector<32x256xf32>
    %cst_69 = arith.constant 0.000000e+00 : f32
    %228 = vector.broadcast %cst_69 : f32 to vector<32x256xf32>
    %229 = arith.maximumf %227, %228 : vector<32x256xf32>
    %230 = arith.truncf %229 : vector<32x256xf32> to vector<32x256xbf16>
    %cst_70 = arith.constant dense<0.000000e+00> : vector<32x128xf32>
    %231 = tpu.matmul %230, %13, %cst_70 {dimension_numbers = #tpu.dot_dimension_numbers<[1], [0], [0], [1], [0, 0, 1, 1], [], []>} : vector<32x256xbf16>, vector<256x128xbf16>, vector<32x128xf32> -> vector<32x128xf32>
    %232 = vector.broadcast %17 : vector<1x128xf32> to vector<32x128xf32>
    %233 = arith.addf %231, %232 : vector<32x128xf32>
    %234 = arith.addf %223, %233 : vector<32x128xf32>
    %cst_71 = arith.constant dense<0.000000e+00> : vector<32xf32>
    %235 = vector.multi_reduction <add>, %234, %cst_71 [1] : vector<32x128xf32> to vector<32xf32>
    %236 = vector.shape_cast %235 : vector<32xf32> to vector<32x1xf32>
    %cst_72 = arith.constant 1.280000e+02 : f32
    %237 = vector.broadcast %cst_72 : f32 to vector<32x1xf32>
    %238 = arith.divf %236, %237 : vector<32x1xf32>
    %239 = vector.broadcast %238 : vector<32x1xf32> to vector<32x128xf32>
    %240 = arith.subf %234, %239 : vector<32x128xf32>
    %241 = arith.mulf %240, %240 : vector<32x128xf32>
    %cst_73 = arith.constant dense<0.000000e+00> : vector<32xf32>
    %242 = vector.multi_reduction <add>, %241, %cst_73 [1] : vector<32x128xf32> to vector<32xf32>
    %243 = vector.shape_cast %242 : vector<32xf32> to vector<32x1xf32>
    %cst_74 = arith.constant 1.280000e+02 : f32
    %244 = vector.broadcast %cst_74 : f32 to vector<32x1xf32>
    %245 = arith.divf %243, %244 : vector<32x1xf32>
    %246 = vector.broadcast %238 : vector<32x1xf32> to vector<32x128xf32>
    %247 = arith.subf %234, %246 : vector<32x128xf32>
    %cst_75 = arith.constant 9.99999974E-6 : f32
    %248 = vector.broadcast %cst_75 : f32 to vector<32x1xf32>
    %249 = arith.addf %245, %248 : vector<32x1xf32>
    %250 = math.rsqrt %249 : vector<32x1xf32>
    %251 = vector.broadcast %250 : vector<32x1xf32> to vector<32x128xf32>
    %252 = arith.mulf %247, %251 : vector<32x128xf32>
    %253 = vector.broadcast %20 : vector<1x128xf32> to vector<32x128xf32>
    %254 = arith.mulf %252, %253 : vector<32x128xf32>
    %255 = vector.broadcast %21 : vector<1x128xf32> to vector<32x128xf32>
    %256 = arith.addf %254, %255 : vector<32x128xf32>
    %c0_76 = arith.constant 0 : index
    %c0_77 = arith.constant 0 : index
    %257 = vector.load %arg9[%c0_76, %c0_77] : memref<32x128xf32, #tpu.memory_space<vmem>>, vector<32x128xf32>
    tpu.vector_store %arg9[%c0_76, %c0_77], %256 {strides = array<i32>} : memref<32x128xf32, #tpu.memory_space<vmem>>, vector<32x128xf32>,
    %c1_i32 = arith.constant 1 : i32
    %258 = arith.cmpi eq, %arg1, %c1_i32 : i32
    %259 = arith.extui %258 : i1 to i32
    %c0_i32_78 = arith.constant 0 : i32
    %260 = arith.cmpi ne, %259, %c0_i32_78 : i32
    scf.if %260 {
      %261 = vector.extract_strided_slice %256 {offsets = [0, 0], sizes = [16, 128], strides = [1, 1]} : vector<32x128xf32> to vector<16x128xf32>
      %cst_79 = arith.constant dense<0.000000e+00> : vector<128xf32>
      %262 = vector.multi_reduction <add>, %261, %cst_79 [0] : vector<16x128xf32> to vector<128xf32>
      %263 = vector.shape_cast %262 : vector<128xf32> to vector<1x128xf32>
      %cst_80 = arith.constant 1.600000e+01 : f32
      %264 = vector.broadcast %cst_80 : f32 to vector<1x128xf32>
      %265 = arith.divf %263, %264 : vector<1x128xf32>
      %266 = vector.extract_strided_slice %256 {offsets = [16, 0], sizes = [16, 128], strides = [1, 1]} : vector<32x128xf32> to vector<16x128xf32>
      %cst_81 = arith.constant dense<0.000000e+00> : vector<128xf32>
      %267 = vector.multi_reduction <add>, %266, %cst_81 [0] : vector<16x128xf32> to vector<128xf32>
      %268 = vector.shape_cast %267 : vector<128xf32> to vector<1x128xf32>
      %cst_82 = arith.constant 1.600000e+01 : f32
      %269 = vector.broadcast %cst_82 : f32 to vector<1x128xf32>
      %270 = arith.divf %268, %269 : vector<1x128xf32>
      %271 = tpu.concatenate %265, %270 in 0 : vector<1x128xf32>, vector<1x128xf32> -> vector<2x128xf32>
      %c0_83 = arith.constant 0 : index
      %c0_84 = arith.constant 0 : index
      %c0_85 = arith.constant 0 : index
      %272 = vector.load %arg8[%c0_83, %c0_84, %c0_85] : memref<1x2x128xf32, #tpu.memory_space<vmem>>, vector<1x2x128xf32>
      %273 = vector.shape_cast %272 : vector<1x2x128xf32> to vector<2x128xf32>
      %274 = vector.shape_cast %271 : vector<2x128xf32> to vector<1x2x128xf32>
      tpu.vector_store %arg8[%c0_83, %c0_84, %c0_85], %274 {strides = array<i32>} : memref<1x2x128xf32, #tpu.memory_space<vmem>>, vector<1x2x128xf32>,
    } else {
    }
    return
  }
  func.func @transform_0(%arg0: i32, %arg1: i32) -> (i32, i32, i32, i32) {
    %c0_i32 = arith.constant 0 : i32
    %c0_i32_0 = arith.constant 0 : i32
    %c0_i32_1 = arith.constant 0 : i32
    %c0_i32_2 = arith.constant 0 : i32
    return %arg0, %c0_i32, %c0_i32_0, %c0_i32_1 : i32, i32, i32, i32
  }
  func.func @transform_1(%arg0: i32, %arg1: i32) -> (i32, i32, i32, i32) {
    %c0_i32 = arith.constant 0 : i32
    %c0_i32_0 = arith.constant 0 : i32
    %c0_i32_1 = arith.constant 0 : i32
    return %arg0, %arg1, %c0_i32, %c0_i32_0 : i32, i32, i32, i32
  }
  func.func @transform_2(%arg0: i32, %arg1: i32) -> (i32, i32, i32, i32) {
    %c0_i32 = arith.constant 0 : i32
    %c0_i32_0 = arith.constant 0 : i32
    %c0_i32_1 = arith.constant 0 : i32
    return %arg0, %arg1, %c0_i32, %c0_i32_0 : i32, i32, i32, i32
  }
  func.func @transform_3(%arg0: i32, %arg1: i32) -> (i32, i32, i32, i32) {
    %c0_i32 = arith.constant 0 : i32
    %c0_i32_0 = arith.constant 0 : i32
    %c0_i32_1 = arith.constant 0 : i32
    return %arg0, %arg1, %c0_i32, %c0_i32_0 : i32, i32, i32, i32
  }
  func.func @transform_4(%arg0: i32, %arg1: i32) -> (i32, i32, i32, i32) {
    %c0_i32 = arith.constant 0 : i32
    %c0_i32_0 = arith.constant 0 : i32
    %c0_i32_1 = arith.constant 0 : i32
    return %arg0, %arg1, %c0_i32, %c0_i32_0 : i32, i32, i32, i32
  }
  func.func @transform_5(%arg0: i32, %arg1: i32) -> (i32, i32, i32, i32) {
    %c0_i32 = arith.constant 0 : i32
    %c0_i32_0 = arith.constant 0 : i32
    %c0_i32_1 = arith.constant 0 : i32
    return %arg0, %arg1, %c0_i32, %c0_i32_0 : i32, i32, i32, i32
  }
  func.func @transform_6(%arg0: i32, %arg1: i32) -> (i32, i32, i32) {
    %c0_i32 = arith.constant 0 : i32
    %c0_i32_0 = arith.constant 0 : i32
    %c0_i32_1 = arith.constant 0 : i32
    return %arg0, %c0_i32, %c0_i32_0 : i32, i32, i32
  }
}

module attributes {stable_mosaic.version = 11 : i64} {
  func.func @_decoder_stack_kernel(%arg0: i32, %arg1: i32, %arg2: memref<1x8x128xf32, #tpu.memory_space<vmem>>, %arg3: memref<1x2x128xf32, #tpu.memory_space<vmem>>, %arg4: memref<1x128x384xbf16, #tpu.memory_space<vmem>>, %arg5: memref<1x128x128xbf16, #tpu.memory_space<vmem>>, %arg6: memref<1x128x128xbf16, #tpu.memory_space<vmem>>, %arg7: memref<1x128x256xbf16, #tpu.memory_space<vmem>>, %arg8: memref<1x128x128xbf16, #tpu.memory_space<vmem>>, %arg9: memref<1x128x256xbf16, #tpu.memory_space<vmem>>, %arg10: memref<1x256x128xbf16, #tpu.memory_space<vmem>>, %arg11: memref<1x13x384xf32, #tpu.memory_space<vmem>>, %arg12: memref<128x512xbf16, #tpu.memory_space<vmem>>, %arg13: memref<1x512xf32, #tpu.memory_space<vmem>>, %arg14: memref<1x8x512xf32, #tpu.memory_space<vmem>>, %arg15: memref<8x128xf32, #tpu.memory_space<vmem>>) attributes {dimension_semantics = [#tpu.dimension_semantics<parallel>, #tpu.dimension_semantics<arbitrary>], iteration_bounds = array<i64: 2, 2>, scalar_prefetch = 0 : i64, scratch_operands = 1 : i64, tpu.core_type = #tpu.core_type<tc>, window_params = [{transform_indices = @transform_0, window_bounds = array<i64: 1, 8, 128>}, {transform_indices = @transform_1, window_bounds = array<i64: 1, 2, 128>}, {transform_indices = @transform_2, window_bounds = array<i64: 1, 128, 384>}, {transform_indices = @transform_3, window_bounds = array<i64: 1, 128, 128>}, {transform_indices = @transform_4, window_bounds = array<i64: 1, 128, 128>}, {transform_indices = @transform_5, window_bounds = array<i64: 1, 128, 256>}, {transform_indices = @transform_6, window_bounds = array<i64: 1, 128, 128>}, {transform_indices = @transform_7, window_bounds = array<i64: 1, 128, 256>}, {transform_indices = @transform_8, window_bounds = array<i64: 1, 256, 128>}, {transform_indices = @transform_9, window_bounds = array<i64: 1, 13, 384>}, {pipeline_mode = #tpu.pipeline_mode<synchronous>, transform_indices = @transform_10, window_bounds = array<i64: 128, 512>}, {pipeline_mode = #tpu.pipeline_mode<synchronous>, transform_indices = @transform_11, window_bounds = array<i64: 1, 512>}, {transform_indices = @transform_12, window_bounds = array<i64: 1, 8, 512>}]} {
    %c0_i32 = arith.constant 0 : i32
    %0 = arith.cmpi eq, %arg1, %c0_i32 : i32
    %1 = arith.extui %0 : i1 to i32
    %c0_i32_0 = arith.constant 0 : i32
    %2 = arith.cmpi ne, %1, %c0_i32_0 : i32
    scf.if %2 {
      %c0_95 = arith.constant 0 : index
      %c0_96 = arith.constant 0 : index
      %c0_97 = arith.constant 0 : index
      %310 = vector.load %arg2[%c0_95, %c0_96, %c0_97] : memref<1x8x128xf32, #tpu.memory_space<vmem>>, vector<1x8x128xf32>
      %311 = vector.shape_cast %310 : vector<1x8x128xf32> to vector<8x128xf32>
      %c0_98 = arith.constant 0 : index
      %c0_99 = arith.constant 0 : index
      %312 = vector.load %arg15[%c0_98, %c0_99] : memref<8x128xf32, #tpu.memory_space<vmem>>, vector<8x128xf32>
      tpu.vector_store %arg15[%c0_98, %c0_99], %311 {strides = array<i32>} : memref<8x128xf32, #tpu.memory_space<vmem>>, vector<8x128xf32>,
    } else {
    }
    %c0 = arith.constant 0 : index
    %c0_1 = arith.constant 0 : index
    %3 = vector.load %arg15[%c0, %c0_1] : memref<8x128xf32, #tpu.memory_space<vmem>>, vector<8x128xf32>
    %c0_2 = arith.constant 0 : index
    %c0_3 = arith.constant 0 : index
    %c0_4 = arith.constant 0 : index
    %4 = vector.load %arg3[%c0_2, %c0_3, %c0_4] : memref<1x2x128xf32, #tpu.memory_space<vmem>>, vector<1x2x128xf32>
    %5 = vector.shape_cast %4 : vector<1x2x128xf32> to vector<2x128xf32>
    %c0_5 = arith.constant 0 : index
    %c0_6 = arith.constant 0 : index
    %c0_7 = arith.constant 0 : index
    %6 = vector.load %arg11[%c0_5, %c0_6, %c0_7] : memref<1x13x384xf32, #tpu.memory_space<vmem>>, vector<1x13x384xf32>
    %7 = vector.shape_cast %6 : vector<1x13x384xf32> to vector<13x384xf32>
    %8 = vector.extract_strided_slice %7 {offsets = [0, 0], sizes = [1, 384], strides = [1, 1]} : vector<13x384xf32> to vector<1x384xf32>
    %9 = vector.extract_strided_slice %7 {offsets = [1, 0], sizes = [1, 128], strides = [1, 1]} : vector<13x384xf32> to vector<1x128xf32>
    %10 = vector.extract_strided_slice %7 {offsets = [2, 0], sizes = [1, 128], strides = [1, 1]} : vector<13x384xf32> to vector<1x128xf32>
    %11 = vector.extract_strided_slice %7 {offsets = [3, 0], sizes = [1, 256], strides = [1, 1]} : vector<13x384xf32> to vector<1x256xf32>
    %12 = vector.extract_strided_slice %7 {offsets = [4, 0], sizes = [1, 128], strides = [1, 1]} : vector<13x384xf32> to vector<1x128xf32>
    %13 = vector.extract_strided_slice %7 {offsets = [5, 0], sizes = [1, 256], strides = [1, 1]} : vector<13x384xf32> to vector<1x256xf32>
    %14 = vector.extract_strided_slice %7 {offsets = [6, 0], sizes = [1, 128], strides = [1, 1]} : vector<13x384xf32> to vector<1x128xf32>
    %15 = vector.extract_strided_slice %7 {offsets = [7, 0], sizes = [1, 128], strides = [1, 1]} : vector<13x384xf32> to vector<1x128xf32>
    %16 = vector.extract_strided_slice %7 {offsets = [8, 0], sizes = [1, 128], strides = [1, 1]} : vector<13x384xf32> to vector<1x128xf32>
    %17 = vector.extract_strided_slice %7 {offsets = [9, 0], sizes = [1, 128], strides = [1, 1]} : vector<13x384xf32> to vector<1x128xf32>
    %18 = vector.extract_strided_slice %7 {offsets = [10, 0], sizes = [1, 128], strides = [1, 1]} : vector<13x384xf32> to vector<1x128xf32>
    %19 = vector.extract_strided_slice %7 {offsets = [11, 0], sizes = [1, 128], strides = [1, 1]} : vector<13x384xf32> to vector<1x128xf32>
    %20 = vector.extract_strided_slice %7 {offsets = [12, 0], sizes = [1, 128], strides = [1, 1]} : vector<13x384xf32> to vector<1x128xf32>
    %21 = arith.truncf %3 : vector<8x128xf32> to vector<8x128xbf16>
    %c0_8 = arith.constant 0 : index
    %c0_9 = arith.constant 0 : index
    %c0_10 = arith.constant 0 : index
    %22 = vector.load %arg4[%c0_8, %c0_9, %c0_10] : memref<1x128x384xbf16, #tpu.memory_space<vmem>>, vector<1x128x384xbf16>
    %23 = vector.shape_cast %22 : vector<1x128x384xbf16> to vector<128x384xbf16>
    %cst = arith.constant dense<0.000000e+00> : vector<8x384xf32>
    %24 = tpu.matmul %21, %23, %cst {dimension_numbers = #tpu.dot_dimension_numbers<[1], [0], [0], [1], [0, 0, 1, 1], [], []>} : vector<8x128xbf16>, vector<128x384xbf16>, vector<8x384xf32> -> vector<8x384xf32>
    %25 = vector.broadcast %8 : vector<1x384xf32> to vector<8x384xf32>
    %26 = arith.addf %24, %25 : vector<8x384xf32>
    %27 = vector.extract_strided_slice %26 {offsets = [0, 0], sizes = [8, 128], strides = [1, 1]} : vector<8x384xf32> to vector<8x128xf32>
    %cst_11 = arith.constant 0.176776692 : f32
    %28 = vector.broadcast %cst_11 : f32 to vector<8x128xf32>
    %29 = arith.mulf %27, %28 : vector<8x128xf32>
    %30 = arith.truncf %29 : vector<8x128xf32> to vector<8x128xbf16>
    %31 = vector.extract_strided_slice %26 {offsets = [0, 128], sizes = [8, 128], strides = [1, 1]} : vector<8x384xf32> to vector<8x128xf32>
    %32 = arith.truncf %31 : vector<8x128xf32> to vector<8x128xbf16>
    %33 = vector.extract_strided_slice %26 {offsets = [0, 256], sizes = [8, 128], strides = [1, 1]} : vector<8x384xf32> to vector<8x128xf32>
    %34 = arith.truncf %33 : vector<8x128xf32> to vector<8x128xbf16>
    %c0_12 = arith.constant 0 : index
    %c0_13 = arith.constant 0 : index
    %c0_14 = arith.constant 0 : index
    %35 = vector.load %arg5[%c0_12, %c0_13, %c0_14] : memref<1x128x128xbf16, #tpu.memory_space<vmem>>, vector<1x128x128xbf16>
    %36 = vector.shape_cast %35 : vector<1x128x128xbf16> to vector<128x128xbf16>
    %37 = vector.extract_strided_slice %30 {offsets = [0, 0], sizes = [8, 32], strides = [1, 1]} : vector<8x128xbf16> to vector<8x32xbf16>
    %38 = vector.extract_strided_slice %32 {offsets = [0, 0], sizes = [8, 32], strides = [1, 1]} : vector<8x128xbf16> to vector<8x32xbf16>
    "tpu.trace_start"() <{level = 10 : i32, message = "qd,kd->qk"}> : () -> ()
    %cst_15 = arith.constant dense<0.000000e+00> : vector<8x8xf32>
    %39 = tpu.matmul %37, %38, %cst_15 {dimension_numbers = #tpu.dot_dimension_numbers<[1], [1], [0], [0], [0, 0, 1, 0], [], []>} : vector<8x32xbf16>, vector<8x32xbf16>, vector<8x8xf32> -> vector<8x8xf32>
    "tpu.trace_stop"() : () -> ()
    %cst_16 = arith.constant dense<0xFF800000> : vector<8xf32>
    %40 = vector.multi_reduction <maximumf>, %39, %cst_16 [1] : vector<8x8xf32> to vector<8xf32>
    %41 = vector.shape_cast %40 : vector<8xf32> to vector<8x1xf32>
    %42 = vector.broadcast %41 : vector<8x1xf32> to vector<8x8xf32>
    %43 = arith.subf %39, %42 : vector<8x8xf32>
    %44 = math.exp %43 : vector<8x8xf32>
    %cst_17 = arith.constant dense<0.000000e+00> : vector<8xf32>
    %45 = vector.multi_reduction <add>, %44, %cst_17 [1] : vector<8x8xf32> to vector<8xf32>
    %46 = vector.shape_cast %45 : vector<8xf32> to vector<8x1xf32>
    %47 = tpu.reciprocal %46 {approx = true} : vector<8x1xf32> -> vector<8x1xf32>
    %48 = vector.broadcast %47 : vector<8x1xf32> to vector<8x8xf32>
    %49 = arith.mulf %44, %48 : vector<8x8xf32>
    %50 = arith.truncf %49 : vector<8x8xf32> to vector<8x8xbf16>
    %51 = vector.extract_strided_slice %34 {offsets = [0, 0], sizes = [8, 32], strides = [1, 1]} : vector<8x128xbf16> to vector<8x32xbf16>
    %cst_18 = arith.constant dense<0.000000e+00> : vector<8x32xf32>
    %52 = tpu.matmul %50, %51, %cst_18 {dimension_numbers = #tpu.dot_dimension_numbers<[1], [0], [0], [1], [0, 0, 1, 1], [], []>} : vector<8x8xbf16>, vector<8x32xbf16>, vector<8x32xf32> -> vector<8x32xf32>
    %53 = arith.truncf %52 : vector<8x32xf32> to vector<8x32xbf16>
    %54 = vector.extract_strided_slice %36 {offsets = [0, 0], sizes = [32, 128], strides = [1, 1]} : vector<128x128xbf16> to vector<32x128xbf16>
    %cst_19 = arith.constant dense<0.000000e+00> : vector<8x128xf32>
    %55 = tpu.matmul %53, %54, %cst_19 {dimension_numbers = #tpu.dot_dimension_numbers<[1], [0], [0], [1], [0, 0, 1, 1], [], []>} : vector<8x32xbf16>, vector<32x128xbf16>, vector<8x128xf32> -> vector<8x128xf32>
    %56 = vector.extract_strided_slice %30 {offsets = [0, 32], sizes = [8, 32], strides = [1, 1]} : vector<8x128xbf16> to vector<8x32xbf16>
    %57 = vector.extract_strided_slice %32 {offsets = [0, 32], sizes = [8, 32], strides = [1, 1]} : vector<8x128xbf16> to vector<8x32xbf16>
    "tpu.trace_start"() <{level = 10 : i32, message = "qd,kd->qk"}> : () -> ()
    %cst_20 = arith.constant dense<0.000000e+00> : vector<8x8xf32>
    %58 = tpu.matmul %56, %57, %cst_20 {dimension_numbers = #tpu.dot_dimension_numbers<[1], [1], [0], [0], [0, 0, 1, 0], [], []>} : vector<8x32xbf16>, vector<8x32xbf16>, vector<8x8xf32> -> vector<8x8xf32>
    "tpu.trace_stop"() : () -> ()
    %cst_21 = arith.constant dense<0xFF800000> : vector<8xf32>
    %59 = vector.multi_reduction <maximumf>, %58, %cst_21 [1] : vector<8x8xf32> to vector<8xf32>
    %60 = vector.shape_cast %59 : vector<8xf32> to vector<8x1xf32>
    %61 = vector.broadcast %60 : vector<8x1xf32> to vector<8x8xf32>
    %62 = arith.subf %58, %61 : vector<8x8xf32>
    %63 = math.exp %62 : vector<8x8xf32>
    %cst_22 = arith.constant dense<0.000000e+00> : vector<8xf32>
    %64 = vector.multi_reduction <add>, %63, %cst_22 [1] : vector<8x8xf32> to vector<8xf32>
    %65 = vector.shape_cast %64 : vector<8xf32> to vector<8x1xf32>
    %66 = tpu.reciprocal %65 {approx = true} : vector<8x1xf32> -> vector<8x1xf32>
    %67 = vector.broadcast %66 : vector<8x1xf32> to vector<8x8xf32>
    %68 = arith.mulf %63, %67 : vector<8x8xf32>
    %69 = arith.truncf %68 : vector<8x8xf32> to vector<8x8xbf16>
    %70 = vector.extract_strided_slice %34 {offsets = [0, 32], sizes = [8, 32], strides = [1, 1]} : vector<8x128xbf16> to vector<8x32xbf16>
    %cst_23 = arith.constant dense<0.000000e+00> : vector<8x32xf32>
    %71 = tpu.matmul %69, %70, %cst_23 {dimension_numbers = #tpu.dot_dimension_numbers<[1], [0], [0], [1], [0, 0, 1, 1], [], []>} : vector<8x8xbf16>, vector<8x32xbf16>, vector<8x32xf32> -> vector<8x32xf32>
    %72 = arith.truncf %71 : vector<8x32xf32> to vector<8x32xbf16>
    %73 = vector.extract_strided_slice %36 {offsets = [32, 0], sizes = [32, 128], strides = [1, 1]} : vector<128x128xbf16> to vector<32x128xbf16>
    %cst_24 = arith.constant dense<0.000000e+00> : vector<8x128xf32>
    %74 = tpu.matmul %72, %73, %cst_24 {dimension_numbers = #tpu.dot_dimension_numbers<[1], [0], [0], [1], [0, 0, 1, 1], [], []>} : vector<8x32xbf16>, vector<32x128xbf16>, vector<8x128xf32> -> vector<8x128xf32>
    %75 = arith.addf %55, %74 : vector<8x128xf32>
    %76 = vector.extract_strided_slice %30 {offsets = [0, 64], sizes = [8, 32], strides = [1, 1]} : vector<8x128xbf16> to vector<8x32xbf16>
    %77 = vector.extract_strided_slice %32 {offsets = [0, 64], sizes = [8, 32], strides = [1, 1]} : vector<8x128xbf16> to vector<8x32xbf16>
    "tpu.trace_start"() <{level = 10 : i32, message = "qd,kd->qk"}> : () -> ()
    %cst_25 = arith.constant dense<0.000000e+00> : vector<8x8xf32>
    %78 = tpu.matmul %76, %77, %cst_25 {dimension_numbers = #tpu.dot_dimension_numbers<[1], [1], [0], [0], [0, 0, 1, 0], [], []>} : vector<8x32xbf16>, vector<8x32xbf16>, vector<8x8xf32> -> vector<8x8xf32>
    "tpu.trace_stop"() : () -> ()
    %cst_26 = arith.constant dense<0xFF800000> : vector<8xf32>
    %79 = vector.multi_reduction <maximumf>, %78, %cst_26 [1] : vector<8x8xf32> to vector<8xf32>
    %80 = vector.shape_cast %79 : vector<8xf32> to vector<8x1xf32>
    %81 = vector.broadcast %80 : vector<8x1xf32> to vector<8x8xf32>
    %82 = arith.subf %78, %81 : vector<8x8xf32>
    %83 = math.exp %82 : vector<8x8xf32>
    %cst_27 = arith.constant dense<0.000000e+00> : vector<8xf32>
    %84 = vector.multi_reduction <add>, %83, %cst_27 [1] : vector<8x8xf32> to vector<8xf32>
    %85 = vector.shape_cast %84 : vector<8xf32> to vector<8x1xf32>
    %86 = tpu.reciprocal %85 {approx = true} : vector<8x1xf32> -> vector<8x1xf32>
    %87 = vector.broadcast %86 : vector<8x1xf32> to vector<8x8xf32>
    %88 = arith.mulf %83, %87 : vector<8x8xf32>
    %89 = arith.truncf %88 : vector<8x8xf32> to vector<8x8xbf16>
    %90 = vector.extract_strided_slice %34 {offsets = [0, 64], sizes = [8, 32], strides = [1, 1]} : vector<8x128xbf16> to vector<8x32xbf16>
    %cst_28 = arith.constant dense<0.000000e+00> : vector<8x32xf32>
    %91 = tpu.matmul %89, %90, %cst_28 {dimension_numbers = #tpu.dot_dimension_numbers<[1], [0], [0], [1], [0, 0, 1, 1], [], []>} : vector<8x8xbf16>, vector<8x32xbf16>, vector<8x32xf32> -> vector<8x32xf32>
    %92 = arith.truncf %91 : vector<8x32xf32> to vector<8x32xbf16>
    %93 = vector.extract_strided_slice %36 {offsets = [64, 0], sizes = [32, 128], strides = [1, 1]} : vector<128x128xbf16> to vector<32x128xbf16>
    %cst_29 = arith.constant dense<0.000000e+00> : vector<8x128xf32>
    %94 = tpu.matmul %92, %93, %cst_29 {dimension_numbers = #tpu.dot_dimension_numbers<[1], [0], [0], [1], [0, 0, 1, 1], [], []>} : vector<8x32xbf16>, vector<32x128xbf16>, vector<8x128xf32> -> vector<8x128xf32>
    %95 = arith.addf %75, %94 : vector<8x128xf32>
    %96 = vector.extract_strided_slice %30 {offsets = [0, 96], sizes = [8, 32], strides = [1, 1]} : vector<8x128xbf16> to vector<8x32xbf16>
    %97 = vector.extract_strided_slice %32 {offsets = [0, 96], sizes = [8, 32], strides = [1, 1]} : vector<8x128xbf16> to vector<8x32xbf16>
    "tpu.trace_start"() <{level = 10 : i32, message = "qd,kd->qk"}> : () -> ()
    %cst_30 = arith.constant dense<0.000000e+00> : vector<8x8xf32>
    %98 = tpu.matmul %96, %97, %cst_30 {dimension_numbers = #tpu.dot_dimension_numbers<[1], [1], [0], [0], [0, 0, 1, 0], [], []>} : vector<8x32xbf16>, vector<8x32xbf16>, vector<8x8xf32> -> vector<8x8xf32>
    "tpu.trace_stop"() : () -> ()
    %cst_31 = arith.constant dense<0xFF800000> : vector<8xf32>
    %99 = vector.multi_reduction <maximumf>, %98, %cst_31 [1] : vector<8x8xf32> to vector<8xf32>
    %100 = vector.shape_cast %99 : vector<8xf32> to vector<8x1xf32>
    %101 = vector.broadcast %100 : vector<8x1xf32> to vector<8x8xf32>
    %102 = arith.subf %98, %101 : vector<8x8xf32>
    %103 = math.exp %102 : vector<8x8xf32>
    %cst_32 = arith.constant dense<0.000000e+00> : vector<8xf32>
    %104 = vector.multi_reduction <add>, %103, %cst_32 [1] : vector<8x8xf32> to vector<8xf32>
    %105 = vector.shape_cast %104 : vector<8xf32> to vector<8x1xf32>
    %106 = tpu.reciprocal %105 {approx = true} : vector<8x1xf32> -> vector<8x1xf32>
    %107 = vector.broadcast %106 : vector<8x1xf32> to vector<8x8xf32>
    %108 = arith.mulf %103, %107 : vector<8x8xf32>
    %109 = arith.truncf %108 : vector<8x8xf32> to vector<8x8xbf16>
    %110 = vector.extract_strided_slice %34 {offsets = [0, 96], sizes = [8, 32], strides = [1, 1]} : vector<8x128xbf16> to vector<8x32xbf16>
    %cst_33 = arith.constant dense<0.000000e+00> : vector<8x32xf32>
    %111 = tpu.matmul %109, %110, %cst_33 {dimension_numbers = #tpu.dot_dimension_numbers<[1], [0], [0], [1], [0, 0, 1, 1], [], []>} : vector<8x8xbf16>, vector<8x32xbf16>, vector<8x32xf32> -> vector<8x32xf32>
    %112 = arith.truncf %111 : vector<8x32xf32> to vector<8x32xbf16>
    %113 = vector.extract_strided_slice %36 {offsets = [96, 0], sizes = [32, 128], strides = [1, 1]} : vector<128x128xbf16> to vector<32x128xbf16>
    %cst_34 = arith.constant dense<0.000000e+00> : vector<8x128xf32>
    %114 = tpu.matmul %112, %113, %cst_34 {dimension_numbers = #tpu.dot_dimension_numbers<[1], [0], [0], [1], [0, 0, 1, 1], [], []>} : vector<8x32xbf16>, vector<32x128xbf16>, vector<8x128xf32> -> vector<8x128xf32>
    %115 = arith.addf %95, %114 : vector<8x128xf32>
    %116 = vector.broadcast %9 : vector<1x128xf32> to vector<8x128xf32>
    %117 = arith.addf %115, %116 : vector<8x128xf32>
    %118 = arith.addf %3, %117 : vector<8x128xf32>
    %cst_35 = arith.constant dense<0.000000e+00> : vector<8xf32>
    %119 = vector.multi_reduction <add>, %118, %cst_35 [1] : vector<8x128xf32> to vector<8xf32>
    %120 = vector.shape_cast %119 : vector<8xf32> to vector<8x1xf32>
    %cst_36 = arith.constant 1.280000e+02 : f32
    %121 = vector.broadcast %cst_36 : f32 to vector<8x1xf32>
    %122 = arith.divf %120, %121 : vector<8x1xf32>
    %123 = vector.broadcast %122 : vector<8x1xf32> to vector<8x128xf32>
    %124 = arith.subf %118, %123 : vector<8x128xf32>
    %125 = arith.mulf %124, %124 : vector<8x128xf32>
    %cst_37 = arith.constant dense<0.000000e+00> : vector<8xf32>
    %126 = vector.multi_reduction <add>, %125, %cst_37 [1] : vector<8x128xf32> to vector<8xf32>
    %127 = vector.shape_cast %126 : vector<8xf32> to vector<8x1xf32>
    %cst_38 = arith.constant 1.280000e+02 : f32
    %128 = vector.broadcast %cst_38 : f32 to vector<8x1xf32>
    %129 = arith.divf %127, %128 : vector<8x1xf32>
    %130 = vector.broadcast %122 : vector<8x1xf32> to vector<8x128xf32>
    %131 = arith.subf %118, %130 : vector<8x128xf32>
    %cst_39 = arith.constant 9.99999974E-6 : f32
    %132 = vector.broadcast %cst_39 : f32 to vector<8x1xf32>
    %133 = arith.addf %129, %132 : vector<8x1xf32>
    %134 = math.rsqrt %133 : vector<8x1xf32>
    %135 = vector.broadcast %134 : vector<8x1xf32> to vector<8x128xf32>
    %136 = arith.mulf %131, %135 : vector<8x128xf32>
    %137 = vector.broadcast %15 : vector<1x128xf32> to vector<8x128xf32>
    %138 = arith.mulf %136, %137 : vector<8x128xf32>
    %139 = vector.broadcast %16 : vector<1x128xf32> to vector<8x128xf32>
    %140 = arith.addf %138, %139 : vector<8x128xf32>
    %141 = arith.truncf %140 : vector<8x128xf32> to vector<8x128xbf16>
    %c0_40 = arith.constant 0 : index
    %c0_41 = arith.constant 0 : index
    %c0_42 = arith.constant 0 : index
    %142 = vector.load %arg6[%c0_40, %c0_41, %c0_42] : memref<1x128x128xbf16, #tpu.memory_space<vmem>>, vector<1x128x128xbf16>
    %143 = vector.shape_cast %142 : vector<1x128x128xbf16> to vector<128x128xbf16>
    %cst_43 = arith.constant dense<0.000000e+00> : vector<8x128xf32>
    %144 = tpu.matmul %141, %143, %cst_43 {dimension_numbers = #tpu.dot_dimension_numbers<[1], [0], [0], [1], [0, 0, 1, 1], [], []>} : vector<8x128xbf16>, vector<128x128xbf16>, vector<8x128xf32> -> vector<8x128xf32>
    %145 = vector.broadcast %10 : vector<1x128xf32> to vector<8x128xf32>
    %146 = arith.addf %144, %145 : vector<8x128xf32>
    %cst_44 = arith.constant 0.176776692 : f32
    %147 = vector.broadcast %cst_44 : f32 to vector<8x128xf32>
    %148 = arith.mulf %146, %147 : vector<8x128xf32>
    %149 = arith.truncf %148 : vector<8x128xf32> to vector<8x128xbf16>
    %150 = arith.truncf %5 : vector<2x128xf32> to vector<2x128xbf16>
    %c0_45 = arith.constant 0 : index
    %c0_46 = arith.constant 0 : index
    %c0_47 = arith.constant 0 : index
    %151 = vector.load %arg7[%c0_45, %c0_46, %c0_47] : memref<1x128x256xbf16, #tpu.memory_space<vmem>>, vector<1x128x256xbf16>
    %152 = vector.shape_cast %151 : vector<1x128x256xbf16> to vector<128x256xbf16>
    %cst_48 = arith.constant dense<0.000000e+00> : vector<2x256xf32>
    %153 = tpu.matmul %150, %152, %cst_48 {dimension_numbers = #tpu.dot_dimension_numbers<[1], [0], [0], [1], [0, 0, 1, 1], [], []>} : vector<2x128xbf16>, vector<128x256xbf16>, vector<2x256xf32> -> vector<2x256xf32>
    %154 = vector.broadcast %11 : vector<1x256xf32> to vector<2x256xf32>
    %155 = arith.addf %153, %154 : vector<2x256xf32>
    %156 = vector.extract_strided_slice %155 {offsets = [0, 0], sizes = [2, 128], strides = [1, 1]} : vector<2x256xf32> to vector<2x128xf32>
    %157 = arith.truncf %156 : vector<2x128xf32> to vector<2x128xbf16>
    %158 = vector.extract_strided_slice %155 {offsets = [0, 128], sizes = [2, 128], strides = [1, 1]} : vector<2x256xf32> to vector<2x128xf32>
    %159 = arith.truncf %158 : vector<2x128xf32> to vector<2x128xbf16>
    %c0_49 = arith.constant 0 : index
    %c0_50 = arith.constant 0 : index
    %c0_51 = arith.constant 0 : index
    %160 = vector.load %arg8[%c0_49, %c0_50, %c0_51] : memref<1x128x128xbf16, #tpu.memory_space<vmem>>, vector<1x128x128xbf16>
    %161 = vector.shape_cast %160 : vector<1x128x128xbf16> to vector<128x128xbf16>
    %162 = vector.extract_strided_slice %149 {offsets = [0, 0], sizes = [8, 32], strides = [1, 1]} : vector<8x128xbf16> to vector<8x32xbf16>
    %163 = vector.extract_strided_slice %157 {offsets = [0, 0], sizes = [2, 32], strides = [1, 1]} : vector<2x128xbf16> to vector<2x32xbf16>
    "tpu.trace_start"() <{level = 10 : i32, message = "qd,kd->qk"}> : () -> ()
    %cst_52 = arith.constant dense<0.000000e+00> : vector<8x2xf32>
    %164 = tpu.matmul %162, %163, %cst_52 {dimension_numbers = #tpu.dot_dimension_numbers<[1], [1], [0], [0], [0, 0, 1, 0], [], []>} : vector<8x32xbf16>, vector<2x32xbf16>, vector<8x2xf32> -> vector<8x2xf32>
    "tpu.trace_stop"() : () -> ()
    %cst_53 = arith.constant dense<0xFF800000> : vector<8xf32>
    %165 = vector.multi_reduction <maximumf>, %164, %cst_53 [1] : vector<8x2xf32> to vector<8xf32>
    %166 = vector.shape_cast %165 : vector<8xf32> to vector<8x1xf32>
    %167 = vector.broadcast %166 : vector<8x1xf32> to vector<8x2xf32>
    %168 = arith.subf %164, %167 : vector<8x2xf32>
    %169 = math.exp %168 : vector<8x2xf32>
    %cst_54 = arith.constant dense<0.000000e+00> : vector<8xf32>
    %170 = vector.multi_reduction <add>, %169, %cst_54 [1] : vector<8x2xf32> to vector<8xf32>
    %171 = vector.shape_cast %170 : vector<8xf32> to vector<8x1xf32>
    %172 = tpu.reciprocal %171 {approx = true} : vector<8x1xf32> -> vector<8x1xf32>
    %173 = vector.broadcast %172 : vector<8x1xf32> to vector<8x2xf32>
    %174 = arith.mulf %169, %173 : vector<8x2xf32>
    %175 = arith.truncf %174 : vector<8x2xf32> to vector<8x2xbf16>
    %176 = vector.extract_strided_slice %159 {offsets = [0, 0], sizes = [2, 32], strides = [1, 1]} : vector<2x128xbf16> to vector<2x32xbf16>
    %cst_55 = arith.constant dense<0.000000e+00> : vector<8x32xf32>
    %177 = tpu.matmul %175, %176, %cst_55 {dimension_numbers = #tpu.dot_dimension_numbers<[1], [0], [0], [1], [0, 0, 1, 1], [], []>} : vector<8x2xbf16>, vector<2x32xbf16>, vector<8x32xf32> -> vector<8x32xf32>
    %178 = arith.truncf %177 : vector<8x32xf32> to vector<8x32xbf16>
    %179 = vector.extract_strided_slice %161 {offsets = [0, 0], sizes = [32, 128], strides = [1, 1]} : vector<128x128xbf16> to vector<32x128xbf16>
    %cst_56 = arith.constant dense<0.000000e+00> : vector<8x128xf32>
    %180 = tpu.matmul %178, %179, %cst_56 {dimension_numbers = #tpu.dot_dimension_numbers<[1], [0], [0], [1], [0, 0, 1, 1], [], []>} : vector<8x32xbf16>, vector<32x128xbf16>, vector<8x128xf32> -> vector<8x128xf32>
    %181 = vector.extract_strided_slice %149 {offsets = [0, 32], sizes = [8, 32], strides = [1, 1]} : vector<8x128xbf16> to vector<8x32xbf16>
    %182 = vector.extract_strided_slice %157 {offsets = [0, 32], sizes = [2, 32], strides = [1, 1]} : vector<2x128xbf16> to vector<2x32xbf16>
    "tpu.trace_start"() <{level = 10 : i32, message = "qd,kd->qk"}> : () -> ()
    %cst_57 = arith.constant dense<0.000000e+00> : vector<8x2xf32>
    %183 = tpu.matmul %181, %182, %cst_57 {dimension_numbers = #tpu.dot_dimension_numbers<[1], [1], [0], [0], [0, 0, 1, 0], [], []>} : vector<8x32xbf16>, vector<2x32xbf16>, vector<8x2xf32> -> vector<8x2xf32>
    "tpu.trace_stop"() : () -> ()
    %cst_58 = arith.constant dense<0xFF800000> : vector<8xf32>
    %184 = vector.multi_reduction <maximumf>, %183, %cst_58 [1] : vector<8x2xf32> to vector<8xf32>
    %185 = vector.shape_cast %184 : vector<8xf32> to vector<8x1xf32>
    %186 = vector.broadcast %185 : vector<8x1xf32> to vector<8x2xf32>
    %187 = arith.subf %183, %186 : vector<8x2xf32>
    %188 = math.exp %187 : vector<8x2xf32>
    %cst_59 = arith.constant dense<0.000000e+00> : vector<8xf32>
    %189 = vector.multi_reduction <add>, %188, %cst_59 [1] : vector<8x2xf32> to vector<8xf32>
    %190 = vector.shape_cast %189 : vector<8xf32> to vector<8x1xf32>
    %191 = tpu.reciprocal %190 {approx = true} : vector<8x1xf32> -> vector<8x1xf32>
    %192 = vector.broadcast %191 : vector<8x1xf32> to vector<8x2xf32>
    %193 = arith.mulf %188, %192 : vector<8x2xf32>
    %194 = arith.truncf %193 : vector<8x2xf32> to vector<8x2xbf16>
    %195 = vector.extract_strided_slice %159 {offsets = [0, 32], sizes = [2, 32], strides = [1, 1]} : vector<2x128xbf16> to vector<2x32xbf16>
    %cst_60 = arith.constant dense<0.000000e+00> : vector<8x32xf32>
    %196 = tpu.matmul %194, %195, %cst_60 {dimension_numbers = #tpu.dot_dimension_numbers<[1], [0], [0], [1], [0, 0, 1, 1], [], []>} : vector<8x2xbf16>, vector<2x32xbf16>, vector<8x32xf32> -> vector<8x32xf32>
    %197 = arith.truncf %196 : vector<8x32xf32> to vector<8x32xbf16>
    %198 = vector.extract_strided_slice %161 {offsets = [32, 0], sizes = [32, 128], strides = [1, 1]} : vector<128x128xbf16> to vector<32x128xbf16>
    %cst_61 = arith.constant dense<0.000000e+00> : vector<8x128xf32>
    %199 = tpu.matmul %197, %198, %cst_61 {dimension_numbers = #tpu.dot_dimension_numbers<[1], [0], [0], [1], [0, 0, 1, 1], [], []>} : vector<8x32xbf16>, vector<32x128xbf16>, vector<8x128xf32> -> vector<8x128xf32>
    %200 = arith.addf %180, %199 : vector<8x128xf32>
    %201 = vector.extract_strided_slice %149 {offsets = [0, 64], sizes = [8, 32], strides = [1, 1]} : vector<8x128xbf16> to vector<8x32xbf16>
    %202 = vector.extract_strided_slice %157 {offsets = [0, 64], sizes = [2, 32], strides = [1, 1]} : vector<2x128xbf16> to vector<2x32xbf16>
    "tpu.trace_start"() <{level = 10 : i32, message = "qd,kd->qk"}> : () -> ()
    %cst_62 = arith.constant dense<0.000000e+00> : vector<8x2xf32>
    %203 = tpu.matmul %201, %202, %cst_62 {dimension_numbers = #tpu.dot_dimension_numbers<[1], [1], [0], [0], [0, 0, 1, 0], [], []>} : vector<8x32xbf16>, vector<2x32xbf16>, vector<8x2xf32> -> vector<8x2xf32>
    "tpu.trace_stop"() : () -> ()
    %cst_63 = arith.constant dense<0xFF800000> : vector<8xf32>
    %204 = vector.multi_reduction <maximumf>, %203, %cst_63 [1] : vector<8x2xf32> to vector<8xf32>
    %205 = vector.shape_cast %204 : vector<8xf32> to vector<8x1xf32>
    %206 = vector.broadcast %205 : vector<8x1xf32> to vector<8x2xf32>
    %207 = arith.subf %203, %206 : vector<8x2xf32>
    %208 = math.exp %207 : vector<8x2xf32>
    %cst_64 = arith.constant dense<0.000000e+00> : vector<8xf32>
    %209 = vector.multi_reduction <add>, %208, %cst_64 [1] : vector<8x2xf32> to vector<8xf32>
    %210 = vector.shape_cast %209 : vector<8xf32> to vector<8x1xf32>
    %211 = tpu.reciprocal %210 {approx = true} : vector<8x1xf32> -> vector<8x1xf32>
    %212 = vector.broadcast %211 : vector<8x1xf32> to vector<8x2xf32>
    %213 = arith.mulf %208, %212 : vector<8x2xf32>
    %214 = arith.truncf %213 : vector<8x2xf32> to vector<8x2xbf16>
    %215 = vector.extract_strided_slice %159 {offsets = [0, 64], sizes = [2, 32], strides = [1, 1]} : vector<2x128xbf16> to vector<2x32xbf16>
    %cst_65 = arith.constant dense<0.000000e+00> : vector<8x32xf32>
    %216 = tpu.matmul %214, %215, %cst_65 {dimension_numbers = #tpu.dot_dimension_numbers<[1], [0], [0], [1], [0, 0, 1, 1], [], []>} : vector<8x2xbf16>, vector<2x32xbf16>, vector<8x32xf32> -> vector<8x32xf32>
    %217 = arith.truncf %216 : vector<8x32xf32> to vector<8x32xbf16>
    %218 = vector.extract_strided_slice %161 {offsets = [64, 0], sizes = [32, 128], strides = [1, 1]} : vector<128x128xbf16> to vector<32x128xbf16>
    %cst_66 = arith.constant dense<0.000000e+00> : vector<8x128xf32>
    %219 = tpu.matmul %217, %218, %cst_66 {dimension_numbers = #tpu.dot_dimension_numbers<[1], [0], [0], [1], [0, 0, 1, 1], [], []>} : vector<8x32xbf16>, vector<32x128xbf16>, vector<8x128xf32> -> vector<8x128xf32>
    %220 = arith.addf %200, %219 : vector<8x128xf32>
    %221 = vector.extract_strided_slice %149 {offsets = [0, 96], sizes = [8, 32], strides = [1, 1]} : vector<8x128xbf16> to vector<8x32xbf16>
    %222 = vector.extract_strided_slice %157 {offsets = [0, 96], sizes = [2, 32], strides = [1, 1]} : vector<2x128xbf16> to vector<2x32xbf16>
    "tpu.trace_start"() <{level = 10 : i32, message = "qd,kd->qk"}> : () -> ()
    %cst_67 = arith.constant dense<0.000000e+00> : vector<8x2xf32>
    %223 = tpu.matmul %221, %222, %cst_67 {dimension_numbers = #tpu.dot_dimension_numbers<[1], [1], [0], [0], [0, 0, 1, 0], [], []>} : vector<8x32xbf16>, vector<2x32xbf16>, vector<8x2xf32> -> vector<8x2xf32>
    "tpu.trace_stop"() : () -> ()
    %cst_68 = arith.constant dense<0xFF800000> : vector<8xf32>
    %224 = vector.multi_reduction <maximumf>, %223, %cst_68 [1] : vector<8x2xf32> to vector<8xf32>
    %225 = vector.shape_cast %224 : vector<8xf32> to vector<8x1xf32>
    %226 = vector.broadcast %225 : vector<8x1xf32> to vector<8x2xf32>
    %227 = arith.subf %223, %226 : vector<8x2xf32>
    %228 = math.exp %227 : vector<8x2xf32>
    %cst_69 = arith.constant dense<0.000000e+00> : vector<8xf32>
    %229 = vector.multi_reduction <add>, %228, %cst_69 [1] : vector<8x2xf32> to vector<8xf32>
    %230 = vector.shape_cast %229 : vector<8xf32> to vector<8x1xf32>
    %231 = tpu.reciprocal %230 {approx = true} : vector<8x1xf32> -> vector<8x1xf32>
    %232 = vector.broadcast %231 : vector<8x1xf32> to vector<8x2xf32>
    %233 = arith.mulf %228, %232 : vector<8x2xf32>
    %234 = arith.truncf %233 : vector<8x2xf32> to vector<8x2xbf16>
    %235 = vector.extract_strided_slice %159 {offsets = [0, 96], sizes = [2, 32], strides = [1, 1]} : vector<2x128xbf16> to vector<2x32xbf16>
    %cst_70 = arith.constant dense<0.000000e+00> : vector<8x32xf32>
    %236 = tpu.matmul %234, %235, %cst_70 {dimension_numbers = #tpu.dot_dimension_numbers<[1], [0], [0], [1], [0, 0, 1, 1], [], []>} : vector<8x2xbf16>, vector<2x32xbf16>, vector<8x32xf32> -> vector<8x32xf32>
    %237 = arith.truncf %236 : vector<8x32xf32> to vector<8x32xbf16>
    %238 = vector.extract_strided_slice %161 {offsets = [96, 0], sizes = [32, 128], strides = [1, 1]} : vector<128x128xbf16> to vector<32x128xbf16>
    %cst_71 = arith.constant dense<0.000000e+00> : vector<8x128xf32>
    %239 = tpu.matmul %237, %238, %cst_71 {dimension_numbers = #tpu.dot_dimension_numbers<[1], [0], [0], [1], [0, 0, 1, 1], [], []>} : vector<8x32xbf16>, vector<32x128xbf16>, vector<8x128xf32> -> vector<8x128xf32>
    %240 = arith.addf %220, %239 : vector<8x128xf32>
    %241 = vector.broadcast %12 : vector<1x128xf32> to vector<8x128xf32>
    %242 = arith.addf %240, %241 : vector<8x128xf32>
    %243 = arith.addf %140, %242 : vector<8x128xf32>
    %cst_72 = arith.constant dense<0.000000e+00> : vector<8xf32>
    %244 = vector.multi_reduction <add>, %243, %cst_72 [1] : vector<8x128xf32> to vector<8xf32>
    %245 = vector.shape_cast %244 : vector<8xf32> to vector<8x1xf32>
    %cst_73 = arith.constant 1.280000e+02 : f32
    %246 = vector.broadcast %cst_73 : f32 to vector<8x1xf32>
    %247 = arith.divf %245, %246 : vector<8x1xf32>
    %248 = vector.broadcast %247 : vector<8x1xf32> to vector<8x128xf32>
    %249 = arith.subf %243, %248 : vector<8x128xf32>
    %250 = arith.mulf %249, %249 : vector<8x128xf32>
    %cst_74 = arith.constant dense<0.000000e+00> : vector<8xf32>
    %251 = vector.multi_reduction <add>, %250, %cst_74 [1] : vector<8x128xf32> to vector<8xf32>
    %252 = vector.shape_cast %251 : vector<8xf32> to vector<8x1xf32>
    %cst_75 = arith.constant 1.280000e+02 : f32
    %253 = vector.broadcast %cst_75 : f32 to vector<8x1xf32>
    %254 = arith.divf %252, %253 : vector<8x1xf32>
    %255 = vector.broadcast %247 : vector<8x1xf32> to vector<8x128xf32>
    %256 = arith.subf %243, %255 : vector<8x128xf32>
    %cst_76 = arith.constant 9.99999974E-6 : f32
    %257 = vector.broadcast %cst_76 : f32 to vector<8x1xf32>
    %258 = arith.addf %254, %257 : vector<8x1xf32>
    %259 = math.rsqrt %258 : vector<8x1xf32>
    %260 = vector.broadcast %259 : vector<8x1xf32> to vector<8x128xf32>
    %261 = arith.mulf %256, %260 : vector<8x128xf32>
    %262 = vector.broadcast %17 : vector<1x128xf32> to vector<8x128xf32>
    %263 = arith.mulf %261, %262 : vector<8x128xf32>
    %264 = vector.broadcast %18 : vector<1x128xf32> to vector<8x128xf32>
    %265 = arith.addf %263, %264 : vector<8x128xf32>
    %266 = arith.truncf %265 : vector<8x128xf32> to vector<8x128xbf16>
    %c0_77 = arith.constant 0 : index
    %c0_78 = arith.constant 0 : index
    %c0_79 = arith.constant 0 : index
    %267 = vector.load %arg9[%c0_77, %c0_78, %c0_79] : memref<1x128x256xbf16, #tpu.memory_space<vmem>>, vector<1x128x256xbf16>
    %268 = vector.shape_cast %267 : vector<1x128x256xbf16> to vector<128x256xbf16>
    %cst_80 = arith.constant dense<0.000000e+00> : vector<8x256xf32>
    %269 = tpu.matmul %266, %268, %cst_80 {dimension_numbers = #tpu.dot_dimension_numbers<[1], [0], [0], [1], [0, 0, 1, 1], [], []>} : vector<8x128xbf16>, vector<128x256xbf16>, vector<8x256xf32> -> vector<8x256xf32>
    %270 = vector.broadcast %13 : vector<1x256xf32> to vector<8x256xf32>
    %271 = arith.addf %269, %270 : vector<8x256xf32>
    %cst_81 = arith.constant 0.000000e+00 : f32
    %272 = vector.broadcast %cst_81 : f32 to vector<8x256xf32>
    %273 = arith.maximumf %271, %272 : vector<8x256xf32>
    %274 = arith.truncf %273 : vector<8x256xf32> to vector<8x256xbf16>
    %c0_82 = arith.constant 0 : index
    %c0_83 = arith.constant 0 : index
    %c0_84 = arith.constant 0 : index
    %275 = vector.load %arg10[%c0_82, %c0_83, %c0_84] : memref<1x256x128xbf16, #tpu.memory_space<vmem>>, vector<1x256x128xbf16>
    %276 = vector.shape_cast %275 : vector<1x256x128xbf16> to vector<256x128xbf16>
    %cst_85 = arith.constant dense<0.000000e+00> : vector<8x128xf32>
    %277 = tpu.matmul %274, %276, %cst_85 {dimension_numbers = #tpu.dot_dimension_numbers<[1], [0], [0], [1], [0, 0, 1, 1], [], []>} : vector<8x256xbf16>, vector<256x128xbf16>, vector<8x128xf32> -> vector<8x128xf32>
    %278 = vector.broadcast %14 : vector<1x128xf32> to vector<8x128xf32>
    %279 = arith.addf %277, %278 : vector<8x128xf32>
    %280 = arith.addf %265, %279 : vector<8x128xf32>
    %cst_86 = arith.constant 0.000000e+00 : f32
    %281 = vector.broadcast %cst_86 : f32 to vector<1x128xf32>
    %282 = arith.mulf %17, %281 : vector<1x128xf32>
    %283 = arith.addf %282, %19 : vector<1x128xf32>
    %cst_87 = arith.constant dense<0.000000e+00> : vector<8xf32>
    %284 = vector.multi_reduction <add>, %280, %cst_87 [1] : vector<8x128xf32> to vector<8xf32>
    %285 = vector.shape_cast %284 : vector<8xf32> to vector<8x1xf32>
    %cst_88 = arith.constant 1.280000e+02 : f32
    %286 = vector.broadcast %cst_88 : f32 to vector<8x1xf32>
    %287 = arith.divf %285, %286 : vector<8x1xf32>
    %288 = vector.broadcast %287 : vector<8x1xf32> to vector<8x128xf32>
    %289 = arith.subf %280, %288 : vector<8x128xf32>
    %290 = arith.mulf %289, %289 : vector<8x128xf32>
    %cst_89 = arith.constant dense<0.000000e+00> : vector<8xf32>
    %291 = vector.multi_reduction <add>, %290, %cst_89 [1] : vector<8x128xf32> to vector<8xf32>
    %292 = vector.shape_cast %291 : vector<8xf32> to vector<8x1xf32>
    %cst_90 = arith.constant 1.280000e+02 : f32
    %293 = vector.broadcast %cst_90 : f32 to vector<8x1xf32>
    %294 = arith.divf %292, %293 : vector<8x1xf32>
    %295 = vector.broadcast %287 : vector<8x1xf32> to vector<8x128xf32>
    %296 = arith.subf %280, %295 : vector<8x128xf32>
    %cst_91 = arith.constant 9.99999974E-6 : f32
    %297 = vector.broadcast %cst_91 : f32 to vector<8x1xf32>
    %298 = arith.addf %294, %297 : vector<8x1xf32>
    %299 = math.rsqrt %298 : vector<8x1xf32>
    %300 = vector.broadcast %299 : vector<8x1xf32> to vector<8x128xf32>
    %301 = arith.mulf %296, %300 : vector<8x128xf32>
    %302 = vector.broadcast %283 : vector<1x128xf32> to vector<8x128xf32>
    %303 = arith.mulf %301, %302 : vector<8x128xf32>
    %304 = vector.broadcast %20 : vector<1x128xf32> to vector<8x128xf32>
    %305 = arith.addf %303, %304 : vector<8x128xf32>
    %c0_92 = arith.constant 0 : index
    %c0_93 = arith.constant 0 : index
    %306 = vector.load %arg15[%c0_92, %c0_93] : memref<8x128xf32, #tpu.memory_space<vmem>>, vector<8x128xf32>
    tpu.vector_store %arg15[%c0_92, %c0_93], %305 {strides = array<i32>} : memref<8x128xf32, #tpu.memory_space<vmem>>, vector<8x128xf32>,
    %c1_i32 = arith.constant 1 : i32
    %307 = arith.cmpi eq, %arg1, %c1_i32 : i32
    %308 = arith.extui %307 : i1 to i32
    %c0_i32_94 = arith.constant 0 : i32
    %309 = arith.cmpi ne, %308, %c0_i32_94 : i32
    scf.if %309 {
      %310 = arith.truncf %305 : vector<8x128xf32> to vector<8x128xbf16>
      %c0_95 = arith.constant 0 : index
      %c0_96 = arith.constant 0 : index
      %311 = vector.load %arg12[%c0_95, %c0_96] : memref<128x512xbf16, #tpu.memory_space<vmem>>, vector<128x512xbf16>
      %cst_97 = arith.constant dense<0.000000e+00> : vector<8x512xf32>
      %312 = tpu.matmul %310, %311, %cst_97 {dimension_numbers = #tpu.dot_dimension_numbers<[1], [0], [0], [1], [0, 0, 1, 1], [], []>} : vector<8x128xbf16>, vector<128x512xbf16>, vector<8x512xf32> -> vector<8x512xf32>
      %c0_98 = arith.constant 0 : index
      %c0_99 = arith.constant 0 : index
      %313 = vector.load %arg13[%c0_98, %c0_99] : memref<1x512xf32, #tpu.memory_space<vmem>>, vector<1x512xf32>
      %314 = vector.broadcast %313 : vector<1x512xf32> to vector<8x512xf32>
      %315 = arith.addf %312, %314 : vector<8x512xf32>
      %c0_100 = arith.constant 0 : index
      %c0_101 = arith.constant 0 : index
      %c0_102 = arith.constant 0 : index
      %316 = vector.load %arg14[%c0_100, %c0_101, %c0_102] : memref<1x8x512xf32, #tpu.memory_space<vmem>>, vector<1x8x512xf32>
      %317 = vector.shape_cast %316 : vector<1x8x512xf32> to vector<8x512xf32>
      %318 = vector.shape_cast %315 : vector<8x512xf32> to vector<1x8x512xf32>
      tpu.vector_store %arg14[%c0_100, %c0_101, %c0_102], %318 {strides = array<i32>} : memref<1x8x512xf32, #tpu.memory_space<vmem>>, vector<1x8x512xf32>,
    } else {
    }
    return
  }
  func.func @transform_0(%arg0: i32, %arg1: i32) -> (i32, i32, i32) {
    %c0_i32 = arith.constant 0 : i32
    %c0_i32_0 = arith.constant 0 : i32
    %c0_i32_1 = arith.constant 0 : i32
    return %arg0, %c0_i32, %c0_i32_0 : i32, i32, i32
  }
  func.func @transform_1(%arg0: i32, %arg1: i32) -> (i32, i32, i32) {
    %c0_i32 = arith.constant 0 : i32
    %c0_i32_0 = arith.constant 0 : i32
    %c0_i32_1 = arith.constant 0 : i32
    return %arg0, %c0_i32, %c0_i32_0 : i32, i32, i32
  }
  func.func @transform_2(%arg0: i32, %arg1: i32) -> (i32, i32, i32) {
    %c0_i32 = arith.constant 0 : i32
    %c0_i32_0 = arith.constant 0 : i32
    %c0_i32_1 = arith.constant 0 : i32
    return %arg1, %c0_i32, %c0_i32_0 : i32, i32, i32
  }
  func.func @transform_3(%arg0: i32, %arg1: i32) -> (i32, i32, i32) {
    %c0_i32 = arith.constant 0 : i32
    %c0_i32_0 = arith.constant 0 : i32
    %c0_i32_1 = arith.constant 0 : i32
    return %arg1, %c0_i32, %c0_i32_0 : i32, i32, i32
  }
  func.func @transform_4(%arg0: i32, %arg1: i32) -> (i32, i32, i32) {
    %c0_i32 = arith.constant 0 : i32
    %c0_i32_0 = arith.constant 0 : i32
    %c0_i32_1 = arith.constant 0 : i32
    return %arg1, %c0_i32, %c0_i32_0 : i32, i32, i32
  }
  func.func @transform_5(%arg0: i32, %arg1: i32) -> (i32, i32, i32) {
    %c0_i32 = arith.constant 0 : i32
    %c0_i32_0 = arith.constant 0 : i32
    %c0_i32_1 = arith.constant 0 : i32
    return %arg1, %c0_i32, %c0_i32_0 : i32, i32, i32
  }
  func.func @transform_6(%arg0: i32, %arg1: i32) -> (i32, i32, i32) {
    %c0_i32 = arith.constant 0 : i32
    %c0_i32_0 = arith.constant 0 : i32
    %c0_i32_1 = arith.constant 0 : i32
    return %arg1, %c0_i32, %c0_i32_0 : i32, i32, i32
  }
  func.func @transform_7(%arg0: i32, %arg1: i32) -> (i32, i32, i32) {
    %c0_i32 = arith.constant 0 : i32
    %c0_i32_0 = arith.constant 0 : i32
    %c0_i32_1 = arith.constant 0 : i32
    return %arg1, %c0_i32, %c0_i32_0 : i32, i32, i32
  }
  func.func @transform_8(%arg0: i32, %arg1: i32) -> (i32, i32, i32) {
    %c0_i32 = arith.constant 0 : i32
    %c0_i32_0 = arith.constant 0 : i32
    %c0_i32_1 = arith.constant 0 : i32
    return %arg1, %c0_i32, %c0_i32_0 : i32, i32, i32
  }
  func.func @transform_9(%arg0: i32, %arg1: i32) -> (i32, i32, i32) {
    %c0_i32 = arith.constant 0 : i32
    %c0_i32_0 = arith.constant 0 : i32
    %c0_i32_1 = arith.constant 0 : i32
    return %arg1, %c0_i32, %c0_i32_0 : i32, i32, i32
  }
  func.func @transform_10(%arg0: i32, %arg1: i32) -> (i32, i32) {
    %c0_i32 = arith.constant 0 : i32
    %c0_i32_0 = arith.constant 0 : i32
    %c0_i32_1 = arith.constant 0 : i32
    return %c0_i32, %c0_i32_0 : i32, i32
  }
  func.func @transform_11(%arg0: i32, %arg1: i32) -> (i32, i32) {
    %c0_i32 = arith.constant 0 : i32
    %c0_i32_0 = arith.constant 0 : i32
    %c0_i32_1 = arith.constant 0 : i32
    return %c0_i32, %c0_i32_0 : i32, i32
  }
  func.func @transform_12(%arg0: i32, %arg1: i32) -> (i32, i32, i32) {
    %c0_i32 = arith.constant 0 : i32
    %c0_i32_0 = arith.constant 0 : i32
    %c0_i32_1 = arith.constant 0 : i32
    return %arg0, %c0_i32, %c0_i32_0 : i32, i32, i32
  }
}

</mosaic_0001>

<llo_original>
// kernel: multimodal_forward.4
$region0: #{multimodal_forward.4}
  #allocation0 [shape = 'u32[]', space=smem, size = 0x4, offset = 0x4, fixed_abs, tag = 'smem constant byte address 0x4 - core index']
  #allocation1 [shape = 'u32[144,128]{1,0:T(1,128)}', space=vmem, size = 0x12000, scoped, tag = 'internal scratch']
  %s0 = inlined_call_operand.hbm [shape: f32[32,256], index: 0, kind: input, shape index: {}]
  %s1 = inlined_call_operand.vmem [shape: bf16[256,128], index: 1, kind: input, shape index: {}]
  %s2 = inlined_call_operand.vmem [shape: f32[1,128], index: 2, kind: input, shape index: {}]
  %s3 = inlined_call_operand.vmem [shape: f32[32,128], index: 3, kind: output, shape index: {}]
  %s4 = sld [smem:[#allocation0]]
  $region26: #{multimodal_forward.4} parent=0
    _
  %s6 = ssub.s32 1, %s4
  %s7 = scalar_select 0, %s6, %s4
  $region1: #{multimodal_forward.4} parent=0
    #allocation2 [shape = 'u8[32768]{0}', space=vmem, size = 0x8000, scoped, tag = 'input window, operand 0, single buffered']
    #allocation3 [shape = 's32[1]{0}', space=sflag, size = 0x4, scoped, tag = 'scoped memory for multimodal_forward.4']
    %8 = vsyncpa [#allocation3], 0
    // Predicated region
    $region2: #{multimodal_forward.4} parent=1 // pred_check
      _
    $region3: #{multimodal_forward.4} parent=1 // pred_check_branch
      %10 = sbr.rel (0) target = $region5
    $region4: #{multimodal_forward.4} parent=1 // pred_region
      %s12 = ssub.s32 1024, 1024
      %13 = vsyncadd [#allocation3], %s12
      %s14 = sshll.u32 [#allocation2], 4
      %s15 = int_to_ptr.vmem [resolvable:$true] %s14
      %20 = dma.hbm_to_vmem [thread:$0]  %s0, 1024, %s15, [#allocation3], 256, 256, 16
    $region5: #{multimodal_forward.4} parent=1 // pred_fallthru
      _
    // Predicated region
    $region6: #{multimodal_forward.4} parent=1 // pred_check
      _
    $region7: #{multimodal_forward.4} parent=1 // pred_check_branch
      %22 = sbr.rel (0) target = $region9
    $region8: #{multimodal_forward.4} parent=1 // pred_region
      _
    $region9: #{multimodal_forward.4} parent=1 // pred_fallthru
      _
    // Predicated region
    $region10: #{multimodal_forward.4} parent=1 // pred_check
      _
    $region11: #{multimodal_forward.4} parent=1 // pred_check_branch
      %24 = sbr.rel (0) target = $region13
    $region12: #{multimodal_forward.4} parent=1 // pred_region
      _
    $region13: #{multimodal_forward.4} parent=1 // pred_fallthru
      _
    // Predicated region
    $region14: #{multimodal_forward.4} parent=1 // pred_check
      _
    $region15: #{multimodal_forward.4} parent=1 // pred_check_branch
      %26 = sbr.rel (0) target = $region17
    $region16: #{multimodal_forward.4} parent=1 // pred_region
      %27 = dma.done [#allocation3], 1024
    $region17: #{multimodal_forward.4} parent=1 // pred_fallthru
      _
    %v29 = vld [vmem:[#allocation2] sm:$0xff]
    %v30 = vld [vmem:[#allocation2 + $0x8] sm:$0xff]
    %v31 = vld [vmem:[#allocation2 + $0x10] sm:$0xff]
    %v32 = vld [vmem:[#allocation2 + $0x18] sm:$0xff]
    %v33 = vld [vmem:[#allocation2 + $0x20] sm:$0xff]
    %v34 = vld [vmem:[#allocation2 + $0x28] sm:$0xff]
    %v35 = vld [vmem:[#allocation2 + $0x30] sm:$0xff]
    %v36 = vld [vmem:[#allocation2 + $0x38] sm:$0xff]
    %v37 = vpack.c.bf16 %v31, %v29
    %v38 = vpack.c.bf16 %v32, %v30
    %v39 = vpack.c.bf16 %v35, %v33
    %v40 = vpack.c.bf16 %v36, %v34
    %v41 = vld [vmem:[%s1] sm:$0xf]
    %v42 = vld [vmem:[%s1 + $0x4] sm:$0xf]
    %v43 = vld [vmem:[%s1 + $0x8] sm:$0xf]
    %v44 = vld [vmem:[%s1 + $0xc] sm:$0xf]
    %v45 = vld [vmem:[%s1 + $0x10] sm:$0xf]
    %v46 = vld [vmem:[%s1 + $0x14] sm:$0xf]
    %v47 = vld [vmem:[%s1 + $0x18] sm:$0xf]
    %v48 = vld [vmem:[%s1 + $0x1c] sm:$0xf]
    %v49 = vld [vmem:[%s1 + $0x20] sm:$0xf]
    %v50 = vld [vmem:[%s1 + $0x24] sm:$0xf]
    %v51 = vld [vmem:[%s1 + $0x28] sm:$0xf]
    %v52 = vld [vmem:[%s1 + $0x2c] sm:$0xf]
    %v53 = vld [vmem:[%s1 + $0x30] sm:$0xf]
    %v54 = vld [vmem:[%s1 + $0x34] sm:$0xf]
    %v55 = vld [vmem:[%s1 + $0x38] sm:$0xf]
    %v56 = vld [vmem:[%s1 + $0x3c] sm:$0xf]
    %v57 = vld [vmem:[%s1 + $0x40] sm:$0xf]
    %v58 = vld [vmem:[%s1 + $0x44] sm:$0xf]
    %v59 = vld [vmem:[%s1 + $0x48] sm:$0xf]
    %v60 = vld [vmem:[%s1 + $0x4c] sm:$0xf]
    %v61 = vld [vmem:[%s1 + $0x50] sm:$0xf]
    %v62 = vld [vmem:[%s1 + $0x54] sm:$0xf]
    %v63 = vld [vmem:[%s1 + $0x58] sm:$0xf]
    %v64 = vld [vmem:[%s1 + $0x5c] sm:$0xf]
    %v65 = vld [vmem:[%s1 + $0x60] sm:$0xf]
    %v66 = vld [vmem:[%s1 + $0x64] sm:$0xf]
    %v67 = vld [vmem:[%s1 + $0x68] sm:$0xf]
    %v68 = vld [vmem:[%s1 + $0x6c] sm:$0xf]
    %v69 = vld [vmem:[%s1 + $0x70] sm:$0xf]
    %v70 = vld [vmem:[%s1 + $0x74] sm:$0xf]
    %v71 = vld [vmem:[%s1 + $0x78] sm:$0xf]
    %v72 = vld [vmem:[%s1 + $0x7c] sm:$0xf]
    %v73 = vld [vmem:[%s2] sm:$0x1]
    %v75 = vlaneseq
    %v76 = vshrl.u32 %v75, 7
    %v77 = vsub.s32 0, %v76
    %v78 = vrot.slane %v73, %v77
    %v112 = vunpack.c.l.b16 %v41
    %v113 = vunpack.c.l.b16 %v42
    %v114 = vunpack.c.l.b16 %v43
    %v115 = vunpack.c.l.b16 %v44
    %v116 = vunpack.c.l.b16 %v45
    %v117 = vunpack.c.l.b16 %v46
    %v118 = vunpack.c.l.b16 %v47
    %v119 = vunpack.c.l.b16 %v48
    %v120 = vunpack.c.l.b16 %v49
    %v121 = vunpack.c.l.b16 %v50
    %v122 = vunpack.c.l.b16 %v51
    %v123 = vunpack.c.l.b16 %v52
    %v124 = vunpack.c.l.b16 %v53
    %v125 = vunpack.c.l.b16 %v54
    %v126 = vunpack.c.l.b16 %v55
    %v127 = vunpack.c.l.b16 %v56
    %v128 = vunpack.c.l.b16 %v57
    %v129 = vunpack.c.l.b16 %v58
    %v130 = vunpack.c.l.b16 %v59
    %v131 = vunpack.c.l.b16 %v60
    %v132 = vunpack.c.l.b16 %v61
    %v133 = vunpack.c.l.b16 %v62
    %v134 = vunpack.c.l.b16 %v63
    %v135 = vunpack.c.l.b16 %v64
    %v136 = vunpack.c.l.b16 %v65
    %v137 = vunpack.c.l.b16 %v66
    %v138 = vunpack.c.l.b16 %v67
    %v139 = vunpack.c.l.b16 %v68
    %v140 = vunpack.c.l.b16 %v69
    %v141 = vunpack.c.l.b16 %v70
    %v142 = vunpack.c.l.b16 %v71
    %v143 = vunpack.c.l.b16 %v72
    %v144 = vpack.c.b16 %v113, %v112
    %v145 = vpack.c.b16 %v115, %v114
    %v146 = vpack.c.b16 %v117, %v116
    %v147 = vpack.c.b16 %v119, %v118
    %v148 = vpack.c.b16 %v121, %v120
    %v149 = vpack.c.b16 %v123, %v122
    %v150 = vpack.c.b16 %v125, %v124
    %v151 = vpack.c.b16 %v127, %v126
    %v152 = vpack.c.b16 %v129, %v128
    %v153 = vpack.c.b16 %v131, %v130
    %v154 = vpack.c.b16 %v133, %v132
    %v155 = vpack.c.b16 %v135, %v134
    %v156 = vpack.c.b16 %v137, %v136
    %v157 = vpack.c.b16 %v139, %v138
    %v158 = vpack.c.b16 %v141, %v140
    %v159 = vpack.c.b16 %v143, %v142
    %176 = vmatprep.subr.bf16.mxu0 0
    %177 = vmatpush1.bf16.msra.mxu0 %v151
    %178 = vmatprep.subr.bf16.mxu0 0
    %179 = vmatpush1.bf16.msra.mxu0 %v150
    %180 = vmatprep.subr.bf16.mxu0 0
    %181 = vmatpush1.bf16.msra.mxu0 %v149
    %182 = vmatprep.subr.bf16.mxu0 0
    %183 = vmatpush1.bf16.msra.mxu0 %v148
    %184 = vmatprep.subr.bf16.mxu0 0
    %185 = vmatpush1.bf16.msra.mxu0 %v147
    %186 = vmatprep.subr.bf16.mxu0 0
    %187 = vmatpush1.bf16.msra.mxu0 %v146
    %188 = vmatprep.subr.bf16.mxu0 0
    %189 = vmatpush1.bf16.msra.mxu0 %v145
    %190 = vmatprep.subr.bf16.mxu0 0
    %191 = vmatpush1.bf16.msra.mxu0 %v144
    %192 = vmatprep.subr.bf16.mxu0 0
    %193 = vmatpush2.bf16.msra.mxu0 %v159
    %194 = vmatprep.subr.bf16.mxu0 0
    %195 = vmatpush2.bf16.msra.mxu0 %v158
    %196 = vmatprep.subr.bf16.mxu0 0
    %197 = vmatpush2.bf16.msra.mxu0 %v157
    %198 = vmatprep.subr.bf16.mxu0 0
    %199 = vmatpush2.bf16.msra.mxu0 %v156
    %200 = vmatprep.subr.bf16.mxu0 0
    %201 = vmatpush2.bf16.msra.mxu0 %v155
    %202 = vmatprep.subr.bf16.mxu0 0
    %203 = vmatpush2.bf16.msra.mxu0 %v154
    %204 = vmatprep.subr.bf16.mxu0 0
    %205 = vmatpush2.bf16.msra.mxu0 %v153
    %206 = vmatprep.subr.bf16.mxu0 0
    %207 = vmatpush2.bf16.msra.mxu0 %v152
    %208 = vmatprep.mubr.bf16.mxu0 %v38
    %209 = vmatmul.mubr.bf16.gmra.mxu0 %v37
    %v210 = vpop.f32.mrf.mxu0
    %v211 = vadd.f32 %v78, %v210
    %v212 = vpop.f32.mrf.mxu0
    %v213 = vpop.f32.mrf.mxu0
    %v214 = vadd.f32 %v78, %v213
    %v215 = vpop.f32.mrf.mxu0
    %216 = vmatprep.mubr.bf16.mxu0 %v40
    %217 = vmatmul.mubr.bf16.gmra.mxu0 %v39
    %v218 = vpop.f32.mrf.mxu0
    %v219 = vadd.f32 %v78, %v218
    %v220 = vpop.f32.mrf.mxu0
    %v221 = vpop.f32.mrf.mxu0
    %v222 = vadd.f32 %v78, %v221
    %v223 = vpop.f32.mrf.mxu0
    %224 = vdwg.mxu0
    %225 = vst [vmem:[%s3] sm:$0xff] %v211
    %226 = vst [vmem:[%s3 + $0x8] sm:$0xff] %v214
    %227 = vst [vmem:[%s3 + $0x10] sm:$0xff] %v219
    %228 = vst [vmem:[%s3 + $0x18] sm:$0xff] %v222
    // Predicated region
    $region18: #{multimodal_forward.4} parent=1 // pred_check
      _
    $region19: #{multimodal_forward.4} parent=1 // pred_check_branch
      %230 = sbr.rel (0) target = $region21
    $region20: #{multimodal_forward.4} parent=1 // pred_region
      _
    $region21: #{multimodal_forward.4} parent=1 // pred_fallthru
      _
    // Predicated region
    $region22: #{multimodal_forward.4} parent=1 // pred_check
      _
    $region23: #{multimodal_forward.4} parent=1 // pred_check_branch
      %232 = sbr.rel (0) target = $region25
    $region24: #{multimodal_forward.4} parent=1 // pred_region
      _
    $region25: #{multimodal_forward.4} parent=1 // pred_fallthru
      _
    %233 = vsyncpa [#allocation3], 1

// kernel: multimodal_forward.5
$region0: #{multimodal_forward.5}
  #allocation0 [shape = 'u32[]', space=smem, size = 0x4, offset = 0x4, fixed_abs, tag = 'smem constant byte address 0x4 - core index']
  #allocation1 [shape = 'u32[144,128]{1,0:T(1,128)}', space=vmem, size = 0x12000, scoped, tag = 'internal scratch']
  %s0 = inlined_call_operand.hbm [shape: f32[32,128], index: 0, kind: input, shape index: {}]
  %s1 = inlined_call_operand.hbm [shape: bf16[128,128], index: 1, kind: input, shape index: {}]
  %s2 = inlined_call_operand.hbm [shape: f32[1,128], index: 2, kind: input, shape index: {}]
  %s3 = inlined_call_operand.vmem [shape: f32[32,128], index: 3, kind: output, shape index: {}]
  %s4 = sld [smem:[#allocation0]]
  $region34: #{multimodal_forward.5} parent=0
    _
  %s6 = ssub.s32 1, %s4
  %s7 = scalar_select 0, %s6, %s4
  $region1: #{multimodal_forward.5} parent=0
    #allocation2 [shape = 'u8[16384]{0}', space=vmem, size = 0x4000, scoped, tag = 'input window, operand 0, single buffered']
    #allocation3 [shape = 's32[1]{0}', space=sflag, size = 0x4, scoped, tag = 'scoped memory for multimodal_forward.5']
    #allocation4 [shape = 'u8[32768]{0}', space=vmem, size = 0x8000, scoped, tag = 'input window, operand 1, single buffered']
    #allocation5 [shape = 's32[1]{0}', space=sflag, size = 0x4, scoped, tag = 'scoped memory for multimodal_forward.5']
    #allocation6 [shape = 'u8[512]{0}', space=vmem, size = 0x400, scoped, tag = 'input window, operand 2, single buffered']
    %8 = vsyncpa [#allocation3], 0
    %9 = vsyncpa [#allocation5], 0
    // Predicated region
    $region2: #{multimodal_forward.5} parent=1 // pred_check
      _
    $region3: #{multimodal_forward.5} parent=1 // pred_check_branch
      %11 = sbr.rel (0) target = $region5
    $region4: #{multimodal_forward.5} parent=1 // pred_region
      %s13 = ssub.s32 512, 512
      %14 = vsyncadd [#allocation3], %s13
      %s15 = sshll.u32 [#allocation2], 4
      %s16 = int_to_ptr.vmem [resolvable:$true] %s15
      %21 = dma.hbm_to_vmem [thread:$0]  %s0, 512, %s16, [#allocation3], 128, 128, 8
    $region5: #{multimodal_forward.5} parent=1 // pred_fallthru
      _
    // Predicated region
    $region6: #{multimodal_forward.5} parent=1 // pred_check
      _
    $region7: #{multimodal_forward.5} parent=1 // pred_check_branch
      %23 = sbr.rel (0) target = $region9
    $region8: #{multimodal_forward.5} parent=1 // pred_region
      %s25 = ssub.s32 1024, 1024
      %26 = vsyncadd [#allocation5], %s25
      %s27 = sshll.u32 [#allocation4], 4
      %s28 = int_to_ptr.vmem [resolvable:$true] %s27
      %33 = dma.hbm_to_vmem [thread:$0]  %s1, 1024, %s28, [#allocation5], 64, 64, 4
    $region9: #{multimodal_forward.5} parent=1 // pred_fallthru
      _
    // Predicated region
    $region10: #{multimodal_forward.5} parent=1 // pred_check
      _
    $region11: #{multimodal_forward.5} parent=1 // pred_check_branch
      %35 = sbr.rel (0) target = $region13
    $region12: #{multimodal_forward.5} parent=1 // pred_region
      %s37 = ssub.s32 16, 16
      %38 = vsyncadd [#allocation5], %s37
      %s40 = sshll.u32 [#allocation6], 4
      %s41 = int_to_ptr.vmem [resolvable:$true] %s40
      %43 = dma.hbm_to_vmem [thread:$0]  %s2, 16, %s41, [#allocation5]
    $region13: #{multimodal_forward.5} parent=1 // pred_fallthru
      _
    // Predicated region
    $region14: #{multimodal_forward.5} parent=1 // pred_check
      _
    $region15: #{multimodal_forward.5} parent=1 // pred_check_branch
      %45 = sbr.rel (0) target = $region17
    $region16: #{multimodal_forward.5} parent=1 // pred_region
      %46 = dma.done [#allocation3], 512
    $region17: #{multimodal_forward.5} parent=1 // pred_fallthru
      _
    // Predicated region
    $region18: #{multimodal_forward.5} parent=1 // pred_check
      _
    $region19: #{multimodal_forward.5} parent=1 // pred_check_branch
      %48 = sbr.rel (0) target = $region21
    $region20: #{multimodal_forward.5} parent=1 // pred_region
      %49 = dma.done [#allocation5], 1024
    $region21: #{multimodal_forward.5} parent=1 // pred_fallthru
      _
    // Predicated region
    $region22: #{multimodal_forward.5} parent=1 // pred_check
      _
    $region23: #{multimodal_forward.5} parent=1 // pred_check_branch
      %51 = sbr.rel (0) target = $region25
    $region24: #{multimodal_forward.5} parent=1 // pred_region
      %52 = dma.done [#allocation5], 16
    $region25: #{multimodal_forward.5} parent=1 // pred_fallthru
      _
    %v54 = vld [vmem:[#allocation2] sm:$0xff]
    %v55 = vld [vmem:[#allocation2 + $0x8] sm:$0xff]
    %v56 = vld [vmem:[#allocation2 + $0x10] sm:$0xff]
    %v57 = vld [vmem:[#allocation2 + $0x18] sm:$0xff]
    %v58 = vpack.c.bf16 %v55, %v54
    %v59 = vpack.c.bf16 %v57, %v56
    %v60 = vld [vmem:[#allocation4] sm:$0xf]
    %v61 = vld [vmem:[#allocation4 + $0x4] sm:$0xf]
    %v62 = vld [vmem:[#allocation4 + $0x8] sm:$0xf]
    %v63 = vld [vmem:[#allocation4 + $0xc] sm:$0xf]
    %v64 = vld [vmem:[#allocation4 + $0x10] sm:$0xf]
    %v65 = vld [vmem:[#allocation4 + $0x14] sm:$0xf]
    %v66 = vld [vmem:[#allocation4 + $0x18] sm:$0xf]
    %v67 = vld [vmem:[#allocation4 + $0x1c] sm:$0xf]
    %v68 = vld [vmem:[#allocation4 + $0x20] sm:$0xf]
    %v69 = vld [vmem:[#allocation4 + $0x24] sm:$0xf]
    %v70 = vld [vmem:[#allocation4 + $0x28] sm:$0xf]
    %v71 = vld [vmem:[#allocation4 + $0x2c] sm:$0xf]
    %v72 = vld [vmem:[#allocation4 + $0x30] sm:$0xf]
    %v73 = vld [vmem:[#allocation4 + $0x34] sm:$0xf]
    %v74 = vld [vmem:[#allocation4 + $0x38] sm:$0xf]
    %v75 = vld [vmem:[#allocation4 + $0x3c] sm:$0xf]
    %v76 = vld [vmem:[#allocation6] sm:$0x1]
    %v78 = vlaneseq
    %v79 = vshrl.u32 %v78, 7
    %v80 = vsub.s32 0, %v79
    %v81 = vrot.slane %v76, %v80
    %v99 = vunpack.c.l.b16 %v60
    %v100 = vunpack.c.l.b16 %v61
    %v101 = vunpack.c.l.b16 %v62
    %v102 = vunpack.c.l.b16 %v63
    %v103 = vunpack.c.l.b16 %v64
    %v104 = vunpack.c.l.b16 %v65
    %v105 = vunpack.c.l.b16 %v66
    %v106 = vunpack.c.l.b16 %v67
    %v107 = vunpack.c.l.b16 %v68
    %v108 = vunpack.c.l.b16 %v69
    %v109 = vunpack.c.l.b16 %v70
    %v110 = vunpack.c.l.b16 %v71
    %v111 = vunpack.c.l.b16 %v72
    %v112 = vunpack.c.l.b16 %v73
    %v113 = vunpack.c.l.b16 %v74
    %v114 = vunpack.c.l.b16 %v75
    %v115 = vpack.c.b16 %v100, %v99
    %v116 = vpack.c.b16 %v102, %v101
    %v117 = vpack.c.b16 %v104, %v103
    %v118 = vpack.c.b16 %v106, %v105
    %v119 = vpack.c.b16 %v108, %v107
    %v120 = vpack.c.b16 %v110, %v109
    %v121 = vpack.c.b16 %v112, %v111
    %v122 = vpack.c.b16 %v114, %v113
    %131 = vmatprep.subr.bf16.mxu0 0
    %132 = vmatpush1.bf16.msra.mxu0 %v122
    %133 = vmatprep.subr.bf16.mxu0 0
    %134 = vmatpush1.bf16.msra.mxu0 %v121
    %135 = vmatprep.subr.bf16.mxu0 0
    %136 = vmatpush1.bf16.msra.mxu0 %v120
    %137 = vmatprep.subr.bf16.mxu0 0
    %138 = vmatpush1.bf16.msra.mxu0 %v119
    %139 = vmatprep.subr.bf16.mxu0 0
    %140 = vmatpush1.bf16.msra.mxu0 %v118
    %141 = vmatprep.subr.bf16.mxu0 0
    %142 = vmatpush1.bf16.msra.mxu0 %v117
    %143 = vmatprep.subr.bf16.mxu0 0
    %144 = vmatpush1.bf16.msra.mxu0 %v116
    %145 = vmatprep.subr.bf16.mxu0 0
    %146 = vmatpush1.bf16.msra.mxu0 %v115
    %147 = vmatprep.subr.bf16.mxu0 0
    %148 = vmatpush2.bf16.msra.mxu0 0
    %149 = vmatprep.subr.bf16.mxu0 0
    %150 = vmatpush2.bf16.msra.mxu0 0
    %151 = vmatprep.subr.bf16.mxu0 0
    %152 = vmatpush2.bf16.msra.mxu0 0
    %153 = vmatprep.subr.bf16.mxu0 0
    %154 = vmatpush2.bf16.msra.mxu0 0
    %155 = vmatprep.subr.bf16.mxu0 0
    %156 = vmatpush2.bf16.msra.mxu0 0
    %157 = vmatprep.subr.bf16.mxu0 0
    %158 = vmatpush2.bf16.msra.mxu0 0
    %159 = vmatprep.subr.bf16.mxu0 0
    %160 = vmatpush2.bf16.msra.mxu0 0
    %161 = vmatprep.subr.bf16.mxu0 0
    %162 = vmatpush2.bf16.msra.mxu0 0
    %163 = vmatprep.mubr.bf16.mxu0 0
    %164 = vmatmul.mubr.bf16.gmra.mxu0 %v58
    %v165 = vpop.f32.mrf.mxu0
    %v166 = vadd.f32 %v81, %v165
    %v167 = vpop.f32.mrf.mxu0
    %v168 = vpop.f32.mrf.mxu0
    %v169 = vadd.f32 %v81, %v168
    %v170 = vpop.f32.mrf.mxu0
    %171 = vmatprep.mubr.bf16.mxu0 0
    %172 = vmatmul.mubr.bf16.gmra.mxu0 %v59
    %v173 = vpop.f32.mrf.mxu0
    %v174 = vadd.f32 %v81, %v173
    %v175 = vpop.f32.mrf.mxu0
    %v176 = vpop.f32.mrf.mxu0
    %v177 = vadd.f32 %v81, %v176
    %v178 = vpop.f32.mrf.mxu0
    %179 = vdwg.mxu0
    %180 = vst [vmem:[%s3] sm:$0xff] %v166
    %181 = vst [vmem:[%s3 + $0x8] sm:$0xff] %v169
    %182 = vst [vmem:[%s3 + $0x10] sm:$0xff] %v174
    %183 = vst [vmem:[%s3 + $0x18] sm:$0xff] %v177
    // Predicated region
    $region26: #{multimodal_forward.5} parent=1 // pred_check
      _
    $region27: #{multimodal_forward.5} parent=1 // pred_check_branch
      %185 = sbr.rel (0) target = $region29
    $region28: #{multimodal_forward.5} parent=1 // pred_region
      _
    $region29: #{multimodal_forward.5} parent=1 // pred_fallthru
      _
    // Predicated region
    $region30: #{multimodal_forward.5} parent=1 // pred_check
      _
    $region31: #{multimodal_forward.5} parent=1 // pred_check_branch
      %187 = sbr.rel (0) target = $region33
    $region32: #{multimodal_forward.5} parent=1 // pred_region
      _
    $region33: #{multimodal_forward.5} parent=1 // pred_fallthru
      _
    %188 = vsyncpa [#allocation3], 1
    %189 = vsyncpa [#allocation5], 1

// kernel: multimodal_forward.6
$region0: #{multimodal_forward.6}
  #allocation0 [shape = 'u32[]', space=smem, size = 0x4, offset = 0x4, fixed_abs, tag = 'smem constant byte address 0x4 - core index']
  #allocation1 [shape = 'u32[144,128]{1,0:T(1,128)}', space=vmem, size = 0x12000, scoped, tag = 'internal scratch']
  #allocation2 [shape = 'f32[32,128]{1,0:T(8,128)}', space=vmem, size = 0x4000, scoped, tag = 'scratch operand']
  %s0 = inlined_call_operand.vmem [shape: f32[2,2,16,128], index: 0, kind: input, shape index: {}]
  %s1 = inlined_call_operand.hbm [shape: bf16[2,2,128,384], index: 1, kind: input, shape index: {}]
  %s2 = inlined_call_operand.hbm [shape: bf16[2,2,128,128], index: 2, kind: input, shape index: {}]
  %s3 = inlined_call_operand.vmem [shape: bf16[2,2,128,256], index: 3, kind: input, shape index: {}]
  %s4 = inlined_call_operand.hbm [shape: bf16[2,2,256,128], index: 4, kind: input, shape index: {}]
  %s5 = inlined_call_operand.vmem [shape: f32[2,2,8,384], index: 5, kind: input, shape index: {}]
  %s6 = inlined_call_operand.vmem [shape: f32[2,2,128], index: 6, kind: output, shape index: {}]
  %s7 = sld [smem:[#allocation0]]
  $region77: #{multimodal_forward.6} parent=0
    _
  %s9 = ssub.s32 1, %s7
  %s10 = scalar_select 0, %s9, %s7
  $region1: #{multimodal_forward.6} parent=0
    #allocation3 [shape = 'u8[196608]{0}', space=vmem, size = 0x30000, scoped, tag = 'input window, operand 1']
    #allocation4 [shape = 's32[2]{0}', space=sflag, size = 0x8, scoped, tag = 'scoped memory for multimodal_forward.6']
    #allocation5 [shape = 'u8[65536]{0}', space=vmem, size = 0x10000, scoped, tag = 'input window, operand 2']
    #allocation6 [shape = 's32[2]{0}', space=sflag, size = 0x8, scoped, tag = 'scoped memory for multimodal_forward.6']
    #allocation7 [shape = 'u8[131072]{0}', space=vmem, size = 0x20000, scoped, tag = 'input window, operand 4']
    %11 = vsyncpa [#allocation4], 0
    %s12 = scalar_lea.sflag [#allocation4], 1
    %13 = vsyncpa %s12, 0
    %14 = vsyncpa [#allocation6], 0
    %s15 = scalar_lea.sflag [#allocation6], 1
    %16 = vsyncpa %s15, 0
    loop: start=0, step=1, limit=6
    $region2: #{multimodal_forward.6} parent=1 // loop_pre_header
      _
    $region3: #{multimodal_forward.6} parent=1 // loop_header
      %s18 = sphi 0, %s22
      %p19 = scmp.ge.s32.totalorder %s18, 6
      %s25 = sphi 0, %s37
      %s26 = sphi 0, %s33
      %s27 = sphi 0, %s25
      %s28 = sphi 0, %s26
      %s29 = sphi 0, %s27
      %s30 = sphi 0, %s28
      %s40 = sphi 0, %s42
      %s43 = sphi 0, %s40
      %s44 = sphi 0, %s43
      %s60 = sphi 0, %s44
      %s68 = sphi 0, %s70
      %s71 = sphi 0, %s68
      %s72 = sphi 0, %s71
      %s88 = sphi 0, %s72
      %s96 = sphi 0, %s98
      %s99 = sphi 0, %s96
      %s100 = sphi 0, %s99
      %s116 = sphi 0, %s100
      %s124 = sphi 0, %s126
      %s127 = sphi 0, %s124
      %s128 = sphi 0, %s127
      %s144 = sphi 0, %s128
      %s152 = sphi 0, %s154
      %s155 = sphi 0, %s152
      %s156 = sphi 0, %s155
      %s172 = sphi 0, %s156
      %s180 = sphi 0, %s182
      %s183 = sphi 0, %s180
      %s184 = sphi 0, %s183
      %s200 = sphi 0, %s184
      %s206 = sphi 0, %s208
      %s209 = sphi 0, %s206
      %s210 = sphi 0, %s209
      %s226 = sphi 0, %s210
    $region4: #{multimodal_forward.6} parent=1 // loop_header_branch
      %21 = sbr.rel (%p19) target = $region8
    $region5: #{multimodal_forward.6} parent=1 // loop_body
      %s23 = ssub.s32 %s18, 1
      %s24 = ssub.s32 %s18, 2
      %s31 = sadd.s32 1, %s26
      %p32 = scmp.ge.s32.totalorder %s31, 2
      %s33 = scalar_select %p32, 0, %s31
      %s34 = sadd.s32 1, %s25
      %s35 = scalar_select %p32, %s34, %s25
      %p36 = scmp.ge.s32.totalorder %s35, 2
      %s37 = scalar_select %p36, 0, %s35
      %s38 = ssub.s32 %s25, %s37
      %p39 = scmp.eq.s32.totalorder %s38, 0
      %s41 = sadd.s32 %s40, 1
      %s42 = scalar_select %p39, %s40, %s41
      %p45 = pneg %p39
      %p46 = scmp.eq.s32.totalorder %s18, 3
      %p47 = por %p45, %p46
      %p48 = scmp.ne.s32.totalorder %s40, %s43
      %p49 = scmp.eq.s32.totalorder %s18, 0
      %p50 = por %p48, %p49
      %p51 = scmp.ne.s32.totalorder %s40, %s43
      %p52 = scmp.eq.s32.totalorder %s23, 3
      %p53 = por %p51, %p52
      %p54 = scmp.ne.s32.totalorder %s43, %s44
      %p55 = scmp.eq.s32.totalorder %s23, 0
      %p56 = por %p54, %p55
      %p57 = scmp.ne.s32.totalorder %s43, %s44
      %p58 = scmp.eq.s32.totalorder %s24, 3
      %p59 = por %p57, %p58
      %p61 = scmp.ne.s32.totalorder %s44, %s60
      %p62 = scmp.eq.s32.totalorder %s24, 0
      %p63 = por %p61, %p62
      %s64 = ssub.s32 %s25, %s37
      %s65 = ssub.s32 %s26, %s33
      %s66 = sor.u32 %s64, %s65
      %p67 = scmp.eq.s32.totalorder %s66, 0
      %s69 = sadd.s32 %s68, 1
      %s70 = scalar_select %p67, %s68, %s69
      %p73 = pneg %p67
      %p74 = scmp.eq.s32.totalorder %s18, 3
      %p75 = por %p73, %p74
      %p76 = scmp.ne.s32.totalorder %s68, %s71
      %p77 = scmp.eq.s32.totalorder %s18, 0
      %p78 = por %p76, %p77
      %p79 = scmp.ne.s32.totalorder %s68, %s71
      %p80 = scmp.eq.s32.totalorder %s23, 3
      %p81 = por %p79, %p80
      %p82 = scmp.ne.s32.totalorder %s71, %s72
      %p83 = scmp.eq.s32.totalorder %s23, 0
      %p84 = por %p82, %p83
      %p85 = scmp.ne.s32.totalorder %s71, %s72
      %p86 = scmp.eq.s32.totalorder %s24, 3
      %p87 = por %p85, %p86
      %p89 = scmp.ne.s32.totalorder %s72, %s88
      %p90 = scmp.eq.s32.totalorder %s24, 0
      %p91 = por %p89, %p90
      %s92 = ssub.s32 %s25, %s37
      %s93 = ssub.s32 %s26, %s33
      %s94 = sor.u32 %s92, %s93
      %p95 = scmp.eq.s32.totalorder %s94, 0
      %s97 = sadd.s32 %s96, 1
      %s98 = scalar_select %p95, %s96, %s97
      %p101 = pneg %p95
      %p102 = scmp.eq.s32.totalorder %s18, 3
      %p103 = por %p101, %p102
      %p104 = scmp.ne.s32.totalorder %s96, %s99
      %p105 = scmp.eq.s32.totalorder %s18, 0
      %p106 = por %p104, %p105
      %p107 = scmp.ne.s32.totalorder %s96, %s99
      %p108 = scmp.eq.s32.totalorder %s23, 3
      %p109 = por %p107, %p108
      %p110 = scmp.ne.s32.totalorder %s99, %s100
      %p111 = scmp.eq.s32.totalorder %s23, 0
      %p112 = por %p110, %p111
      %p113 = scmp.ne.s32.totalorder %s99, %s100
      %p114 = scmp.eq.s32.totalorder %s24, 3
      %p115 = por %p113, %p114
      %p117 = scmp.ne.s32.totalorder %s100, %s116
      %p118 = scmp.eq.s32.totalorder %s24, 0
      %p119 = por %p117, %p118
      %s120 = ssub.s32 %s25, %s37
      %s121 = ssub.s32 %s26, %s33
      %s122 = sor.u32 %s120, %s121
      %p123 = scmp.eq.s32.totalorder %s122, 0
      %s125 = sadd.s32 %s124, 1
      %s126 = scalar_select %p123, %s124, %s125
      %p129 = pneg %p123
      %p130 = scmp.eq.s32.totalorder %s18, 3
      %p131 = por %p129, %p130
      %p132 = scmp.ne.s32.totalorder %s124, %s127
      %p133 = scmp.eq.s32.totalorder %s18, 0
      %p134 = por %p132, %p133
      %p135 = scmp.ne.s32.totalorder %s124, %s127
      %p136 = scmp.eq.s32.totalorder %s23, 3
      %p137 = por %p135, %p136
      %p138 = scmp.ne.s32.totalorder %s127, %s128
      %p139 = scmp.eq.s32.totalorder %s23, 0
      %p140 = por %p138, %p139
      %p141 = scmp.ne.s32.totalorder %s127, %s128
      %p142 = scmp.eq.s32.totalorder %s24, 3
      %p143 = por %p141, %p142
      %p145 = scmp.ne.s32.totalorder %s128, %s144
      %p146 = scmp.eq.s32.totalorder %s24, 0
      %p147 = por %p145, %p146
      %s148 = ssub.s32 %s25, %s37
      %s149 = ssub.s32 %s26, %s33
      %s150 = sor.u32 %s148, %s149
      %p151 = scmp.eq.s32.totalorder %s150, 0
      %s153 = sadd.s32 %s152, 1
      %s154 = scalar_select %p151, %s152, %s153
      %p157 = pneg %p151
      %p158 = scmp.eq.s32.totalorder %s18, 3
      %p159 = por %p157, %p158
      %p160 = scmp.ne.s32.totalorder %s152, %s155
      %p161 = scmp.eq.s32.totalorder %s18, 0
      %p162 = por %p160, %p161
      %p163 = scmp.ne.s32.totalorder %s152, %s155
      %p164 = scmp.eq.s32.totalorder %s23, 3
      %p165 = por %p163, %p164
      %p166 = scmp.ne.s32.totalorder %s155, %s156
      %p167 = scmp.eq.s32.totalorder %s23, 0
      %p168 = por %p166, %p167
      %p169 = scmp.ne.s32.totalorder %s155, %s156
      %p170 = scmp.eq.s32.totalorder %s24, 3
      %p171 = por %p169, %p170
      %p173 = scmp.ne.s32.totalorder %s156, %s172
      %p174 = scmp.eq.s32.totalorder %s24, 0
      %p175 = por %p173, %p174
      %s176 = ssub.s32 %s25, %s37
      %s177 = ssub.s32 %s26, %s33
      %s178 = sor.u32 %s176, %s177
      %p179 = scmp.eq.s32.totalorder %s178, 0
      %s181 = sadd.s32 %s180, 1
      %s182 = scalar_select %p179, %s180, %s181
      %p185 = pneg %p179
      %p186 = scmp.eq.s32.totalorder %s18, 3
      %p187 = por %p185, %p186
      %p188 = scmp.ne.s32.totalorder %s180, %s183
      %p189 = scmp.eq.s32.totalorder %s18, 0
      %p190 = por %p188, %p189
      %p191 = scmp.ne.s32.totalorder %s180, %s183
      %p192 = scmp.eq.s32.totalorder %s23, 3
      %p193 = por %p191, %p192
      %p194 = scmp.ne.s32.totalorder %s183, %s184
      %p195 = scmp.eq.s32.totalorder %s23, 0
      %p196 = por %p194, %p195
      %p197 = scmp.ne.s32.totalorder %s183, %s184
      %p198 = scmp.eq.s32.totalorder %s24, 3
      %p199 = por %p197, %p198
      %p201 = scmp.ne.s32.totalorder %s184, %s200
      %p202 = scmp.eq.s32.totalorder %s24, 0
      %p203 = por %p201, %p202
      %s204 = ssub.s32 %s25, %s37
      %p205 = scmp.eq.s32.totalorder %s204, 0
      %s207 = sadd.s32 %s206, 1
      %s208 = scalar_select %p205, %s206, %s207
      %p211 = pneg %p205
      %p212 = scmp.eq.s32.totalorder %s18, 3
      %p213 = por %p211, %p212
      %p214 = scmp.ne.s32.totalorder %s206, %s209
      %p215 = scmp.eq.s32.totalorder %s18, 0
      %p216 = por %p214, %p215
      %p217 = scmp.ne.s32.totalorder %s206, %s209
      %p218 = scmp.eq.s32.totalorder %s23, 3
      %p219 = por %p217, %p218
      %p220 = scmp.ne.s32.totalorder %s209, %s210
      %p221 = scmp.eq.s32.totalorder %s23, 0
      %p222 = por %p220, %p221
      %p223 = scmp.ne.s32.totalorder %s209, %s210
      %p224 = scmp.eq.s32.totalorder %s24, 3
      %p225 = por %p223, %p224
      %p227 = scmp.ne.s32.totalorder %s210, %s226
      %p228 = scmp.eq.s32.totalorder %s24, 0
      %p229 = por %p227, %p228
      %p230 = scmp.le.s32.totalorder 1, %s18
      %p231 = scmp.lt.s32.totalorder %s18, 5
      %p232 = pnand %p230, %p231
      %p233 = pneg %p232
      // Predicated region
      $region9: #{multimodal_forward.6} parent=5 // pred_check
        _
      $region10: #{multimodal_forward.6} parent=5 // pred_check_branch
        %235 = sbr.rel (%p232) target = $region12
      $region11: #{multimodal_forward.6} parent=5 // pred_region
        %s236 = ssub.s32 %s18, 1
      $region12: #{multimodal_forward.6} parent=5 // pred_fallthru
        _
      %p237 = scmp.lt.s32.totalorder %s18, 4
      // Predicated region
      $region13: #{multimodal_forward.6} parent=5 // pred_check
        %p238 = pneg %p237
      $region14: #{multimodal_forward.6} parent=5 // pred_check_branch
        %240 = sbr.rel (%p238) target = $region16
      $region15: #{multimodal_forward.6} parent=5 // pred_region
        // Predicated region
        $region17: #{multimodal_forward.6} parent=15 // pred_check
          %p241 = pneg %p50
        $region18: #{multimodal_forward.6} parent=15 // pred_check_branch
          %243 = sbr.rel (%p241) target = $region20
        $region19: #{multimodal_forward.6} parent=15 // pred_region
          %p244 = scmp.lt.s32.totalorder %s25, 1
          %s245 = scalar_select %p244, %s25, 1
          %s246 = smul.addr %s245, 4
          %s247 = smul.addr %s246, 8
          %s248 = scalar_lea.vmem %s0, %s247
        $region20: #{multimodal_forward.6} parent=15 // pred_fallthru
          _
        // Predicated region
        $region21: #{multimodal_forward.6} parent=15 // pred_check
          %p249 = pneg %p78
        $region22: #{multimodal_forward.6} parent=15 // pred_check_branch
          %251 = sbr.rel (%p249) target = $region24
        $region23: #{multimodal_forward.6} parent=15 // pred_region
          %s252 = sand.u32 %s68, 1
          %s253 = scalar_lea.sflag [#allocation4], %s252
          %s254 = sand.u32 %s68, 1
          %s255 = smul.addr %s254, 192
          %s256 = scalar_lea.vmem [#allocation3], %s255
          %s258 = ssub.s32 3072, 3072
          %259 = vsyncadd %s253, %s258
          %s260 = smul.addr %s26, 48
          %s261 = smul.addr %s25, 96
          %s262 = sadd.s32 %s260, %s261
          %s263 = smul.addr %s262, 64
          %s264 = scalar_lea.hbm %s1, %s263
          %s265 = sshll.u32 %s256, 4
          %s266 = int_to_ptr.vmem [resolvable:$true] %s265
          %271 = dma.hbm_to_vmem [thread:$0]  %s264, 3072, %s266, %s253, 192, 192, 12
        $region24: #{multimodal_forward.6} parent=15 // pred_fallthru
          _
        // Predicated region
        $region25: #{multimodal_forward.6} parent=15 // pred_check
          %p272 = pneg %p106
        $region26: #{multimodal_forward.6} parent=15 // pred_check_branch
          %274 = sbr.rel (%p272) target = $region28
        $region27: #{multimodal_forward.6} parent=15 // pred_region
          %s275 = sand.u32 %s18, 1
          %s276 = scalar_lea.sflag [#allocation6], %s275
          %s277 = sand.u32 %s96, 1
          %s278 = smul.addr %s277, 64
          %s279 = scalar_lea.vmem [#allocation5], %s278
          %s281 = ssub.s32 1024, 1024
          %282 = vsyncadd %s276, %s281
          %s283 = smul.addr %s26, 16
          %s284 = smul.addr %s25, 32
          %s285 = sadd.s32 %s283, %s284
          %s286 = smul.addr %s285, 64
          %s287 = scalar_lea.hbm %s2, %s286
          %s288 = sshll.u32 %s279, 4
          %s289 = int_to_ptr.vmem [resolvable:$true] %s288
          %294 = dma.hbm_to_vmem [thread:$0]  %s287, 1024, %s289, %s276, 64, 64, 4
        $region28: #{multimodal_forward.6} parent=15 // pred_fallthru
          _
        // Predicated region
        $region29: #{multimodal_forward.6} parent=15 // pred_check
          %p295 = pneg %p134
        $region30: #{multimodal_forward.6} parent=15 // pred_check_branch
          %297 = sbr.rel (%p295) target = $region32
        $region31: #{multimodal_forward.6} parent=15 // pred_region
          %p298 = scmp.lt.s32.totalorder %s25, 1
          %s299 = scalar_select %p298, %s25, 1
          %p300 = scmp.lt.s32.totalorder %s26, 1
          %s301 = scalar_select %p300, %s26, 1
          %s302 = smul.addr %s301, 32
          %s303 = smul.addr %s299, 64
          %s304 = sadd.s32 %s302, %s303
          %s305 = smul.addr %s304, 4
          %s306 = scalar_lea.vmem %s3, %s305
        $region32: #{multimodal_forward.6} parent=15 // pred_fallthru
          _
        // Predicated region
        $region33: #{multimodal_forward.6} parent=15 // pred_check
          %p307 = pneg %p162
        $region34: #{multimodal_forward.6} parent=15 // pred_check_branch
          %309 = sbr.rel (%p307) target = $region36
        $region35: #{multimodal_forward.6} parent=15 // pred_region
          %s310 = sand.u32 %s18, 1
          %s311 = scalar_lea.sflag [#allocation6], %s310
          %s312 = sand.u32 %s152, 1
          %s313 = smul.addr %s312, 128
          %s314 = scalar_lea.vmem [#allocation7], %s313
          %s316 = ssub.s32 2048, 2048
          %317 = vsyncadd %s311, %s316
          %s318 = smul.addr %s26, 32
          %s319 = smul.addr %s25, 64
          %s320 = sadd.s32 %s318, %s319
          %s321 = smul.addr %s320, 64
          %s322 = scalar_lea.hbm %s4, %s321
          %s323 = sshll.u32 %s314, 4
          %s324 = int_to_ptr.vmem [resolvable:$true] %s323
          %329 = dma.hbm_to_vmem [thread:$0]  %s322, 2048, %s324, %s311, 64, 64, 4
        $region36: #{multimodal_forward.6} parent=15 // pred_fallthru
          _
        // Predicated region
        $region37: #{multimodal_forward.6} parent=15 // pred_check
          %p330 = pneg %p190
        $region38: #{multimodal_forward.6} parent=15 // pred_check_branch
          %332 = sbr.rel (%p330) target = $region40
        $region39: #{multimodal_forward.6} parent=15 // pred_region
          %p333 = scmp.lt.s32.totalorder %s25, 1
          %s334 = scalar_select %p333, %s25, 1
          %p335 = scmp.lt.s32.totalorder %s26, 1
          %s336 = scalar_select %p335, %s26, 1
          %s337 = smul.addr %s336, 3
          %s338 = smul.addr %s334, 6
          %s339 = sadd.s32 %s337, %s338
          %s340 = smul.addr %s339, 8
          %s341 = scalar_lea.vmem %s5, %s340
        $region40: #{multimodal_forward.6} parent=15 // pred_fallthru
          _
      $region16: #{multimodal_forward.6} parent=5 // pred_fallthru
        _
      %p342 = scmp.le.s32.totalorder 1, %s18
      %p343 = scmp.lt.s32.totalorder %s18, 5
      %p344 = pnand %p342, %p343
      %p345 = pneg %p344
      // Predicated region
      $region41: #{multimodal_forward.6} parent=5 // pred_check
        _
      $region42: #{multimodal_forward.6} parent=5 // pred_check_branch
        %347 = sbr.rel (%p344) target = $region44
      $region43: #{multimodal_forward.6} parent=5 // pred_region
        %s348 = ssub.s32 %s18, 1
        %s349 = sand.u32 %s71, 1
        %s350 = scalar_lea.sflag [#allocation4], %s349
        %s351 = sand.u32 %s71, 1
        %s352 = smul.addr %s351, 192
        %s353 = scalar_lea.vmem [#allocation3], %s352
        // Predicated region
        $region45: #{multimodal_forward.6} parent=43 // pred_check
          %p354 = pneg %p84
        $region46: #{multimodal_forward.6} parent=43 // pred_check_branch
          %356 = sbr.rel (%p354) target = $region48
        $region47: #{multimodal_forward.6} parent=43 // pred_region
          %357 = dma.done %s350, 3072
        $region48: #{multimodal_forward.6} parent=43 // pred_fallthru
          _
        %s358 = sand.u32 %s23, 1
        %s359 = scalar_lea.sflag [#allocation6], %s358
        %s360 = sand.u32 %s99, 1
        %s361 = smul.addr %s360, 64
        %s362 = scalar_lea.vmem [#allocation5], %s361
        // Predicated region
        $region49: #{multimodal_forward.6} parent=43 // pred_check
          %p363 = pneg %p112
        $region50: #{multimodal_forward.6} parent=43 // pred_check_branch
          %365 = sbr.rel (%p363) target = $region52
        $region51: #{multimodal_forward.6} parent=43 // pred_region
          %366 = dma.done %s359, 1024
        $region52: #{multimodal_forward.6} parent=43 // pred_fallthru
          _
        %s367 = sand.u32 %s23, 1
        %s368 = scalar_lea.sflag [#allocation6], %s367
        %s369 = sand.u32 %s155, 1
        %s370 = smul.addr %s369, 128
        %s371 = scalar_lea.vmem [#allocation7], %s370
        // Predicated region
        $region53: #{multimodal_forward.6} parent=43 // pred_check
          %p372 = pneg %p168
        $region54: #{multimodal_forward.6} parent=43 // pred_check_branch
          %374 = sbr.rel (%p372) target = $region56
        $region55: #{multimodal_forward.6} parent=43 // pred_region
          %375 = dma.done %s368, 2048
        $region56: #{multimodal_forward.6} parent=43 // pred_fallthru
          _
        %p376 = scmp.lt.s32.totalorder %s27, 1
        %s377 = scalar_select %p376, %s27, 1
        %s378 = smul.addr %s377, 4
        %s379 = smul.addr %s378, 8
        %s380 = scalar_lea.vmem %s0, %s379
        %p381 = pneg %p56
        %p382 = pneg %p53
        %s383 = sand.u32 %s71, 1
        %s384 = scalar_lea.sflag [#allocation4], %s383
        %s385 = sand.u32 %s71, 1
        %s386 = smul.addr %s385, 192
        %s387 = scalar_lea.vmem [#allocation3], %s386
        %p388 = pneg %p84
        %p389 = pneg %p81
        %s390 = sand.u32 %s23, 1
        %s391 = scalar_lea.sflag [#allocation6], %s390
        %s392 = sand.u32 %s99, 1
        %s393 = smul.addr %s392, 64
        %s394 = scalar_lea.vmem [#allocation5], %s393
        %p395 = pneg %p112
        %p396 = pneg %p109
        %p397 = scmp.lt.s32.totalorder %s27, 1
        %s398 = scalar_select %p397, %s27, 1
        %p399 = scmp.lt.s32.totalorder %s28, 1
        %s400 = scalar_select %p399, %s28, 1
        %s401 = smul.addr %s400, 32
        %s402 = smul.addr %s398, 64
        %s403 = sadd.s32 %s401, %s402
        %s404 = smul.addr %s403, 4
        %s405 = scalar_lea.vmem %s3, %s404
        %p406 = pneg %p140
        %p407 = pneg %p137
        %s408 = sand.u32 %s23, 1
        %s409 = scalar_lea.sflag [#allocation6], %s408
        %s410 = sand.u32 %s155, 1
        %s411 = smul.addr %s410, 128
        %s412 = scalar_lea.vmem [#allocation7], %s411
        %p413 = pneg %p168
        %p414 = pneg %p165
        %p415 = scmp.lt.s32.totalorder %s27, 1
        %s416 = scalar_select %p415, %s27, 1
        %p417 = scmp.lt.s32.totalorder %s28, 1
        %s418 = scalar_select %p417, %s28, 1
        %s419 = smul.addr %s418, 3
        %s420 = smul.addr %s416, 6
        %s421 = sadd.s32 %s419, %s420
        %s422 = smul.addr %s421, 8
        %s423 = scalar_lea.vmem %s5, %s422
        %p424 = pneg %p196
        %p425 = pneg %p193
        %p426 = pneg %p222
        %p427 = pneg %p219
        %p428 = scmp.lt.s32.totalorder %s27, 1
        %s429 = scalar_select %p428, %s27, 1
        %s430 = smul.addr %s429, 2
        %s431 = scalar_lea.vmem %s6, %s430
        %p432 = scmp.lt.s32.totalorder %s27, 1
        %s433 = scalar_select %p432, %s27, 1
        %s434 = smul.addr %s433, 4
        %s435 = smul.addr %s434, 8
        %s436 = scalar_lea.vmem %s0, %s435
        %p437 = scmp.lt.s32.totalorder %s27, 1
        %s438 = scalar_select %p437, %s27, 1
        %p439 = scmp.lt.s32.totalorder %s28, 1
        %s440 = scalar_select %p439, %s28, 1
        %s441 = smul.addr %s440, 32
        %s442 = smul.addr %s438, 64
        %s443 = sadd.s32 %s441, %s442
        %s444 = smul.addr %s443, 4
        %s445 = scalar_lea.vmem %s3, %s444
        %p446 = scmp.lt.s32.totalorder %s27, 1
        %s447 = scalar_select %p446, %s27, 1
        %p448 = scmp.lt.s32.totalorder %s28, 1
        %s449 = scalar_select %p448, %s28, 1
        %s450 = smul.addr %s449, 3
        %s451 = smul.addr %s447, 6
        %s452 = sadd.s32 %s450, %s451
        %s453 = smul.addr %s452, 8
        %s454 = scalar_lea.vmem %s5, %s453
        %p455 = scmp.lt.s32.totalorder %s27, 1
        %s456 = scalar_select %p455, %s27, 1
        %s457 = smul.addr %s456, 2
        %s458 = scalar_lea.vmem %s6, %s457
        %p460 = scmp.eq.s32.totalorder %s28, 0
        // Predicated region
        $region57: #{multimodal_forward.6} parent=43 // pred_check
          %p461 = pneg %p460
        $region58: #{multimodal_forward.6} parent=43 // pred_check_branch
          %463 = sbr.rel (%p461) target = $region60
        $region59: #{multimodal_forward.6} parent=43 // pred_region
          %v464 = vld [vmem:[%s436] sm:$0xff]
          %v465 = vld [vmem:[%s436 + $0x8] sm:$0xff]
          %466 = vst [vmem:[#allocation2] sm:$0xff] %v464
          %467 = vst [vmem:[#allocation2 + $0x8] sm:$0xff] %v465
          %s468 = scalar_lea.vmem %s436, 16
          %v469 = vld [vmem:[%s468] sm:$0xff]
          %v470 = vld [vmem:[%s468 + $0x8] sm:$0xff]
          %471 = vst [vmem:[#allocation2 + $0x10] sm:$0xff] %v469
          %472 = vst [vmem:[#allocation2 + $0x18] sm:$0xff] %v470
        $region60: #{multimodal_forward.6} parent=43 // pred_fallthru
          _
        %v473 = vld [vmem:[#allocation2] sm:$0xff]
        %v474 = vld [vmem:[#allocation2 + $0x8] sm:$0xff]
        %v475 = vld [vmem:[#allocation2 + $0x10] sm:$0xff]
        %v476 = vld [vmem:[#allocation2 + $0x18] sm:$0xff]
        %v477 = vld [vmem:[%s454] sm:$0xff]
        %v478 = vld [vmem:[%s454 + $0x8] sm:$0xff]
        %v479 = vld [vmem:[%s454 + $0x10] sm:$0xff]
        %v480 = vld [vmem:[%s353] sm:$0xff]
        %v481 = vld [vmem:[%s353 + $0x8] sm:$0xf]
        %v482 = vld [vmem:[%s353 + $0xc] sm:$0xff]
        %v483 = vld [vmem:[%s353 + $0x14] sm:$0xf]
        %v484 = vld [vmem:[%s353 + $0x18] sm:$0xff]
        %v485 = vld [vmem:[%s353 + $0x20] sm:$0xf]
        %v486 = vld [vmem:[%s353 + $0x24] sm:$0xff]
        %v487 = vld [vmem:[%s353 + $0x2c] sm:$0xf]
        %v488 = vld [vmem:[%s353 + $0x30] sm:$0xff]
        %v489 = vld [vmem:[%s353 + $0x38] sm:$0xf]
        %v490 = vld [vmem:[%s353 + $0x3c] sm:$0xff]
        %v491 = vld [vmem:[%s353 + $0x44] sm:$0xf]
        %v492 = vld [vmem:[%s353 + $0x48] sm:$0xff]
        %v493 = vld [vmem:[%s353 + $0x50] sm:$0xf]
        %v494 = vld [vmem:[%s353 + $0x54] sm:$0xff]
        %v495 = vld [vmem:[%s353 + $0x5c] sm:$0xf]
        %v496 = vld [vmem:[%s353 + $0x60] sm:$0xff]
        %v497 = vld [vmem:[%s353 + $0x68] sm:$0xf]
        %v498 = vld [vmem:[%s353 + $0x6c] sm:$0xff]
        %v499 = vld [vmem:[%s353 + $0x74] sm:$0xf]
        %v500 = vld [vmem:[%s353 + $0x78] sm:$0xff]
        %v501 = vld [vmem:[%s353 + $0x80] sm:$0xf]
        %v502 = vld [vmem:[%s353 + $0x84] sm:$0xff]
        %v503 = vld [vmem:[%s353 + $0x8c] sm:$0xf]
        %v504 = vld [vmem:[%s353 + $0x90] sm:$0xff]
        %v505 = vld [vmem:[%s353 + $0x98] sm:$0xf]
        %v506 = vld [vmem:[%s353 + $0x9c] sm:$0xff]
        %v507 = vld [vmem:[%s353 + $0xa4] sm:$0xf]
        %v508 = vld [vmem:[%s353 + $0xa8] sm:$0xff]
        %v509 = vld [vmem:[%s353 + $0xb0] sm:$0xf]
        %v510 = vld [vmem:[%s353 + $0xb4] sm:$0xff]
        %v511 = vld [vmem:[%s353 + $0xbc] sm:$0xf]
        %v512 = vld [vmem:[%s362] sm:$0xf]
        %v513 = vld [vmem:[%s362 + $0x4] sm:$0xf]
        %v514 = vld [vmem:[%s362 + $0x8] sm:$0xf]
        %v515 = vld [vmem:[%s362 + $0xc] sm:$0xf]
        %v516 = vld [vmem:[%s362 + $0x10] sm:$0xf]
        %v517 = vld [vmem:[%s362 + $0x14] sm:$0xf]
        %v518 = vld [vmem:[%s362 + $0x18] sm:$0xf]
        %v519 = vld [vmem:[%s362 + $0x1c] sm:$0xf]
        %v520 = vld [vmem:[%s362 + $0x20] sm:$0xf]
        %v521 = vld [vmem:[%s362 + $0x24] sm:$0xf]
        %v522 = vld [vmem:[%s362 + $0x28] sm:$0xf]
        %v523 = vld [vmem:[%s362 + $0x2c] sm:$0xf]
        %v524 = vld [vmem:[%s362 + $0x30] sm:$0xf]
        %v525 = vld [vmem:[%s362 + $0x34] sm:$0xf]
        %v526 = vld [vmem:[%s362 + $0x38] sm:$0xf]
        %v527 = vld [vmem:[%s362 + $0x3c] sm:$0xf]
        %v528 = vld [vmem:[%s445] sm:$0xff]
        %v529 = vld [vmem:[%s445 + $0x8] sm:$0xff]
        %v530 = vld [vmem:[%s445 + $0x10] sm:$0xff]
        %v531 = vld [vmem:[%s445 + $0x18] sm:$0xff]
        %v532 = vld [vmem:[%s445 + $0x20] sm:$0xff]
        %v533 = vld [vmem:[%s445 + $0x28] sm:$0xff]
        %v534 = vld [vmem:[%s445 + $0x30] sm:$0xff]
        %v535 = vld [vmem:[%s445 + $0x38] sm:$0xff]
        %v536 = vld [vmem:[%s445 + $0x40] sm:$0xff]
        %v537 = vld [vmem:[%s445 + $0x48] sm:$0xff]
        %v538 = vld [vmem:[%s445 + $0x50] sm:$0xff]
        %v539 = vld [vmem:[%s445 + $0x58] sm:$0xff]
        %v540 = vld [vmem:[%s445 + $0x60] sm:$0xff]
        %v541 = vld [vmem:[%s445 + $0x68] sm:$0xff]
        %v542 = vld [vmem:[%s445 + $0x70] sm:$0xff]
        %v543 = vld [vmem:[%s445 + $0x78] sm:$0xff]
        %v544 = vld [vmem:[%s371] sm:$0xf]
        %v545 = vld [vmem:[%s371 + $0x4] sm:$0xf]
        %v546 = vld [vmem:[%s371 + $0x8] sm:$0xf]
        %v547 = vld [vmem:[%s371 + $0xc] sm:$0xf]
        %v548 = vld [vmem:[%s371 + $0x10] sm:$0xf]
        %v549 = vld [vmem:[%s371 + $0x14] sm:$0xf]
        %v550 = vld [vmem:[%s371 + $0x18] sm:$0xf]
        %v551 = vld [vmem:[%s371 + $0x1c] sm:$0xf]
        %v552 = vld [vmem:[%s371 + $0x20] sm:$0xf]
        %v553 = vld [vmem:[%s371 + $0x24] sm:$0xf]
        %v554 = vld [vmem:[%s371 + $0x28] sm:$0xf]
        %v555 = vld [vmem:[%s371 + $0x2c] sm:$0xf]
        %v556 = vld [vmem:[%s371 + $0x30] sm:$0xf]
        %v557 = vld [vmem:[%s371 + $0x34] sm:$0xf]
        %v558 = vld [vmem:[%s371 + $0x38] sm:$0xf]
        %v559 = vld [vmem:[%s371 + $0x3c] sm:$0xf]
        %v560 = vld [vmem:[%s371 + $0x40] sm:$0xf]
        %v561 = vld [vmem:[%s371 + $0x44] sm:$0xf]
        %v562 = vld [vmem:[%s371 + $0x48] sm:$0xf]
        %v563 = vld [vmem:[%s371 + $0x4c] sm:$0xf]
        %v564 = vld [vmem:[%s371 + $0x50] sm:$0xf]
        %v565 = vld [vmem:[%s371 + $0x54] sm:$0xf]
        %v566 = vld [vmem:[%s371 + $0x58] sm:$0xf]
        %v567 = vld [vmem:[%s371 + $0x5c] sm:$0xf]
        %v568 = vld [vmem:[%s371 + $0x60] sm:$0xf]
        %v569 = vld [vmem:[%s371 + $0x64] sm:$0xf]
        %v570 = vld [vmem:[%s371 + $0x68] sm:$0xf]
        %v571 = vld [vmem:[%s371 + $0x6c] sm:$0xf]
        %v572 = vld [vmem:[%s371 + $0x70] sm:$0xf]
        %v573 = vld [vmem:[%s371 + $0x74] sm:$0xf]
        %v574 = vld [vmem:[%s371 + $0x78] sm:$0xf]
        %v575 = vld [vmem:[%s371 + $0x7c] sm:$0xf]
        %v576 = vpack.c.bf16 %v474, %v473
        %v577 = vpack.c.bf16 %v476, %v475
        %v578 = vlaneseq
        %v579 = vshrl.u32 %v578, 7
        %v580 = vsub.s32 0, %v579
        %v581 = vrot.slane %v477, %v580
        %v582 = vlaneseq
        %v583 = vshrl.u32 %v582, 7
        %v584 = vsub.s32 0, %v583
        %v585 = vrot.slane %v478, %v584
        %v586 = vlaneseq
        %v587 = vshrl.u32 %v586, 7
        %v588 = vsub.s32 0, %v587
        %v589 = vrot.slane %v479, %v588
        %v622 = vunpack.c.l.b16 %v480
        %v623 = vunpack.c.h.b16 %v480
        %v624 = vunpack.c.l.b16 %v481
        %v625 = vunpack.c.l.b16 %v482
        %v626 = vunpack.c.h.b16 %v482
        %v627 = vunpack.c.l.b16 %v483
        %v628 = vunpack.c.l.b16 %v484
        %v629 = vunpack.c.h.b16 %v484
        %v630 = vunpack.c.l.b16 %v485
        %v631 = vunpack.c.l.b16 %v486
        %v632 = vunpack.c.h.b16 %v486
        %v633 = vunpack.c.l.b16 %v487
        %v634 = vunpack.c.l.b16 %v488
        %v635 = vunpack.c.h.b16 %v488
        %v636 = vunpack.c.l.b16 %v489
        %v637 = vunpack.c.l.b16 %v490
        %v638 = vunpack.c.h.b16 %v490
        %v639 = vunpack.c.l.b16 %v491
        %v640 = vunpack.c.l.b16 %v492
        %v641 = vunpack.c.h.b16 %v492
        %v642 = vunpack.c.l.b16 %v493
        %v643 = vunpack.c.l.b16 %v494
        %v644 = vunpack.c.h.b16 %v494
        %v645 = vunpack.c.l.b16 %v495
        %v646 = vunpack.c.l.b16 %v496
        %v647 = vunpack.c.h.b16 %v496
        %v648 = vunpack.c.l.b16 %v497
        %v649 = vunpack.c.l.b16 %v498
        %v650 = vunpack.c.h.b16 %v498
        %v651 = vunpack.c.l.b16 %v499
        %v652 = vunpack.c.l.b16 %v500
        %v653 = vunpack.c.h.b16 %v500
        %v654 = vunpack.c.l.b16 %v501
        %v655 = vunpack.c.l.b16 %v502
        %v656 = vunpack.c.h.b16 %v502
        %v657 = vunpack.c.l.b16 %v503
        %v658 = vunpack.c.l.b16 %v504
        %v659 = vunpack.c.h.b16 %v504
        %v660 = vunpack.c.l.b16 %v505
        %v661 = vunpack.c.l.b16 %v506
        %v662 = vunpack.c.h.b16 %v506
        %v663 = vunpack.c.l.b16 %v507
        %v664 = vunpack.c.l.b16 %v508
        %v665 = vunpack.c.h.b16 %v508
        %v666 = vunpack.c.l.b16 %v509
        %v667 = vunpack.c.l.b16 %v510
        %v668 = vunpack.c.h.b16 %v510
        %v669 = vunpack.c.l.b16 %v511
        %v670 = vpack.c.b16 %v625, %v622
        %v671 = vpack.c.b16 %v626, %v623
        %v672 = vpack.c.b16 %v627, %v624
        %v673 = vpack.c.b16 %v631, %v628
        %v674 = vpack.c.b16 %v632, %v629
        %v675 = vpack.c.b16 %v633, %v630
        %v676 = vpack.c.b16 %v637, %v634
        %v677 = vpack.c.b16 %v638, %v635
        %v678 = vpack.c.b16 %v639, %v636
        %v679 = vpack.c.b16 %v643, %v640
        %v680 = vpack.c.b16 %v644, %v641
        %v681 = vpack.c.b16 %v645, %v642
        %v682 = vpack.c.b16 %v649, %v646
        %v683 = vpack.c.b16 %v650, %v647
        %v684 = vpack.c.b16 %v651, %v648
        %v685 = vpack.c.b16 %v655, %v652
        %v686 = vpack.c.b16 %v656, %v653
        %v687 = vpack.c.b16 %v657, %v654
        %v688 = vpack.c.b16 %v661, %v658
        %v689 = vpack.c.b16 %v662, %v659
        %v690 = vpack.c.b16 %v663, %v660
        %v691 = vpack.c.b16 %v667, %v664
        %v692 = vpack.c.b16 %v668, %v665
        %v693 = vpack.c.b16 %v669, %v666
        %718 = vmatprep.subr.bf16.mxu0 %v692
        %719 = vmatpush1.bf16.msra.mxu0 %v691
        %720 = vmatprep.subr.bf16.mxu0 %v689
        %721 = vmatpush1.bf16.msra.mxu0 %v688
        %722 = vmatprep.subr.bf16.mxu0 %v686
        %723 = vmatpush1.bf16.msra.mxu0 %v685
        %724 = vmatprep.subr.bf16.mxu0 %v683
        %725 = vmatpush1.bf16.msra.mxu0 %v682
        %726 = vmatprep.subr.bf16.mxu0 %v680
        %727 = vmatpush1.bf16.msra.mxu0 %v679
        %728 = vmatprep.subr.bf16.mxu0 %v677
        %729 = vmatpush1.bf16.msra.mxu0 %v676
        %730 = vmatprep.subr.bf16.mxu0 %v674
        %731 = vmatpush1.bf16.msra.mxu0 %v673
        %732 = vmatprep.subr.bf16.mxu0 %v671
        %733 = vmatpush1.bf16.msra.mxu0 %v670
        %734 = vmatprep.subr.bf16.mxu0 0
        %735 = vmatpush2.bf16.msra.mxu0 0
        %736 = vmatprep.subr.bf16.mxu0 0
        %737 = vmatpush2.bf16.msra.mxu0 0
        %738 = vmatprep.subr.bf16.mxu0 0
        %739 = vmatpush2.bf16.msra.mxu0 0
        %740 = vmatprep.subr.bf16.mxu0 0
        %741 = vmatpush2.bf16.msra.mxu0 0
        %742 = vmatprep.subr.bf16.mxu0 0
        %743 = vmatpush2.bf16.msra.mxu0 0
        %744 = vmatprep.subr.bf16.mxu0 0
        %745 = vmatpush2.bf16.msra.mxu0 0
        %746 = vmatprep.subr.bf16.mxu0 0
        %747 = vmatpush2.bf16.msra.mxu0 0
        %748 = vmatprep.subr.bf16.mxu0 0
        %749 = vmatpush2.bf16.msra.mxu0 0
        %750 = vmatprep.mubr.bf16.mxu0 0
        %751 = vmatmul.mubr.bf16.gmra.mxu0 %v576
        %v752 = vpop.f32.mrf.mxu0
        %v753 = vadd.f32 %v581, %v752
        %v754 = vpop.f32.mrf.mxu0
        %v755 = vadd.f32 %v585, %v754
        %v756 = vpop.f32.mrf.mxu0
        %v757 = vadd.f32 %v581, %v756
        %v758 = vpop.f32.mrf.mxu0
        %v759 = vadd.f32 %v585, %v758
        %760 = vmatprep.mubr.bf16.mxu0 0
        %761 = vmatmul.mubr.bf16.gmra.mxu0 %v577
        %v762 = vpop.f32.mrf.mxu0
        %v763 = vadd.f32 %v581, %v762
        %v764 = vpop.f32.mrf.mxu0
        %v765 = vadd.f32 %v585, %v764
        %v766 = vpop.f32.mrf.mxu0
        %v767 = vadd.f32 %v581, %v766
        %v768 = vpop.f32.mrf.mxu0
        %v769 = vadd.f32 %v585, %v768
        %770 = vdwg.mxu0
        %771 = vmatprep.subr.bf16.mxu0 0
        %772 = vmatpush1.bf16.msra.mxu0 %v693
        %773 = vmatprep.subr.bf16.mxu0 0
        %774 = vmatpush1.bf16.msra.mxu0 %v690
        %775 = vmatprep.subr.bf16.mxu0 0
        %776 = vmatpush1.bf16.msra.mxu0 %v687
        %777 = vmatprep.subr.bf16.mxu0 0
        %778 = vmatpush1.bf16.msra.mxu0 %v684
        %779 = vmatprep.subr.bf16.mxu0 0
        %780 = vmatpush1.bf16.msra.mxu0 %v681
        %781 = vmatprep.subr.bf16.mxu0 0
        %782 = vmatpush1.bf16.msra.mxu0 %v678
        %783 = vmatprep.subr.bf16.mxu0 0
        %784 = vmatpush1.bf16.msra.mxu0 %v675
        %785 = vmatprep.subr.bf16.mxu0 0
        %786 = vmatpush1.bf16.msra.mxu0 %v672
        %787 = vmatprep.subr.bf16.mxu0 0
        %788 = vmatpush2.bf16.msra.mxu0 0
        %789 = vmatprep.subr.bf16.mxu0 0
        %790 = vmatpush2.bf16.msra.mxu0 0
        %791 = vmatprep.subr.bf16.mxu0 0
        %792 = vmatpush2.bf16.msra.mxu0 0
        %793 = vmatprep.subr.bf16.mxu0 0
        %794 = vmatpush2.bf16.msra.mxu0 0
        %795 = vmatprep.subr.bf16.mxu0 0
        %796 = vmatpush2.bf16.msra.mxu0 0
        %797 = vmatprep.subr.bf16.mxu0 0
        %798 = vmatpush2.bf16.msra.mxu0 0
        %799 = vmatprep.subr.bf16.mxu0 0
        %800 = vmatpush2.bf16.msra.mxu0 0
        %801 = vmatprep.subr.bf16.mxu0 0
        %802 = vmatpush2.bf16.msra.mxu0 0
        %803 = vmatprep.mubr.bf16.mxu0 0
        %804 = vmatmul.mubr.bf16.gmra.mxu0 %v576
        %v805 = vpop.f32.mrf.mxu0
        %v806 = vadd.f32 %v589, %v805
        %v807 = vpop.f32.mrf.mxu0
        %v808 = vpop.f32.mrf.mxu0
        %v809 = vadd.f32 %v589, %v808
        %v810 = vpop.f32.mrf.mxu0
        %811 = vmatprep.mubr.bf16.mxu0 0
        %812 = vmatmul.mubr.bf16.gmra.mxu0 %v577
        %v813 = vpop.f32.mrf.mxu0
        %v814 = vadd.f32 %v589, %v813
        %v815 = vpop.f32.mrf.mxu0
        %v816 = vpop.f32.mrf.mxu0
        %v817 = vadd.f32 %v589, %v816
        %v818 = vpop.f32.mrf.mxu0
        %819 = vdwg.mxu0
        %v820 = vmul.f32 %v753, 0.17677669
        %v821 = vmul.f32 %v757, 0.17677669
        %v822 = vmul.f32 %v763, 0.17677669
        %v823 = vmul.f32 %v767, 0.17677669
        %v824 = vpack.c.bf16 %v821, %v820
        %v825 = vpack.c.bf16 %v823, %v822
        %v826 = vpack.c.bf16 %v759, %v755
        %v827 = vpack.c.bf16 %v769, %v765
        %v828 = vpack.c.bf16 %v809, %v806
        %v829 = vpack.c.bf16 %v817, %v814
        %vm830 = vcmask 261120
        %v832 = vsel %vm830, %v824, 0
        %v835 = vsel %vm830, %v826, 0
        %837 = vmatprep.subr.bf16.mxu0 0
        %838 = vmatpush1.bf16.xpose.msra.mxu0 0
        %839 = vmatprep.subr.bf16.mxu0 0
        %840 = vmatpush1.bf16.xpose.msra.mxu0 0
        %841 = vmatprep.subr.bf16.mxu0 0
        %842 = vmatpush1.bf16.xpose.msra.mxu0 0
        %843 = vmatprep.subr.bf16.mxu0 0
        %844 = vmatpush1.bf16.xpose.msra.mxu0 0
        %845 = vmatprep.subr.bf16.mxu0 0
        %846 = vmatpush1.bf16.xpose.msra.mxu0 0
        %847 = vmatprep.subr.bf16.mxu0 0
        %848 = vmatpush1.bf16.xpose.msra.mxu0 0
        %849 = vmatprep.subr.bf16.mxu0 0
        %850 = vmatpush1.bf16.xpose.msra.mxu0 0
        %851 = vmatprep.subr.bf16.mxu0 0
        %852 = vmatpush1.bf16.xpose.msra.mxu0 %v835
        %853 = vmatprep.subr.bf16.mxu0 0
        %854 = vmatpush2.bf16.xpose.msra.mxu0 0
        %855 = vmatprep.subr.bf16.mxu0 0
        %856 = vmatpush2.bf16.xpose.msra.mxu0 0
        %857 = vmatprep.subr.bf16.mxu0 0
        %858 = vmatpush2.bf16.xpose.msra.mxu0 0
        %859 = vmatprep.subr.bf16.mxu0 0
        %860 = vmatpush2.bf16.xpose.msra.mxu0 0
        %861 = vmatprep.subr.bf16.mxu0 0
        %862 = vmatpush2.bf16.xpose.msra.mxu0 0
        %863 = vmatprep.subr.bf16.mxu0 0
        %864 = vmatpush2.bf16.xpose.msra.mxu0 0
        %865 = vmatprep.subr.bf16.mxu0 0
        %866 = vmatpush2.bf16.xpose.msra.mxu0 0
        %867 = vmatprep.subr.bf16.mxu0 0
        %868 = vmatpush2.bf16.xpose.msra.mxu0 0
        %869 = vmatprep.mubr.bf16.mxu0 0
        %870 = vmatmul.mubr.bf16.gmra.mxu0 %v832
        %v871 = vpop.f32.mrf.mxu0
        %v872 = vadd.f32 0.0, %v871
        %v873 = vpop.f32.mrf.mxu0
        %v874 = vpop.f32.mrf.mxu0
        %v875 = vadd.f32 0.0, %v874
        %v876 = vpop.f32.mrf.mxu0
        %877 = vdwg.mxu0
        %vm878 = vcmask 130048
        %v879 = vsel %vm878, %v872, -inf
        %880 = vmax.xlane.f32.xlu0 %v879
        %v881 = vpop.xlane.xlu0 %880
        %v882 = vsel %vm878, %v875, -inf
        %883 = vmax.xlane.f32.xlu0 %v882
        %v884 = vpop.xlane.xlu0 %883
        %v885 = vsub.f32 %v872, %v881
        %v886 = vsub.f32 %v875, %v884
        %v887 = vmul.f32 %v885, 1.442695
        %v888 = vpow.pop %v887
        %v889 = vmul.f32 %v886, 1.442695
        %v890 = vpow.pop %v889
        %v891 = vsel %vm878, %v888, 0.0
        %892 = vadd.xlane.f32.xlu0 %v891
        %v893 = vpop.xlane.xlu0 %892
        %v894 = vsel %vm878, %v890, 0.0
        %895 = vadd.xlane.f32.xlu0 %v894
        %v896 = vpop.xlane.xlu0 %895
        %v897 = vrcp.pop %v893
        %v898 = vrcp.pop %v896
        %v899 = vmul.f32 %v888, %v897
        %v900 = vmul.f32 %v890, %v898
        %v901 = vpack.c.bf16 %v900, %v899
        %v903 = vsel %vm878, %v901, 0
        %905 = vmatprep.subr.bf16.mxu0 0
        %906 = vmatpush1.bf16.msra.mxu0 0
        %907 = vmatprep.subr.bf16.mxu0 0
        %908 = vmatpush1.bf16.msra.mxu0 0
        %909 = vmatprep.subr.bf16.mxu0 0
        %910 = vmatpush1.bf16.msra.mxu0 0
        %911 = vmatprep.subr.bf16.mxu0 0
        %912 = vmatpush1.bf16.msra.mxu0 0
        %913 = vmatprep.subr.bf16.mxu0 0
        %914 = vmatpush1.bf16.msra.mxu0 0
        %915 = vmatprep.subr.bf16.mxu0 0
        %916 = vmatpush1.bf16.msra.mxu0 0
        %917 = vmatprep.subr.bf16.mxu0 0
        %918 = vmatpush1.bf16.msra.mxu0 0
        %919 = vmatprep.subr.bf16.mxu0 0
        %920 = vmatpush1.bf16.msra.mxu0 %v828
        %921 = vmatprep.subr.bf16.mxu0 0
        %922 = vmatpush2.bf16.msra.mxu0 0
        %923 = vmatprep.subr.bf16.mxu0 0
        %924 = vmatpush2.bf16.msra.mxu0 0
        %925 = vmatprep.subr.bf16.mxu0 0
        %926 = vmatpush2.bf16.msra.mxu0 0
        %927 = vmatprep.subr.bf16.mxu0 0
        %928 = vmatpush2.bf16.msra.mxu0 0
        %929 = vmatprep.subr.bf16.mxu0 0
        %930 = vmatpush2.bf16.msra.mxu0 0
        %931 = vmatprep.subr.bf16.mxu0 0
        %932 = vmatpush2.bf16.msra.mxu0 0
        %933 = vmatprep.subr.bf16.mxu0 0
        %934 = vmatpush2.bf16.msra.mxu0 0
        %935 = vmatprep.subr.bf16.mxu0 0
        %936 = vmatpush2.bf16.msra.mxu0 0
        %937 = vmatprep.mubr.bf16.mxu0 0
        %938 = vmatmul.mubr.bf16.gmra.mxu0 %v903
        %v939 = vpop.f32.mrf.mxu0
        %v940 = vadd.f32 0.0, %v939
        %v941 = vpop.f32.mrf.mxu0
        %v942 = vpop.f32.mrf.mxu0
        %v943 = vadd.f32 0.0, %v942
        %v944 = vpop.f32.mrf.mxu0
        %945 = vdwg.mxu0
        %v946 = vpack.c.bf16 %v943, %v940
        %948 = vrot.lane.b32.xlu0 %v824, 96
        %v949 = vpop.permute.xlu0 %948
        %951 = vrot.lane.b32.xlu0 %v826, 96
        %v952 = vpop.permute.xlu0 %951
        %v954 = vsel %vm830, %v949, 0
        %v957 = vsel %vm830, %v952, 0
        %959 = vmatprep.subr.bf16.mxu0 0
        %960 = vmatpush1.bf16.xpose.msra.mxu0 0
        %961 = vmatprep.subr.bf16.mxu0 0
        %962 = vmatpush1.bf16.xpose.msra.mxu0 0
        %963 = vmatprep.subr.bf16.mxu0 0
        %964 = vmatpush1.bf16.xpose.msra.mxu0 0
        %965 = vmatprep.subr.bf16.mxu0 0
        %966 = vmatpush1.bf16.xpose.msra.mxu0 0
        %967 = vmatprep.subr.bf16.mxu0 0
        %968 = vmatpush1.bf16.xpose.msra.mxu0 0
        %969 = vmatprep.subr.bf16.mxu0 0
        %970 = vmatpush1.bf16.xpose.msra.mxu0 0
        %971 = vmatprep.subr.bf16.mxu0 0
        %972 = vmatpush1.bf16.xpose.msra.mxu0 0
        %973 = vmatprep.subr.bf16.mxu0 0
        %974 = vmatpush1.bf16.xpose.msra.mxu0 %v957
        %975 = vmatprep.subr.bf16.mxu0 0
        %976 = vmatpush2.bf16.xpose.msra.mxu0 0
        %977 = vmatprep.subr.bf16.mxu0 0
        %978 = vmatpush2.bf16.xpose.msra.mxu0 0
        %979 = vmatprep.subr.bf16.mxu0 0
        %980 = vmatpush2.bf16.xpose.msra.mxu0 0
        %981 = vmatprep.subr.bf16.mxu0 0
        %982 = vmatpush2.bf16.xpose.msra.mxu0 0
        %983 = vmatprep.subr.bf16.mxu0 0
        %984 = vmatpush2.bf16.xpose.msra.mxu0 0
        %985 = vmatprep.subr.bf16.mxu0 0
        %986 = vmatpush2.bf16.xpose.msra.mxu0 0
        %987 = vmatprep.subr.bf16.mxu0 0
        %988 = vmatpush2.bf16.xpose.msra.mxu0 0
        %989 = vmatprep.subr.bf16.mxu0 0
        %990 = vmatpush2.bf16.xpose.msra.mxu0 0
        %991 = vmatprep.mubr.bf16.mxu0 0
        %992 = vmatmul.mubr.bf16.gmra.mxu0 %v954
        %v993 = vpop.f32.mrf.mxu0
        %v994 = vadd.f32 0.0, %v993
        %v995 = vpop.f32.mrf.mxu0
        %v996 = vpop.f32.mrf.mxu0
        %v997 = vadd.f32 0.0, %v996
        %v998 = vpop.f32.mrf.mxu0
        %999 = vdwg.mxu0
        %v1000 = vsel %vm878, %v994, -inf
        %1001 = vmax.xlane.f32.xlu0 %v1000
        %v1002 = vpop.xlane.xlu0 %1001
        %v1003 = vsel %vm878, %v997, -inf
        %1004 = vmax.xlane.f32.xlu0 %v1003
        %v1005 = vpop.xlane.xlu0 %1004
        %v1006 = vsub.f32 %v994, %v1002
        %v1007 = vsub.f32 %v997, %v1005
        %v1008 = vmul.f32 %v1006, 1.442695
        %v1009 = vpow.pop %v1008
        %v1010 = vmul.f32 %v1007, 1.442695
        %v1011 = vpow.pop %v1010
        %v1012 = vsel %vm878, %v1009, 0.0
        %1013 = vadd.xlane.f32.xlu0 %v1012
        %v1014 = vpop.xlane.xlu0 %1013
        %v1015 = vsel %vm878, %v1011, 0.0
        %1016 = vadd.xlane.f32.xlu0 %v1015
        %v1017 = vpop.xlane.xlu0 %1016
        %v1018 = vrcp.pop %v1014
        %v1019 = vrcp.pop %v1017
        %v1020 = vmul.f32 %v1009, %v1018
        %v1021 = vmul.f32 %v1011, %v1019
        %v1022 = vpack.c.bf16 %v1021, %v1020
        %1024 = vrot.lane.b32.xlu0 %v828, 96
        %v1025 = vpop.permute.xlu0 %1024
        %v1028 = vsel %vm878, %v1022, 0
        %1030 = vmatprep.subr.bf16.mxu0 0
        %1031 = vmatpush1.bf16.msra.mxu0 0
        %1032 = vmatprep.subr.bf16.mxu0 0
        %1033 = vmatpush1.bf16.msra.mxu0 0
        %1034 = vmatprep.subr.bf16.mxu0 0
        %1035 = vmatpush1.bf16.msra.mxu0 0
        %1036 = vmatprep.subr.bf16.mxu0 0
        %1037 = vmatpush1.bf16.msra.mxu0 0
        %1038 = vmatprep.subr.bf16.mxu0 0
        %1039 = vmatpush1.bf16.msra.mxu0 0
        %1040 = vmatprep.subr.bf16.mxu0 0
        %1041 = vmatpush1.bf16.msra.mxu0 0
        %1042 = vmatprep.subr.bf16.mxu0 0
        %1043 = vmatpush1.bf16.msra.mxu0 0
        %1044 = vmatprep.subr.bf16.mxu0 0
        %1045 = vmatpush1.bf16.msra.mxu0 %v1025
        %1046 = vmatprep.subr.bf16.mxu0 0
        %1047 = vmatpush2.bf16.msra.mxu0 0
        %1048 = vmatprep.subr.bf16.mxu0 0
        %1049 = vmatpush2.bf16.msra.mxu0 0
        %1050 = vmatprep.subr.bf16.mxu0 0
        %1051 = vmatpush2.bf16.msra.mxu0 0
        %1052 = vmatprep.subr.bf16.mxu0 0
        %1053 = vmatpush2.bf16.msra.mxu0 0
        %1054 = vmatprep.subr.bf16.mxu0 0
        %1055 = vmatpush2.bf16.msra.mxu0 0
        %1056 = vmatprep.subr.bf16.mxu0 0
        %1057 = vmatpush2.bf16.msra.mxu0 0
        %1058 = vmatprep.subr.bf16.mxu0 0
        %1059 = vmatpush2.bf16.msra.mxu0 0
        %1060 = vmatprep.subr.bf16.mxu0 0
        %1061 = vmatpush2.bf16.msra.mxu0 0
        %1062 = vmatprep.mubr.bf16.mxu0 0
        %1063 = vmatmul.mubr.bf16.gmra.mxu0 %v1028
        %v1064 = vpop.f32.mrf.mxu0
        %v1065 = vadd.f32 0.0, %v1064
        %v1066 = vpop.f32.mrf.mxu0
        %v1067 = vpop.f32.mrf.mxu0
        %v1068 = vadd.f32 0.0, %v1067
        %v1069 = vpop.f32.mrf.mxu0
        %1070 = vdwg.mxu0
        %v1071 = vpack.c.bf16 %v1068, %v1065
        %v1076 = vunpack.c.l.b16 %v516
        %v1077 = vunpack.c.l.b16 %v517
        %v1078 = vunpack.c.l.b16 %v518
        %v1079 = vunpack.c.l.b16 %v519
        %v1080 = vpack.c.b16 %v1077, %v1076
        %v1081 = vpack.c.b16 %v1079, %v1078
        %v1085 = vsel %vm830, %v1071, 0
        %1087 = vmatprep.subr.bf16.mxu0 0
        %1088 = vmatpush1.bf16.msra.mxu0 0
        %1089 = vmatprep.subr.bf16.mxu0 0
        %1090 = vmatpush1.bf16.msra.mxu0 0
        %1091 = vmatprep.subr.bf16.mxu0 0
        %1092 = vmatpush1.bf16.msra.mxu0 0
        %1093 = vmatprep.subr.bf16.mxu0 0
        %1094 = vmatpush1.bf16.msra.mxu0 0
        %1095 = vmatprep.subr.bf16.mxu0 0
        %1096 = vmatpush1.bf16.msra.mxu0 0
        %1097 = vmatprep.subr.bf16.mxu0 0
        %1098 = vmatpush1.bf16.msra.mxu0 0
        %1099 = vmatprep.subr.bf16.mxu0 0
        %1100 = vmatpush1.bf16.msra.mxu0 %v1081
        %1101 = vmatprep.subr.bf16.mxu0 0
        %1102 = vmatpush1.bf16.msra.mxu0 %v1080
        %1103 = vmatprep.subr.bf16.mxu0 0
        %1104 = vmatpush2.bf16.msra.mxu0 0
        %1105 = vmatprep.subr.bf16.mxu0 0
        %1106 = vmatpush2.bf16.msra.mxu0 0
        %1107 = vmatprep.subr.bf16.mxu0 0
        %1108 = vmatpush2.bf16.msra.mxu0 0
        %1109 = vmatprep.subr.bf16.mxu0 0
        %1110 = vmatpush2.bf16.msra.mxu0 0
        %1111 = vmatprep.subr.bf16.mxu0 0
        %1112 = vmatpush2.bf16.msra.mxu0 0
        %1113 = vmatprep.subr.bf16.mxu0 0
        %1114 = vmatpush2.bf16.msra.mxu0 0
        %1115 = vmatprep.subr.bf16.mxu0 0
        %1116 = vmatpush2.bf16.msra.mxu0 0
        %1117 = vmatprep.subr.bf16.mxu0 0
        %1118 = vmatpush2.bf16.msra.mxu0 0
        %1119 = vmatprep.mubr.bf16.mxu0 0
        %1120 = vmatmul.mubr.bf16.gmra.mxu0 %v1085
        %v1121 = vpop.f32.mrf.mxu0
        %v1122 = vadd.f32 0.0, %v1121
        %v1123 = vpop.f32.mrf.mxu0
        %v1124 = vpop.f32.mrf.mxu0
        %v1125 = vadd.f32 0.0, %v1124
        %v1126 = vpop.f32.mrf.mxu0
        %1127 = vdwg.mxu0
        %v1132 = vunpack.c.l.b16 %v512
        %v1133 = vunpack.c.l.b16 %v513
        %v1134 = vunpack.c.l.b16 %v514
        %v1135 = vunpack.c.l.b16 %v515
        %v1136 = vpack.c.b16 %v1133, %v1132
        %v1137 = vpack.c.b16 %v1135, %v1134
        %v1141 = vsel %vm830, %v946, 0
        %1143 = vmatprep.subr.bf16.mxu0 0
        %1144 = vmatpush1.bf16.msra.mxu0 0
        %1145 = vmatprep.subr.bf16.mxu0 0
        %1146 = vmatpush1.bf16.msra.mxu0 0
        %1147 = vmatprep.subr.bf16.mxu0 0
        %1148 = vmatpush1.bf16.msra.mxu0 0
        %1149 = vmatprep.subr.bf16.mxu0 0
        %1150 = vmatpush1.bf16.msra.mxu0 0
        %1151 = vmatprep.subr.bf16.mxu0 0
        %1152 = vmatpush1.bf16.msra.mxu0 0
        %1153 = vmatprep.subr.bf16.mxu0 0
        %1154 = vmatpush1.bf16.msra.mxu0 0
        %1155 = vmatprep.subr.bf16.mxu0 0
        %1156 = vmatpush1.bf16.msra.mxu0 %v1137
        %1157 = vmatprep.subr.bf16.mxu0 0
        %1158 = vmatpush1.bf16.msra.mxu0 %v1136
        %1159 = vmatprep.subr.bf16.mxu0 0
        %1160 = vmatpush2.bf16.msra.mxu0 0
        %1161 = vmatprep.subr.bf16.mxu0 0
        %1162 = vmatpush2.bf16.msra.mxu0 0
        %1163 = vmatprep.subr.bf16.mxu0 0
        %1164 = vmatpush2.bf16.msra.mxu0 0
        %1165 = vmatprep.subr.bf16.mxu0 0
        %1166 = vmatpush2.bf16.msra.mxu0 0
        %1167 = vmatprep.subr.bf16.mxu0 0
        %1168 = vmatpush2.bf16.msra.mxu0 0
        %1169 = vmatprep.subr.bf16.mxu0 0
        %1170 = vmatpush2.bf16.msra.mxu0 0
        %1171 = vmatprep.subr.bf16.mxu0 0
        %1172 = vmatpush2.bf16.msra.mxu0 0
        %1173 = vmatprep.subr.bf16.mxu0 0
        %1174 = vmatpush2.bf16.msra.mxu0 0
        %1175 = vmatprep.mubr.bf16.mxu0 0
        %1176 = vmatmul.mubr.bf16.gmra.mxu0 %v1141
        %v1177 = vpop.f32.mrf.mxu0
        %v1178 = vadd.f32 %v1122, %v1177
        %v1179 = vpop.f32.mrf.mxu0
        %v1180 = vpop.f32.mrf.mxu0
        %v1181 = vadd.f32 %v1125, %v1180
        %v1182 = vpop.f32.mrf.mxu0
        %1183 = vdwg.mxu0
        %1184 = vrot.lane.b32.xlu0 %v824, 64
        %v1185 = vpop.permute.xlu0 %1184
        %1186 = vrot.lane.b32.xlu0 %v826, 64
        %v1187 = vpop.permute.xlu0 %1186
        %v1189 = vsel %vm830, %v1185, 0
        %v1192 = vsel %vm830, %v1187, 0
        %1194 = vmatprep.subr.bf16.mxu0 0
        %1195 = vmatpush1.bf16.xpose.msra.mxu0 0
        %1196 = vmatprep.subr.bf16.mxu0 0
        %1197 = vmatpush1.bf16.xpose.msra.mxu0 0
        %1198 = vmatprep.subr.bf16.mxu0 0
        %1199 = vmatpush1.bf16.xpose.msra.mxu0 0
        %1200 = vmatprep.subr.bf16.mxu0 0
        %1201 = vmatpush1.bf16.xpose.msra.mxu0 0
        %1202 = vmatprep.subr.bf16.mxu0 0
        %1203 = vmatpush1.bf16.xpose.msra.mxu0 0
        %1204 = vmatprep.subr.bf16.mxu0 0
        %1205 = vmatpush1.bf16.xpose.msra.mxu0 0
        %1206 = vmatprep.subr.bf16.mxu0 0
        %1207 = vmatpush1.bf16.xpose.msra.mxu0 0
        %1208 = vmatprep.subr.bf16.mxu0 0
        %1209 = vmatpush1.bf16.xpose.msra.mxu0 %v1192
        %1210 = vmatprep.subr.bf16.mxu0 0
        %1211 = vmatpush2.bf16.xpose.msra.mxu0 0
        %1212 = vmatprep.subr.bf16.mxu0 0
        %1213 = vmatpush2.bf16.xpose.msra.mxu0 0
        %1214 = vmatprep.subr.bf16.mxu0 0
        %1215 = vmatpush2.bf16.xpose.msra.mxu0 0
        %1216 = vmatprep.subr.bf16.mxu0 0
        %1217 = vmatpush2.bf16.xpose.msra.mxu0 0
        %1218 = vmatprep.subr.bf16.mxu0 0
        %1219 = vmatpush2.bf16.xpose.msra.mxu0 0
        %1220 = vmatprep.subr.bf16.mxu0 0
        %1221 = vmatpush2.bf16.xpose.msra.mxu0 0
        %1222 = vmatprep.subr.bf16.mxu0 0
        %1223 = vmatpush2.bf16.xpose.msra.mxu0 0
        %1224 = vmatprep.subr.bf16.mxu0 0
        %1225 = vmatpush2.bf16.xpose.msra.mxu0 0
        %1226 = vmatprep.mubr.bf16.mxu0 0
        %1227 = vmatmul.mubr.bf16.gmra.mxu0 %v1189
        %v1228 = vpop.f32.mrf.mxu0
        %v1229 = vadd.f32 0.0, %v1228
        %v1230 = vpop.f32.mrf.mxu0
        %v1231 = vpop.f32.mrf.mxu0
        %v1232 = vadd.f32 0.0, %v1231
        %v1233 = vpop.f32.mrf.mxu0
        %1234 = vdwg.mxu0
        %v1235 = vsel %vm878, %v1229, -inf
        %1236 = vmax.xlane.f32.xlu0 %v1235
        %v1237 = vpop.xlane.xlu0 %1236
        %v1238 = vsel %vm878, %v1232, -inf
        %1239 = vmax.xlane.f32.xlu0 %v1238
        %v1240 = vpop.xlane.xlu0 %1239
        %v1241 = vsub.f32 %v1229, %v1237
        %v1242 = vsub.f32 %v1232, %v1240
        %v1243 = vmul.f32 %v1241, 1.442695
        %v1244 = vpow.pop %v1243
        %v1245 = vmul.f32 %v1242, 1.442695
        %v1246 = vpow.pop %v1245
        %v1247 = vsel %vm878, %v1244, 0.0
        %1248 = vadd.xlane.f32.xlu0 %v1247
        %v1249 = vpop.xlane.xlu0 %1248
        %v1250 = vsel %vm878, %v1246, 0.0
        %1251 = vadd.xlane.f32.xlu0 %v1250
        %v1252 = vpop.xlane.xlu0 %1251
        %v1253 = vrcp.pop %v1249
        %v1254 = vrcp.pop %v1252
        %v1255 = vmul.f32 %v1244, %v1253
        %v1256 = vmul.f32 %v1246, %v1254
        %v1257 = vpack.c.bf16 %v1256, %v1255
        %1258 = vrot.lane.b32.xlu0 %v828, 64
        %v1259 = vpop.permute.xlu0 %1258
        %v1262 = vsel %vm878, %v1257, 0
        %1264 = vmatprep.subr.bf16.mxu0 0
        %1265 = vmatpush1.bf16.msra.mxu0 0
        %1266 = vmatprep.subr.bf16.mxu0 0
        %1267 = vmatpush1.bf16.msra.mxu0 0
        %1268 = vmatprep.subr.bf16.mxu0 0
        %1269 = vmatpush1.bf16.msra.mxu0 0
        %1270 = vmatprep.subr.bf16.mxu0 0
        %1271 = vmatpush1.bf16.msra.mxu0 0
        %1272 = vmatprep.subr.bf16.mxu0 0
        %1273 = vmatpush1.bf16.msra.mxu0 0
        %1274 = vmatprep.subr.bf16.mxu0 0
        %1275 = vmatpush1.bf16.msra.mxu0 0
        %1276 = vmatprep.subr.bf16.mxu0 0
        %1277 = vmatpush1.bf16.msra.mxu0 0
        %1278 = vmatprep.subr.bf16.mxu0 0
        %1279 = vmatpush1.bf16.msra.mxu0 %v1259
        %1280 = vmatprep.subr.bf16.mxu0 0
        %1281 = vmatpush2.bf16.msra.mxu0 0
        %1282 = vmatprep.subr.bf16.mxu0 0
        %1283 = vmatpush2.bf16.msra.mxu0 0
        %1284 = vmatprep.subr.bf16.mxu0 0
        %1285 = vmatpush2.bf16.msra.mxu0 0
        %1286 = vmatprep.subr.bf16.mxu0 0
        %1287 = vmatpush2.bf16.msra.mxu0 0
        %1288 = vmatprep.subr.bf16.mxu0 0
        %1289 = vmatpush2.bf16.msra.mxu0 0
        %1290 = vmatprep.subr.bf16.mxu0 0
        %1291 = vmatpush2.bf16.msra.mxu0 0
        %1292 = vmatprep.subr.bf16.mxu0 0
        %1293 = vmatpush2.bf16.msra.mxu0 0
        %1294 = vmatprep.subr.bf16.mxu0 0
        %1295 = vmatpush2.bf16.msra.mxu0 0
        %1296 = vmatprep.mubr.bf16.mxu0 0
        %1297 = vmatmul.mubr.bf16.gmra.mxu0 %v1262
        %v1298 = vpop.f32.mrf.mxu0
        %v1299 = vadd.f32 0.0, %v1298
        %v1300 = vpop.f32.mrf.mxu0
        %v1301 = vpop.f32.mrf.mxu0
        %v1302 = vadd.f32 0.0, %v1301
        %v1303 = vpop.f32.mrf.mxu0
        %1304 = vdwg.mxu0
        %v1305 = vpack.c.bf16 %v1302, %v1299
        %v1310 = vunpack.c.l.b16 %v520
        %v1311 = vunpack.c.l.b16 %v521
        %v1312 = vunpack.c.l.b16 %v522
        %v1313 = vunpack.c.l.b16 %v523
        %v1314 = vpack.c.b16 %v1311, %v1310
        %v1315 = vpack.c.b16 %v1313, %v1312
        %v1319 = vsel %vm830, %v1305, 0
        %1321 = vmatprep.subr.bf16.mxu0 0
        %1322 = vmatpush1.bf16.msra.mxu0 0
        %1323 = vmatprep.subr.bf16.mxu0 0
        %1324 = vmatpush1.bf16.msra.mxu0 0
        %1325 = vmatprep.subr.bf16.mxu0 0
        %1326 = vmatpush1.bf16.msra.mxu0 0
        %1327 = vmatprep.subr.bf16.mxu0 0
        %1328 = vmatpush1.bf16.msra.mxu0 0
        %1329 = vmatprep.subr.bf16.mxu0 0
        %1330 = vmatpush1.bf16.msra.mxu0 0
        %1331 = vmatprep.subr.bf16.mxu0 0
        %1332 = vmatpush1.bf16.msra.mxu0 0
        %1333 = vmatprep.subr.bf16.mxu0 0
        %1334 = vmatpush1.bf16.msra.mxu0 %v1315
        %1335 = vmatprep.subr.bf16.mxu0 0
        %1336 = vmatpush1.bf16.msra.mxu0 %v1314
        %1337 = vmatprep.subr.bf16.mxu0 0
        %1338 = vmatpush2.bf16.msra.mxu0 0
        %1339 = vmatprep.subr.bf16.mxu0 0
        %1340 = vmatpush2.bf16.msra.mxu0 0
        %1341 = vmatprep.subr.bf16.mxu0 0
        %1342 = vmatpush2.bf16.msra.mxu0 0
        %1343 = vmatprep.subr.bf16.mxu0 0
        %1344 = vmatpush2.bf16.msra.mxu0 0
        %1345 = vmatprep.subr.bf16.mxu0 0
        %1346 = vmatpush2.bf16.msra.mxu0 0
        %1347 = vmatprep.subr.bf16.mxu0 0
        %1348 = vmatpush2.bf16.msra.mxu0 0
        %1349 = vmatprep.subr.bf16.mxu0 0
        %1350 = vmatpush2.bf16.msra.mxu0 0
        %1351 = vmatprep.subr.bf16.mxu0 0
        %1352 = vmatpush2.bf16.msra.mxu0 0
        %1353 = vmatprep.mubr.bf16.mxu0 0
        %1354 = vmatmul.mubr.bf16.gmra.mxu0 %v1319
        %v1355 = vpop.f32.mrf.mxu0
        %v1356 = vadd.f32 0.0, %v1355
        %v1357 = vpop.f32.mrf.mxu0
        %v1358 = vpop.f32.mrf.mxu0
        %v1359 = vadd.f32 0.0, %v1358
        %v1360 = vpop.f32.mrf.mxu0
        %1361 = vdwg.mxu0
        %v1362 = vadd.f32 %v1178, %v1356
        %v1363 = vadd.f32 %v1181, %v1359
        %1364 = vrot.lane.b32.xlu0 %v824, 32
        %v1365 = vpop.permute.xlu0 %1364
        %1366 = vrot.lane.b32.xlu0 %v826, 32
        %v1367 = vpop.permute.xlu0 %1366
        %v1369 = vsel %vm830, %v1365, 0
        %v1372 = vsel %vm830, %v1367, 0
        %1374 = vmatprep.subr.bf16.mxu0 0
        %1375 = vmatpush1.bf16.xpose.msra.mxu0 0
        %1376 = vmatprep.subr.bf16.mxu0 0
        %1377 = vmatpush1.bf16.xpose.msra.mxu0 0
        %1378 = vmatprep.subr.bf16.mxu0 0
        %1379 = vmatpush1.bf16.xpose.msra.mxu0 0
        %1380 = vmatprep.subr.bf16.mxu0 0
        %1381 = vmatpush1.bf16.xpose.msra.mxu0 0
        %1382 = vmatprep.subr.bf16.mxu0 0
        %1383 = vmatpush1.bf16.xpose.msra.mxu0 0
        %1384 = vmatprep.subr.bf16.mxu0 0
        %1385 = vmatpush1.bf16.xpose.msra.mxu0 0
        %1386 = vmatprep.subr.bf16.mxu0 0
        %1387 = vmatpush1.bf16.xpose.msra.mxu0 0
        %1388 = vmatprep.subr.bf16.mxu0 0
        %1389 = vmatpush1.bf16.xpose.msra.mxu0 %v1372
        %1390 = vmatprep.subr.bf16.mxu0 0
        %1391 = vmatpush2.bf16.xpose.msra.mxu0 0
        %1392 = vmatprep.subr.bf16.mxu0 0
        %1393 = vmatpush2.bf16.xpose.msra.mxu0 0
        %1394 = vmatprep.subr.bf16.mxu0 0
        %1395 = vmatpush2.bf16.xpose.msra.mxu0 0
        %1396 = vmatprep.subr.bf16.mxu0 0
        %1397 = vmatpush2.bf16.xpose.msra.mxu0 0
        %1398 = vmatprep.subr.bf16.mxu0 0
        %1399 = vmatpush2.bf16.xpose.msra.mxu0 0
        %1400 = vmatprep.subr.bf16.mxu0 0
        %1401 = vmatpush2.bf16.xpose.msra.mxu0 0
        %1402 = vmatprep.subr.bf16.mxu0 0
        %1403 = vmatpush2.bf16.xpose.msra.mxu0 0
        %1404 = vmatprep.subr.bf16.mxu0 0
        %1405 = vmatpush2.bf16.xpose.msra.mxu0 0
        %1406 = vmatprep.mubr.bf16.mxu0 0
        %1407 = vmatmul.mubr.bf16.gmra.mxu0 %v1369
        %v1408 = vpop.f32.mrf.mxu0
        %v1409 = vadd.f32 0.0, %v1408
        %v1410 = vpop.f32.mrf.mxu0
        %v1411 = vpop.f32.mrf.mxu0
        %v1412 = vadd.f32 0.0, %v1411
        %v1413 = vpop.f32.mrf.mxu0
        %1414 = vdwg.mxu0
        %v1415 = vsel %vm878, %v1409, -inf
        %1416 = vmax.xlane.f32.xlu0 %v1415
        %v1417 = vpop.xlane.xlu0 %1416
        %v1418 = vsel %vm878, %v1412, -inf
        %1419 = vmax.xlane.f32.xlu0 %v1418
        %v1420 = vpop.xlane.xlu0 %1419
        %v1421 = vsub.f32 %v1409, %v1417
        %v1422 = vsub.f32 %v1412, %v1420
        %v1423 = vmul.f32 %v1421, 1.442695
        %v1424 = vpow.pop %v1423
        %v1425 = vmul.f32 %v1422, 1.442695
        %v1426 = vpow.pop %v1425
        %v1427 = vsel %vm878, %v1424, 0.0
        %1428 = vadd.xlane.f32.xlu0 %v1427
        %v1429 = vpop.xlane.xlu0 %1428
        %v1430 = vsel %vm878, %v1426, 0.0
        %1431 = vadd.xlane.f32.xlu0 %v1430
        %v1432 = vpop.xlane.xlu0 %1431
        %v1433 = vrcp.pop %v1429
        %v1434 = vrcp.pop %v1432
        %v1435 = vmul.f32 %v1424, %v1433
        %v1436 = vmul.f32 %v1426, %v1434
        %v1437 = vpack.c.bf16 %v1436, %v1435
        %1438 = vrot.lane.b32.xlu0 %v828, 32
        %v1439 = vpop.permute.xlu0 %1438
        %v1442 = vsel %vm878, %v1437, 0
        %1444 = vmatprep.subr.bf16.mxu0 0
        %1445 = vmatpush1.bf16.msra.mxu0 0
        %1446 = vmatprep.subr.bf16.mxu0 0
        %1447 = vmatpush1.bf16.msra.mxu0 0
        %1448 = vmatprep.subr.bf16.mxu0 0
        %1449 = vmatpush1.bf16.msra.mxu0 0
        %1450 = vmatprep.subr.bf16.mxu0 0
        %1451 = vmatpush1.bf16.msra.mxu0 0
        %1452 = vmatprep.subr.bf16.mxu0 0
        %1453 = vmatpush1.bf16.msra.mxu0 0
        %1454 = vmatprep.subr.bf16.mxu0 0
        %1455 = vmatpush1.bf16.msra.mxu0 0
        %1456 = vmatprep.subr.bf16.mxu0 0
        %1457 = vmatpush1.bf16.msra.mxu0 0
        %1458 = vmatprep.subr.bf16.mxu0 0
        %1459 = vmatpush1.bf16.msra.mxu0 %v1439
        %1460 = vmatprep.subr.bf16.mxu0 0
        %1461 = vmatpush2.bf16.msra.mxu0 0
        %1462 = vmatprep.subr.bf16.mxu0 0
        %1463 = vmatpush2.bf16.msra.mxu0 0
        %1464 = vmatprep.subr.bf16.mxu0 0
        %1465 = vmatpush2.bf16.msra.mxu0 0
        %1466 = vmatprep.subr.bf16.mxu0 0
        %1467 = vmatpush2.bf16.msra.mxu0 0
        %1468 = vmatprep.subr.bf16.mxu0 0
        %1469 = vmatpush2.bf16.msra.mxu0 0
        %1470 = vmatprep.subr.bf16.mxu0 0
        %1471 = vmatpush2.bf16.msra.mxu0 0
        %1472 = vmatprep.subr.bf16.mxu0 0
        %1473 = vmatpush2.bf16.msra.mxu0 0
        %1474 = vmatprep.subr.bf16.mxu0 0
        %1475 = vmatpush2.bf16.msra.mxu0 0
        %1476 = vmatprep.mubr.bf16.mxu0 0
        %1477 = vmatmul.mubr.bf16.gmra.mxu0 %v1442
        %v1478 = vpop.f32.mrf.mxu0
        %v1479 = vadd.f32 0.0, %v1478
        %v1480 = vpop.f32.mrf.mxu0
        %v1481 = vpop.f32.mrf.mxu0
        %v1482 = vadd.f32 0.0, %v1481
        %v1483 = vpop.f32.mrf.mxu0
        %1484 = vdwg.mxu0
        %v1485 = vpack.c.bf16 %v1482, %v1479
        %v1490 = vunpack.c.l.b16 %v524
        %v1491 = vunpack.c.l.b16 %v525
        %v1492 = vunpack.c.l.b16 %v526
        %v1493 = vunpack.c.l.b16 %v527
        %v1494 = vpack.c.b16 %v1491, %v1490
        %v1495 = vpack.c.b16 %v1493, %v1492
        %v1499 = vsel %vm830, %v1485, 0
        %1501 = vmatprep.subr.bf16.mxu0 0
        %1502 = vmatpush1.bf16.msra.mxu0 0
        %1503 = vmatprep.subr.bf16.mxu0 0
        %1504 = vmatpush1.bf16.msra.mxu0 0
        %1505 = vmatprep.subr.bf16.mxu0 0
        %1506 = vmatpush1.bf16.msra.mxu0 0
        %1507 = vmatprep.subr.bf16.mxu0 0
        %1508 = vmatpush1.bf16.msra.mxu0 0
        %1509 = vmatprep.subr.bf16.mxu0 0
        %1510 = vmatpush1.bf16.msra.mxu0 0
        %1511 = vmatprep.subr.bf16.mxu0 0
        %1512 = vmatpush1.bf16.msra.mxu0 0
        %1513 = vmatprep.subr.bf16.mxu0 0
        %1514 = vmatpush1.bf16.msra.mxu0 %v1495
        %1515 = vmatprep.subr.bf16.mxu0 0
        %1516 = vmatpush1.bf16.msra.mxu0 %v1494
        %1517 = vmatprep.subr.bf16.mxu0 0
        %1518 = vmatpush2.bf16.msra.mxu0 0
        %1519 = vmatprep.subr.bf16.mxu0 0
        %1520 = vmatpush2.bf16.msra.mxu0 0
        %1521 = vmatprep.subr.bf16.mxu0 0
        %1522 = vmatpush2.bf16.msra.mxu0 0
        %1523 = vmatprep.subr.bf16.mxu0 0
        %1524 = vmatpush2.bf16.msra.mxu0 0
        %1525 = vmatprep.subr.bf16.mxu0 0
        %1526 = vmatpush2.bf16.msra.mxu0 0
        %1527 = vmatprep.subr.bf16.mxu0 0
        %1528 = vmatpush2.bf16.msra.mxu0 0
        %1529 = vmatprep.subr.bf16.mxu0 0
        %1530 = vmatpush2.bf16.msra.mxu0 0
        %1531 = vmatprep.subr.bf16.mxu0 0
        %1532 = vmatpush2.bf16.msra.mxu0 0
        %1533 = vmatprep.mubr.bf16.mxu0 0
        %1534 = vmatmul.mubr.bf16.gmra.mxu0 %v1499
        %v1535 = vpop.f32.mrf.mxu0
        %v1536 = vadd.f32 0.0, %v1535
        %v1537 = vpop.f32.mrf.mxu0
        %v1538 = vpop.f32.mrf.mxu0
        %v1539 = vadd.f32 0.0, %v1538
        %v1540 = vpop.f32.mrf.mxu0
        %1541 = vdwg.mxu0
        %v1542 = vadd.f32 %v1362, %v1536
        %v1543 = vadd.f32 %v1363, %v1539
        %v1545 = vsel %vm830, %v825, 0
        %v1548 = vsel %vm830, %v827, 0
        %1550 = vmatprep.subr.bf16.mxu0 0
        %1551 = vmatpush1.bf16.xpose.msra.mxu0 0
        %1552 = vmatprep.subr.bf16.mxu0 0
        %1553 = vmatpush1.bf16.xpose.msra.mxu0 0
        %1554 = vmatprep.subr.bf16.mxu0 0
        %1555 = vmatpush1.bf16.xpose.msra.mxu0 0
        %1556 = vmatprep.subr.bf16.mxu0 0
        %1557 = vmatpush1.bf16.xpose.msra.mxu0 0
        %1558 = vmatprep.subr.bf16.mxu0 0
        %1559 = vmatpush1.bf16.xpose.msra.mxu0 0
        %1560 = vmatprep.subr.bf16.mxu0 0
        %1561 = vmatpush1.bf16.xpose.msra.mxu0 0
        %1562 = vmatprep.subr.bf16.mxu0 0
        %1563 = vmatpush1.bf16.xpose.msra.mxu0 0
        %1564 = vmatprep.subr.bf16.mxu0 0
        %1565 = vmatpush1.bf16.xpose.msra.mxu0 %v1548
        %1566 = vmatprep.subr.bf16.mxu0 0
        %1567 = vmatpush2.bf16.xpose.msra.mxu0 0
        %1568 = vmatprep.subr.bf16.mxu0 0
        %1569 = vmatpush2.bf16.xpose.msra.mxu0 0
        %1570 = vmatprep.subr.bf16.mxu0 0
        %1571 = vmatpush2.bf16.xpose.msra.mxu0 0
        %1572 = vmatprep.subr.bf16.mxu0 0
        %1573 = vmatpush2.bf16.xpose.msra.mxu0 0
        %1574 = vmatprep.subr.bf16.mxu0 0
        %1575 = vmatpush2.bf16.xpose.msra.mxu0 0
        %1576 = vmatprep.subr.bf16.mxu0 0
        %1577 = vmatpush2.bf16.xpose.msra.mxu0 0
        %1578 = vmatprep.subr.bf16.mxu0 0
        %1579 = vmatpush2.bf16.xpose.msra.mxu0 0
        %1580 = vmatprep.subr.bf16.mxu0 0
        %1581 = vmatpush2.bf16.xpose.msra.mxu0 0
        %1582 = vmatprep.mubr.bf16.mxu0 0
        %1583 = vmatmul.mubr.bf16.gmra.mxu0 %v1545
        %v1584 = vpop.f32.mrf.mxu0
        %v1585 = vadd.f32 0.0, %v1584
        %v1586 = vpop.f32.mrf.mxu0
        %v1587 = vpop.f32.mrf.mxu0
        %v1588 = vadd.f32 0.0, %v1587
        %v1589 = vpop.f32.mrf.mxu0
        %1590 = vdwg.mxu0
        %v1591 = vsel %vm878, %v1585, -inf
        %1592 = vmax.xlane.f32.xlu0 %v1591
        %v1593 = vpop.xlane.xlu0 %1592
        %v1594 = vsel %vm878, %v1588, -inf
        %1595 = vmax.xlane.f32.xlu0 %v1594
        %v1596 = vpop.xlane.xlu0 %1595
        %v1597 = vsub.f32 %v1585, %v1593
        %v1598 = vsub.f32 %v1588, %v1596
        %v1599 = vmul.f32 %v1597, 1.442695
        %v1600 = vpow.pop %v1599
        %v1601 = vmul.f32 %v1598, 1.442695
        %v1602 = vpow.pop %v1601
        %v1603 = vsel %vm878, %v1600, 0.0
        %1604 = vadd.xlane.f32.xlu0 %v1603
        %v1605 = vpop.xlane.xlu0 %1604
        %v1606 = vsel %vm878, %v1602, 0.0
        %1607 = vadd.xlane.f32.xlu0 %v1606
        %v1608 = vpop.xlane.xlu0 %1607
        %v1609 = vrcp.pop %v1605
        %v1610 = vrcp.pop %v1608
        %v1611 = vmul.f32 %v1600, %v1609
        %v1612 = vmul.f32 %v1602, %v1610
        %v1613 = vpack.c.bf16 %v1612, %v1611
        %v1615 = vsel %vm878, %v1613, 0
        %1617 = vmatprep.subr.bf16.mxu0 0
        %1618 = vmatpush1.bf16.msra.mxu0 0
        %1619 = vmatprep.subr.bf16.mxu0 0
        %1620 = vmatpush1.bf16.msra.mxu0 0
        %1621 = vmatprep.subr.bf16.mxu0 0
        %1622 = vmatpush1.bf16.msra.mxu0 0
        %1623 = vmatprep.subr.bf16.mxu0 0
        %1624 = vmatpush1.bf16.msra.mxu0 0
        %1625 = vmatprep.subr.bf16.mxu0 0
        %1626 = vmatpush1.bf16.msra.mxu0 0
        %1627 = vmatprep.subr.bf16.mxu0 0
        %1628 = vmatpush1.bf16.msra.mxu0 0
        %1629 = vmatprep.subr.bf16.mxu0 0
        %1630 = vmatpush1.bf16.msra.mxu0 0
        %1631 = vmatprep.subr.bf16.mxu0 0
        %1632 = vmatpush1.bf16.msra.mxu0 %v829
        %1633 = vmatprep.subr.bf16.mxu0 0
        %1634 = vmatpush2.bf16.msra.mxu0 0
        %1635 = vmatprep.subr.bf16.mxu0 0
        %1636 = vmatpush2.bf16.msra.mxu0 0
        %1637 = vmatprep.subr.bf16.mxu0 0
        %1638 = vmatpush2.bf16.msra.mxu0 0
        %1639 = vmatprep.subr.bf16.mxu0 0
        %1640 = vmatpush2.bf16.msra.mxu0 0
        %1641 = vmatprep.subr.bf16.mxu0 0
        %1642 = vmatpush2.bf16.msra.mxu0 0
        %1643 = vmatprep.subr.bf16.mxu0 0
        %1644 = vmatpush2.bf16.msra.mxu0 0
        %1645 = vmatprep.subr.bf16.mxu0 0
        %1646 = vmatpush2.bf16.msra.mxu0 0
        %1647 = vmatprep.subr.bf16.mxu0 0
        %1648 = vmatpush2.bf16.msra.mxu0 0
        %1649 = vmatprep.mubr.bf16.mxu0 0
        %1650 = vmatmul.mubr.bf16.gmra.mxu0 %v1615
        %v1651 = vpop.f32.mrf.mxu0
        %v1652 = vadd.f32 0.0, %v1651
        %v1653 = vpop.f32.mrf.mxu0
        %v1654 = vpop.f32.mrf.mxu0
        %v1655 = vadd.f32 0.0, %v1654
        %v1656 = vpop.f32.mrf.mxu0
        %1657 = vdwg.mxu0
        %v1658 = vpack.c.bf16 %v1655, %v1652
        %1660 = vrot.lane.b32.xlu0 %v825, 96
        %v1661 = vpop.permute.xlu0 %1660
        %1663 = vrot.lane.b32.xlu0 %v827, 96
        %v1664 = vpop.permute.xlu0 %1663
        %v1666 = vsel %vm830, %v1661, 0
        %v1669 = vsel %vm830, %v1664, 0
        %1671 = vmatprep.subr.bf16.mxu0 0
        %1672 = vmatpush1.bf16.xpose.msra.mxu0 0
        %1673 = vmatprep.subr.bf16.mxu0 0
        %1674 = vmatpush1.bf16.xpose.msra.mxu0 0
        %1675 = vmatprep.subr.bf16.mxu0 0
        %1676 = vmatpush1.bf16.xpose.msra.mxu0 0
        %1677 = vmatprep.subr.bf16.mxu0 0
        %1678 = vmatpush1.bf16.xpose.msra.mxu0 0
        %1679 = vmatprep.subr.bf16.mxu0 0
        %1680 = vmatpush1.bf16.xpose.msra.mxu0 0
        %1681 = vmatprep.subr.bf16.mxu0 0
        %1682 = vmatpush1.bf16.xpose.msra.mxu0 0
        %1683 = vmatprep.subr.bf16.mxu0 0
        %1684 = vmatpush1.bf16.xpose.msra.mxu0 0
        %1685 = vmatprep.subr.bf16.mxu0 0
        %1686 = vmatpush1.bf16.xpose.msra.mxu0 %v1669
        %1687 = vmatprep.subr.bf16.mxu0 0
        %1688 = vmatpush2.bf16.xpose.msra.mxu0 0
        %1689 = vmatprep.subr.bf16.mxu0 0
        %1690 = vmatpush2.bf16.xpose.msra.mxu0 0
        %1691 = vmatprep.subr.bf16.mxu0 0
        %1692 = vmatpush2.bf16.xpose.msra.mxu0 0
        %1693 = vmatprep.subr.bf16.mxu0 0
        %1694 = vmatpush2.bf16.xpose.msra.mxu0 0
        %1695 = vmatprep.subr.bf16.mxu0 0
        %1696 = vmatpush2.bf16.xpose.msra.mxu0 0
        %1697 = vmatprep.subr.bf16.mxu0 0
        %1698 = vmatpush2.bf16.xpose.msra.mxu0 0
        %1699 = vmatprep.subr.bf16.mxu0 0
        %1700 = vmatpush2.bf16.xpose.msra.mxu0 0
        %1701 = vmatprep.subr.bf16.mxu0 0
        %1702 = vmatpush2.bf16.xpose.msra.mxu0 0
        %1703 = vmatprep.mubr.bf16.mxu0 0
        %1704 = vmatmul.mubr.bf16.gmra.mxu0 %v1666
        %v1705 = vpop.f32.mrf.mxu0
        %v1706 = vadd.f32 0.0, %v1705
        %v1707 = vpop.f32.mrf.mxu0
        %v1708 = vpop.f32.mrf.mxu0
        %v1709 = vadd.f32 0.0, %v1708
        %v1710 = vpop.f32.mrf.mxu0
        %1711 = vdwg.mxu0
        %v1712 = vsel %vm878, %v1706, -inf
        %1713 = vmax.xlane.f32.xlu0 %v1712
        %v1714 = vpop.xlane.xlu0 %1713
        %v1715 = vsel %vm878, %v1709, -inf
        %1716 = vmax.xlane.f32.xlu0 %v1715
        %v1717 = vpop.xlane.xlu0 %1716
        %v1718 = vsub.f32 %v1706, %v1714
        %v1719 = vsub.f32 %v1709, %v1717
        %v1720 = vmul.f32 %v1718, 1.442695
        %v1721 = vpow.pop %v1720
        %v1722 = vmul.f32 %v1719, 1.442695
        %v1723 = vpow.pop %v1722
        %v1724 = vsel %vm878, %v1721, 0.0
        %1725 = vadd.xlane.f32.xlu0 %v1724
        %v1726 = vpop.xlane.xlu0 %1725
        %v1727 = vsel %vm878, %v1723, 0.0
        %1728 = vadd.xlane.f32.xlu0 %v1727
        %v1729 = vpop.xlane.xlu0 %1728
        %v1730 = vrcp.pop %v1726
        %v1731 = vrcp.pop %v1729
        %v1732 = vmul.f32 %v1721, %v1730
        %v1733 = vmul.f32 %v1723, %v1731
        %v1734 = vpack.c.bf16 %v1733, %v1732
        %1736 = vrot.lane.b32.xlu0 %v829, 96
        %v1737 = vpop.permute.xlu0 %1736
        %v1740 = vsel %vm878, %v1734, 0
        %1742 = vmatprep.subr.bf16.mxu0 0
        %1743 = vmatpush1.bf16.msra.mxu0 0
        %1744 = vmatprep.subr.bf16.mxu0 0
        %1745 = vmatpush1.bf16.msra.mxu0 0
        %1746 = vmatprep.subr.bf16.mxu0 0
        %1747 = vmatpush1.bf16.msra.mxu0 0
        %1748 = vmatprep.subr.bf16.mxu0 0
        %1749 = vmatpush1.bf16.msra.mxu0 0
        %1750 = vmatprep.subr.bf16.mxu0 0
        %1751 = vmatpush1.bf16.msra.mxu0 0
        %1752 = vmatprep.subr.bf16.mxu0 0
        %1753 = vmatpush1.bf16.msra.mxu0 0
        %1754 = vmatprep.subr.bf16.mxu0 0
        %1755 = vmatpush1.bf16.msra.mxu0 0
        %1756 = vmatprep.subr.bf16.mxu0 0
        %1757 = vmatpush1.bf16.msra.mxu0 %v1737
        %1758 = vmatprep.subr.bf16.mxu0 0
        %1759 = vmatpush2.bf16.msra.mxu0 0
        %1760 = vmatprep.subr.bf16.mxu0 0
        %1761 = vmatpush2.bf16.msra.mxu0 0
        %1762 = vmatprep.subr.bf16.mxu0 0
        %1763 = vmatpush2.bf16.msra.mxu0 0
        %1764 = vmatprep.subr.bf16.mxu0 0
        %1765 = vmatpush2.bf16.msra.mxu0 0
        %1766 = vmatprep.subr.bf16.mxu0 0
        %1767 = vmatpush2.bf16.msra.mxu0 0
        %1768 = vmatprep.subr.bf16.mxu0 0
        %1769 = vmatpush2.bf16.msra.mxu0 0
        %1770 = vmatprep.subr.bf16.mxu0 0
        %1771 = vmatpush2.bf16.msra.mxu0 0
        %1772 = vmatprep.subr.bf16.mxu0 0
        %1773 = vmatpush2.bf16.msra.mxu0 0
        %1774 = vmatprep.mubr.bf16.mxu0 0
        %1775 = vmatmul.mubr.bf16.gmra.mxu0 %v1740
        %v1776 = vpop.f32.mrf.mxu0
        %v1777 = vadd.f32 0.0, %v1776
        %v1778 = vpop.f32.mrf.mxu0
        %v1779 = vpop.f32.mrf.mxu0
        %v1780 = vadd.f32 0.0, %v1779
        %v1781 = vpop.f32.mrf.mxu0
        %1782 = vdwg.mxu0
        %v1783 = vpack.c.bf16 %v1780, %v1777
        %v1785 = vsel %vm830, %v1783, 0
        %1787 = vmatprep.subr.bf16.mxu0 0
        %1788 = vmatpush1.bf16.msra.mxu0 0
        %1789 = vmatprep.subr.bf16.mxu0 0
        %1790 = vmatpush1.bf16.msra.mxu0 0
        %1791 = vmatprep.subr.bf16.mxu0 0
        %1792 = vmatpush1.bf16.msra.mxu0 0
        %1793 = vmatprep.subr.bf16.mxu0 0
        %1794 = vmatpush1.bf16.msra.mxu0 0
        %1795 = vmatprep.subr.bf16.mxu0 0
        %1796 = vmatpush1.bf16.msra.mxu0 0
        %1797 = vmatprep.subr.bf16.mxu0 0
        %1798 = vmatpush1.bf16.msra.mxu0 0
        %1799 = vmatprep.subr.bf16.mxu0 0
        %1800 = vmatpush1.bf16.msra.mxu0 %v1081
        %1801 = vmatprep.subr.bf16.mxu0 0
        %1802 = vmatpush1.bf16.msra.mxu0 %v1080
        %1803 = vmatprep.subr.bf16.mxu0 0
        %1804 = vmatpush2.bf16.msra.mxu0 0
        %1805 = vmatprep.subr.bf16.mxu0 0
        %1806 = vmatpush2.bf16.msra.mxu0 0
        %1807 = vmatprep.subr.bf16.mxu0 0
        %1808 = vmatpush2.bf16.msra.mxu0 0
        %1809 = vmatprep.subr.bf16.mxu0 0
        %1810 = vmatpush2.bf16.msra.mxu0 0
        %1811 = vmatprep.subr.bf16.mxu0 0
        %1812 = vmatpush2.bf16.msra.mxu0 0
        %1813 = vmatprep.subr.bf16.mxu0 0
        %1814 = vmatpush2.bf16.msra.mxu0 0
        %1815 = vmatprep.subr.bf16.mxu0 0
        %1816 = vmatpush2.bf16.msra.mxu0 0
        %1817 = vmatprep.subr.bf16.mxu0 0
        %1818 = vmatpush2.bf16.msra.mxu0 0
        %1819 = vmatprep.mubr.bf16.mxu0 0
        %1820 = vmatmul.mubr.bf16.gmra.mxu0 %v1785
        %v1821 = vpop.f32.mrf.mxu0
        %v1822 = vadd.f32 0.0, %v1821
        %v1823 = vpop.f32.mrf.mxu0
        %v1824 = vpop.f32.mrf.mxu0
        %v1825 = vadd.f32 0.0, %v1824
        %v1826 = vpop.f32.mrf.mxu0
        %1827 = vdwg.mxu0
        %v1829 = vsel %vm830, %v1658, 0
        %1831 = vmatprep.subr.bf16.mxu0 0
        %1832 = vmatpush1.bf16.msra.mxu0 0
        %1833 = vmatprep.subr.bf16.mxu0 0
        %1834 = vmatpush1.bf16.msra.mxu0 0
        %1835 = vmatprep.subr.bf16.mxu0 0
        %1836 = vmatpush1.bf16.msra.mxu0 0
        %1837 = vmatprep.subr.bf16.mxu0 0
        %1838 = vmatpush1.bf16.msra.mxu0 0
        %1839 = vmatprep.subr.bf16.mxu0 0
        %1840 = vmatpush1.bf16.msra.mxu0 0
        %1841 = vmatprep.subr.bf16.mxu0 0
        %1842 = vmatpush1.bf16.msra.mxu0 0
        %1843 = vmatprep.subr.bf16.mxu0 0
        %1844 = vmatpush1.bf16.msra.mxu0 %v1137
        %1845 = vmatprep.subr.bf16.mxu0 0
        %1846 = vmatpush1.bf16.msra.mxu0 %v1136
        %1847 = vmatprep.subr.bf16.mxu0 0
        %1848 = vmatpush2.bf16.msra.mxu0 0
        %1849 = vmatprep.subr.bf16.mxu0 0
        %1850 = vmatpush2.bf16.msra.mxu0 0
        %1851 = vmatprep.subr.bf16.mxu0 0
        %1852 = vmatpush2.bf16.msra.mxu0 0
        %1853 = vmatprep.subr.bf16.mxu0 0
        %1854 = vmatpush2.bf16.msra.mxu0 0
        %1855 = vmatprep.subr.bf16.mxu0 0
        %1856 = vmatpush2.bf16.msra.mxu0 0
        %1857 = vmatprep.subr.bf16.mxu0 0
        %1858 = vmatpush2.bf16.msra.mxu0 0
        %1859 = vmatprep.subr.bf16.mxu0 0
        %1860 = vmatpush2.bf16.msra.mxu0 0
        %1861 = vmatprep.subr.bf16.mxu0 0
        %1862 = vmatpush2.bf16.msra.mxu0 0
        %1863 = vmatprep.mubr.bf16.mxu0 0
        %1864 = vmatmul.mubr.bf16.gmra.mxu0 %v1829
        %v1865 = vpop.f32.mrf.mxu0
        %v1866 = vadd.f32 %v1822, %v1865
        %v1867 = vpop.f32.mrf.mxu0
        %v1868 = vpop.f32.mrf.mxu0
        %v1869 = vadd.f32 %v1825, %v1868
        %v1870 = vpop.f32.mrf.mxu0
        %1871 = vdwg.mxu0
        %1872 = vrot.lane.b32.xlu0 %v825, 64
        %v1873 = vpop.permute.xlu0 %1872
        %1874 = vrot.lane.b32.xlu0 %v827, 64
        %v1875 = vpop.permute.xlu0 %1874
        %v1877 = vsel %vm830, %v1873, 0
        %v1880 = vsel %vm830, %v1875, 0
        %1882 = vmatprep.subr.bf16.mxu0 0
        %1883 = vmatpush1.bf16.xpose.msra.mxu0 0
        %1884 = vmatprep.subr.bf16.mxu0 0
        %1885 = vmatpush1.bf16.xpose.msra.mxu0 0
        %1886 = vmatprep.subr.bf16.mxu0 0
        %1887 = vmatpush1.bf16.xpose.msra.mxu0 0
        %1888 = vmatprep.subr.bf16.mxu0 0
        %1889 = vmatpush1.bf16.xpose.msra.mxu0 0
        %1890 = vmatprep.subr.bf16.mxu0 0
        %1891 = vmatpush1.bf16.xpose.msra.mxu0 0
        %1892 = vmatprep.subr.bf16.mxu0 0
        %1893 = vmatpush1.bf16.xpose.msra.mxu0 0
        %1894 = vmatprep.subr.bf16.mxu0 0
        %1895 = vmatpush1.bf16.xpose.msra.mxu0 0
        %1896 = vmatprep.subr.bf16.mxu0 0
        %1897 = vmatpush1.bf16.xpose.msra.mxu0 %v1880
        %1898 = vmatprep.subr.bf16.mxu0 0
        %1899 = vmatpush2.bf16.xpose.msra.mxu0 0
        %1900 = vmatprep.subr.bf16.mxu0 0
        %1901 = vmatpush2.bf16.xpose.msra.mxu0 0
        %1902 = vmatprep.subr.bf16.mxu0 0
        %1903 = vmatpush2.bf16.xpose.msra.mxu0 0
        %1904 = vmatprep.subr.bf16.mxu0 0
        %1905 = vmatpush2.bf16.xpose.msra.mxu0 0
        %1906 = vmatprep.subr.bf16.mxu0 0
        %1907 = vmatpush2.bf16.xpose.msra.mxu0 0
        %1908 = vmatprep.subr.bf16.mxu0 0
        %1909 = vmatpush2.bf16.xpose.msra.mxu0 0
        %1910 = vmatprep.subr.bf16.mxu0 0
        %1911 = vmatpush2.bf16.xpose.msra.mxu0 0
        %1912 = vmatprep.subr.bf16.mxu0 0
        %1913 = vmatpush2.bf16.xpose.msra.mxu0 0
        %1914 = vmatprep.mubr.bf16.mxu0 0
        %1915 = vmatmul.mubr.bf16.gmra.mxu0 %v1877
        %v1916 = vpop.f32.mrf.mxu0
        %v1917 = vadd.f32 0.0, %v1916
        %v1918 = vpop.f32.mrf.mxu0
        %v1919 = vpop.f32.mrf.mxu0
        %v1920 = vadd.f32 0.0, %v1919
        %v1921 = vpop.f32.mrf.mxu0
        %1922 = vdwg.mxu0
        %v1923 = vsel %vm878, %v1917, -inf
        %1924 = vmax.xlane.f32.xlu0 %v1923
        %v1925 = vpop.xlane.xlu0 %1924
        %v1926 = vsel %vm878, %v1920, -inf
        %1927 = vmax.xlane.f32.xlu0 %v1926
        %v1928 = vpop.xlane.xlu0 %1927
        %v1929 = vsub.f32 %v1917, %v1925
        %v1930 = vsub.f32 %v1920, %v1928
        %v1931 = vmul.f32 %v1929, 1.442695
        %v1932 = vpow.pop %v1931
        %v1933 = vmul.f32 %v1930, 1.442695
        %v1934 = vpow.pop %v1933
        %v1935 = vsel %vm878, %v1932, 0.0
        %1936 = vadd.xlane.f32.xlu0 %v1935
        %v1937 = vpop.xlane.xlu0 %1936
        %v1938 = vsel %vm878, %v1934, 0.0
        %1939 = vadd.xlane.f32.xlu0 %v1938
        %v1940 = vpop.xlane.xlu0 %1939
        %v1941 = vrcp.pop %v1937
        %v1942 = vrcp.pop %v1940
        %v1943 = vmul.f32 %v1932, %v1941
        %v1944 = vmul.f32 %v1934, %v1942
        %v1945 = vpack.c.bf16 %v1944, %v1943
        %1946 = vrot.lane.b32.xlu0 %v829, 64
        %v1947 = vpop.permute.xlu0 %1946
        %v1950 = vsel %vm878, %v1945, 0
        %1952 = vmatprep.subr.bf16.mxu0 0
        %1953 = vmatpush1.bf16.msra.mxu0 0
        %1954 = vmatprep.subr.bf16.mxu0 0
        %1955 = vmatpush1.bf16.msra.mxu0 0
        %1956 = vmatprep.subr.bf16.mxu0 0
        %1957 = vmatpush1.bf16.msra.mxu0 0
        %1958 = vmatprep.subr.bf16.mxu0 0
        %1959 = vmatpush1.bf16.msra.mxu0 0
        %1960 = vmatprep.subr.bf16.mxu0 0
        %1961 = vmatpush1.bf16.msra.mxu0 0
        %1962 = vmatprep.subr.bf16.mxu0 0
        %1963 = vmatpush1.bf16.msra.mxu0 0
        %1964 = vmatprep.subr.bf16.mxu0 0
        %1965 = vmatpush1.bf16.msra.mxu0 0
        %1966 = vmatprep.subr.bf16.mxu0 0
        %1967 = vmatpush1.bf16.msra.mxu0 %v1947
        %1968 = vmatprep.subr.bf16.mxu0 0
        %1969 = vmatpush2.bf16.msra.mxu0 0
        %1970 = vmatprep.subr.bf16.mxu0 0
        %1971 = vmatpush2.bf16.msra.mxu0 0
        %1972 = vmatprep.subr.bf16.mxu0 0
        %1973 = vmatpush2.bf16.msra.mxu0 0
        %1974 = vmatprep.subr.bf16.mxu0 0
        %1975 = vmatpush2.bf16.msra.mxu0 0
        %1976 = vmatprep.subr.bf16.mxu0 0
        %1977 = vmatpush2.bf16.msra.mxu0 0
        %1978 = vmatprep.subr.bf16.mxu0 0
        %1979 = vmatpush2.bf16.msra.mxu0 0
        %1980 = vmatprep.subr.bf16.mxu0 0
        %1981 = vmatpush2.bf16.msra.mxu0 0
        %1982 = vmatprep.subr.bf16.mxu0 0
        %1983 = vmatpush2.bf16.msra.mxu0 0
        %1984 = vmatprep.mubr.bf16.mxu0 0
        %1985 = vmatmul.mubr.bf16.gmra.mxu0 %v1950
        %v1986 = vpop.f32.mrf.mxu0
        %v1987 = vadd.f32 0.0, %v1986
        %v1988 = vpop.f32.mrf.mxu0
        %v1989 = vpop.f32.mrf.mxu0
        %v1990 = vadd.f32 0.0, %v1989
        %v1991 = vpop.f32.mrf.mxu0
        %1992 = vdwg.mxu0
        %v1993 = vpack.c.bf16 %v1990, %v1987
        %v1995 = vsel %vm830, %v1993, 0
        %1997 = vmatprep.subr.bf16.mxu0 0
        %1998 = vmatpush1.bf16.msra.mxu0 0
        %1999 = vmatprep.subr.bf16.mxu0 0
        %2000 = vmatpush1.bf16.msra.mxu0 0
        %2001 = vmatprep.subr.bf16.mxu0 0
        %2002 = vmatpush1.bf16.msra.mxu0 0
        %2003 = vmatprep.subr.bf16.mxu0 0
        %2004 = vmatpush1.bf16.msra.mxu0 0
        %2005 = vmatprep.subr.bf16.mxu0 0
        %2006 = vmatpush1.bf16.msra.mxu0 0
        %2007 = vmatprep.subr.bf16.mxu0 0
        %2008 = vmatpush1.bf16.msra.mxu0 0
        %2009 = vmatprep.subr.bf16.mxu0 0
        %2010 = vmatpush1.bf16.msra.mxu0 %v1315
        %2011 = vmatprep.subr.bf16.mxu0 0
        %2012 = vmatpush1.bf16.msra.mxu0 %v1314
        %2013 = vmatprep.subr.bf16.mxu0 0
        %2014 = vmatpush2.bf16.msra.mxu0 0
        %2015 = vmatprep.subr.bf16.mxu0 0
        %2016 = vmatpush2.bf16.msra.mxu0 0
        %2017 = vmatprep.subr.bf16.mxu0 0
        %2018 = vmatpush2.bf16.msra.mxu0 0
        %2019 = vmatprep.subr.bf16.mxu0 0
        %2020 = vmatpush2.bf16.msra.mxu0 0
        %2021 = vmatprep.subr.bf16.mxu0 0
        %2022 = vmatpush2.bf16.msra.mxu0 0
        %2023 = vmatprep.subr.bf16.mxu0 0
        %2024 = vmatpush2.bf16.msra.mxu0 0
        %2025 = vmatprep.subr.bf16.mxu0 0
        %2026 = vmatpush2.bf16.msra.mxu0 0
        %2027 = vmatprep.subr.bf16.mxu0 0
        %2028 = vmatpush2.bf16.msra.mxu0 0
        %2029 = vmatprep.mubr.bf16.mxu0 0
        %2030 = vmatmul.mubr.bf16.gmra.mxu0 %v1995
        %v2031 = vpop.f32.mrf.mxu0
        %v2032 = vadd.f32 0.0, %v2031
        %v2033 = vpop.f32.mrf.mxu0
        %v2034 = vpop.f32.mrf.mxu0
        %v2035 = vadd.f32 0.0, %v2034
        %v2036 = vpop.f32.mrf.mxu0
        %2037 = vdwg.mxu0
        %v2038 = vadd.f32 %v1866, %v2032
        %v2039 = vadd.f32 %v1869, %v2035
        %2040 = vrot.lane.b32.xlu0 %v825, 32
        %v2041 = vpop.permute.xlu0 %2040
        %2042 = vrot.lane.b32.xlu0 %v827, 32
        %v2043 = vpop.permute.xlu0 %2042
        %v2045 = vsel %vm830, %v2041, 0
        %v2048 = vsel %vm830, %v2043, 0
        %2050 = vmatprep.subr.bf16.mxu0 0
        %2051 = vmatpush1.bf16.xpose.msra.mxu0 0
        %2052 = vmatprep.subr.bf16.mxu0 0
        %2053 = vmatpush1.bf16.xpose.msra.mxu0 0
        %2054 = vmatprep.subr.bf16.mxu0 0
        %2055 = vmatpush1.bf16.xpose.msra.mxu0 0
        %2056 = vmatprep.subr.bf16.mxu0 0
        %2057 = vmatpush1.bf16.xpose.msra.mxu0 0
        %2058 = vmatprep.subr.bf16.mxu0 0
        %2059 = vmatpush1.bf16.xpose.msra.mxu0 0
        %2060 = vmatprep.subr.bf16.mxu0 0
        %2061 = vmatpush1.bf16.xpose.msra.mxu0 0
        %2062 = vmatprep.subr.bf16.mxu0 0
        %2063 = vmatpush1.bf16.xpose.msra.mxu0 0
        %2064 = vmatprep.subr.bf16.mxu0 0
        %2065 = vmatpush1.bf16.xpose.msra.mxu0 %v2048
        %2066 = vmatprep.subr.bf16.mxu0 0
        %2067 = vmatpush2.bf16.xpose.msra.mxu0 0
        %2068 = vmatprep.subr.bf16.mxu0 0
        %2069 = vmatpush2.bf16.xpose.msra.mxu0 0
        %2070 = vmatprep.subr.bf16.mxu0 0
        %2071 = vmatpush2.bf16.xpose.msra.mxu0 0
        %2072 = vmatprep.subr.bf16.mxu0 0
        %2073 = vmatpush2.bf16.xpose.msra.mxu0 0
        %2074 = vmatprep.subr.bf16.mxu0 0
        %2075 = vmatpush2.bf16.xpose.msra.mxu0 0
        %2076 = vmatprep.subr.bf16.mxu0 0
        %2077 = vmatpush2.bf16.xpose.msra.mxu0 0
        %2078 = vmatprep.subr.bf16.mxu0 0
        %2079 = vmatpush2.bf16.xpose.msra.mxu0 0
        %2080 = vmatprep.subr.bf16.mxu0 0
        %2081 = vmatpush2.bf16.xpose.msra.mxu0 0
        %2082 = vmatprep.mubr.bf16.mxu0 0
        %2083 = vmatmul.mubr.bf16.gmra.mxu0 %v2045
        %v2084 = vpop.f32.mrf.mxu0
        %v2085 = vadd.f32 0.0, %v2084
        %v2086 = vpop.f32.mrf.mxu0
        %v2087 = vpop.f32.mrf.mxu0
        %v2088 = vadd.f32 0.0, %v2087
        %v2089 = vpop.f32.mrf.mxu0
        %2090 = vdwg.mxu0
        %v2091 = vsel %vm878, %v2085, -inf
        %2092 = vmax.xlane.f32.xlu0 %v2091
        %v2093 = vpop.xlane.xlu0 %2092
        %v2094 = vsel %vm878, %v2088, -inf
        %2095 = vmax.xlane.f32.xlu0 %v2094
        %v2096 = vpop.xlane.xlu0 %2095
        %v2097 = vsub.f32 %v2085, %v2093
        %v2098 = vsub.f32 %v2088, %v2096
        %v2099 = vmul.f32 %v2097, 1.442695
        %v2100 = vpow.pop %v2099
        %v2101 = vmul.f32 %v2098, 1.442695
        %v2102 = vpow.pop %v2101
        %v2103 = vsel %vm878, %v2100, 0.0
        %2104 = vadd.xlane.f32.xlu0 %v2103
        %v2105 = vpop.xlane.xlu0 %2104
        %v2106 = vsel %vm878, %v2102, 0.0
        %2107 = vadd.xlane.f32.xlu0 %v2106
        %v2108 = vpop.xlane.xlu0 %2107
        %v2109 = vrcp.pop %v2105
        %v2110 = vrcp.pop %v2108
        %v2111 = vmul.f32 %v2100, %v2109
        %v2112 = vmul.f32 %v2102, %v2110
        %v2113 = vpack.c.bf16 %v2112, %v2111
        %2114 = vrot.lane.b32.xlu0 %v829, 32
        %v2115 = vpop.permute.xlu0 %2114
        %v2118 = vsel %vm878, %v2113, 0
        %2120 = vmatprep.subr.bf16.mxu0 0
        %2121 = vmatpush1.bf16.msra.mxu0 0
        %2122 = vmatprep.subr.bf16.mxu0 0
        %2123 = vmatpush1.bf16.msra.mxu0 0
        %2124 = vmatprep.subr.bf16.mxu0 0
        %2125 = vmatpush1.bf16.msra.mxu0 0
        %2126 = vmatprep.subr.bf16.mxu0 0
        %2127 = vmatpush1.bf16.msra.mxu0 0
        %2128 = vmatprep.subr.bf16.mxu0 0
        %2129 = vmatpush1.bf16.msra.mxu0 0
        %2130 = vmatprep.subr.bf16.mxu0 0
        %2131 = vmatpush1.bf16.msra.mxu0 0
        %2132 = vmatprep.subr.bf16.mxu0 0
        %2133 = vmatpush1.bf16.msra.mxu0 0
        %2134 = vmatprep.subr.bf16.mxu0 0
        %2135 = vmatpush1.bf16.msra.mxu0 %v2115
        %2136 = vmatprep.subr.bf16.mxu0 0
        %2137 = vmatpush2.bf16.msra.mxu0 0
        %2138 = vmatprep.subr.bf16.mxu0 0
        %2139 = vmatpush2.bf16.msra.mxu0 0
        %2140 = vmatprep.subr.bf16.mxu0 0
        %2141 = vmatpush2.bf16.msra.mxu0 0
        %2142 = vmatprep.subr.bf16.mxu0 0
        %2143 = vmatpush2.bf16.msra.mxu0 0
        %2144 = vmatprep.subr.bf16.mxu0 0
        %2145 = vmatpush2.bf16.msra.mxu0 0
        %2146 = vmatprep.subr.bf16.mxu0 0
        %2147 = vmatpush2.bf16.msra.mxu0 0
        %2148 = vmatprep.subr.bf16.mxu0 0
        %2149 = vmatpush2.bf16.msra.mxu0 0
        %2150 = vmatprep.subr.bf16.mxu0 0
        %2151 = vmatpush2.bf16.msra.mxu0 0
        %2152 = vmatprep.mubr.bf16.mxu0 0
        %2153 = vmatmul.mubr.bf16.gmra.mxu0 %v2118
        %v2154 = vpop.f32.mrf.mxu0
        %v2155 = vadd.f32 0.0, %v2154
        %v2156 = vpop.f32.mrf.mxu0
        %v2157 = vpop.f32.mrf.mxu0
        %v2158 = vadd.f32 0.0, %v2157
        %v2159 = vpop.f32.mrf.mxu0
        %2160 = vdwg.mxu0
        %v2161 = vpack.c.bf16 %v2158, %v2155
        %v2163 = vsel %vm830, %v2161, 0
        %2165 = vmatprep.subr.bf16.mxu0 0
        %2166 = vmatpush1.bf16.msra.mxu0 0
        %2167 = vmatprep.subr.bf16.mxu0 0
        %2168 = vmatpush1.bf16.msra.mxu0 0
        %2169 = vmatprep.subr.bf16.mxu0 0
        %2170 = vmatpush1.bf16.msra.mxu0 0
        %2171 = vmatprep.subr.bf16.mxu0 0
        %2172 = vmatpush1.bf16.msra.mxu0 0
        %2173 = vmatprep.subr.bf16.mxu0 0
        %2174 = vmatpush1.bf16.msra.mxu0 0
        %2175 = vmatprep.subr.bf16.mxu0 0
        %2176 = vmatpush1.bf16.msra.mxu0 0
        %2177 = vmatprep.subr.bf16.mxu0 0
        %2178 = vmatpush1.bf16.msra.mxu0 %v1495
        %2179 = vmatprep.subr.bf16.mxu0 0
        %2180 = vmatpush1.bf16.msra.mxu0 %v1494
        %2181 = vmatprep.subr.bf16.mxu0 0
        %2182 = vmatpush2.bf16.msra.mxu0 0
        %2183 = vmatprep.subr.bf16.mxu0 0
        %2184 = vmatpush2.bf16.msra.mxu0 0
        %2185 = vmatprep.subr.bf16.mxu0 0
        %2186 = vmatpush2.bf16.msra.mxu0 0
        %2187 = vmatprep.subr.bf16.mxu0 0
        %2188 = vmatpush2.bf16.msra.mxu0 0
        %2189 = vmatprep.subr.bf16.mxu0 0
        %2190 = vmatpush2.bf16.msra.mxu0 0
        %2191 = vmatprep.subr.bf16.mxu0 0
        %2192 = vmatpush2.bf16.msra.mxu0 0
        %2193 = vmatprep.subr.bf16.mxu0 0
        %2194 = vmatpush2.bf16.msra.mxu0 0
        %2195 = vmatprep.subr.bf16.mxu0 0
        %2196 = vmatpush2.bf16.msra.mxu0 0
        %2197 = vmatprep.mubr.bf16.mxu0 0
        %2198 = vmatmul.mubr.bf16.gmra.mxu0 %v2163
        %v2199 = vpop.f32.mrf.mxu0
        %v2200 = vadd.f32 0.0, %v2199
        %v2201 = vpop.f32.mrf.mxu0
        %v2202 = vpop.f32.mrf.mxu0
        %v2203 = vadd.f32 0.0, %v2202
        %v2204 = vpop.f32.mrf.mxu0
        %2205 = vdwg.mxu0
        %v2206 = vadd.f32 %v2038, %v2200
        %v2207 = vadd.f32 %v2039, %v2203
        %v2208 = vlaneseq
        %v2209 = vshrl.u32 %v2208, 7
        %v2210 = vsub.s32 1, %v2209
        %v2211 = vrot.slane %v477, %v2210
        %v2212 = vadd.f32 %v1542, %v2211
        %v2213 = vadd.f32 %v1543, %v2211
        %v2214 = vadd.f32 %v2206, %v2211
        %v2215 = vadd.f32 %v2207, %v2211
        %v2216 = vadd.f32 %v473, %v2212
        %v2217 = vadd.f32 %v474, %v2213
        %v2218 = vadd.f32 %v475, %v2214
        %v2219 = vadd.f32 %v476, %v2215
        %2220 = vadd.xlane.f32.xlu0 %v2216
        %v2221 = vpop.xlane.xlu0 %2220
        %2222 = vadd.xlane.f32.xlu0 %v2217
        %v2223 = vpop.xlane.xlu0 %2222
        %2224 = vadd.xlane.f32.xlu0 %v2218
        %v2225 = vpop.xlane.xlu0 %2224
        %2226 = vadd.xlane.f32.xlu0 %v2219
        %v2227 = vpop.xlane.xlu0 %2226
        %v2228 = vrcp.pop 128.0
        %v2229 = vmul.f32 %v2221, %v2228
        %v2230 = vmul.f32 %v2223, %v2228
        %v2231 = vmul.f32 %v2225, %v2228
        %v2232 = vmul.f32 %v2227, %v2228
        %v2233 = vsub.f32 %v2216, %v2229
        %v2234 = vsub.f32 %v2217, %v2230
        %v2235 = vsub.f32 %v2218, %v2231
        %v2236 = vsub.f32 %v2219, %v2232
        %v2237 = vmul.f32 %v2233, %v2233
        %v2238 = vmul.f32 %v2234, %v2234
        %v2239 = vmul.f32 %v2235, %v2235
        %v2240 = vmul.f32 %v2236, %v2236
        %2241 = vadd.xlane.f32.xlu0 %v2237
        %v2242 = vpop.xlane.xlu0 %2241
        %2243 = vadd.xlane.f32.xlu0 %v2238
        %v2244 = vpop.xlane.xlu0 %2243
        %2245 = vadd.xlane.f32.xlu0 %v2239
        %v2246 = vpop.xlane.xlu0 %2245
        %2247 = vadd.xlane.f32.xlu0 %v2240
        %v2248 = vpop.xlane.xlu0 %2247
        %v2249 = vmul.f32 %v2242, %v2228
        %v2250 = vmul.f32 %v2244, %v2228
        %v2251 = vmul.f32 %v2246, %v2228
        %v2252 = vmul.f32 %v2248, %v2228
        %v2253 = vadd.f32 %v2249, 1e-05
        %v2254 = vadd.f32 %v2250, 1e-05
        %v2255 = vadd.f32 %v2251, 1e-05
        %v2256 = vadd.f32 %v2252, 1e-05
        %v2257 = vrsqrt.pop %v2253
        %v2258 = vrsqrt.pop %v2254
        %v2259 = vrsqrt.pop %v2255
        %v2260 = vrsqrt.pop %v2256
        %v2261 = vmul.f32 %v2233, %v2257
        %v2262 = vmul.f32 %v2234, %v2258
        %v2263 = vmul.f32 %v2235, %v2259
        %v2264 = vmul.f32 %v2236, %v2260
        %v2265 = vlaneseq
        %v2266 = vshrl.u32 %v2265, 7
        %v2267 = vsub.s32 4, %v2266
        %v2268 = vrot.slane %v477, %v2267
        %v2269 = vmul.f32 %v2261, %v2268
        %v2270 = vmul.f32 %v2262, %v2268
        %v2271 = vmul.f32 %v2263, %v2268
        %v2272 = vmul.f32 %v2264, %v2268
        %v2273 = vlaneseq
        %v2274 = vshrl.u32 %v2273, 7
        %v2275 = vsub.s32 5, %v2274
        %v2276 = vrot.slane %v477, %v2275
        %v2277 = vadd.f32 %v2269, %v2276
        %v2278 = vadd.f32 %v2270, %v2276
        %v2279 = vadd.f32 %v2271, %v2276
        %v2280 = vadd.f32 %v2272, %v2276
        %v2281 = vpack.c.bf16 %v2278, %v2277
        %v2282 = vpack.c.bf16 %v2280, %v2279
        %v2283 = vlaneseq
        %v2284 = vshrl.u32 %v2283, 7
        %v2285 = vsub.s32 2, %v2284
        %v2286 = vrot.slane %v477, %v2285
        %v2287 = vlaneseq
        %v2288 = vshrl.u32 %v2287, 7
        %v2289 = vsub.s32 2, %v2288
        %v2290 = vrot.slane %v478, %v2289
        %v2307 = vunpack.c.l.b16 %v528
        %v2308 = vunpack.c.h.b16 %v528
        %v2309 = vunpack.c.l.b16 %v529
        %v2310 = vunpack.c.h.b16 %v529
        %v2311 = vunpack.c.l.b16 %v530
        %v2312 = vunpack.c.h.b16 %v530
        %v2313 = vunpack.c.l.b16 %v531
        %v2314 = vunpack.c.h.b16 %v531
        %v2315 = vunpack.c.l.b16 %v532
        %v2316 = vunpack.c.h.b16 %v532
        %v2317 = vunpack.c.l.b16 %v533
        %v2318 = vunpack.c.h.b16 %v533
        %v2319 = vunpack.c.l.b16 %v534
        %v2320 = vunpack.c.h.b16 %v534
        %v2321 = vunpack.c.l.b16 %v535
        %v2322 = vunpack.c.h.b16 %v535
        %v2323 = vunpack.c.l.b16 %v536
        %v2324 = vunpack.c.h.b16 %v536
        %v2325 = vunpack.c.l.b16 %v537
        %v2326 = vunpack.c.h.b16 %v537
        %v2327 = vunpack.c.l.b16 %v538
        %v2328 = vunpack.c.h.b16 %v538
        %v2329 = vunpack.c.l.b16 %v539
        %v2330 = vunpack.c.h.b16 %v539
        %v2331 = vunpack.c.l.b16 %v540
        %v2332 = vunpack.c.h.b16 %v540
        %v2333 = vunpack.c.l.b16 %v541
        %v2334 = vunpack.c.h.b16 %v541
        %v2335 = vunpack.c.l.b16 %v542
        %v2336 = vunpack.c.h.b16 %v542
        %v2337 = vunpack.c.l.b16 %v543
        %v2338 = vunpack.c.h.b16 %v543
        %v2339 = vpack.c.b16 %v2309, %v2307
        %v2340 = vpack.c.b16 %v2310, %v2308
        %v2341 = vpack.c.b16 %v2313, %v2311
        %v2342 = vpack.c.b16 %v2314, %v2312
        %v2343 = vpack.c.b16 %v2317, %v2315
        %v2344 = vpack.c.b16 %v2318, %v2316
        %v2345 = vpack.c.b16 %v2321, %v2319
        %v2346 = vpack.c.b16 %v2322, %v2320
        %v2347 = vpack.c.b16 %v2325, %v2323
        %v2348 = vpack.c.b16 %v2326, %v2324
        %v2349 = vpack.c.b16 %v2329, %v2327
        %v2350 = vpack.c.b16 %v2330, %v2328
        %v2351 = vpack.c.b16 %v2333, %v2331
        %v2352 = vpack.c.b16 %v2334, %v2332
        %v2353 = vpack.c.b16 %v2337, %v2335
        %v2354 = vpack.c.b16 %v2338, %v2336
        %2371 = vmatprep.subr.bf16.mxu0 %v2354
        %2372 = vmatpush1.bf16.msra.mxu0 %v2353
        %2373 = vmatprep.subr.bf16.mxu0 %v2352
        %2374 = vmatpush1.bf16.msra.mxu0 %v2351
        %2375 = vmatprep.subr.bf16.mxu0 %v2350
        %2376 = vmatpush1.bf16.msra.mxu0 %v2349
        %2377 = vmatprep.subr.bf16.mxu0 %v2348
        %2378 = vmatpush1.bf16.msra.mxu0 %v2347
        %2379 = vmatprep.subr.bf16.mxu0 %v2346
        %2380 = vmatpush1.bf16.msra.mxu0 %v2345
        %2381 = vmatprep.subr.bf16.mxu0 %v2344
        %2382 = vmatpush1.bf16.msra.mxu0 %v2343
        %2383 = vmatprep.subr.bf16.mxu0 %v2342
        %2384 = vmatpush1.bf16.msra.mxu0 %v2341
        %2385 = vmatprep.subr.bf16.mxu0 %v2340
        %2386 = vmatpush1.bf16.msra.mxu0 %v2339
        %2387 = vmatprep.subr.bf16.mxu0 0
        %2388 = vmatpush2.bf16.msra.mxu0 0
        %2389 = vmatprep.subr.bf16.mxu0 0
        %2390 = vmatpush2.bf16.msra.mxu0 0
        %2391 = vmatprep.subr.bf16.mxu0 0
        %2392 = vmatpush2.bf16.msra.mxu0 0
        %2393 = vmatprep.subr.bf16.mxu0 0
        %2394 = vmatpush2.bf16.msra.mxu0 0
        %2395 = vmatprep.subr.bf16.mxu0 0
        %2396 = vmatpush2.bf16.msra.mxu0 0
        %2397 = vmatprep.subr.bf16.mxu0 0
        %2398 = vmatpush2.bf16.msra.mxu0 0
        %2399 = vmatprep.subr.bf16.mxu0 0
        %2400 = vmatpush2.bf16.msra.mxu0 0
        %2401 = vmatprep.subr.bf16.mxu0 0
        %2402 = vmatpush2.bf16.msra.mxu0 0
        %2403 = vmatprep.mubr.bf16.mxu0 0
        %2404 = vmatmul.mubr.bf16.gmra.mxu0 %v2281
        %v2405 = vpop.f32.mrf.mxu0
        %v2406 = vadd.f32 %v2286, %v2405
        %v2407 = vpop.f32.mrf.mxu0
        %v2408 = vadd.f32 %v2290, %v2407
        %v2409 = vpop.f32.mrf.mxu0
        %v2410 = vadd.f32 %v2286, %v2409
        %v2411 = vpop.f32.mrf.mxu0
        %v2412 = vadd.f32 %v2290, %v2411
        %2413 = vmatprep.mubr.bf16.mxu0 0
        %2414 = vmatmul.mubr.bf16.gmra.mxu0 %v2282
        %v2415 = vpop.f32.mrf.mxu0
        %v2416 = vadd.f32 %v2286, %v2415
        %v2417 = vpop.f32.mrf.mxu0
        %v2418 = vadd.f32 %v2290, %v2417
        %v2419 = vpop.f32.mrf.mxu0
        %v2420 = vadd.f32 %v2286, %v2419
        %v2421 = vpop.f32.mrf.mxu0
        %v2422 = vadd.f32 %v2290, %v2421
        %2423 = vdwg.mxu0
        %v2424 = vmax.f32 %v2406, 0.0
        %v2425 = vmax.f32 %v2408, 0.0
        %v2426 = vmax.f32 %v2410, 0.0
        %v2427 = vmax.f32 %v2412, 0.0
        %v2428 = vmax.f32 %v2416, 0.0
        %v2429 = vmax.f32 %v2418, 0.0
        %v2430 = vmax.f32 %v2420, 0.0
        %v2431 = vmax.f32 %v2422, 0.0
        %v2432 = vpack.c.bf16 %v2426, %v2424
        %v2433 = vpack.c.bf16 %v2427, %v2425
        %v2434 = vpack.c.bf16 %v2430, %v2428
        %v2435 = vpack.c.bf16 %v2431, %v2429
        %v2436 = vlaneseq
        %v2437 = vshrl.u32 %v2436, 7
        %v2438 = vsub.s32 3, %v2437
        %v2439 = vrot.slane %v477, %v2438
        %v2472 = vunpack.c.l.b16 %v544
        %v2473 = vunpack.c.l.b16 %v545
        %v2474 = vunpack.c.l.b16 %v546
        %v2475 = vunpack.c.l.b16 %v547
        %v2476 = vunpack.c.l.b16 %v548
        %v2477 = vunpack.c.l.b16 %v549
        %v2478 = vunpack.c.l.b16 %v550
        %v2479 = vunpack.c.l.b16 %v551
        %v2480 = vunpack.c.l.b16 %v552
        %v2481 = vunpack.c.l.b16 %v553
        %v2482 = vunpack.c.l.b16 %v554
        %v2483 = vunpack.c.l.b16 %v555
        %v2484 = vunpack.c.l.b16 %v556
        %v2485 = vunpack.c.l.b16 %v557
        %v2486 = vunpack.c.l.b16 %v558
        %v2487 = vunpack.c.l.b16 %v559
        %v2488 = vunpack.c.l.b16 %v560
        %v2489 = vunpack.c.l.b16 %v561
        %v2490 = vunpack.c.l.b16 %v562
        %v2491 = vunpack.c.l.b16 %v563
        %v2492 = vunpack.c.l.b16 %v564
        %v2493 = vunpack.c.l.b16 %v565
        %v2494 = vunpack.c.l.b16 %v566
        %v2495 = vunpack.c.l.b16 %v567
        %v2496 = vunpack.c.l.b16 %v568
        %v2497 = vunpack.c.l.b16 %v569
        %v2498 = vunpack.c.l.b16 %v570
        %v2499 = vunpack.c.l.b16 %v571
        %v2500 = vunpack.c.l.b16 %v572
        %v2501 = vunpack.c.l.b16 %v573
        %v2502 = vunpack.c.l.b16 %v574
        %v2503 = vunpack.c.l.b16 %v575
        %v2504 = vpack.c.b16 %v2473, %v2472
        %v2505 = vpack.c.b16 %v2475, %v2474
        %v2506 = vpack.c.b16 %v2477, %v2476
        %v2507 = vpack.c.b16 %v2479, %v2478
        %v2508 = vpack.c.b16 %v2481, %v2480
        %v2509 = vpack.c.b16 %v2483, %v2482
        %v2510 = vpack.c.b16 %v2485, %v2484
        %v2511 = vpack.c.b16 %v2487, %v2486
        %v2512 = vpack.c.b16 %v2489, %v2488
        %v2513 = vpack.c.b16 %v2491, %v2490
        %v2514 = vpack.c.b16 %v2493, %v2492
        %v2515 = vpack.c.b16 %v2495, %v2494
        %v2516 = vpack.c.b16 %v2497, %v2496
        %v2517 = vpack.c.b16 %v2499, %v2498
        %v2518 = vpack.c.b16 %v2501, %v2500
        %v2519 = vpack.c.b16 %v2503, %v2502
        %2536 = vmatprep.subr.bf16.mxu0 0
        %2537 = vmatpush1.bf16.msra.mxu0 %v2511
        %2538 = vmatprep.subr.bf16.mxu0 0
        %2539 = vmatpush1.bf16.msra.mxu0 %v2510
        %2540 = vmatprep.subr.bf16.mxu0 0
        %2541 = vmatpush1.bf16.msra.mxu0 %v2509
        %2542 = vmatprep.subr.bf16.mxu0 0
        %2543 = vmatpush1.bf16.msra.mxu0 %v2508
        %2544 = vmatprep.subr.bf16.mxu0 0
        %2545 = vmatpush1.bf16.msra.mxu0 %v2507
        %2546 = vmatprep.subr.bf16.mxu0 0
        %2547 = vmatpush1.bf16.msra.mxu0 %v2506
        %2548 = vmatprep.subr.bf16.mxu0 0
        %2549 = vmatpush1.bf16.msra.mxu0 %v2505
        %2550 = vmatprep.subr.bf16.mxu0 0
        %2551 = vmatpush1.bf16.msra.mxu0 %v2504
        %2552 = vmatprep.subr.bf16.mxu0 0
        %2553 = vmatpush2.bf16.msra.mxu0 %v2519
        %2554 = vmatprep.subr.bf16.mxu0 0
        %2555 = vmatpush2.bf16.msra.mxu0 %v2518
        %2556 = vmatprep.subr.bf16.mxu0 0
        %2557 = vmatpush2.bf16.msra.mxu0 %v2517
        %2558 = vmatprep.subr.bf16.mxu0 0
        %2559 = vmatpush2.bf16.msra.mxu0 %v2516
        %2560 = vmatprep.subr.bf16.mxu0 0
        %2561 = vmatpush2.bf16.msra.mxu0 %v2515
        %2562 = vmatprep.subr.bf16.mxu0 0
        %2563 = vmatpush2.bf16.msra.mxu0 %v2514
        %2564 = vmatprep.subr.bf16.mxu0 0
        %2565 = vmatpush2.bf16.msra.mxu0 %v2513
        %2566 = vmatprep.subr.bf16.mxu0 0
        %2567 = vmatpush2.bf16.msra.mxu0 %v2512
        %2568 = vmatprep.mubr.bf16.mxu0 %v2433
        %2569 = vmatmul.mubr.bf16.gmra.mxu0 %v2432
        %v2570 = vpop.f32.mrf.mxu0
        %v2571 = vadd.f32 %v2439, %v2570
        %v2572 = vpop.f32.mrf.mxu0
        %v2573 = vpop.f32.mrf.mxu0
        %v2574 = vadd.f32 %v2439, %v2573
        %v2575 = vpop.f32.mrf.mxu0
        %2576 = vmatprep.mubr.bf16.mxu0 %v2435
        %2577 = vmatmul.mubr.bf16.gmra.mxu0 %v2434
        %v2578 = vpop.f32.mrf.mxu0
        %v2579 = vadd.f32 %v2439, %v2578
        %v2580 = vpop.f32.mrf.mxu0
        %v2581 = vpop.f32.mrf.mxu0
        %v2582 = vadd.f32 %v2439, %v2581
        %v2583 = vpop.f32.mrf.mxu0
        %2584 = vdwg.mxu0
        %v2585 = vadd.f32 %v2277, %v2571
        %v2586 = vadd.f32 %v2278, %v2574
        %v2587 = vadd.f32 %v2279, %v2579
        %v2588 = vadd.f32 %v2280, %v2582
        %2589 = vadd.xlane.f32.xlu0 %v2585
        %v2590 = vpop.xlane.xlu0 %2589
        %2591 = vadd.xlane.f32.xlu0 %v2586
        %v2592 = vpop.xlane.xlu0 %2591
        %2593 = vadd.xlane.f32.xlu0 %v2587
        %v2594 = vpop.xlane.xlu0 %2593
        %2595 = vadd.xlane.f32.xlu0 %v2588
        %v2596 = vpop.xlane.xlu0 %2595
        %v2597 = vmul.f32 %v2590, %v2228
        %v2598 = vmul.f32 %v2592, %v2228
        %v2599 = vmul.f32 %v2594, %v2228
        %v2600 = vmul.f32 %v2596, %v2228
        %v2601 = vsub.f32 %v2585, %v2597
        %v2602 = vsub.f32 %v2586, %v2598
        %v2603 = vsub.f32 %v2587, %v2599
        %v2604 = vsub.f32 %v2588, %v2600
        %v2605 = vmul.f32 %v2601, %v2601
        %v2606 = vmul.f32 %v2602, %v2602
        %v2607 = vmul.f32 %v2603, %v2603
        %v2608 = vmul.f32 %v2604, %v2604
        %2609 = vadd.xlane.f32.xlu0 %v2605
        %v2610 = vpop.xlane.xlu0 %2609
        %2611 = vadd.xlane.f32.xlu0 %v2606
        %v2612 = vpop.xlane.xlu0 %2611
        %2613 = vadd.xlane.f32.xlu0 %v2607
        %v2614 = vpop.xlane.xlu0 %2613
        %2615 = vadd.xlane.f32.xlu0 %v2608
        %v2616 = vpop.xlane.xlu0 %2615
        %v2617 = vmul.f32 %v2610, %v2228
        %v2618 = vmul.f32 %v2612, %v2228
        %v2619 = vmul.f32 %v2614, %v2228
        %v2620 = vmul.f32 %v2616, %v2228
        %v2621 = vadd.f32 %v2617, 1e-05
        %v2622 = vadd.f32 %v2618, 1e-05
        %v2623 = vadd.f32 %v2619, 1e-05
        %v2624 = vadd.f32 %v2620, 1e-05
        %v2625 = vrsqrt.pop %v2621
        %v2626 = vrsqrt.pop %v2622
        %v2627 = vrsqrt.pop %v2623
        %v2628 = vrsqrt.pop %v2624
        %v2629 = vmul.f32 %v2601, %v2625
        %v2630 = vmul.f32 %v2602, %v2626
        %v2631 = vmul.f32 %v2603, %v2627
        %v2632 = vmul.f32 %v2604, %v2628
        %v2633 = vlaneseq
        %v2634 = vshrl.u32 %v2633, 7
        %v2635 = vsub.s32 6, %v2634
        %v2636 = vrot.slane %v477, %v2635
        %v2637 = vmul.f32 %v2629, %v2636
        %v2638 = vmul.f32 %v2630, %v2636
        %v2639 = vmul.f32 %v2631, %v2636
        %v2640 = vmul.f32 %v2632, %v2636
        %v2641 = vlaneseq
        %v2642 = vshrl.u32 %v2641, 7
        %v2643 = vsub.s32 7, %v2642
        %v2644 = vrot.slane %v477, %v2643
        %v2645 = vadd.f32 %v2637, %v2644
        %v2646 = vadd.f32 %v2638, %v2644
        %v2647 = vadd.f32 %v2639, %v2644
        %v2648 = vadd.f32 %v2640, %v2644
        %2649 = vst [vmem:[#allocation2] sm:$0xff] %v2645
        %2650 = vst [vmem:[#allocation2 + $0x8] sm:$0xff] %v2646
        %2651 = vst [vmem:[#allocation2 + $0x10] sm:$0xff] %v2647
        %2652 = vst [vmem:[#allocation2 + $0x18] sm:$0xff] %v2648
        %p2653 = scmp.eq.s32.totalorder %s28, 1
        // Predicated region
        $region61: #{multimodal_forward.6} parent=43 // pred_check
          %p2654 = pneg %p2653
        $region62: #{multimodal_forward.6} parent=43 // pred_check_branch
          %2656 = sbr.rel (%p2654) target = $region64
        $region63: #{multimodal_forward.6} parent=43 // pred_region
          %v2657 = vadd.f32 %v2645, %v2646
          %v2658 = vrot.slane %v2657, 4
          %v2659 = vadd.f32 %v2657, %v2658
          %v2660 = vrot.slane %v2659, 2
          %v2661 = vadd.f32 %v2659, %v2660
          %v2662 = vrot.slane %v2661, 1
          %v2663 = vadd.f32 %v2661, %v2662
          %v2664 = vrcp.pop 16.0
          %v2665 = vmul.f32 %v2663, %v2664
          %v2666 = vadd.f32 %v2647, %v2648
          %v2667 = vrot.slane %v2666, 4
          %v2668 = vadd.f32 %v2666, %v2667
          %v2669 = vrot.slane %v2668, 2
          %v2670 = vadd.f32 %v2668, %v2669
          %v2671 = vrot.slane %v2670, 1
          %v2672 = vadd.f32 %v2670, %v2671
          %v2673 = vmul.f32 %v2672, %v2664
          %vm2674 = vcmask 1040384
          %v2675 = vsel %vm2674, %v2665, %v2673
          %2676 = vst [vmem:[%s458] sm:$0x3] %v2675
        $region64: #{multimodal_forward.6} parent=43 // pred_fallthru
          _
        %p2677 = scmp.lt.s32.totalorder %s27, 1
        %s2678 = scalar_select %p2677, %s27, 1
        %s2679 = smul.addr %s2678, 2
        %s2680 = scalar_lea.vmem %s6, %s2679
        // Predicated region
        $region65: #{multimodal_forward.6} parent=43 // pred_check
          %p2681 = pneg %p219
        $region66: #{multimodal_forward.6} parent=43 // pred_check_branch
          %2683 = sbr.rel (%p2681) target = $region68
        $region67: #{multimodal_forward.6} parent=43 // pred_region
          _
        $region68: #{multimodal_forward.6} parent=43 // pred_fallthru
          _
      $region44: #{multimodal_forward.6} parent=5 // pred_fallthru
        _
      %p2684 = scmp.le.s32.totalorder 2, %s18
      // Predicated region
      $region69: #{multimodal_forward.6} parent=5 // pred_check
        %p2685 = pneg %p2684
      $region70: #{multimodal_forward.6} parent=5 // pred_check_branch
        %2687 = sbr.rel (%p2685) target = $region72
      $region71: #{multimodal_forward.6} parent=5 // pred_region
        %s2688 = ssub.s32 %s18, 2
        // Predicated region
        $region73: #{multimodal_forward.6} parent=71 // pred_check
          %p2689 = pneg %p225
        $region74: #{multimodal_forward.6} parent=71 // pred_check_branch
          %2691 = sbr.rel (%p2689) target = $region76
        $region75: #{multimodal_forward.6} parent=71 // pred_region
          %p2692 = scmp.lt.s32.totalorder %s29, 1
          %s2693 = scalar_select %p2692, %s29, 1
          %s2694 = smul.addr %s2693, 2
          %s2695 = scalar_lea.vmem %s6, %s2694
        $region76: #{multimodal_forward.6} parent=71 // pred_fallthru
          _
      $region72: #{multimodal_forward.6} parent=5 // pred_fallthru
        _
    $region6: #{multimodal_forward.6} parent=1 // loop_footer
      %s22 = sadd.s32 1, %s18
    $region7: #{multimodal_forward.6} parent=1 // loop_footer_branch
      %17 = sbr.rel target = $region3
    $region8: #{multimodal_forward.6} parent=1 // loop_exit
      _
    %2696 = vsyncpa [#allocation4], 1
    %s2697 = scalar_lea.sflag [#allocation4], 1
    %2698 = vsyncpa %s2697, 1
    %2699 = vsyncpa [#allocation6], 1
    %s2700 = scalar_lea.sflag [#allocation6], 1
    %2701 = vsyncpa %s2700, 1

// kernel: multimodal_forward.7
$region0: #{multimodal_forward.7}
  #allocation0 [shape = 'u32[]', space=smem, size = 0x4, offset = 0x4, fixed_abs, tag = 'smem constant byte address 0x4 - core index']
  #allocation1 [shape = 'u32[144,128]{1,0:T(1,128)}', space=vmem, size = 0x12000, scoped, tag = 'internal scratch']
  #allocation2 [shape = 'f32[8,128]{1,0:T(8,128)}', space=vmem, size = 0x1000, scoped, tag = 'scratch operand']
  %s0 = inlined_call_operand.vmem [shape: f32[2,8,128], index: 0, kind: input, shape index: {}]
  %s1 = inlined_call_operand.vmem [shape: f32[2,2,128], index: 1, kind: input, shape index: {}]
  %s2 = inlined_call_operand.vmem [shape: bf16[2,128,384], index: 2, kind: input, shape index: {}]
  %s3 = inlined_call_operand.vmem [shape: bf16[2,128,128], index: 3, kind: input, shape index: {}]
  %s4 = inlined_call_operand.vmem [shape: bf16[2,128,128], index: 4, kind: input, shape index: {}]
  %s5 = inlined_call_operand.vmem [shape: bf16[2,128,256], index: 5, kind: input, shape index: {}]
  %s6 = inlined_call_operand.vmem [shape: bf16[2,128,128], index: 6, kind: input, shape index: {}]
  %s7 = inlined_call_operand.vmem [shape: bf16[2,128,256], index: 7, kind: input, shape index: {}]
  %s8 = inlined_call_operand.vmem [shape: bf16[2,256,128], index: 8, kind: input, shape index: {}]
  %s9 = inlined_call_operand.vmem [shape: f32[2,13,384], index: 9, kind: input, shape index: {}]
  %s10 = inlined_call_operand.vmem [shape: bf16[128,512], index: 10, kind: input, shape index: {}]
  %s11 = inlined_call_operand.vmem [shape: f32[1,512], index: 11, kind: input, shape index: {}]
  %s12 = inlined_call_operand.hbm [shape: f32[2,8,512], index: 12, kind: output, shape index: {}]
  %s13 = sld [smem:[#allocation0]]
  $region89: #{multimodal_forward.7} parent=0
    _
  %s15 = ssub.s32 1, %s13
  %s16 = scalar_select 0, %s15, %s13
  $region1: #{multimodal_forward.7} parent=0
    #allocation3 [shape = 'u8[32768]{0}', space=vmem, size = 0x8000, scoped, tag = 'output window, operand 0']
    #allocation4 [shape = 's32[2]{0}', space=sflag, size = 0x8, scoped, tag = 'scoped memory for multimodal_forward.7']
    %17 = vsyncpa [#allocation4], 0
    %s18 = scalar_lea.sflag [#allocation4], 1
    %19 = vsyncpa %s18, 0
    loop: start=0, step=1, limit=6
    $region2: #{multimodal_forward.7} parent=1 // loop_pre_header
      _
    $region3: #{multimodal_forward.7} parent=1 // loop_header
      %s21 = sphi 0, %s25
      %p22 = scmp.ge.s32.totalorder %s21, 6
      %s28 = sphi 0, %s40
      %s29 = sphi 0, %s36
      %s30 = sphi 0, %s28
      %s31 = sphi 0, %s29
      %s32 = sphi 0, %s30
      %s33 = sphi 0, %s31
      %s43 = sphi 0, %s45
      %s46 = sphi 0, %s43
      %s47 = sphi 0, %s46
      %s63 = sphi 0, %s47
      %s69 = sphi 0, %s71
      %s72 = sphi 0, %s69
      %s73 = sphi 0, %s72
      %s89 = sphi 0, %s73
      %s95 = sphi 0, %s97
      %s98 = sphi 0, %s95
      %s99 = sphi 0, %s98
      %s115 = sphi 0, %s99
      %s121 = sphi 0, %s123
      %s124 = sphi 0, %s121
      %s125 = sphi 0, %s124
      %s141 = sphi 0, %s125
      %s147 = sphi 0, %s149
      %s150 = sphi 0, %s147
      %s151 = sphi 0, %s150
      %s167 = sphi 0, %s151
      %s173 = sphi 0, %s175
      %s176 = sphi 0, %s173
      %s177 = sphi 0, %s176
      %s193 = sphi 0, %s177
      %s199 = sphi 0, %s201
      %s202 = sphi 0, %s199
      %s203 = sphi 0, %s202
      %s219 = sphi 0, %s203
      %s225 = sphi 0, %s227
      %s228 = sphi 0, %s225
      %s229 = sphi 0, %s228
      %s245 = sphi 0, %s229
      %s251 = sphi 0, %s253
      %s254 = sphi 0, %s251
      %s255 = sphi 0, %s254
      %s271 = sphi 0, %s255
      %s277 = sphi 0, %s279
      %s280 = sphi 0, %s277
      %s281 = sphi 0, %s280
      %s297 = sphi 0, %s281
      %s301 = sphi 0, %s301
      %s303 = sphi 0, %s301
      %s304 = sphi 0, %s303
      %s318 = sphi 0, %s304
      %s322 = sphi 0, %s322
      %s324 = sphi 0, %s322
      %s325 = sphi 0, %s324
      %s339 = sphi 0, %s325
      %s345 = sphi 0, %s347
      %s348 = sphi 0, %s345
      %s349 = sphi 0, %s348
      %s365 = sphi 0, %s349
    $region4: #{multimodal_forward.7} parent=1 // loop_header_branch
      %24 = sbr.rel (%p22) target = $region8
    $region5: #{multimodal_forward.7} parent=1 // loop_body
      %s26 = ssub.s32 %s21, 1
      %s27 = ssub.s32 %s21, 2
      %s34 = sadd.s32 1, %s29
      %p35 = scmp.ge.s32.totalorder %s34, 2
      %s36 = scalar_select %p35, 0, %s34
      %s37 = sadd.s32 1, %s28
      %s38 = scalar_select %p35, %s37, %s28
      %p39 = scmp.ge.s32.totalorder %s38, 2
      %s40 = scalar_select %p39, 0, %s38
      %s41 = ssub.s32 %s28, %s40
      %p42 = scmp.eq.s32.totalorder %s41, 0
      %s44 = sadd.s32 %s43, 1
      %s45 = scalar_select %p42, %s43, %s44
      %p48 = pneg %p42
      %p49 = scmp.eq.s32.totalorder %s21, 3
      %p50 = por %p48, %p49
      %p51 = scmp.ne.s32.totalorder %s43, %s46
      %p52 = scmp.eq.s32.totalorder %s21, 0
      %p53 = por %p51, %p52
      %p54 = scmp.ne.s32.totalorder %s43, %s46
      %p55 = scmp.eq.s32.totalorder %s26, 3
      %p56 = por %p54, %p55
      %p57 = scmp.ne.s32.totalorder %s46, %s47
      %p58 = scmp.eq.s32.totalorder %s26, 0
      %p59 = por %p57, %p58
      %p60 = scmp.ne.s32.totalorder %s46, %s47
      %p61 = scmp.eq.s32.totalorder %s27, 3
      %p62 = por %p60, %p61
      %p64 = scmp.ne.s32.totalorder %s47, %s63
      %p65 = scmp.eq.s32.totalorder %s27, 0
      %p66 = por %p64, %p65
      %s67 = ssub.s32 %s28, %s40
      %p68 = scmp.eq.s32.totalorder %s67, 0
      %s70 = sadd.s32 %s69, 1
      %s71 = scalar_select %p68, %s69, %s70
      %p74 = pneg %p68
      %p75 = scmp.eq.s32.totalorder %s21, 3
      %p76 = por %p74, %p75
      %p77 = scmp.ne.s32.totalorder %s69, %s72
      %p78 = scmp.eq.s32.totalorder %s21, 0
      %p79 = por %p77, %p78
      %p80 = scmp.ne.s32.totalorder %s69, %s72
      %p81 = scmp.eq.s32.totalorder %s26, 3
      %p82 = por %p80, %p81
      %p83 = scmp.ne.s32.totalorder %s72, %s73
      %p84 = scmp.eq.s32.totalorder %s26, 0
      %p85 = por %p83, %p84
      %p86 = scmp.ne.s32.totalorder %s72, %s73
      %p87 = scmp.eq.s32.totalorder %s27, 3
      %p88 = por %p86, %p87
      %p90 = scmp.ne.s32.totalorder %s73, %s89
      %p91 = scmp.eq.s32.totalorder %s27, 0
      %p92 = por %p90, %p91
      %s93 = ssub.s32 %s29, %s36
      %p94 = scmp.eq.s32.totalorder %s93, 0
      %s96 = sadd.s32 %s95, 1
      %s97 = scalar_select %p94, %s95, %s96
      %p100 = pneg %p94
      %p101 = scmp.eq.s32.totalorder %s21, 3
      %p102 = por %p100, %p101
      %p103 = scmp.ne.s32.totalorder %s95, %s98
      %p104 = scmp.eq.s32.totalorder %s21, 0
      %p105 = por %p103, %p104
      %p106 = scmp.ne.s32.totalorder %s95, %s98
      %p107 = scmp.eq.s32.totalorder %s26, 3
      %p108 = por %p106, %p107
      %p109 = scmp.ne.s32.totalorder %s98, %s99
      %p110 = scmp.eq.s32.totalorder %s26, 0
      %p111 = por %p109, %p110
      %p112 = scmp.ne.s32.totalorder %s98, %s99
      %p113 = scmp.eq.s32.totalorder %s27, 3
      %p114 = por %p112, %p113
      %p116 = scmp.ne.s32.totalorder %s99, %s115
      %p117 = scmp.eq.s32.totalorder %s27, 0
      %p118 = por %p116, %p117
      %s119 = ssub.s32 %s29, %s36
      %p120 = scmp.eq.s32.totalorder %s119, 0
      %s122 = sadd.s32 %s121, 1
      %s123 = scalar_select %p120, %s121, %s122
      %p126 = pneg %p120
      %p127 = scmp.eq.s32.totalorder %s21, 3
      %p128 = por %p126, %p127
      %p129 = scmp.ne.s32.totalorder %s121, %s124
      %p130 = scmp.eq.s32.totalorder %s21, 0
      %p131 = por %p129, %p130
      %p132 = scmp.ne.s32.totalorder %s121, %s124
      %p133 = scmp.eq.s32.totalorder %s26, 3
      %p134 = por %p132, %p133
      %p135 = scmp.ne.s32.totalorder %s124, %s125
      %p136 = scmp.eq.s32.totalorder %s26, 0
      %p137 = por %p135, %p136
      %p138 = scmp.ne.s32.totalorder %s124, %s125
      %p139 = scmp.eq.s32.totalorder %s27, 3
      %p140 = por %p138, %p139
      %p142 = scmp.ne.s32.totalorder %s125, %s141
      %p143 = scmp.eq.s32.totalorder %s27, 0
      %p144 = por %p142, %p143
      %s145 = ssub.s32 %s29, %s36
      %p146 = scmp.eq.s32.totalorder %s145, 0
      %s148 = sadd.s32 %s147, 1
      %s149 = scalar_select %p146, %s147, %s148
      %p152 = pneg %p146
      %p153 = scmp.eq.s32.totalorder %s21, 3
      %p154 = por %p152, %p153
      %p155 = scmp.ne.s32.totalorder %s147, %s150
      %p156 = scmp.eq.s32.totalorder %s21, 0
      %p157 = por %p155, %p156
      %p158 = scmp.ne.s32.totalorder %s147, %s150
      %p159 = scmp.eq.s32.totalorder %s26, 3
      %p160 = por %p158, %p159
      %p161 = scmp.ne.s32.totalorder %s150, %s151
      %p162 = scmp.eq.s32.totalorder %s26, 0
      %p163 = por %p161, %p162
      %p164 = scmp.ne.s32.totalorder %s150, %s151
      %p165 = scmp.eq.s32.totalorder %s27, 3
      %p166 = por %p164, %p165
      %p168 = scmp.ne.s32.totalorder %s151, %s167
      %p169 = scmp.eq.s32.totalorder %s27, 0
      %p170 = por %p168, %p169
      %s171 = ssub.s32 %s29, %s36
      %p172 = scmp.eq.s32.totalorder %s171, 0
      %s174 = sadd.s32 %s173, 1
      %s175 = scalar_select %p172, %s173, %s174
      %p178 = pneg %p172
      %p179 = scmp.eq.s32.totalorder %s21, 3
      %p180 = por %p178, %p179
      %p181 = scmp.ne.s32.totalorder %s173, %s176
      %p182 = scmp.eq.s32.totalorder %s21, 0
      %p183 = por %p181, %p182
      %p184 = scmp.ne.s32.totalorder %s173, %s176
      %p185 = scmp.eq.s32.totalorder %s26, 3
      %p186 = por %p184, %p185
      %p187 = scmp.ne.s32.totalorder %s176, %s177
      %p188 = scmp.eq.s32.totalorder %s26, 0
      %p189 = por %p187, %p188
      %p190 = scmp.ne.s32.totalorder %s176, %s177
      %p191 = scmp.eq.s32.totalorder %s27, 3
      %p192 = por %p190, %p191
      %p194 = scmp.ne.s32.totalorder %s177, %s193
      %p195 = scmp.eq.s32.totalorder %s27, 0
      %p196 = por %p194, %p195
      %s197 = ssub.s32 %s29, %s36
      %p198 = scmp.eq.s32.totalorder %s197, 0
      %s200 = sadd.s32 %s199, 1
      %s201 = scalar_select %p198, %s199, %s200
      %p204 = pneg %p198
      %p205 = scmp.eq.s32.totalorder %s21, 3
      %p206 = por %p204, %p205
      %p207 = scmp.ne.s32.totalorder %s199, %s202
      %p208 = scmp.eq.s32.totalorder %s21, 0
      %p209 = por %p207, %p208
      %p210 = scmp.ne.s32.totalorder %s199, %s202
      %p211 = scmp.eq.s32.totalorder %s26, 3
      %p212 = por %p210, %p211
      %p213 = scmp.ne.s32.totalorder %s202, %s203
      %p214 = scmp.eq.s32.totalorder %s26, 0
      %p215 = por %p213, %p214
      %p216 = scmp.ne.s32.totalorder %s202, %s203
      %p217 = scmp.eq.s32.totalorder %s27, 3
      %p218 = por %p216, %p217
      %p220 = scmp.ne.s32.totalorder %s203, %s219
      %p221 = scmp.eq.s32.totalorder %s27, 0
      %p222 = por %p220, %p221
      %s223 = ssub.s32 %s29, %s36
      %p224 = scmp.eq.s32.totalorder %s223, 0
      %s226 = sadd.s32 %s225, 1
      %s227 = scalar_select %p224, %s225, %s226
      %p230 = pneg %p224
      %p231 = scmp.eq.s32.totalorder %s21, 3
      %p232 = por %p230, %p231
      %p233 = scmp.ne.s32.totalorder %s225, %s228
      %p234 = scmp.eq.s32.totalorder %s21, 0
      %p235 = por %p233, %p234
      %p236 = scmp.ne.s32.totalorder %s225, %s228
      %p237 = scmp.eq.s32.totalorder %s26, 3
      %p238 = por %p236, %p237
      %p239 = scmp.ne.s32.totalorder %s228, %s229
      %p240 = scmp.eq.s32.totalorder %s26, 0
      %p241 = por %p239, %p240
      %p242 = scmp.ne.s32.totalorder %s228, %s229
      %p243 = scmp.eq.s32.totalorder %s27, 3
      %p244 = por %p242, %p243
      %p246 = scmp.ne.s32.totalorder %s229, %s245
      %p247 = scmp.eq.s32.totalorder %s27, 0
      %p248 = por %p246, %p247
      %s249 = ssub.s32 %s29, %s36
      %p250 = scmp.eq.s32.totalorder %s249, 0
      %s252 = sadd.s32 %s251, 1
      %s253 = scalar_select %p250, %s251, %s252
      %p256 = pneg %p250
      %p257 = scmp.eq.s32.totalorder %s21, 3
      %p258 = por %p256, %p257
      %p259 = scmp.ne.s32.totalorder %s251, %s254
      %p260 = scmp.eq.s32.totalorder %s21, 0
      %p261 = por %p259, %p260
      %p262 = scmp.ne.s32.totalorder %s251, %s254
      %p263 = scmp.eq.s32.totalorder %s26, 3
      %p264 = por %p262, %p263
      %p265 = scmp.ne.s32.totalorder %s254, %s255
      %p266 = scmp.eq.s32.totalorder %s26, 0
      %p267 = por %p265, %p266
      %p268 = scmp.ne.s32.totalorder %s254, %s255
      %p269 = scmp.eq.s32.totalorder %s27, 3
      %p270 = por %p268, %p269
      %p272 = scmp.ne.s32.totalorder %s255, %s271
      %p273 = scmp.eq.s32.totalorder %s27, 0
      %p274 = por %p272, %p273
      %s275 = ssub.s32 %s29, %s36
      %p276 = scmp.eq.s32.totalorder %s275, 0
      %s278 = sadd.s32 %s277, 1
      %s279 = scalar_select %p276, %s277, %s278
      %p282 = pneg %p276
      %p283 = scmp.eq.s32.totalorder %s21, 3
      %p284 = por %p282, %p283
      %p285 = scmp.ne.s32.totalorder %s277, %s280
      %p286 = scmp.eq.s32.totalorder %s21, 0
      %p287 = por %p285, %p286
      %p288 = scmp.ne.s32.totalorder %s277, %s280
      %p289 = scmp.eq.s32.totalorder %s26, 3
      %p290 = por %p288, %p289
      %p291 = scmp.ne.s32.totalorder %s280, %s281
      %p292 = scmp.eq.s32.totalorder %s26, 0
      %p293 = por %p291, %p292
      %p294 = scmp.ne.s32.totalorder %s280, %s281
      %p295 = scmp.eq.s32.totalorder %s27, 3
      %p296 = por %p294, %p295
      %p298 = scmp.ne.s32.totalorder %s281, %s297
      %p299 = scmp.eq.s32.totalorder %s27, 0
      %p300 = por %p298, %p299
      %s302 = sadd.s32 %s301, 1
      %p305 = scmp.eq.s32.totalorder %s21, 3
      %p306 = scmp.ne.s32.totalorder %s301, %s303
      %p307 = scmp.eq.s32.totalorder %s21, 0
      %p308 = por %p306, %p307
      %p309 = scmp.ne.s32.totalorder %s301, %s303
      %p310 = scmp.eq.s32.totalorder %s26, 3
      %p311 = por %p309, %p310
      %p312 = scmp.ne.s32.totalorder %s303, %s304
      %p313 = scmp.eq.s32.totalorder %s26, 0
      %p314 = por %p312, %p313
      %p315 = scmp.ne.s32.totalorder %s303, %s304
      %p316 = scmp.eq.s32.totalorder %s27, 3
      %p317 = por %p315, %p316
      %p319 = scmp.ne.s32.totalorder %s304, %s318
      %p320 = scmp.eq.s32.totalorder %s27, 0
      %p321 = por %p319, %p320
      %s323 = sadd.s32 %s322, 1
      %p326 = scmp.eq.s32.totalorder %s21, 3
      %p327 = scmp.ne.s32.totalorder %s322, %s324
      %p328 = scmp.eq.s32.totalorder %s21, 0
      %p329 = por %p327, %p328
      %p330 = scmp.ne.s32.totalorder %s322, %s324
      %p331 = scmp.eq.s32.totalorder %s26, 3
      %p332 = por %p330, %p331
      %p333 = scmp.ne.s32.totalorder %s324, %s325
      %p334 = scmp.eq.s32.totalorder %s26, 0
      %p335 = por %p333, %p334
      %p336 = scmp.ne.s32.totalorder %s324, %s325
      %p337 = scmp.eq.s32.totalorder %s27, 3
      %p338 = por %p336, %p337
      %p340 = scmp.ne.s32.totalorder %s325, %s339
      %p341 = scmp.eq.s32.totalorder %s27, 0
      %p342 = por %p340, %p341
      %s343 = ssub.s32 %s28, %s40
      %p344 = scmp.eq.s32.totalorder %s343, 0
      %s346 = sadd.s32 %s345, 1
      %s347 = scalar_select %p344, %s345, %s346
      %p350 = pneg %p344
      %p351 = scmp.eq.s32.totalorder %s21, 3
      %p352 = por %p350, %p351
      %p353 = scmp.ne.s32.totalorder %s345, %s348
      %p354 = scmp.eq.s32.totalorder %s21, 0
      %p355 = por %p353, %p354
      %p356 = scmp.ne.s32.totalorder %s345, %s348
      %p357 = scmp.eq.s32.totalorder %s26, 3
      %p358 = por %p356, %p357
      %p359 = scmp.ne.s32.totalorder %s348, %s349
      %p360 = scmp.eq.s32.totalorder %s26, 0
      %p361 = por %p359, %p360
      %p362 = scmp.ne.s32.totalorder %s348, %s349
      %p363 = scmp.eq.s32.totalorder %s27, 3
      %p364 = por %p362, %p363
      %p366 = scmp.ne.s32.totalorder %s349, %s365
      %p367 = scmp.eq.s32.totalorder %s27, 0
      %p368 = por %p366, %p367
      %p369 = scmp.le.s32.totalorder 1, %s21
      %p370 = scmp.lt.s32.totalorder %s21, 5
      %p371 = pnand %p369, %p370
      %p372 = pneg %p371
      // Predicated region
      $region9: #{multimodal_forward.7} parent=5 // pred_check
        _
      $region10: #{multimodal_forward.7} parent=5 // pred_check_branch
        %374 = sbr.rel (%p371) target = $region12
      $region11: #{multimodal_forward.7} parent=5 // pred_region
        %s375 = ssub.s32 %s21, 1
        // Predicated region
        $region13: #{multimodal_forward.7} parent=11 // pred_check
          %p376 = pneg %p314
        $region14: #{multimodal_forward.7} parent=11 // pred_check_branch
          %378 = sbr.rel (%p376) target = $region16
        $region15: #{multimodal_forward.7} parent=11 // pred_region
          _
        $region16: #{multimodal_forward.7} parent=11 // pred_fallthru
          _
        // Predicated region
        $region17: #{multimodal_forward.7} parent=11 // pred_check
          %p379 = pneg %p335
        $region18: #{multimodal_forward.7} parent=11 // pred_check_branch
          %381 = sbr.rel (%p379) target = $region20
        $region19: #{multimodal_forward.7} parent=11 // pred_region
          _
        $region20: #{multimodal_forward.7} parent=11 // pred_fallthru
          _
      $region12: #{multimodal_forward.7} parent=5 // pred_fallthru
        _
      %p382 = scmp.lt.s32.totalorder %s21, 4
      // Predicated region
      $region21: #{multimodal_forward.7} parent=5 // pred_check
        %p383 = pneg %p382
      $region22: #{multimodal_forward.7} parent=5 // pred_check_branch
        %385 = sbr.rel (%p383) target = $region24
      $region23: #{multimodal_forward.7} parent=5 // pred_region
        // Predicated region
        $region25: #{multimodal_forward.7} parent=23 // pred_check
          %p386 = pneg %p53
        $region26: #{multimodal_forward.7} parent=23 // pred_check_branch
          %388 = sbr.rel (%p386) target = $region28
        $region27: #{multimodal_forward.7} parent=23 // pred_region
          %p389 = scmp.lt.s32.totalorder %s28, 1
          %s390 = scalar_select %p389, %s28, 1
          %s391 = smul.addr %s390, 8
          %s392 = scalar_lea.vmem %s0, %s391
        $region28: #{multimodal_forward.7} parent=23 // pred_fallthru
          _
        // Predicated region
        $region29: #{multimodal_forward.7} parent=23 // pred_check
          %p393 = pneg %p79
        $region30: #{multimodal_forward.7} parent=23 // pred_check_branch
          %395 = sbr.rel (%p393) target = $region32
        $region31: #{multimodal_forward.7} parent=23 // pred_region
          %p396 = scmp.lt.s32.totalorder %s28, 1
          %s397 = scalar_select %p396, %s28, 1
          %s398 = smul.addr %s397, 2
          %s399 = scalar_lea.vmem %s1, %s398
        $region32: #{multimodal_forward.7} parent=23 // pred_fallthru
          _
        // Predicated region
        $region33: #{multimodal_forward.7} parent=23 // pred_check
          %p400 = pneg %p105
        $region34: #{multimodal_forward.7} parent=23 // pred_check_branch
          %402 = sbr.rel (%p400) target = $region36
        $region35: #{multimodal_forward.7} parent=23 // pred_region
          %p403 = scmp.lt.s32.totalorder %s29, 1
          %s404 = scalar_select %p403, %s29, 1
          %s405 = smul.addr %s404, 48
          %s406 = smul.addr %s405, 4
          %s407 = scalar_lea.vmem %s2, %s406
        $region36: #{multimodal_forward.7} parent=23 // pred_fallthru
          _
        // Predicated region
        $region37: #{multimodal_forward.7} parent=23 // pred_check
          %p408 = pneg %p131
        $region38: #{multimodal_forward.7} parent=23 // pred_check_branch
          %410 = sbr.rel (%p408) target = $region40
        $region39: #{multimodal_forward.7} parent=23 // pred_region
          %p411 = scmp.lt.s32.totalorder %s29, 1
          %s412 = scalar_select %p411, %s29, 1
          %s413 = smul.addr %s412, 16
          %s414 = smul.addr %s413, 4
          %s415 = scalar_lea.vmem %s3, %s414
        $region40: #{multimodal_forward.7} parent=23 // pred_fallthru
          _
        // Predicated region
        $region41: #{multimodal_forward.7} parent=23 // pred_check
          %p416 = pneg %p157
        $region42: #{multimodal_forward.7} parent=23 // pred_check_branch
          %418 = sbr.rel (%p416) target = $region44
        $region43: #{multimodal_forward.7} parent=23 // pred_region
          %p419 = scmp.lt.s32.totalorder %s29, 1
          %s420 = scalar_select %p419, %s29, 1
          %s421 = smul.addr %s420, 16
          %s422 = smul.addr %s421, 4
          %s423 = scalar_lea.vmem %s4, %s422
        $region44: #{multimodal_forward.7} parent=23 // pred_fallthru
          _
        // Predicated region
        $region45: #{multimodal_forward.7} parent=23 // pred_check
          %p424 = pneg %p183
        $region46: #{multimodal_forward.7} parent=23 // pred_check_branch
          %426 = sbr.rel (%p424) target = $region48
        $region47: #{multimodal_forward.7} parent=23 // pred_region
          %p427 = scmp.lt.s32.totalorder %s29, 1
          %s428 = scalar_select %p427, %s29, 1
          %s429 = smul.addr %s428, 32
          %s430 = smul.addr %s429, 4
          %s431 = scalar_lea.vmem %s5, %s430
        $region48: #{multimodal_forward.7} parent=23 // pred_fallthru
          _
        // Predicated region
        $region49: #{multimodal_forward.7} parent=23 // pred_check
          %p432 = pneg %p209
        $region50: #{multimodal_forward.7} parent=23 // pred_check_branch
          %434 = sbr.rel (%p432) target = $region52
        $region51: #{multimodal_forward.7} parent=23 // pred_region
          %p435 = scmp.lt.s32.totalorder %s29, 1
          %s436 = scalar_select %p435, %s29, 1
          %s437 = smul.addr %s436, 16
          %s438 = smul.addr %s437, 4
          %s439 = scalar_lea.vmem %s6, %s438
        $region52: #{multimodal_forward.7} parent=23 // pred_fallthru
          _
        // Predicated region
        $region53: #{multimodal_forward.7} parent=23 // pred_check
          %p440 = pneg %p235
        $region54: #{multimodal_forward.7} parent=23 // pred_check_branch
          %442 = sbr.rel (%p440) target = $region56
        $region55: #{multimodal_forward.7} parent=23 // pred_region
          %p443 = scmp.lt.s32.totalorder %s29, 1
          %s444 = scalar_select %p443, %s29, 1
          %s445 = smul.addr %s444, 32
          %s446 = smul.addr %s445, 4
          %s447 = scalar_lea.vmem %s7, %s446
        $region56: #{multimodal_forward.7} parent=23 // pred_fallthru
          _
        // Predicated region
        $region57: #{multimodal_forward.7} parent=23 // pred_check
          %p448 = pneg %p261
        $region58: #{multimodal_forward.7} parent=23 // pred_check_branch
          %450 = sbr.rel (%p448) target = $region60
        $region59: #{multimodal_forward.7} parent=23 // pred_region
          %p451 = scmp.lt.s32.totalorder %s29, 1
          %s452 = scalar_select %p451, %s29, 1
          %s453 = smul.addr %s452, 32
          %s454 = smul.addr %s453, 4
          %s455 = scalar_lea.vmem %s8, %s454
        $region60: #{multimodal_forward.7} parent=23 // pred_fallthru
          _
        // Predicated region
        $region61: #{multimodal_forward.7} parent=23 // pred_check
          %p456 = pneg %p287
        $region62: #{multimodal_forward.7} parent=23 // pred_check_branch
          %458 = sbr.rel (%p456) target = $region64
        $region63: #{multimodal_forward.7} parent=23 // pred_region
          %p459 = scmp.lt.s32.totalorder %s29, 1
          %s460 = scalar_select %p459, %s29, 1
          %s461 = smul.addr %s460, 6
          %s462 = smul.addr %s461, 8
          %s463 = scalar_lea.vmem %s9, %s462
        $region64: #{multimodal_forward.7} parent=23 // pred_fallthru
          _
      $region24: #{multimodal_forward.7} parent=5 // pred_fallthru
        _
      %p464 = scmp.le.s32.totalorder 1, %s21
      %p465 = scmp.lt.s32.totalorder %s21, 5
      %p466 = pnand %p464, %p465
      %p467 = pneg %p466
      // Predicated region
      $region65: #{multimodal_forward.7} parent=5 // pred_check
        _
      $region66: #{multimodal_forward.7} parent=5 // pred_check_branch
        %469 = sbr.rel (%p466) target = $region68
      $region67: #{multimodal_forward.7} parent=5 // pred_region
        %s470 = ssub.s32 %s21, 1
        %p471 = scmp.lt.s32.totalorder %s30, 1
        %s472 = scalar_select %p471, %s30, 1
        %s473 = smul.addr %s472, 8
        %s474 = scalar_lea.vmem %s0, %s473
        %p475 = pneg %p59
        %p476 = pneg %p56
        %p477 = scmp.lt.s32.totalorder %s30, 1
        %s478 = scalar_select %p477, %s30, 1
        %s479 = smul.addr %s478, 2
        %s480 = scalar_lea.vmem %s1, %s479
        %p481 = pneg %p85
        %p482 = pneg %p82
        %p483 = scmp.lt.s32.totalorder %s31, 1
        %s484 = scalar_select %p483, %s31, 1
        %s485 = smul.addr %s484, 48
        %s486 = smul.addr %s485, 4
        %s487 = scalar_lea.vmem %s2, %s486
        %p488 = pneg %p111
        %p489 = pneg %p108
        %p490 = scmp.lt.s32.totalorder %s31, 1
        %s491 = scalar_select %p490, %s31, 1
        %s492 = smul.addr %s491, 16
        %s493 = smul.addr %s492, 4
        %s494 = scalar_lea.vmem %s3, %s493
        %p495 = pneg %p137
        %p496 = pneg %p134
        %p497 = scmp.lt.s32.totalorder %s31, 1
        %s498 = scalar_select %p497, %s31, 1
        %s499 = smul.addr %s498, 16
        %s500 = smul.addr %s499, 4
        %s501 = scalar_lea.vmem %s4, %s500
        %p502 = pneg %p163
        %p503 = pneg %p160
        %p504 = scmp.lt.s32.totalorder %s31, 1
        %s505 = scalar_select %p504, %s31, 1
        %s506 = smul.addr %s505, 32
        %s507 = smul.addr %s506, 4
        %s508 = scalar_lea.vmem %s5, %s507
        %p509 = pneg %p189
        %p510 = pneg %p186
        %p511 = scmp.lt.s32.totalorder %s31, 1
        %s512 = scalar_select %p511, %s31, 1
        %s513 = smul.addr %s512, 16
        %s514 = smul.addr %s513, 4
        %s515 = scalar_lea.vmem %s6, %s514
        %p516 = pneg %p215
        %p517 = pneg %p212
        %p518 = scmp.lt.s32.totalorder %s31, 1
        %s519 = scalar_select %p518, %s31, 1
        %s520 = smul.addr %s519, 32
        %s521 = smul.addr %s520, 4
        %s522 = scalar_lea.vmem %s7, %s521
        %p523 = pneg %p241
        %p524 = pneg %p238
        %p525 = scmp.lt.s32.totalorder %s31, 1
        %s526 = scalar_select %p525, %s31, 1
        %s527 = smul.addr %s526, 32
        %s528 = smul.addr %s527, 4
        %s529 = scalar_lea.vmem %s8, %s528
        %p530 = pneg %p267
        %p531 = pneg %p264
        %p532 = scmp.lt.s32.totalorder %s31, 1
        %s533 = scalar_select %p532, %s31, 1
        %s534 = smul.addr %s533, 6
        %s535 = smul.addr %s534, 8
        %s536 = scalar_lea.vmem %s9, %s535
        %p537 = pneg %p293
        %p538 = pneg %p290
        %p539 = pneg %p314
        %p540 = pneg %p311
        %p541 = pneg %p335
        %p542 = pneg %p332
        %p543 = pneg %p361
        %p544 = pneg %p358
        %s545 = sand.u32 %s348, 1
        %s546 = scalar_lea.sflag [#allocation4], %s545
        %s547 = sand.u32 %s348, 1
        %s548 = smul.addr %s547, 32
        %s549 = scalar_lea.vmem [#allocation3], %s548
        %p550 = scmp.lt.s32.totalorder %s30, 1
        %s551 = scalar_select %p550, %s30, 1
        %s552 = smul.addr %s551, 8
        %s553 = scalar_lea.vmem %s0, %s552
        %p554 = scmp.lt.s32.totalorder %s30, 1
        %s555 = scalar_select %p554, %s30, 1
        %s556 = smul.addr %s555, 2
        %s557 = scalar_lea.vmem %s1, %s556
        %p558 = scmp.lt.s32.totalorder %s31, 1
        %s559 = scalar_select %p558, %s31, 1
        %s560 = smul.addr %s559, 48
        %s561 = smul.addr %s560, 4
        %s562 = scalar_lea.vmem %s2, %s561
        %p563 = scmp.lt.s32.totalorder %s31, 1
        %s564 = scalar_select %p563, %s31, 1
        %s565 = smul.addr %s564, 16
        %s566 = smul.addr %s565, 4
        %s567 = scalar_lea.vmem %s3, %s566
        %p568 = scmp.lt.s32.totalorder %s31, 1
        %s569 = scalar_select %p568, %s31, 1
        %s570 = smul.addr %s569, 16
        %s571 = smul.addr %s570, 4
        %s572 = scalar_lea.vmem %s4, %s571
        %p573 = scmp.lt.s32.totalorder %s31, 1
        %s574 = scalar_select %p573, %s31, 1
        %s575 = smul.addr %s574, 32
        %s576 = smul.addr %s575, 4
        %s577 = scalar_lea.vmem %s5, %s576
        %p578 = scmp.lt.s32.totalorder %s31, 1
        %s579 = scalar_select %p578, %s31, 1
        %s580 = smul.addr %s579, 16
        %s581 = smul.addr %s580, 4
        %s582 = scalar_lea.vmem %s6, %s581
        %p583 = scmp.lt.s32.totalorder %s31, 1
        %s584 = scalar_select %p583, %s31, 1
        %s585 = smul.addr %s584, 32
        %s586 = smul.addr %s585, 4
        %s587 = scalar_lea.vmem %s7, %s586
        %p588 = scmp.lt.s32.totalorder %s31, 1
        %s589 = scalar_select %p588, %s31, 1
        %s590 = smul.addr %s589, 32
        %s591 = smul.addr %s590, 4
        %s592 = scalar_lea.vmem %s8, %s591
        %p593 = scmp.lt.s32.totalorder %s31, 1
        %s594 = scalar_select %p593, %s31, 1
        %s595 = smul.addr %s594, 6
        %s596 = smul.addr %s595, 8
        %s597 = scalar_lea.vmem %s9, %s596
        %p599 = scmp.eq.s32.totalorder %s31, 0
        // Predicated region
        $region69: #{multimodal_forward.7} parent=67 // pred_check
          %p600 = pneg %p599
        $region70: #{multimodal_forward.7} parent=67 // pred_check_branch
          %602 = sbr.rel (%p600) target = $region72
        $region71: #{multimodal_forward.7} parent=67 // pred_region
          %v603 = vld [vmem:[%s553] sm:$0xff]
          %604 = vst [vmem:[#allocation2] sm:$0xff] %v603
        $region72: #{multimodal_forward.7} parent=67 // pred_fallthru
          _
        %v605 = vld [vmem:[#allocation2] sm:$0xff]
        %v606 = vld [vmem:[%s557] sm:$0x3]
        %v607 = vld [vmem:[%s597] sm:$0xff]
        %v608 = vld [vmem:[%s597 + $0x8] sm:$0xff]
        %v609 = vld [vmem:[%s597 + $0x10] sm:$0xff]
        %v610 = vld [vmem:[%s597 + $0x18] sm:$0x1f]
        %v611 = vpack.c.bf16 %v605, %v605
        %v612 = vld [vmem:[%s562] sm:$0xff]
        %v613 = vld [vmem:[%s562 + $0x8] sm:$0xf]
        %v614 = vld [vmem:[%s562 + $0xc] sm:$0xff]
        %v615 = vld [vmem:[%s562 + $0x14] sm:$0xf]
        %v616 = vld [vmem:[%s562 + $0x18] sm:$0xff]
        %v617 = vld [vmem:[%s562 + $0x20] sm:$0xf]
        %v618 = vld [vmem:[%s562 + $0x24] sm:$0xff]
        %v619 = vld [vmem:[%s562 + $0x2c] sm:$0xf]
        %v620 = vld [vmem:[%s562 + $0x30] sm:$0xff]
        %v621 = vld [vmem:[%s562 + $0x38] sm:$0xf]
        %v622 = vld [vmem:[%s562 + $0x3c] sm:$0xff]
        %v623 = vld [vmem:[%s562 + $0x44] sm:$0xf]
        %v624 = vld [vmem:[%s562 + $0x48] sm:$0xff]
        %v625 = vld [vmem:[%s562 + $0x50] sm:$0xf]
        %v626 = vld [vmem:[%s562 + $0x54] sm:$0xff]
        %v627 = vld [vmem:[%s562 + $0x5c] sm:$0xf]
        %v628 = vld [vmem:[%s562 + $0x60] sm:$0xff]
        %v629 = vld [vmem:[%s562 + $0x68] sm:$0xf]
        %v630 = vld [vmem:[%s562 + $0x6c] sm:$0xff]
        %v631 = vld [vmem:[%s562 + $0x74] sm:$0xf]
        %v632 = vld [vmem:[%s562 + $0x78] sm:$0xff]
        %v633 = vld [vmem:[%s562 + $0x80] sm:$0xf]
        %v634 = vld [vmem:[%s562 + $0x84] sm:$0xff]
        %v635 = vld [vmem:[%s562 + $0x8c] sm:$0xf]
        %v636 = vld [vmem:[%s562 + $0x90] sm:$0xff]
        %v637 = vld [vmem:[%s562 + $0x98] sm:$0xf]
        %v638 = vld [vmem:[%s562 + $0x9c] sm:$0xff]
        %v639 = vld [vmem:[%s562 + $0xa4] sm:$0xf]
        %v640 = vld [vmem:[%s562 + $0xa8] sm:$0xff]
        %v641 = vld [vmem:[%s562 + $0xb0] sm:$0xf]
        %v642 = vld [vmem:[%s562 + $0xb4] sm:$0xff]
        %v643 = vld [vmem:[%s562 + $0xbc] sm:$0xf]
        %v644 = vlaneseq
        %v645 = vshrl.u32 %v644, 7
        %v646 = vsub.s32 0, %v645
        %v647 = vrot.slane %v607, %v646
        %v648 = vlaneseq
        %v649 = vshrl.u32 %v648, 7
        %v650 = vsub.s32 0, %v649
        %v651 = vrot.slane %v608, %v650
        %v652 = vlaneseq
        %v653 = vshrl.u32 %v652, 7
        %v654 = vsub.s32 0, %v653
        %v655 = vrot.slane %v609, %v654
        %v688 = vunpack.c.l.b16 %v612
        %v689 = vunpack.c.h.b16 %v612
        %v690 = vunpack.c.l.b16 %v613
        %v691 = vunpack.c.l.b16 %v614
        %v692 = vunpack.c.h.b16 %v614
        %v693 = vunpack.c.l.b16 %v615
        %v694 = vunpack.c.l.b16 %v616
        %v695 = vunpack.c.h.b16 %v616
        %v696 = vunpack.c.l.b16 %v617
        %v697 = vunpack.c.l.b16 %v618
        %v698 = vunpack.c.h.b16 %v618
        %v699 = vunpack.c.l.b16 %v619
        %v700 = vunpack.c.l.b16 %v620
        %v701 = vunpack.c.h.b16 %v620
        %v702 = vunpack.c.l.b16 %v621
        %v703 = vunpack.c.l.b16 %v622
        %v704 = vunpack.c.h.b16 %v622
        %v705 = vunpack.c.l.b16 %v623
        %v706 = vunpack.c.l.b16 %v624
        %v707 = vunpack.c.h.b16 %v624
        %v708 = vunpack.c.l.b16 %v625
        %v709 = vunpack.c.l.b16 %v626
        %v710 = vunpack.c.h.b16 %v626
        %v711 = vunpack.c.l.b16 %v627
        %v712 = vunpack.c.l.b16 %v628
        %v713 = vunpack.c.h.b16 %v628
        %v714 = vunpack.c.l.b16 %v629
        %v715 = vunpack.c.l.b16 %v630
        %v716 = vunpack.c.h.b16 %v630
        %v717 = vunpack.c.l.b16 %v631
        %v718 = vunpack.c.l.b16 %v632
        %v719 = vunpack.c.h.b16 %v632
        %v720 = vunpack.c.l.b16 %v633
        %v721 = vunpack.c.l.b16 %v634
        %v722 = vunpack.c.h.b16 %v634
        %v723 = vunpack.c.l.b16 %v635
        %v724 = vunpack.c.l.b16 %v636
        %v725 = vunpack.c.h.b16 %v636
        %v726 = vunpack.c.l.b16 %v637
        %v727 = vunpack.c.l.b16 %v638
        %v728 = vunpack.c.h.b16 %v638
        %v729 = vunpack.c.l.b16 %v639
        %v730 = vunpack.c.l.b16 %v640
        %v731 = vunpack.c.h.b16 %v640
        %v732 = vunpack.c.l.b16 %v641
        %v733 = vunpack.c.l.b16 %v642
        %v734 = vunpack.c.h.b16 %v642
        %v735 = vunpack.c.l.b16 %v643
        %v736 = vpack.c.b16 %v691, %v688
        %v737 = vpack.c.b16 %v692, %v689
        %v738 = vpack.c.b16 %v693, %v690
        %v739 = vpack.c.b16 %v697, %v694
        %v740 = vpack.c.b16 %v698, %v695
        %v741 = vpack.c.b16 %v699, %v696
        %v742 = vpack.c.b16 %v703, %v700
        %v743 = vpack.c.b16 %v704, %v701
        %v744 = vpack.c.b16 %v705, %v702
        %v745 = vpack.c.b16 %v709, %v706
        %v746 = vpack.c.b16 %v710, %v707
        %v747 = vpack.c.b16 %v711, %v708
        %v748 = vpack.c.b16 %v715, %v712
        %v749 = vpack.c.b16 %v716, %v713
        %v750 = vpack.c.b16 %v717, %v714
        %v751 = vpack.c.b16 %v721, %v718
        %v752 = vpack.c.b16 %v722, %v719
        %v753 = vpack.c.b16 %v723, %v720
        %v754 = vpack.c.b16 %v727, %v724
        %v755 = vpack.c.b16 %v728, %v725
        %v756 = vpack.c.b16 %v729, %v726
        %v757 = vpack.c.b16 %v733, %v730
        %v758 = vpack.c.b16 %v734, %v731
        %v759 = vpack.c.b16 %v735, %v732
        %784 = vmatprep.subr.bf16.mxu0 %v758
        %785 = vmatpush1.bf16.msra.mxu0 %v757
        %786 = vmatprep.subr.bf16.mxu0 %v755
        %787 = vmatpush1.bf16.msra.mxu0 %v754
        %788 = vmatprep.subr.bf16.mxu0 %v752
        %789 = vmatpush1.bf16.msra.mxu0 %v751
        %790 = vmatprep.subr.bf16.mxu0 %v749
        %791 = vmatpush1.bf16.msra.mxu0 %v748
        %792 = vmatprep.subr.bf16.mxu0 %v746
        %793 = vmatpush1.bf16.msra.mxu0 %v745
        %794 = vmatprep.subr.bf16.mxu0 %v743
        %795 = vmatpush1.bf16.msra.mxu0 %v742
        %796 = vmatprep.subr.bf16.mxu0 %v740
        %797 = vmatpush1.bf16.msra.mxu0 %v739
        %798 = vmatprep.subr.bf16.mxu0 %v737
        %799 = vmatpush1.bf16.msra.mxu0 %v736
        %800 = vmatprep.subr.bf16.mxu0 0
        %801 = vmatpush2.bf16.msra.mxu0 0
        %802 = vmatprep.subr.bf16.mxu0 0
        %803 = vmatpush2.bf16.msra.mxu0 0
        %804 = vmatprep.subr.bf16.mxu0 0
        %805 = vmatpush2.bf16.msra.mxu0 0
        %806 = vmatprep.subr.bf16.mxu0 0
        %807 = vmatpush2.bf16.msra.mxu0 0
        %808 = vmatprep.subr.bf16.mxu0 0
        %809 = vmatpush2.bf16.msra.mxu0 0
        %810 = vmatprep.subr.bf16.mxu0 0
        %811 = vmatpush2.bf16.msra.mxu0 0
        %812 = vmatprep.subr.bf16.mxu0 0
        %813 = vmatpush2.bf16.msra.mxu0 0
        %814 = vmatprep.subr.bf16.mxu0 0
        %815 = vmatpush2.bf16.msra.mxu0 0
        %816 = vmatprep.mubr.bf16.mxu0 0
        %817 = vmatmul.mubr.bf16.gmra.mxu0 %v611
        %v818 = vpop.f32.mrf.mxu0
        %v819 = vadd.f32 %v647, %v818
        %v820 = vpop.f32.mrf.mxu0
        %v821 = vadd.f32 %v651, %v820
        %v822 = vpop.f32.mrf.mxu0
        %v823 = vpop.f32.mrf.mxu0
        %824 = vdwg.mxu0
        %825 = vmatprep.subr.bf16.mxu0 0
        %826 = vmatpush1.bf16.msra.mxu0 %v759
        %827 = vmatprep.subr.bf16.mxu0 0
        %828 = vmatpush1.bf16.msra.mxu0 %v756
        %829 = vmatprep.subr.bf16.mxu0 0
        %830 = vmatpush1.bf16.msra.mxu0 %v753
        %831 = vmatprep.subr.bf16.mxu0 0
        %832 = vmatpush1.bf16.msra.mxu0 %v750
        %833 = vmatprep.subr.bf16.mxu0 0
        %834 = vmatpush1.bf16.msra.mxu0 %v747
        %835 = vmatprep.subr.bf16.mxu0 0
        %836 = vmatpush1.bf16.msra.mxu0 %v744
        %837 = vmatprep.subr.bf16.mxu0 0
        %838 = vmatpush1.bf16.msra.mxu0 %v741
        %839 = vmatprep.subr.bf16.mxu0 0
        %840 = vmatpush1.bf16.msra.mxu0 %v738
        %841 = vmatprep.subr.bf16.mxu0 0
        %842 = vmatpush2.bf16.msra.mxu0 0
        %843 = vmatprep.subr.bf16.mxu0 0
        %844 = vmatpush2.bf16.msra.mxu0 0
        %845 = vmatprep.subr.bf16.mxu0 0
        %846 = vmatpush2.bf16.msra.mxu0 0
        %847 = vmatprep.subr.bf16.mxu0 0
        %848 = vmatpush2.bf16.msra.mxu0 0
        %849 = vmatprep.subr.bf16.mxu0 0
        %850 = vmatpush2.bf16.msra.mxu0 0
        %851 = vmatprep.subr.bf16.mxu0 0
        %852 = vmatpush2.bf16.msra.mxu0 0
        %853 = vmatprep.subr.bf16.mxu0 0
        %854 = vmatpush2.bf16.msra.mxu0 0
        %855 = vmatprep.subr.bf16.mxu0 0
        %856 = vmatpush2.bf16.msra.mxu0 0
        %857 = vmatprep.mubr.bf16.mxu0 0
        %858 = vmatmul.mubr.bf16.gmra.mxu0 %v611
        %v859 = vpop.f32.mrf.mxu0
        %v860 = vadd.f32 %v655, %v859
        %v861 = vpop.f32.mrf.mxu0
        %v862 = vpop.f32.mrf.mxu0
        %v863 = vpop.f32.mrf.mxu0
        %864 = vdwg.mxu0
        %v865 = vmul.f32 %v819, 0.17677669
        %v866 = vpack.c.bf16 %v865, %v865
        %v867 = vpack.c.bf16 %v821, %v821
        %v868 = vpack.c.bf16 %v860, %v860
        %v869 = vld [vmem:[%s567] sm:$0xf]
        %v870 = vld [vmem:[%s567 + $0x4] sm:$0xf]
        %v871 = vld [vmem:[%s567 + $0x8] sm:$0xf]
        %v872 = vld [vmem:[%s567 + $0xc] sm:$0xf]
        %v873 = vld [vmem:[%s567 + $0x10] sm:$0xf]
        %v874 = vld [vmem:[%s567 + $0x14] sm:$0xf]
        %v875 = vld [vmem:[%s567 + $0x18] sm:$0xf]
        %v876 = vld [vmem:[%s567 + $0x1c] sm:$0xf]
        %v877 = vld [vmem:[%s567 + $0x20] sm:$0xf]
        %v878 = vld [vmem:[%s567 + $0x24] sm:$0xf]
        %v879 = vld [vmem:[%s567 + $0x28] sm:$0xf]
        %v880 = vld [vmem:[%s567 + $0x2c] sm:$0xf]
        %v881 = vld [vmem:[%s567 + $0x30] sm:$0xf]
        %v882 = vld [vmem:[%s567 + $0x34] sm:$0xf]
        %v883 = vld [vmem:[%s567 + $0x38] sm:$0xf]
        %v884 = vld [vmem:[%s567 + $0x3c] sm:$0xf]
        %vm885 = vcmask 261120
        %v887 = vsel %vm885, %v866, 0
        %v890 = vsel %vm885, %v867, 0
        %892 = vmatprep.subr.bf16.mxu0 0
        %893 = vmatpush1.bf16.xpose.msra.mxu0 0
        %894 = vmatprep.subr.bf16.mxu0 0
        %895 = vmatpush1.bf16.xpose.msra.mxu0 0
        %896 = vmatprep.subr.bf16.mxu0 0
        %897 = vmatpush1.bf16.xpose.msra.mxu0 0
        %898 = vmatprep.subr.bf16.mxu0 0
        %899 = vmatpush1.bf16.xpose.msra.mxu0 0
        %900 = vmatprep.subr.bf16.mxu0 0
        %901 = vmatpush1.bf16.xpose.msra.mxu0 0
        %902 = vmatprep.subr.bf16.mxu0 0
        %903 = vmatpush1.bf16.xpose.msra.mxu0 0
        %904 = vmatprep.subr.bf16.mxu0 0
        %905 = vmatpush1.bf16.xpose.msra.mxu0 0
        %906 = vmatprep.subr.bf16.mxu0 0
        %907 = vmatpush1.bf16.xpose.msra.mxu0 %v890
        %908 = vmatprep.subr.bf16.mxu0 0
        %909 = vmatpush2.bf16.xpose.msra.mxu0 0
        %910 = vmatprep.subr.bf16.mxu0 0
        %911 = vmatpush2.bf16.xpose.msra.mxu0 0
        %912 = vmatprep.subr.bf16.mxu0 0
        %913 = vmatpush2.bf16.xpose.msra.mxu0 0
        %914 = vmatprep.subr.bf16.mxu0 0
        %915 = vmatpush2.bf16.xpose.msra.mxu0 0
        %916 = vmatprep.subr.bf16.mxu0 0
        %917 = vmatpush2.bf16.xpose.msra.mxu0 0
        %918 = vmatprep.subr.bf16.mxu0 0
        %919 = vmatpush2.bf16.xpose.msra.mxu0 0
        %920 = vmatprep.subr.bf16.mxu0 0
        %921 = vmatpush2.bf16.xpose.msra.mxu0 0
        %922 = vmatprep.subr.bf16.mxu0 0
        %923 = vmatpush2.bf16.xpose.msra.mxu0 0
        %924 = vmatprep.mubr.bf16.mxu0 0
        %925 = vmatmul.mubr.bf16.gmra.mxu0 %v887
        %v926 = vpop.f32.mrf.mxu0
        %v927 = vadd.f32 0.0, %v926
        %v928 = vpop.f32.mrf.mxu0
        %v929 = vpop.f32.mrf.mxu0
        %v930 = vpop.f32.mrf.mxu0
        %931 = vdwg.mxu0
        %vm932 = vcmask 64512
        %v933 = vsel %vm932, %v927, -inf
        %934 = vmax.xlane.f32.xlu0 %v933
        %v935 = vpop.xlane.xlu0 %934
        %v936 = vsub.f32 %v927, %v935
        %v937 = vmul.f32 %v936, 1.442695
        %v938 = vpow.pop %v937
        %v939 = vsel %vm932, %v938, 0.0
        %940 = vadd.xlane.f32.xlu0 %v939
        %v941 = vpop.xlane.xlu0 %940
        %v942 = vrcp.pop %v941
        %v943 = vmul.f32 %v938, %v942
        %v944 = vpack.c.bf16 %v943, %v943
        %v946 = vsel %vm932, %v944, 0
        %vm948 = vcmask 1043456
        %v950 = vsel %vm948, %v868, 0
        %952 = vmatprep.subr.bf16.mxu0 0
        %953 = vmatpush1.bf16.msra.mxu0 0
        %954 = vmatprep.subr.bf16.mxu0 0
        %955 = vmatpush1.bf16.msra.mxu0 0
        %956 = vmatprep.subr.bf16.mxu0 0
        %957 = vmatpush1.bf16.msra.mxu0 0
        %958 = vmatprep.subr.bf16.mxu0 0
        %959 = vmatpush1.bf16.msra.mxu0 0
        %960 = vmatprep.subr.bf16.mxu0 0
        %961 = vmatpush1.bf16.msra.mxu0 0
        %962 = vmatprep.subr.bf16.mxu0 0
        %963 = vmatpush1.bf16.msra.mxu0 0
        %964 = vmatprep.subr.bf16.mxu0 0
        %965 = vmatpush1.bf16.msra.mxu0 0
        %966 = vmatprep.subr.bf16.mxu0 0
        %967 = vmatpush1.bf16.msra.mxu0 %v950
        %968 = vmatprep.subr.bf16.mxu0 0
        %969 = vmatpush2.bf16.msra.mxu0 0
        %970 = vmatprep.subr.bf16.mxu0 0
        %971 = vmatpush2.bf16.msra.mxu0 0
        %972 = vmatprep.subr.bf16.mxu0 0
        %973 = vmatpush2.bf16.msra.mxu0 0
        %974 = vmatprep.subr.bf16.mxu0 0
        %975 = vmatpush2.bf16.msra.mxu0 0
        %976 = vmatprep.subr.bf16.mxu0 0
        %977 = vmatpush2.bf16.msra.mxu0 0
        %978 = vmatprep.subr.bf16.mxu0 0
        %979 = vmatpush2.bf16.msra.mxu0 0
        %980 = vmatprep.subr.bf16.mxu0 0
        %981 = vmatpush2.bf16.msra.mxu0 0
        %982 = vmatprep.subr.bf16.mxu0 0
        %983 = vmatpush2.bf16.msra.mxu0 0
        %984 = vmatprep.mubr.bf16.mxu0 0
        %985 = vmatmul.mubr.bf16.gmra.mxu0 %v946
        %v986 = vpop.f32.mrf.mxu0
        %v987 = vadd.f32 0.0, %v986
        %v988 = vpop.f32.mrf.mxu0
        %v989 = vpop.f32.mrf.mxu0
        %v990 = vpop.f32.mrf.mxu0
        %991 = vdwg.mxu0
        %v992 = vpack.c.bf16 %v987, %v987
        %994 = vrot.lane.b32.xlu0 %v866, 96
        %v995 = vpop.permute.xlu0 %994
        %997 = vrot.lane.b32.xlu0 %v867, 96
        %v998 = vpop.permute.xlu0 %997
        %v1000 = vsel %vm885, %v995, 0
        %v1003 = vsel %vm885, %v998, 0
        %1005 = vmatprep.subr.bf16.mxu0 0
        %1006 = vmatpush1.bf16.xpose.msra.mxu0 0
        %1007 = vmatprep.subr.bf16.mxu0 0
        %1008 = vmatpush1.bf16.xpose.msra.mxu0 0
        %1009 = vmatprep.subr.bf16.mxu0 0
        %1010 = vmatpush1.bf16.xpose.msra.mxu0 0
        %1011 = vmatprep.subr.bf16.mxu0 0
        %1012 = vmatpush1.bf16.xpose.msra.mxu0 0
        %1013 = vmatprep.subr.bf16.mxu0 0
        %1014 = vmatpush1.bf16.xpose.msra.mxu0 0
        %1015 = vmatprep.subr.bf16.mxu0 0
        %1016 = vmatpush1.bf16.xpose.msra.mxu0 0
        %1017 = vmatprep.subr.bf16.mxu0 0
        %1018 = vmatpush1.bf16.xpose.msra.mxu0 0
        %1019 = vmatprep.subr.bf16.mxu0 0
        %1020 = vmatpush1.bf16.xpose.msra.mxu0 %v1003
        %1021 = vmatprep.subr.bf16.mxu0 0
        %1022 = vmatpush2.bf16.xpose.msra.mxu0 0
        %1023 = vmatprep.subr.bf16.mxu0 0
        %1024 = vmatpush2.bf16.xpose.msra.mxu0 0
        %1025 = vmatprep.subr.bf16.mxu0 0
        %1026 = vmatpush2.bf16.xpose.msra.mxu0 0
        %1027 = vmatprep.subr.bf16.mxu0 0
        %1028 = vmatpush2.bf16.xpose.msra.mxu0 0
        %1029 = vmatprep.subr.bf16.mxu0 0
        %1030 = vmatpush2.bf16.xpose.msra.mxu0 0
        %1031 = vmatprep.subr.bf16.mxu0 0
        %1032 = vmatpush2.bf16.xpose.msra.mxu0 0
        %1033 = vmatprep.subr.bf16.mxu0 0
        %1034 = vmatpush2.bf16.xpose.msra.mxu0 0
        %1035 = vmatprep.subr.bf16.mxu0 0
        %1036 = vmatpush2.bf16.xpose.msra.mxu0 0
        %1037 = vmatprep.mubr.bf16.mxu0 0
        %1038 = vmatmul.mubr.bf16.gmra.mxu0 %v1000
        %v1039 = vpop.f32.mrf.mxu0
        %v1040 = vadd.f32 0.0, %v1039
        %v1041 = vpop.f32.mrf.mxu0
        %v1042 = vpop.f32.mrf.mxu0
        %v1043 = vpop.f32.mrf.mxu0
        %1044 = vdwg.mxu0
        %v1045 = vsel %vm932, %v1040, -inf
        %1046 = vmax.xlane.f32.xlu0 %v1045
        %v1047 = vpop.xlane.xlu0 %1046
        %v1048 = vsub.f32 %v1040, %v1047
        %v1049 = vmul.f32 %v1048, 1.442695
        %v1050 = vpow.pop %v1049
        %v1051 = vsel %vm932, %v1050, 0.0
        %1052 = vadd.xlane.f32.xlu0 %v1051
        %v1053 = vpop.xlane.xlu0 %1052
        %v1054 = vrcp.pop %v1053
        %v1055 = vmul.f32 %v1050, %v1054
        %v1056 = vpack.c.bf16 %v1055, %v1055
        %1058 = vrot.lane.b32.xlu0 %v868, 96
        %v1059 = vpop.permute.xlu0 %1058
        %v1061 = vsel %vm932, %v1056, 0
        %v1064 = vsel %vm948, %v1059, 0
        %1066 = vmatprep.subr.bf16.mxu0 0
        %1067 = vmatpush1.bf16.msra.mxu0 0
        %1068 = vmatprep.subr.bf16.mxu0 0
        %1069 = vmatpush1.bf16.msra.mxu0 0
        %1070 = vmatprep.subr.bf16.mxu0 0
        %1071 = vmatpush1.bf16.msra.mxu0 0
        %1072 = vmatprep.subr.bf16.mxu0 0
        %1073 = vmatpush1.bf16.msra.mxu0 0
        %1074 = vmatprep.subr.bf16.mxu0 0
        %1075 = vmatpush1.bf16.msra.mxu0 0
        %1076 = vmatprep.subr.bf16.mxu0 0
        %1077 = vmatpush1.bf16.msra.mxu0 0
        %1078 = vmatprep.subr.bf16.mxu0 0
        %1079 = vmatpush1.bf16.msra.mxu0 0
        %1080 = vmatprep.subr.bf16.mxu0 0
        %1081 = vmatpush1.bf16.msra.mxu0 %v1064
        %1082 = vmatprep.subr.bf16.mxu0 0
        %1083 = vmatpush2.bf16.msra.mxu0 0
        %1084 = vmatprep.subr.bf16.mxu0 0
        %1085 = vmatpush2.bf16.msra.mxu0 0
        %1086 = vmatprep.subr.bf16.mxu0 0
        %1087 = vmatpush2.bf16.msra.mxu0 0
        %1088 = vmatprep.subr.bf16.mxu0 0
        %1089 = vmatpush2.bf16.msra.mxu0 0
        %1090 = vmatprep.subr.bf16.mxu0 0
        %1091 = vmatpush2.bf16.msra.mxu0 0
        %1092 = vmatprep.subr.bf16.mxu0 0
        %1093 = vmatpush2.bf16.msra.mxu0 0
        %1094 = vmatprep.subr.bf16.mxu0 0
        %1095 = vmatpush2.bf16.msra.mxu0 0
        %1096 = vmatprep.subr.bf16.mxu0 0
        %1097 = vmatpush2.bf16.msra.mxu0 0
        %1098 = vmatprep.mubr.bf16.mxu0 0
        %1099 = vmatmul.mubr.bf16.gmra.mxu0 %v1061
        %v1100 = vpop.f32.mrf.mxu0
        %v1101 = vadd.f32 0.0, %v1100
        %v1102 = vpop.f32.mrf.mxu0
        %v1103 = vpop.f32.mrf.mxu0
        %v1104 = vpop.f32.mrf.mxu0
        %1105 = vdwg.mxu0
        %v1106 = vpack.c.bf16 %v1101, %v1101
        %v1111 = vunpack.c.l.b16 %v873
        %v1112 = vunpack.c.l.b16 %v874
        %v1113 = vunpack.c.l.b16 %v875
        %v1114 = vunpack.c.l.b16 %v876
        %v1115 = vpack.c.b16 %v1112, %v1111
        %v1116 = vpack.c.b16 %v1114, %v1113
        %v1120 = vsel %vm885, %v1106, 0
        %1122 = vmatprep.subr.bf16.mxu0 0
        %1123 = vmatpush1.bf16.msra.mxu0 0
        %1124 = vmatprep.subr.bf16.mxu0 0
        %1125 = vmatpush1.bf16.msra.mxu0 0
        %1126 = vmatprep.subr.bf16.mxu0 0
        %1127 = vmatpush1.bf16.msra.mxu0 0
        %1128 = vmatprep.subr.bf16.mxu0 0
        %1129 = vmatpush1.bf16.msra.mxu0 0
        %1130 = vmatprep.subr.bf16.mxu0 0
        %1131 = vmatpush1.bf16.msra.mxu0 0
        %1132 = vmatprep.subr.bf16.mxu0 0
        %1133 = vmatpush1.bf16.msra.mxu0 0
        %1134 = vmatprep.subr.bf16.mxu0 0
        %1135 = vmatpush1.bf16.msra.mxu0 %v1116
        %1136 = vmatprep.subr.bf16.mxu0 0
        %1137 = vmatpush1.bf16.msra.mxu0 %v1115
        %1138 = vmatprep.subr.bf16.mxu0 0
        %1139 = vmatpush2.bf16.msra.mxu0 0
        %1140 = vmatprep.subr.bf16.mxu0 0
        %1141 = vmatpush2.bf16.msra.mxu0 0
        %1142 = vmatprep.subr.bf16.mxu0 0
        %1143 = vmatpush2.bf16.msra.mxu0 0
        %1144 = vmatprep.subr.bf16.mxu0 0
        %1145 = vmatpush2.bf16.msra.mxu0 0
        %1146 = vmatprep.subr.bf16.mxu0 0
        %1147 = vmatpush2.bf16.msra.mxu0 0
        %1148 = vmatprep.subr.bf16.mxu0 0
        %1149 = vmatpush2.bf16.msra.mxu0 0
        %1150 = vmatprep.subr.bf16.mxu0 0
        %1151 = vmatpush2.bf16.msra.mxu0 0
        %1152 = vmatprep.subr.bf16.mxu0 0
        %1153 = vmatpush2.bf16.msra.mxu0 0
        %1154 = vmatprep.mubr.bf16.mxu0 0
        %1155 = vmatmul.mubr.bf16.gmra.mxu0 %v1120
        %v1156 = vpop.f32.mrf.mxu0
        %v1157 = vadd.f32 0.0, %v1156
        %v1158 = vpop.f32.mrf.mxu0
        %v1159 = vpop.f32.mrf.mxu0
        %v1160 = vpop.f32.mrf.mxu0
        %1161 = vdwg.mxu0
        %v1166 = vunpack.c.l.b16 %v869
        %v1167 = vunpack.c.l.b16 %v870
        %v1168 = vunpack.c.l.b16 %v871
        %v1169 = vunpack.c.l.b16 %v872
        %v1170 = vpack.c.b16 %v1167, %v1166
        %v1171 = vpack.c.b16 %v1169, %v1168
        %v1175 = vsel %vm885, %v992, 0
        %1177 = vmatprep.subr.bf16.mxu0 0
        %1178 = vmatpush1.bf16.msra.mxu0 0
        %1179 = vmatprep.subr.bf16.mxu0 0
        %1180 = vmatpush1.bf16.msra.mxu0 0
        %1181 = vmatprep.subr.bf16.mxu0 0
        %1182 = vmatpush1.bf16.msra.mxu0 0
        %1183 = vmatprep.subr.bf16.mxu0 0
        %1184 = vmatpush1.bf16.msra.mxu0 0
        %1185 = vmatprep.subr.bf16.mxu0 0
        %1186 = vmatpush1.bf16.msra.mxu0 0
        %1187 = vmatprep.subr.bf16.mxu0 0
        %1188 = vmatpush1.bf16.msra.mxu0 0
        %1189 = vmatprep.subr.bf16.mxu0 0
        %1190 = vmatpush1.bf16.msra.mxu0 %v1171
        %1191 = vmatprep.subr.bf16.mxu0 0
        %1192 = vmatpush1.bf16.msra.mxu0 %v1170
        %1193 = vmatprep.subr.bf16.mxu0 0
        %1194 = vmatpush2.bf16.msra.mxu0 0
        %1195 = vmatprep.subr.bf16.mxu0 0
        %1196 = vmatpush2.bf16.msra.mxu0 0
        %1197 = vmatprep.subr.bf16.mxu0 0
        %1198 = vmatpush2.bf16.msra.mxu0 0
        %1199 = vmatprep.subr.bf16.mxu0 0
        %1200 = vmatpush2.bf16.msra.mxu0 0
        %1201 = vmatprep.subr.bf16.mxu0 0
        %1202 = vmatpush2.bf16.msra.mxu0 0
        %1203 = vmatprep.subr.bf16.mxu0 0
        %1204 = vmatpush2.bf16.msra.mxu0 0
        %1205 = vmatprep.subr.bf16.mxu0 0
        %1206 = vmatpush2.bf16.msra.mxu0 0
        %1207 = vmatprep.subr.bf16.mxu0 0
        %1208 = vmatpush2.bf16.msra.mxu0 0
        %1209 = vmatprep.mubr.bf16.mxu0 0
        %1210 = vmatmul.mubr.bf16.gmra.mxu0 %v1175
        %v1211 = vpop.f32.mrf.mxu0
        %v1212 = vadd.f32 %v1157, %v1211
        %v1213 = vpop.f32.mrf.mxu0
        %v1214 = vpop.f32.mrf.mxu0
        %v1215 = vpop.f32.mrf.mxu0
        %1216 = vdwg.mxu0
        %1217 = vrot.lane.b32.xlu0 %v866, 64
        %v1218 = vpop.permute.xlu0 %1217
        %1219 = vrot.lane.b32.xlu0 %v867, 64
        %v1220 = vpop.permute.xlu0 %1219
        %v1222 = vsel %vm885, %v1218, 0
        %v1225 = vsel %vm885, %v1220, 0
        %1227 = vmatprep.subr.bf16.mxu0 0
        %1228 = vmatpush1.bf16.xpose.msra.mxu0 0
        %1229 = vmatprep.subr.bf16.mxu0 0
        %1230 = vmatpush1.bf16.xpose.msra.mxu0 0
        %1231 = vmatprep.subr.bf16.mxu0 0
        %1232 = vmatpush1.bf16.xpose.msra.mxu0 0
        %1233 = vmatprep.subr.bf16.mxu0 0
        %1234 = vmatpush1.bf16.xpose.msra.mxu0 0
        %1235 = vmatprep.subr.bf16.mxu0 0
        %1236 = vmatpush1.bf16.xpose.msra.mxu0 0
        %1237 = vmatprep.subr.bf16.mxu0 0
        %1238 = vmatpush1.bf16.xpose.msra.mxu0 0
        %1239 = vmatprep.subr.bf16.mxu0 0
        %1240 = vmatpush1.bf16.xpose.msra.mxu0 0
        %1241 = vmatprep.subr.bf16.mxu0 0
        %1242 = vmatpush1.bf16.xpose.msra.mxu0 %v1225
        %1243 = vmatprep.subr.bf16.mxu0 0
        %1244 = vmatpush2.bf16.xpose.msra.mxu0 0
        %1245 = vmatprep.subr.bf16.mxu0 0
        %1246 = vmatpush2.bf16.xpose.msra.mxu0 0
        %1247 = vmatprep.subr.bf16.mxu0 0
        %1248 = vmatpush2.bf16.xpose.msra.mxu0 0
        %1249 = vmatprep.subr.bf16.mxu0 0
        %1250 = vmatpush2.bf16.xpose.msra.mxu0 0
        %1251 = vmatprep.subr.bf16.mxu0 0
        %1252 = vmatpush2.bf16.xpose.msra.mxu0 0
        %1253 = vmatprep.subr.bf16.mxu0 0
        %1254 = vmatpush2.bf16.xpose.msra.mxu0 0
        %1255 = vmatprep.subr.bf16.mxu0 0
        %1256 = vmatpush2.bf16.xpose.msra.mxu0 0
        %1257 = vmatprep.subr.bf16.mxu0 0
        %1258 = vmatpush2.bf16.xpose.msra.mxu0 0
        %1259 = vmatprep.mubr.bf16.mxu0 0
        %1260 = vmatmul.mubr.bf16.gmra.mxu0 %v1222
        %v1261 = vpop.f32.mrf.mxu0
        %v1262 = vadd.f32 0.0, %v1261
        %v1263 = vpop.f32.mrf.mxu0
        %v1264 = vpop.f32.mrf.mxu0
        %v1265 = vpop.f32.mrf.mxu0
        %1266 = vdwg.mxu0
        %v1267 = vsel %vm932, %v1262, -inf
        %1268 = vmax.xlane.f32.xlu0 %v1267
        %v1269 = vpop.xlane.xlu0 %1268
        %v1270 = vsub.f32 %v1262, %v1269
        %v1271 = vmul.f32 %v1270, 1.442695
        %v1272 = vpow.pop %v1271
        %v1273 = vsel %vm932, %v1272, 0.0
        %1274 = vadd.xlane.f32.xlu0 %v1273
        %v1275 = vpop.xlane.xlu0 %1274
        %v1276 = vrcp.pop %v1275
        %v1277 = vmul.f32 %v1272, %v1276
        %v1278 = vpack.c.bf16 %v1277, %v1277
        %1279 = vrot.lane.b32.xlu0 %v868, 64
        %v1280 = vpop.permute.xlu0 %1279
        %v1282 = vsel %vm932, %v1278, 0
        %v1285 = vsel %vm948, %v1280, 0
        %1287 = vmatprep.subr.bf16.mxu0 0
        %1288 = vmatpush1.bf16.msra.mxu0 0
        %1289 = vmatprep.subr.bf16.mxu0 0
        %1290 = vmatpush1.bf16.msra.mxu0 0
        %1291 = vmatprep.subr.bf16.mxu0 0
        %1292 = vmatpush1.bf16.msra.mxu0 0
        %1293 = vmatprep.subr.bf16.mxu0 0
        %1294 = vmatpush1.bf16.msra.mxu0 0
        %1295 = vmatprep.subr.bf16.mxu0 0
        %1296 = vmatpush1.bf16.msra.mxu0 0
        %1297 = vmatprep.subr.bf16.mxu0 0
        %1298 = vmatpush1.bf16.msra.mxu0 0
        %1299 = vmatprep.subr.bf16.mxu0 0
        %1300 = vmatpush1.bf16.msra.mxu0 0
        %1301 = vmatprep.subr.bf16.mxu0 0
        %1302 = vmatpush1.bf16.msra.mxu0 %v1285
        %1303 = vmatprep.subr.bf16.mxu0 0
        %1304 = vmatpush2.bf16.msra.mxu0 0
        %1305 = vmatprep.subr.bf16.mxu0 0
        %1306 = vmatpush2.bf16.msra.mxu0 0
        %1307 = vmatprep.subr.bf16.mxu0 0
        %1308 = vmatpush2.bf16.msra.mxu0 0
        %1309 = vmatprep.subr.bf16.mxu0 0
        %1310 = vmatpush2.bf16.msra.mxu0 0
        %1311 = vmatprep.subr.bf16.mxu0 0
        %1312 = vmatpush2.bf16.msra.mxu0 0
        %1313 = vmatprep.subr.bf16.mxu0 0
        %1314 = vmatpush2.bf16.msra.mxu0 0
        %1315 = vmatprep.subr.bf16.mxu0 0
        %1316 = vmatpush2.bf16.msra.mxu0 0
        %1317 = vmatprep.subr.bf16.mxu0 0
        %1318 = vmatpush2.bf16.msra.mxu0 0
        %1319 = vmatprep.mubr.bf16.mxu0 0
        %1320 = vmatmul.mubr.bf16.gmra.mxu0 %v1282
        %v1321 = vpop.f32.mrf.mxu0
        %v1322 = vadd.f32 0.0, %v1321
        %v1323 = vpop.f32.mrf.mxu0
        %v1324 = vpop.f32.mrf.mxu0
        %v1325 = vpop.f32.mrf.mxu0
        %1326 = vdwg.mxu0
        %v1327 = vpack.c.bf16 %v1322, %v1322
        %v1332 = vunpack.c.l.b16 %v877
        %v1333 = vunpack.c.l.b16 %v878
        %v1334 = vunpack.c.l.b16 %v879
        %v1335 = vunpack.c.l.b16 %v880
        %v1336 = vpack.c.b16 %v1333, %v1332
        %v1337 = vpack.c.b16 %v1335, %v1334
        %v1341 = vsel %vm885, %v1327, 0
        %1343 = vmatprep.subr.bf16.mxu0 0
        %1344 = vmatpush1.bf16.msra.mxu0 0
        %1345 = vmatprep.subr.bf16.mxu0 0
        %1346 = vmatpush1.bf16.msra.mxu0 0
        %1347 = vmatprep.subr.bf16.mxu0 0
        %1348 = vmatpush1.bf16.msra.mxu0 0
        %1349 = vmatprep.subr.bf16.mxu0 0
        %1350 = vmatpush1.bf16.msra.mxu0 0
        %1351 = vmatprep.subr.bf16.mxu0 0
        %1352 = vmatpush1.bf16.msra.mxu0 0
        %1353 = vmatprep.subr.bf16.mxu0 0
        %1354 = vmatpush1.bf16.msra.mxu0 0
        %1355 = vmatprep.subr.bf16.mxu0 0
        %1356 = vmatpush1.bf16.msra.mxu0 %v1337
        %1357 = vmatprep.subr.bf16.mxu0 0
        %1358 = vmatpush1.bf16.msra.mxu0 %v1336
        %1359 = vmatprep.subr.bf16.mxu0 0
        %1360 = vmatpush2.bf16.msra.mxu0 0
        %1361 = vmatprep.subr.bf16.mxu0 0
        %1362 = vmatpush2.bf16.msra.mxu0 0
        %1363 = vmatprep.subr.bf16.mxu0 0
        %1364 = vmatpush2.bf16.msra.mxu0 0
        %1365 = vmatprep.subr.bf16.mxu0 0
        %1366 = vmatpush2.bf16.msra.mxu0 0
        %1367 = vmatprep.subr.bf16.mxu0 0
        %1368 = vmatpush2.bf16.msra.mxu0 0
        %1369 = vmatprep.subr.bf16.mxu0 0
        %1370 = vmatpush2.bf16.msra.mxu0 0
        %1371 = vmatprep.subr.bf16.mxu0 0
        %1372 = vmatpush2.bf16.msra.mxu0 0
        %1373 = vmatprep.subr.bf16.mxu0 0
        %1374 = vmatpush2.bf16.msra.mxu0 0
        %1375 = vmatprep.mubr.bf16.mxu0 0
        %1376 = vmatmul.mubr.bf16.gmra.mxu0 %v1341
        %v1377 = vpop.f32.mrf.mxu0
        %v1378 = vadd.f32 0.0, %v1377
        %v1379 = vpop.f32.mrf.mxu0
        %v1380 = vpop.f32.mrf.mxu0
        %v1381 = vpop.f32.mrf.mxu0
        %1382 = vdwg.mxu0
        %v1383 = vadd.f32 %v1212, %v1378
        %1384 = vrot.lane.b32.xlu0 %v866, 32
        %v1385 = vpop.permute.xlu0 %1384
        %1386 = vrot.lane.b32.xlu0 %v867, 32
        %v1387 = vpop.permute.xlu0 %1386
        %v1389 = vsel %vm885, %v1385, 0
        %v1392 = vsel %vm885, %v1387, 0
        %1394 = vmatprep.subr.bf16.mxu0 0
        %1395 = vmatpush1.bf16.xpose.msra.mxu0 0
        %1396 = vmatprep.subr.bf16.mxu0 0
        %1397 = vmatpush1.bf16.xpose.msra.mxu0 0
        %1398 = vmatprep.subr.bf16.mxu0 0
        %1399 = vmatpush1.bf16.xpose.msra.mxu0 0
        %1400 = vmatprep.subr.bf16.mxu0 0
        %1401 = vmatpush1.bf16.xpose.msra.mxu0 0
        %1402 = vmatprep.subr.bf16.mxu0 0
        %1403 = vmatpush1.bf16.xpose.msra.mxu0 0
        %1404 = vmatprep.subr.bf16.mxu0 0
        %1405 = vmatpush1.bf16.xpose.msra.mxu0 0
        %1406 = vmatprep.subr.bf16.mxu0 0
        %1407 = vmatpush1.bf16.xpose.msra.mxu0 0
        %1408 = vmatprep.subr.bf16.mxu0 0
        %1409 = vmatpush1.bf16.xpose.msra.mxu0 %v1392
        %1410 = vmatprep.subr.bf16.mxu0 0
        %1411 = vmatpush2.bf16.xpose.msra.mxu0 0
        %1412 = vmatprep.subr.bf16.mxu0 0
        %1413 = vmatpush2.bf16.xpose.msra.mxu0 0
        %1414 = vmatprep.subr.bf16.mxu0 0
        %1415 = vmatpush2.bf16.xpose.msra.mxu0 0
        %1416 = vmatprep.subr.bf16.mxu0 0
        %1417 = vmatpush2.bf16.xpose.msra.mxu0 0
        %1418 = vmatprep.subr.bf16.mxu0 0
        %1419 = vmatpush2.bf16.xpose.msra.mxu0 0
        %1420 = vmatprep.subr.bf16.mxu0 0
        %1421 = vmatpush2.bf16.xpose.msra.mxu0 0
        %1422 = vmatprep.subr.bf16.mxu0 0
        %1423 = vmatpush2.bf16.xpose.msra.mxu0 0
        %1424 = vmatprep.subr.bf16.mxu0 0
        %1425 = vmatpush2.bf16.xpose.msra.mxu0 0
        %1426 = vmatprep.mubr.bf16.mxu0 0
        %1427 = vmatmul.mubr.bf16.gmra.mxu0 %v1389
        %v1428 = vpop.f32.mrf.mxu0
        %v1429 = vadd.f32 0.0, %v1428
        %v1430 = vpop.f32.mrf.mxu0
        %v1431 = vpop.f32.mrf.mxu0
        %v1432 = vpop.f32.mrf.mxu0
        %1433 = vdwg.mxu0
        %v1434 = vsel %vm932, %v1429, -inf
        %1435 = vmax.xlane.f32.xlu0 %v1434
        %v1436 = vpop.xlane.xlu0 %1435
        %v1437 = vsub.f32 %v1429, %v1436
        %v1438 = vmul.f32 %v1437, 1.442695
        %v1439 = vpow.pop %v1438
        %v1440 = vsel %vm932, %v1439, 0.0
        %1441 = vadd.xlane.f32.xlu0 %v1440
        %v1442 = vpop.xlane.xlu0 %1441
        %v1443 = vrcp.pop %v1442
        %v1444 = vmul.f32 %v1439, %v1443
        %v1445 = vpack.c.bf16 %v1444, %v1444
        %1446 = vrot.lane.b32.xlu0 %v868, 32
        %v1447 = vpop.permute.xlu0 %1446
        %v1449 = vsel %vm932, %v1445, 0
        %v1452 = vsel %vm948, %v1447, 0
        %1454 = vmatprep.subr.bf16.mxu0 0
        %1455 = vmatpush1.bf16.msra.mxu0 0
        %1456 = vmatprep.subr.bf16.mxu0 0
        %1457 = vmatpush1.bf16.msra.mxu0 0
        %1458 = vmatprep.subr.bf16.mxu0 0
        %1459 = vmatpush1.bf16.msra.mxu0 0
        %1460 = vmatprep.subr.bf16.mxu0 0
        %1461 = vmatpush1.bf16.msra.mxu0 0
        %1462 = vmatprep.subr.bf16.mxu0 0
        %1463 = vmatpush1.bf16.msra.mxu0 0
        %1464 = vmatprep.subr.bf16.mxu0 0
        %1465 = vmatpush1.bf16.msra.mxu0 0
        %1466 = vmatprep.subr.bf16.mxu0 0
        %1467 = vmatpush1.bf16.msra.mxu0 0
        %1468 = vmatprep.subr.bf16.mxu0 0
        %1469 = vmatpush1.bf16.msra.mxu0 %v1452
        %1470 = vmatprep.subr.bf16.mxu0 0
        %1471 = vmatpush2.bf16.msra.mxu0 0
        %1472 = vmatprep.subr.bf16.mxu0 0
        %1473 = vmatpush2.bf16.msra.mxu0 0
        %1474 = vmatprep.subr.bf16.mxu0 0
        %1475 = vmatpush2.bf16.msra.mxu0 0
        %1476 = vmatprep.subr.bf16.mxu0 0
        %1477 = vmatpush2.bf16.msra.mxu0 0
        %1478 = vmatprep.subr.bf16.mxu0 0
        %1479 = vmatpush2.bf16.msra.mxu0 0
        %1480 = vmatprep.subr.bf16.mxu0 0
        %1481 = vmatpush2.bf16.msra.mxu0 0
        %1482 = vmatprep.subr.bf16.mxu0 0
        %1483 = vmatpush2.bf16.msra.mxu0 0
        %1484 = vmatprep.subr.bf16.mxu0 0
        %1485 = vmatpush2.bf16.msra.mxu0 0
        %1486 = vmatprep.mubr.bf16.mxu0 0
        %1487 = vmatmul.mubr.bf16.gmra.mxu0 %v1449
        %v1488 = vpop.f32.mrf.mxu0
        %v1489 = vadd.f32 0.0, %v1488
        %v1490 = vpop.f32.mrf.mxu0
        %v1491 = vpop.f32.mrf.mxu0
        %v1492 = vpop.f32.mrf.mxu0
        %1493 = vdwg.mxu0
        %v1494 = vpack.c.bf16 %v1489, %v1489
        %v1499 = vunpack.c.l.b16 %v881
        %v1500 = vunpack.c.l.b16 %v882
        %v1501 = vunpack.c.l.b16 %v883
        %v1502 = vunpack.c.l.b16 %v884
        %v1503 = vpack.c.b16 %v1500, %v1499
        %v1504 = vpack.c.b16 %v1502, %v1501
        %v1508 = vsel %vm885, %v1494, 0
        %1510 = vmatprep.subr.bf16.mxu0 0
        %1511 = vmatpush1.bf16.msra.mxu0 0
        %1512 = vmatprep.subr.bf16.mxu0 0
        %1513 = vmatpush1.bf16.msra.mxu0 0
        %1514 = vmatprep.subr.bf16.mxu0 0
        %1515 = vmatpush1.bf16.msra.mxu0 0
        %1516 = vmatprep.subr.bf16.mxu0 0
        %1517 = vmatpush1.bf16.msra.mxu0 0
        %1518 = vmatprep.subr.bf16.mxu0 0
        %1519 = vmatpush1.bf16.msra.mxu0 0
        %1520 = vmatprep.subr.bf16.mxu0 0
        %1521 = vmatpush1.bf16.msra.mxu0 0
        %1522 = vmatprep.subr.bf16.mxu0 0
        %1523 = vmatpush1.bf16.msra.mxu0 %v1504
        %1524 = vmatprep.subr.bf16.mxu0 0
        %1525 = vmatpush1.bf16.msra.mxu0 %v1503
        %1526 = vmatprep.subr.bf16.mxu0 0
        %1527 = vmatpush2.bf16.msra.mxu0 0
        %1528 = vmatprep.subr.bf16.mxu0 0
        %1529 = vmatpush2.bf16.msra.mxu0 0
        %1530 = vmatprep.subr.bf16.mxu0 0
        %1531 = vmatpush2.bf16.msra.mxu0 0
        %1532 = vmatprep.subr.bf16.mxu0 0
        %1533 = vmatpush2.bf16.msra.mxu0 0
        %1534 = vmatprep.subr.bf16.mxu0 0
        %1535 = vmatpush2.bf16.msra.mxu0 0
        %1536 = vmatprep.subr.bf16.mxu0 0
        %1537 = vmatpush2.bf16.msra.mxu0 0
        %1538 = vmatprep.subr.bf16.mxu0 0
        %1539 = vmatpush2.bf16.msra.mxu0 0
        %1540 = vmatprep.subr.bf16.mxu0 0
        %1541 = vmatpush2.bf16.msra.mxu0 0
        %1542 = vmatprep.mubr.bf16.mxu0 0
        %1543 = vmatmul.mubr.bf16.gmra.mxu0 %v1508
        %v1544 = vpop.f32.mrf.mxu0
        %v1545 = vadd.f32 0.0, %v1544
        %v1546 = vpop.f32.mrf.mxu0
        %v1547 = vpop.f32.mrf.mxu0
        %v1548 = vpop.f32.mrf.mxu0
        %1549 = vdwg.mxu0
        %v1550 = vadd.f32 %v1383, %v1545
        %v1551 = vlaneseq
        %v1552 = vshrl.u32 %v1551, 7
        %v1553 = vsub.s32 1, %v1552
        %v1554 = vrot.slane %v607, %v1553
        %v1555 = vadd.f32 %v1550, %v1554
        %v1556 = vadd.f32 %v605, %v1555
        %1557 = vadd.xlane.f32.xlu0 %v1556
        %v1558 = vpop.xlane.xlu0 %1557
        %v1559 = vrcp.pop 128.0
        %v1560 = vmul.f32 %v1558, %v1559
        %v1561 = vsub.f32 %v1556, %v1560
        %v1562 = vmul.f32 %v1561, %v1561
        %1563 = vadd.xlane.f32.xlu0 %v1562
        %v1564 = vpop.xlane.xlu0 %1563
        %v1565 = vmul.f32 %v1564, %v1559
        %v1566 = vadd.f32 %v1565, 1e-05
        %v1567 = vrsqrt.pop %v1566
        %v1568 = vmul.f32 %v1561, %v1567
        %v1569 = vlaneseq
        %v1570 = vshrl.u32 %v1569, 7
        %v1571 = vsub.s32 7, %v1570
        %v1572 = vrot.slane %v607, %v1571
        %v1573 = vmul.f32 %v1568, %v1572
        %v1574 = vlaneseq
        %v1575 = vshrl.u32 %v1574, 7
        %v1576 = vsub.s32 0, %v1575
        %v1577 = vrot.slane %v610, %v1576
        %v1578 = vadd.f32 %v1573, %v1577
        %v1579 = vpack.c.bf16 %v1578, %v1578
        %v1580 = vld [vmem:[%s572] sm:$0xf]
        %v1581 = vld [vmem:[%s572 + $0x4] sm:$0xf]
        %v1582 = vld [vmem:[%s572 + $0x8] sm:$0xf]
        %v1583 = vld [vmem:[%s572 + $0xc] sm:$0xf]
        %v1584 = vld [vmem:[%s572 + $0x10] sm:$0xf]
        %v1585 = vld [vmem:[%s572 + $0x14] sm:$0xf]
        %v1586 = vld [vmem:[%s572 + $0x18] sm:$0xf]
        %v1587 = vld [vmem:[%s572 + $0x1c] sm:$0xf]
        %v1588 = vld [vmem:[%s572 + $0x20] sm:$0xf]
        %v1589 = vld [vmem:[%s572 + $0x24] sm:$0xf]
        %v1590 = vld [vmem:[%s572 + $0x28] sm:$0xf]
        %v1591 = vld [vmem:[%s572 + $0x2c] sm:$0xf]
        %v1592 = vld [vmem:[%s572 + $0x30] sm:$0xf]
        %v1593 = vld [vmem:[%s572 + $0x34] sm:$0xf]
        %v1594 = vld [vmem:[%s572 + $0x38] sm:$0xf]
        %v1595 = vld [vmem:[%s572 + $0x3c] sm:$0xf]
        %v1596 = vlaneseq
        %v1597 = vshrl.u32 %v1596, 7
        %v1598 = vsub.s32 2, %v1597
        %v1599 = vrot.slane %v607, %v1598
        %v1616 = vunpack.c.l.b16 %v1580
        %v1617 = vunpack.c.l.b16 %v1581
        %v1618 = vunpack.c.l.b16 %v1582
        %v1619 = vunpack.c.l.b16 %v1583
        %v1620 = vunpack.c.l.b16 %v1584
        %v1621 = vunpack.c.l.b16 %v1585
        %v1622 = vunpack.c.l.b16 %v1586
        %v1623 = vunpack.c.l.b16 %v1587
        %v1624 = vunpack.c.l.b16 %v1588
        %v1625 = vunpack.c.l.b16 %v1589
        %v1626 = vunpack.c.l.b16 %v1590
        %v1627 = vunpack.c.l.b16 %v1591
        %v1628 = vunpack.c.l.b16 %v1592
        %v1629 = vunpack.c.l.b16 %v1593
        %v1630 = vunpack.c.l.b16 %v1594
        %v1631 = vunpack.c.l.b16 %v1595
        %v1632 = vpack.c.b16 %v1617, %v1616
        %v1633 = vpack.c.b16 %v1619, %v1618
        %v1634 = vpack.c.b16 %v1621, %v1620
        %v1635 = vpack.c.b16 %v1623, %v1622
        %v1636 = vpack.c.b16 %v1625, %v1624
        %v1637 = vpack.c.b16 %v1627, %v1626
        %v1638 = vpack.c.b16 %v1629, %v1628
        %v1639 = vpack.c.b16 %v1631, %v1630
        %1648 = vmatprep.subr.bf16.mxu0 0
        %1649 = vmatpush1.bf16.msra.mxu0 %v1639
        %1650 = vmatprep.subr.bf16.mxu0 0
        %1651 = vmatpush1.bf16.msra.mxu0 %v1638
        %1652 = vmatprep.subr.bf16.mxu0 0
        %1653 = vmatpush1.bf16.msra.mxu0 %v1637
        %1654 = vmatprep.subr.bf16.mxu0 0
        %1655 = vmatpush1.bf16.msra.mxu0 %v1636
        %1656 = vmatprep.subr.bf16.mxu0 0
        %1657 = vmatpush1.bf16.msra.mxu0 %v1635
        %1658 = vmatprep.subr.bf16.mxu0 0
        %1659 = vmatpush1.bf16.msra.mxu0 %v1634
        %1660 = vmatprep.subr.bf16.mxu0 0
        %1661 = vmatpush1.bf16.msra.mxu0 %v1633
        %1662 = vmatprep.subr.bf16.mxu0 0
        %1663 = vmatpush1.bf16.msra.mxu0 %v1632
        %1664 = vmatprep.subr.bf16.mxu0 0
        %1665 = vmatpush2.bf16.msra.mxu0 0
        %1666 = vmatprep.subr.bf16.mxu0 0
        %1667 = vmatpush2.bf16.msra.mxu0 0
        %1668 = vmatprep.subr.bf16.mxu0 0
        %1669 = vmatpush2.bf16.msra.mxu0 0
        %1670 = vmatprep.subr.bf16.mxu0 0
        %1671 = vmatpush2.bf16.msra.mxu0 0
        %1672 = vmatprep.subr.bf16.mxu0 0
        %1673 = vmatpush2.bf16.msra.mxu0 0
        %1674 = vmatprep.subr.bf16.mxu0 0
        %1675 = vmatpush2.bf16.msra.mxu0 0
        %1676 = vmatprep.subr.bf16.mxu0 0
        %1677 = vmatpush2.bf16.msra.mxu0 0
        %1678 = vmatprep.subr.bf16.mxu0 0
        %1679 = vmatpush2.bf16.msra.mxu0 0
        %1680 = vmatprep.mubr.bf16.mxu0 0
        %1681 = vmatmul.mubr.bf16.gmra.mxu0 %v1579
        %v1682 = vpop.f32.mrf.mxu0
        %v1683 = vadd.f32 %v1599, %v1682
        %v1684 = vpop.f32.mrf.mxu0
        %v1685 = vpop.f32.mrf.mxu0
        %v1686 = vpop.f32.mrf.mxu0
        %1687 = vdwg.mxu0
        %v1688 = vmul.f32 %v1683, 0.17677669
        %v1689 = vpack.c.bf16 %v1688, %v1688
        %v1690 = vpack.c.bf16 %v606, %v606
        %v1691 = vld [vmem:[%s577] sm:$0xff]
        %v1692 = vld [vmem:[%s577 + $0x8] sm:$0xff]
        %v1693 = vld [vmem:[%s577 + $0x10] sm:$0xff]
        %v1694 = vld [vmem:[%s577 + $0x18] sm:$0xff]
        %v1695 = vld [vmem:[%s577 + $0x20] sm:$0xff]
        %v1696 = vld [vmem:[%s577 + $0x28] sm:$0xff]
        %v1697 = vld [vmem:[%s577 + $0x30] sm:$0xff]
        %v1698 = vld [vmem:[%s577 + $0x38] sm:$0xff]
        %v1699 = vld [vmem:[%s577 + $0x40] sm:$0xff]
        %v1700 = vld [vmem:[%s577 + $0x48] sm:$0xff]
        %v1701 = vld [vmem:[%s577 + $0x50] sm:$0xff]
        %v1702 = vld [vmem:[%s577 + $0x58] sm:$0xff]
        %v1703 = vld [vmem:[%s577 + $0x60] sm:$0xff]
        %v1704 = vld [vmem:[%s577 + $0x68] sm:$0xff]
        %v1705 = vld [vmem:[%s577 + $0x70] sm:$0xff]
        %v1706 = vld [vmem:[%s577 + $0x78] sm:$0xff]
        %v1707 = vlaneseq
        %v1708 = vshrl.u32 %v1707, 7
        %v1709 = vsub.s32 3, %v1708
        %v1710 = vrot.slane %v607, %v1709
        %v1711 = vlaneseq
        %v1712 = vshrl.u32 %v1711, 7
        %v1713 = vsub.s32 3, %v1712
        %v1714 = vrot.slane %v608, %v1713
        %v1731 = vunpack.c.l.b16 %v1691
        %v1732 = vunpack.c.h.b16 %v1691
        %v1733 = vunpack.c.l.b16 %v1692
        %v1734 = vunpack.c.h.b16 %v1692
        %v1735 = vunpack.c.l.b16 %v1693
        %v1736 = vunpack.c.h.b16 %v1693
        %v1737 = vunpack.c.l.b16 %v1694
        %v1738 = vunpack.c.h.b16 %v1694
        %v1739 = vunpack.c.l.b16 %v1695
        %v1740 = vunpack.c.h.b16 %v1695
        %v1741 = vunpack.c.l.b16 %v1696
        %v1742 = vunpack.c.h.b16 %v1696
        %v1743 = vunpack.c.l.b16 %v1697
        %v1744 = vunpack.c.h.b16 %v1697
        %v1745 = vunpack.c.l.b16 %v1698
        %v1746 = vunpack.c.h.b16 %v1698
        %v1747 = vunpack.c.l.b16 %v1699
        %v1748 = vunpack.c.h.b16 %v1699
        %v1749 = vunpack.c.l.b16 %v1700
        %v1750 = vunpack.c.h.b16 %v1700
        %v1751 = vunpack.c.l.b16 %v1701
        %v1752 = vunpack.c.h.b16 %v1701
        %v1753 = vunpack.c.l.b16 %v1702
        %v1754 = vunpack.c.h.b16 %v1702
        %v1755 = vunpack.c.l.b16 %v1703
        %v1756 = vunpack.c.h.b16 %v1703
        %v1757 = vunpack.c.l.b16 %v1704
        %v1758 = vunpack.c.h.b16 %v1704
        %v1759 = vunpack.c.l.b16 %v1705
        %v1760 = vunpack.c.h.b16 %v1705
        %v1761 = vunpack.c.l.b16 %v1706
        %v1762 = vunpack.c.h.b16 %v1706
        %v1763 = vpack.c.b16 %v1733, %v1731
        %v1764 = vpack.c.b16 %v1734, %v1732
        %v1765 = vpack.c.b16 %v1737, %v1735
        %v1766 = vpack.c.b16 %v1738, %v1736
        %v1767 = vpack.c.b16 %v1741, %v1739
        %v1768 = vpack.c.b16 %v1742, %v1740
        %v1769 = vpack.c.b16 %v1745, %v1743
        %v1770 = vpack.c.b16 %v1746, %v1744
        %v1771 = vpack.c.b16 %v1749, %v1747
        %v1772 = vpack.c.b16 %v1750, %v1748
        %v1773 = vpack.c.b16 %v1753, %v1751
        %v1774 = vpack.c.b16 %v1754, %v1752
        %v1775 = vpack.c.b16 %v1757, %v1755
        %v1776 = vpack.c.b16 %v1758, %v1756
        %v1777 = vpack.c.b16 %v1761, %v1759
        %v1778 = vpack.c.b16 %v1762, %v1760
        %1795 = vmatprep.subr.bf16.mxu0 %v1778
        %1796 = vmatpush1.bf16.msra.mxu0 %v1777
        %1797 = vmatprep.subr.bf16.mxu0 %v1776
        %1798 = vmatpush1.bf16.msra.mxu0 %v1775
        %1799 = vmatprep.subr.bf16.mxu0 %v1774
        %1800 = vmatpush1.bf16.msra.mxu0 %v1773
        %1801 = vmatprep.subr.bf16.mxu0 %v1772
        %1802 = vmatpush1.bf16.msra.mxu0 %v1771
        %1803 = vmatprep.subr.bf16.mxu0 %v1770
        %1804 = vmatpush1.bf16.msra.mxu0 %v1769
        %1805 = vmatprep.subr.bf16.mxu0 %v1768
        %1806 = vmatpush1.bf16.msra.mxu0 %v1767
        %1807 = vmatprep.subr.bf16.mxu0 %v1766
        %1808 = vmatpush1.bf16.msra.mxu0 %v1765
        %1809 = vmatprep.subr.bf16.mxu0 %v1764
        %1810 = vmatpush1.bf16.msra.mxu0 %v1763
        %1811 = vmatprep.subr.bf16.mxu0 0
        %1812 = vmatpush2.bf16.msra.mxu0 0
        %1813 = vmatprep.subr.bf16.mxu0 0
        %1814 = vmatpush2.bf16.msra.mxu0 0
        %1815 = vmatprep.subr.bf16.mxu0 0
        %1816 = vmatpush2.bf16.msra.mxu0 0
        %1817 = vmatprep.subr.bf16.mxu0 0
        %1818 = vmatpush2.bf16.msra.mxu0 0
        %1819 = vmatprep.subr.bf16.mxu0 0
        %1820 = vmatpush2.bf16.msra.mxu0 0
        %1821 = vmatprep.subr.bf16.mxu0 0
        %1822 = vmatpush2.bf16.msra.mxu0 0
        %1823 = vmatprep.subr.bf16.mxu0 0
        %1824 = vmatpush2.bf16.msra.mxu0 0
        %1825 = vmatprep.subr.bf16.mxu0 0
        %1826 = vmatpush2.bf16.msra.mxu0 0
        %1827 = vmatprep.mubr.bf16.mxu0 0
        %1828 = vmatmul.mubr.bf16.gmra.mxu0 %v1690
        %v1829 = vpop.f32.mrf.mxu0
        %v1830 = vadd.f32 %v1710, %v1829
        %v1831 = vpop.f32.mrf.mxu0
        %v1832 = vadd.f32 %v1714, %v1831
        %v1833 = vpop.f32.mrf.mxu0
        %v1834 = vpop.f32.mrf.mxu0
        %1835 = vdwg.mxu0
        %v1836 = vpack.c.bf16 %v1830, %v1830
        %v1837 = vpack.c.bf16 %v1832, %v1832
        %v1838 = vld [vmem:[%s582] sm:$0xf]
        %v1839 = vld [vmem:[%s582 + $0x4] sm:$0xf]
        %v1840 = vld [vmem:[%s582 + $0x8] sm:$0xf]
        %v1841 = vld [vmem:[%s582 + $0xc] sm:$0xf]
        %v1842 = vld [vmem:[%s582 + $0x10] sm:$0xf]
        %v1843 = vld [vmem:[%s582 + $0x14] sm:$0xf]
        %v1844 = vld [vmem:[%s582 + $0x18] sm:$0xf]
        %v1845 = vld [vmem:[%s582 + $0x1c] sm:$0xf]
        %v1846 = vld [vmem:[%s582 + $0x20] sm:$0xf]
        %v1847 = vld [vmem:[%s582 + $0x24] sm:$0xf]
        %v1848 = vld [vmem:[%s582 + $0x28] sm:$0xf]
        %v1849 = vld [vmem:[%s582 + $0x2c] sm:$0xf]
        %v1850 = vld [vmem:[%s582 + $0x30] sm:$0xf]
        %v1851 = vld [vmem:[%s582 + $0x34] sm:$0xf]
        %v1852 = vld [vmem:[%s582 + $0x38] sm:$0xf]
        %v1853 = vld [vmem:[%s582 + $0x3c] sm:$0xf]
        %v1855 = vsel %vm885, %v1689, 0
        %v1858 = vsel %vm885, %v1836, 0
        %1860 = vmatprep.subr.bf16.mxu0 0
        %1861 = vmatpush1.bf16.xpose.msra.mxu0 0
        %1862 = vmatprep.subr.bf16.mxu0 0
        %1863 = vmatpush1.bf16.xpose.msra.mxu0 0
        %1864 = vmatprep.subr.bf16.mxu0 0
        %1865 = vmatpush1.bf16.xpose.msra.mxu0 0
        %1866 = vmatprep.subr.bf16.mxu0 0
        %1867 = vmatpush1.bf16.xpose.msra.mxu0 0
        %1868 = vmatprep.subr.bf16.mxu0 0
        %1869 = vmatpush1.bf16.xpose.msra.mxu0 0
        %1870 = vmatprep.subr.bf16.mxu0 0
        %1871 = vmatpush1.bf16.xpose.msra.mxu0 0
        %1872 = vmatprep.subr.bf16.mxu0 0
        %1873 = vmatpush1.bf16.xpose.msra.mxu0 0
        %1874 = vmatprep.subr.bf16.mxu0 0
        %1875 = vmatpush1.bf16.xpose.msra.mxu0 %v1858
        %1876 = vmatprep.subr.bf16.mxu0 0
        %1877 = vmatpush2.bf16.xpose.msra.mxu0 0
        %1878 = vmatprep.subr.bf16.mxu0 0
        %1879 = vmatpush2.bf16.xpose.msra.mxu0 0
        %1880 = vmatprep.subr.bf16.mxu0 0
        %1881 = vmatpush2.bf16.xpose.msra.mxu0 0
        %1882 = vmatprep.subr.bf16.mxu0 0
        %1883 = vmatpush2.bf16.xpose.msra.mxu0 0
        %1884 = vmatprep.subr.bf16.mxu0 0
        %1885 = vmatpush2.bf16.xpose.msra.mxu0 0
        %1886 = vmatprep.subr.bf16.mxu0 0
        %1887 = vmatpush2.bf16.xpose.msra.mxu0 0
        %1888 = vmatprep.subr.bf16.mxu0 0
        %1889 = vmatpush2.bf16.xpose.msra.mxu0 0
        %1890 = vmatprep.subr.bf16.mxu0 0
        %1891 = vmatpush2.bf16.xpose.msra.mxu0 0
        %1892 = vmatprep.mubr.bf16.mxu0 0
        %1893 = vmatmul.mubr.bf16.gmra.mxu0 %v1855
        %v1894 = vpop.f32.mrf.mxu0
        %v1895 = vadd.f32 0.0, %v1894
        %v1896 = vpop.f32.mrf.mxu0
        %v1897 = vpop.f32.mrf.mxu0
        %v1898 = vpop.f32.mrf.mxu0
        %1899 = vdwg.mxu0
        %vm1900 = vcmask 15360
        %v1901 = vsel %vm1900, %v1895, -inf
        %1902 = vmax.xlane.f32.xlu0 %v1901
        %v1903 = vpop.xlane.xlu0 %1902
        %v1904 = vsub.f32 %v1895, %v1903
        %v1905 = vmul.f32 %v1904, 1.442695
        %v1906 = vpow.pop %v1905
        %v1907 = vsel %vm1900, %v1906, 0.0
        %1908 = vadd.xlane.f32.xlu0 %v1907
        %v1909 = vpop.xlane.xlu0 %1908
        %v1910 = vrcp.pop %v1909
        %v1911 = vmul.f32 %v1906, %v1910
        %v1912 = vpack.c.bf16 %v1911, %v1911
        %v1914 = vsel %vm1900, %v1912, 0
        %vm1916 = vcmask 1040384
        %v1918 = vsel %vm1916, %v1837, 0
        %1920 = vmatprep.subr.bf16.mxu0 0
        %1921 = vmatpush1.bf16.msra.mxu0 0
        %1922 = vmatprep.subr.bf16.mxu0 0
        %1923 = vmatpush1.bf16.msra.mxu0 0
        %1924 = vmatprep.subr.bf16.mxu0 0
        %1925 = vmatpush1.bf16.msra.mxu0 0
        %1926 = vmatprep.subr.bf16.mxu0 0
        %1927 = vmatpush1.bf16.msra.mxu0 0
        %1928 = vmatprep.subr.bf16.mxu0 0
        %1929 = vmatpush1.bf16.msra.mxu0 0
        %1930 = vmatprep.subr.bf16.mxu0 0
        %1931 = vmatpush1.bf16.msra.mxu0 0
        %1932 = vmatprep.subr.bf16.mxu0 0
        %1933 = vmatpush1.bf16.msra.mxu0 0
        %1934 = vmatprep.subr.bf16.mxu0 0
        %1935 = vmatpush1.bf16.msra.mxu0 %v1918
        %1936 = vmatprep.subr.bf16.mxu0 0
        %1937 = vmatpush2.bf16.msra.mxu0 0
        %1938 = vmatprep.subr.bf16.mxu0 0
        %1939 = vmatpush2.bf16.msra.mxu0 0
        %1940 = vmatprep.subr.bf16.mxu0 0
        %1941 = vmatpush2.bf16.msra.mxu0 0
        %1942 = vmatprep.subr.bf16.mxu0 0
        %1943 = vmatpush2.bf16.msra.mxu0 0
        %1944 = vmatprep.subr.bf16.mxu0 0
        %1945 = vmatpush2.bf16.msra.mxu0 0
        %1946 = vmatprep.subr.bf16.mxu0 0
        %1947 = vmatpush2.bf16.msra.mxu0 0
        %1948 = vmatprep.subr.bf16.mxu0 0
        %1949 = vmatpush2.bf16.msra.mxu0 0
        %1950 = vmatprep.subr.bf16.mxu0 0
        %1951 = vmatpush2.bf16.msra.mxu0 0
        %1952 = vmatprep.mubr.bf16.mxu0 0
        %1953 = vmatmul.mubr.bf16.gmra.mxu0 %v1914
        %v1954 = vpop.f32.mrf.mxu0
        %v1955 = vadd.f32 0.0, %v1954
        %v1956 = vpop.f32.mrf.mxu0
        %v1957 = vpop.f32.mrf.mxu0
        %v1958 = vpop.f32.mrf.mxu0
        %1959 = vdwg.mxu0
        %v1960 = vpack.c.bf16 %v1955, %v1955
        %1962 = vrot.lane.b32.xlu0 %v1689, 96
        %v1963 = vpop.permute.xlu0 %1962
        %1965 = vrot.lane.b32.xlu0 %v1836, 96
        %v1966 = vpop.permute.xlu0 %1965
        %v1968 = vsel %vm885, %v1963, 0
        %v1971 = vsel %vm885, %v1966, 0
        %1973 = vmatprep.subr.bf16.mxu0 0
        %1974 = vmatpush1.bf16.xpose.msra.mxu0 0
        %1975 = vmatprep.subr.bf16.mxu0 0
        %1976 = vmatpush1.bf16.xpose.msra.mxu0 0
        %1977 = vmatprep.subr.bf16.mxu0 0
        %1978 = vmatpush1.bf16.xpose.msra.mxu0 0
        %1979 = vmatprep.subr.bf16.mxu0 0
        %1980 = vmatpush1.bf16.xpose.msra.mxu0 0
        %1981 = vmatprep.subr.bf16.mxu0 0
        %1982 = vmatpush1.bf16.xpose.msra.mxu0 0
        %1983 = vmatprep.subr.bf16.mxu0 0
        %1984 = vmatpush1.bf16.xpose.msra.mxu0 0
        %1985 = vmatprep.subr.bf16.mxu0 0
        %1986 = vmatpush1.bf16.xpose.msra.mxu0 0
        %1987 = vmatprep.subr.bf16.mxu0 0
        %1988 = vmatpush1.bf16.xpose.msra.mxu0 %v1971
        %1989 = vmatprep.subr.bf16.mxu0 0
        %1990 = vmatpush2.bf16.xpose.msra.mxu0 0
        %1991 = vmatprep.subr.bf16.mxu0 0
        %1992 = vmatpush2.bf16.xpose.msra.mxu0 0
        %1993 = vmatprep.subr.bf16.mxu0 0
        %1994 = vmatpush2.bf16.xpose.msra.mxu0 0
        %1995 = vmatprep.subr.bf16.mxu0 0
        %1996 = vmatpush2.bf16.xpose.msra.mxu0 0
        %1997 = vmatprep.subr.bf16.mxu0 0
        %1998 = vmatpush2.bf16.xpose.msra.mxu0 0
        %1999 = vmatprep.subr.bf16.mxu0 0
        %2000 = vmatpush2.bf16.xpose.msra.mxu0 0
        %2001 = vmatprep.subr.bf16.mxu0 0
        %2002 = vmatpush2.bf16.xpose.msra.mxu0 0
        %2003 = vmatprep.subr.bf16.mxu0 0
        %2004 = vmatpush2.bf16.xpose.msra.mxu0 0
        %2005 = vmatprep.mubr.bf16.mxu0 0
        %2006 = vmatmul.mubr.bf16.gmra.mxu0 %v1968
        %v2007 = vpop.f32.mrf.mxu0
        %v2008 = vadd.f32 0.0, %v2007
        %v2009 = vpop.f32.mrf.mxu0
        %v2010 = vpop.f32.mrf.mxu0
        %v2011 = vpop.f32.mrf.mxu0
        %2012 = vdwg.mxu0
        %v2013 = vsel %vm1900, %v2008, -inf
        %2014 = vmax.xlane.f32.xlu0 %v2013
        %v2015 = vpop.xlane.xlu0 %2014
        %v2016 = vsub.f32 %v2008, %v2015
        %v2017 = vmul.f32 %v2016, 1.442695
        %v2018 = vpow.pop %v2017
        %v2019 = vsel %vm1900, %v2018, 0.0
        %2020 = vadd.xlane.f32.xlu0 %v2019
        %v2021 = vpop.xlane.xlu0 %2020
        %v2022 = vrcp.pop %v2021
        %v2023 = vmul.f32 %v2018, %v2022
        %v2024 = vpack.c.bf16 %v2023, %v2023
        %2026 = vrot.lane.b32.xlu0 %v1837, 96
        %v2027 = vpop.permute.xlu0 %2026
        %v2029 = vsel %vm1900, %v2024, 0
        %v2032 = vsel %vm1916, %v2027, 0
        %2034 = vmatprep.subr.bf16.mxu0 0
        %2035 = vmatpush1.bf16.msra.mxu0 0
        %2036 = vmatprep.subr.bf16.mxu0 0
        %2037 = vmatpush1.bf16.msra.mxu0 0
        %2038 = vmatprep.subr.bf16.mxu0 0
        %2039 = vmatpush1.bf16.msra.mxu0 0
        %2040 = vmatprep.subr.bf16.mxu0 0
        %2041 = vmatpush1.bf16.msra.mxu0 0
        %2042 = vmatprep.subr.bf16.mxu0 0
        %2043 = vmatpush1.bf16.msra.mxu0 0
        %2044 = vmatprep.subr.bf16.mxu0 0
        %2045 = vmatpush1.bf16.msra.mxu0 0
        %2046 = vmatprep.subr.bf16.mxu0 0
        %2047 = vmatpush1.bf16.msra.mxu0 0
        %2048 = vmatprep.subr.bf16.mxu0 0
        %2049 = vmatpush1.bf16.msra.mxu0 %v2032
        %2050 = vmatprep.subr.bf16.mxu0 0
        %2051 = vmatpush2.bf16.msra.mxu0 0
        %2052 = vmatprep.subr.bf16.mxu0 0
        %2053 = vmatpush2.bf16.msra.mxu0 0
        %2054 = vmatprep.subr.bf16.mxu0 0
        %2055 = vmatpush2.bf16.msra.mxu0 0
        %2056 = vmatprep.subr.bf16.mxu0 0
        %2057 = vmatpush2.bf16.msra.mxu0 0
        %2058 = vmatprep.subr.bf16.mxu0 0
        %2059 = vmatpush2.bf16.msra.mxu0 0
        %2060 = vmatprep.subr.bf16.mxu0 0
        %2061 = vmatpush2.bf16.msra.mxu0 0
        %2062 = vmatprep.subr.bf16.mxu0 0
        %2063 = vmatpush2.bf16.msra.mxu0 0
        %2064 = vmatprep.subr.bf16.mxu0 0
        %2065 = vmatpush2.bf16.msra.mxu0 0
        %2066 = vmatprep.mubr.bf16.mxu0 0
        %2067 = vmatmul.mubr.bf16.gmra.mxu0 %v2029
        %v2068 = vpop.f32.mrf.mxu0
        %v2069 = vadd.f32 0.0, %v2068
        %v2070 = vpop.f32.mrf.mxu0
        %v2071 = vpop.f32.mrf.mxu0
        %v2072 = vpop.f32.mrf.mxu0
        %2073 = vdwg.mxu0
        %v2074 = vpack.c.bf16 %v2069, %v2069
        %v2079 = vunpack.c.l.b16 %v1842
        %v2080 = vunpack.c.l.b16 %v1843
        %v2081 = vunpack.c.l.b16 %v1844
        %v2082 = vunpack.c.l.b16 %v1845
        %v2083 = vpack.c.b16 %v2080, %v2079
        %v2084 = vpack.c.b16 %v2082, %v2081
        %v2088 = vsel %vm885, %v2074, 0
        %2090 = vmatprep.subr.bf16.mxu0 0
        %2091 = vmatpush1.bf16.msra.mxu0 0
        %2092 = vmatprep.subr.bf16.mxu0 0
        %2093 = vmatpush1.bf16.msra.mxu0 0
        %2094 = vmatprep.subr.bf16.mxu0 0
        %2095 = vmatpush1.bf16.msra.mxu0 0
        %2096 = vmatprep.subr.bf16.mxu0 0
        %2097 = vmatpush1.bf16.msra.mxu0 0
        %2098 = vmatprep.subr.bf16.mxu0 0
        %2099 = vmatpush1.bf16.msra.mxu0 0
        %2100 = vmatprep.subr.bf16.mxu0 0
        %2101 = vmatpush1.bf16.msra.mxu0 0
        %2102 = vmatprep.subr.bf16.mxu0 0
        %2103 = vmatpush1.bf16.msra.mxu0 %v2084
        %2104 = vmatprep.subr.bf16.mxu0 0
        %2105 = vmatpush1.bf16.msra.mxu0 %v2083
        %2106 = vmatprep.subr.bf16.mxu0 0
        %2107 = vmatpush2.bf16.msra.mxu0 0
        %2108 = vmatprep.subr.bf16.mxu0 0
        %2109 = vmatpush2.bf16.msra.mxu0 0
        %2110 = vmatprep.subr.bf16.mxu0 0
        %2111 = vmatpush2.bf16.msra.mxu0 0
        %2112 = vmatprep.subr.bf16.mxu0 0
        %2113 = vmatpush2.bf16.msra.mxu0 0
        %2114 = vmatprep.subr.bf16.mxu0 0
        %2115 = vmatpush2.bf16.msra.mxu0 0
        %2116 = vmatprep.subr.bf16.mxu0 0
        %2117 = vmatpush2.bf16.msra.mxu0 0
        %2118 = vmatprep.subr.bf16.mxu0 0
        %2119 = vmatpush2.bf16.msra.mxu0 0
        %2120 = vmatprep.subr.bf16.mxu0 0
        %2121 = vmatpush2.bf16.msra.mxu0 0
        %2122 = vmatprep.mubr.bf16.mxu0 0
        %2123 = vmatmul.mubr.bf16.gmra.mxu0 %v2088
        %v2124 = vpop.f32.mrf.mxu0
        %v2125 = vadd.f32 0.0, %v2124
        %v2126 = vpop.f32.mrf.mxu0
        %v2127 = vpop.f32.mrf.mxu0
        %v2128 = vpop.f32.mrf.mxu0
        %2129 = vdwg.mxu0
        %v2134 = vunpack.c.l.b16 %v1838
        %v2135 = vunpack.c.l.b16 %v1839
        %v2136 = vunpack.c.l.b16 %v1840
        %v2137 = vunpack.c.l.b16 %v1841
        %v2138 = vpack.c.b16 %v2135, %v2134
        %v2139 = vpack.c.b16 %v2137, %v2136
        %v2143 = vsel %vm885, %v1960, 0
        %2145 = vmatprep.subr.bf16.mxu0 0
        %2146 = vmatpush1.bf16.msra.mxu0 0
        %2147 = vmatprep.subr.bf16.mxu0 0
        %2148 = vmatpush1.bf16.msra.mxu0 0
        %2149 = vmatprep.subr.bf16.mxu0 0
        %2150 = vmatpush1.bf16.msra.mxu0 0
        %2151 = vmatprep.subr.bf16.mxu0 0
        %2152 = vmatpush1.bf16.msra.mxu0 0
        %2153 = vmatprep.subr.bf16.mxu0 0
        %2154 = vmatpush1.bf16.msra.mxu0 0
        %2155 = vmatprep.subr.bf16.mxu0 0
        %2156 = vmatpush1.bf16.msra.mxu0 0
        %2157 = vmatprep.subr.bf16.mxu0 0
        %2158 = vmatpush1.bf16.msra.mxu0 %v2139
        %2159 = vmatprep.subr.bf16.mxu0 0
        %2160 = vmatpush1.bf16.msra.mxu0 %v2138
        %2161 = vmatprep.subr.bf16.mxu0 0
        %2162 = vmatpush2.bf16.msra.mxu0 0
        %2163 = vmatprep.subr.bf16.mxu0 0
        %2164 = vmatpush2.bf16.msra.mxu0 0
        %2165 = vmatprep.subr.bf16.mxu0 0
        %2166 = vmatpush2.bf16.msra.mxu0 0
        %2167 = vmatprep.subr.bf16.mxu0 0
        %2168 = vmatpush2.bf16.msra.mxu0 0
        %2169 = vmatprep.subr.bf16.mxu0 0
        %2170 = vmatpush2.bf16.msra.mxu0 0
        %2171 = vmatprep.subr.bf16.mxu0 0
        %2172 = vmatpush2.bf16.msra.mxu0 0
        %2173 = vmatprep.subr.bf16.mxu0 0
        %2174 = vmatpush2.bf16.msra.mxu0 0
        %2175 = vmatprep.subr.bf16.mxu0 0
        %2176 = vmatpush2.bf16.msra.mxu0 0
        %2177 = vmatprep.mubr.bf16.mxu0 0
        %2178 = vmatmul.mubr.bf16.gmra.mxu0 %v2143
        %v2179 = vpop.f32.mrf.mxu0
        %v2180 = vadd.f32 %v2125, %v2179
        %v2181 = vpop.f32.mrf.mxu0
        %v2182 = vpop.f32.mrf.mxu0
        %v2183 = vpop.f32.mrf.mxu0
        %2184 = vdwg.mxu0
        %2185 = vrot.lane.b32.xlu0 %v1689, 64
        %v2186 = vpop.permute.xlu0 %2185
        %2187 = vrot.lane.b32.xlu0 %v1836, 64
        %v2188 = vpop.permute.xlu0 %2187
        %v2190 = vsel %vm885, %v2186, 0
        %v2193 = vsel %vm885, %v2188, 0
        %2195 = vmatprep.subr.bf16.mxu0 0
        %2196 = vmatpush1.bf16.xpose.msra.mxu0 0
        %2197 = vmatprep.subr.bf16.mxu0 0
        %2198 = vmatpush1.bf16.xpose.msra.mxu0 0
        %2199 = vmatprep.subr.bf16.mxu0 0
        %2200 = vmatpush1.bf16.xpose.msra.mxu0 0
        %2201 = vmatprep.subr.bf16.mxu0 0
        %2202 = vmatpush1.bf16.xpose.msra.mxu0 0
        %2203 = vmatprep.subr.bf16.mxu0 0
        %2204 = vmatpush1.bf16.xpose.msra.mxu0 0
        %2205 = vmatprep.subr.bf16.mxu0 0
        %2206 = vmatpush1.bf16.xpose.msra.mxu0 0
        %2207 = vmatprep.subr.bf16.mxu0 0
        %2208 = vmatpush1.bf16.xpose.msra.mxu0 0
        %2209 = vmatprep.subr.bf16.mxu0 0
        %2210 = vmatpush1.bf16.xpose.msra.mxu0 %v2193
        %2211 = vmatprep.subr.bf16.mxu0 0
        %2212 = vmatpush2.bf16.xpose.msra.mxu0 0
        %2213 = vmatprep.subr.bf16.mxu0 0
        %2214 = vmatpush2.bf16.xpose.msra.mxu0 0
        %2215 = vmatprep.subr.bf16.mxu0 0
        %2216 = vmatpush2.bf16.xpose.msra.mxu0 0
        %2217 = vmatprep.subr.bf16.mxu0 0
        %2218 = vmatpush2.bf16.xpose.msra.mxu0 0
        %2219 = vmatprep.subr.bf16.mxu0 0
        %2220 = vmatpush2.bf16.xpose.msra.mxu0 0
        %2221 = vmatprep.subr.bf16.mxu0 0
        %2222 = vmatpush2.bf16.xpose.msra.mxu0 0
        %2223 = vmatprep.subr.bf16.mxu0 0
        %2224 = vmatpush2.bf16.xpose.msra.mxu0 0
        %2225 = vmatprep.subr.bf16.mxu0 0
        %2226 = vmatpush2.bf16.xpose.msra.mxu0 0
        %2227 = vmatprep.mubr.bf16.mxu0 0
        %2228 = vmatmul.mubr.bf16.gmra.mxu0 %v2190
        %v2229 = vpop.f32.mrf.mxu0
        %v2230 = vadd.f32 0.0, %v2229
        %v2231 = vpop.f32.mrf.mxu0
        %v2232 = vpop.f32.mrf.mxu0
        %v2233 = vpop.f32.mrf.mxu0
        %2234 = vdwg.mxu0
        %v2235 = vsel %vm1900, %v2230, -inf
        %2236 = vmax.xlane.f32.xlu0 %v2235
        %v2237 = vpop.xlane.xlu0 %2236
        %v2238 = vsub.f32 %v2230, %v2237
        %v2239 = vmul.f32 %v2238, 1.442695
        %v2240 = vpow.pop %v2239
        %v2241 = vsel %vm1900, %v2240, 0.0
        %2242 = vadd.xlane.f32.xlu0 %v2241
        %v2243 = vpop.xlane.xlu0 %2242
        %v2244 = vrcp.pop %v2243
        %v2245 = vmul.f32 %v2240, %v2244
        %v2246 = vpack.c.bf16 %v2245, %v2245
        %2247 = vrot.lane.b32.xlu0 %v1837, 64
        %v2248 = vpop.permute.xlu0 %2247
        %v2250 = vsel %vm1900, %v2246, 0
        %v2253 = vsel %vm1916, %v2248, 0
        %2255 = vmatprep.subr.bf16.mxu0 0
        %2256 = vmatpush1.bf16.msra.mxu0 0
        %2257 = vmatprep.subr.bf16.mxu0 0
        %2258 = vmatpush1.bf16.msra.mxu0 0
        %2259 = vmatprep.subr.bf16.mxu0 0
        %2260 = vmatpush1.bf16.msra.mxu0 0
        %2261 = vmatprep.subr.bf16.mxu0 0
        %2262 = vmatpush1.bf16.msra.mxu0 0
        %2263 = vmatprep.subr.bf16.mxu0 0
        %2264 = vmatpush1.bf16.msra.mxu0 0
        %2265 = vmatprep.subr.bf16.mxu0 0
        %2266 = vmatpush1.bf16.msra.mxu0 0
        %2267 = vmatprep.subr.bf16.mxu0 0
        %2268 = vmatpush1.bf16.msra.mxu0 0
        %2269 = vmatprep.subr.bf16.mxu0 0
        %2270 = vmatpush1.bf16.msra.mxu0 %v2253
        %2271 = vmatprep.subr.bf16.mxu0 0
        %2272 = vmatpush2.bf16.msra.mxu0 0
        %2273 = vmatprep.subr.bf16.mxu0 0
        %2274 = vmatpush2.bf16.msra.mxu0 0
        %2275 = vmatprep.subr.bf16.mxu0 0
        %2276 = vmatpush2.bf16.msra.mxu0 0
        %2277 = vmatprep.subr.bf16.mxu0 0
        %2278 = vmatpush2.bf16.msra.mxu0 0
        %2279 = vmatprep.subr.bf16.mxu0 0
        %2280 = vmatpush2.bf16.msra.mxu0 0
        %2281 = vmatprep.subr.bf16.mxu0 0
        %2282 = vmatpush2.bf16.msra.mxu0 0
        %2283 = vmatprep.subr.bf16.mxu0 0
        %2284 = vmatpush2.bf16.msra.mxu0 0
        %2285 = vmatprep.subr.bf16.mxu0 0
        %2286 = vmatpush2.bf16.msra.mxu0 0
        %2287 = vmatprep.mubr.bf16.mxu0 0
        %2288 = vmatmul.mubr.bf16.gmra.mxu0 %v2250
        %v2289 = vpop.f32.mrf.mxu0
        %v2290 = vadd.f32 0.0, %v2289
        %v2291 = vpop.f32.mrf.mxu0
        %v2292 = vpop.f32.mrf.mxu0
        %v2293 = vpop.f32.mrf.mxu0
        %2294 = vdwg.mxu0
        %v2295 = vpack.c.bf16 %v2290, %v2290
        %v2300 = vunpack.c.l.b16 %v1846
        %v2301 = vunpack.c.l.b16 %v1847
        %v2302 = vunpack.c.l.b16 %v1848
        %v2303 = vunpack.c.l.b16 %v1849
        %v2304 = vpack.c.b16 %v2301, %v2300
        %v2305 = vpack.c.b16 %v2303, %v2302
        %v2309 = vsel %vm885, %v2295, 0
        %2311 = vmatprep.subr.bf16.mxu0 0
        %2312 = vmatpush1.bf16.msra.mxu0 0
        %2313 = vmatprep.subr.bf16.mxu0 0
        %2314 = vmatpush1.bf16.msra.mxu0 0
        %2315 = vmatprep.subr.bf16.mxu0 0
        %2316 = vmatpush1.bf16.msra.mxu0 0
        %2317 = vmatprep.subr.bf16.mxu0 0
        %2318 = vmatpush1.bf16.msra.mxu0 0
        %2319 = vmatprep.subr.bf16.mxu0 0
        %2320 = vmatpush1.bf16.msra.mxu0 0
        %2321 = vmatprep.subr.bf16.mxu0 0
        %2322 = vmatpush1.bf16.msra.mxu0 0
        %2323 = vmatprep.subr.bf16.mxu0 0
        %2324 = vmatpush1.bf16.msra.mxu0 %v2305
        %2325 = vmatprep.subr.bf16.mxu0 0
        %2326 = vmatpush1.bf16.msra.mxu0 %v2304
        %2327 = vmatprep.subr.bf16.mxu0 0
        %2328 = vmatpush2.bf16.msra.mxu0 0
        %2329 = vmatprep.subr.bf16.mxu0 0
        %2330 = vmatpush2.bf16.msra.mxu0 0
        %2331 = vmatprep.subr.bf16.mxu0 0
        %2332 = vmatpush2.bf16.msra.mxu0 0
        %2333 = vmatprep.subr.bf16.mxu0 0
        %2334 = vmatpush2.bf16.msra.mxu0 0
        %2335 = vmatprep.subr.bf16.mxu0 0
        %2336 = vmatpush2.bf16.msra.mxu0 0
        %2337 = vmatprep.subr.bf16.mxu0 0
        %2338 = vmatpush2.bf16.msra.mxu0 0
        %2339 = vmatprep.subr.bf16.mxu0 0
        %2340 = vmatpush2.bf16.msra.mxu0 0
        %2341 = vmatprep.subr.bf16.mxu0 0
        %2342 = vmatpush2.bf16.msra.mxu0 0
        %2343 = vmatprep.mubr.bf16.mxu0 0
        %2344 = vmatmul.mubr.bf16.gmra.mxu0 %v2309
        %v2345 = vpop.f32.mrf.mxu0
        %v2346 = vadd.f32 0.0, %v2345
        %v2347 = vpop.f32.mrf.mxu0
        %v2348 = vpop.f32.mrf.mxu0
        %v2349 = vpop.f32.mrf.mxu0
        %2350 = vdwg.mxu0
        %v2351 = vadd.f32 %v2180, %v2346
        %2352 = vrot.lane.b32.xlu0 %v1689, 32
        %v2353 = vpop.permute.xlu0 %2352
        %2354 = vrot.lane.b32.xlu0 %v1836, 32
        %v2355 = vpop.permute.xlu0 %2354
        %v2357 = vsel %vm885, %v2353, 0
        %v2360 = vsel %vm885, %v2355, 0
        %2362 = vmatprep.subr.bf16.mxu0 0
        %2363 = vmatpush1.bf16.xpose.msra.mxu0 0
        %2364 = vmatprep.subr.bf16.mxu0 0
        %2365 = vmatpush1.bf16.xpose.msra.mxu0 0
        %2366 = vmatprep.subr.bf16.mxu0 0
        %2367 = vmatpush1.bf16.xpose.msra.mxu0 0
        %2368 = vmatprep.subr.bf16.mxu0 0
        %2369 = vmatpush1.bf16.xpose.msra.mxu0 0
        %2370 = vmatprep.subr.bf16.mxu0 0
        %2371 = vmatpush1.bf16.xpose.msra.mxu0 0
        %2372 = vmatprep.subr.bf16.mxu0 0
        %2373 = vmatpush1.bf16.xpose.msra.mxu0 0
        %2374 = vmatprep.subr.bf16.mxu0 0
        %2375 = vmatpush1.bf16.xpose.msra.mxu0 0
        %2376 = vmatprep.subr.bf16.mxu0 0
        %2377 = vmatpush1.bf16.xpose.msra.mxu0 %v2360
        %2378 = vmatprep.subr.bf16.mxu0 0
        %2379 = vmatpush2.bf16.xpose.msra.mxu0 0
        %2380 = vmatprep.subr.bf16.mxu0 0
        %2381 = vmatpush2.bf16.xpose.msra.mxu0 0
        %2382 = vmatprep.subr.bf16.mxu0 0
        %2383 = vmatpush2.bf16.xpose.msra.mxu0 0
        %2384 = vmatprep.subr.bf16.mxu0 0
        %2385 = vmatpush2.bf16.xpose.msra.mxu0 0
        %2386 = vmatprep.subr.bf16.mxu0 0
        %2387 = vmatpush2.bf16.xpose.msra.mxu0 0
        %2388 = vmatprep.subr.bf16.mxu0 0
        %2389 = vmatpush2.bf16.xpose.msra.mxu0 0
        %2390 = vmatprep.subr.bf16.mxu0 0
        %2391 = vmatpush2.bf16.xpose.msra.mxu0 0
        %2392 = vmatprep.subr.bf16.mxu0 0
        %2393 = vmatpush2.bf16.xpose.msra.mxu0 0
        %2394 = vmatprep.mubr.bf16.mxu0 0
        %2395 = vmatmul.mubr.bf16.gmra.mxu0 %v2357
        %v2396 = vpop.f32.mrf.mxu0
        %v2397 = vadd.f32 0.0, %v2396
        %v2398 = vpop.f32.mrf.mxu0
        %v2399 = vpop.f32.mrf.mxu0
        %v2400 = vpop.f32.mrf.mxu0
        %2401 = vdwg.mxu0
        %v2402 = vsel %vm1900, %v2397, -inf
        %2403 = vmax.xlane.f32.xlu0 %v2402
        %v2404 = vpop.xlane.xlu0 %2403
        %v2405 = vsub.f32 %v2397, %v2404
        %v2406 = vmul.f32 %v2405, 1.442695
        %v2407 = vpow.pop %v2406
        %v2408 = vsel %vm1900, %v2407, 0.0
        %2409 = vadd.xlane.f32.xlu0 %v2408
        %v2410 = vpop.xlane.xlu0 %2409
        %v2411 = vrcp.pop %v2410
        %v2412 = vmul.f32 %v2407, %v2411
        %v2413 = vpack.c.bf16 %v2412, %v2412
        %2414 = vrot.lane.b32.xlu0 %v1837, 32
        %v2415 = vpop.permute.xlu0 %2414
        %v2417 = vsel %vm1900, %v2413, 0
        %v2420 = vsel %vm1916, %v2415, 0
        %2422 = vmatprep.subr.bf16.mxu0 0
        %2423 = vmatpush1.bf16.msra.mxu0 0
        %2424 = vmatprep.subr.bf16.mxu0 0
        %2425 = vmatpush1.bf16.msra.mxu0 0
        %2426 = vmatprep.subr.bf16.mxu0 0
        %2427 = vmatpush1.bf16.msra.mxu0 0
        %2428 = vmatprep.subr.bf16.mxu0 0
        %2429 = vmatpush1.bf16.msra.mxu0 0
        %2430 = vmatprep.subr.bf16.mxu0 0
        %2431 = vmatpush1.bf16.msra.mxu0 0
        %2432 = vmatprep.subr.bf16.mxu0 0
        %2433 = vmatpush1.bf16.msra.mxu0 0
        %2434 = vmatprep.subr.bf16.mxu0 0
        %2435 = vmatpush1.bf16.msra.mxu0 0
        %2436 = vmatprep.subr.bf16.mxu0 0
        %2437 = vmatpush1.bf16.msra.mxu0 %v2420
        %2438 = vmatprep.subr.bf16.mxu0 0
        %2439 = vmatpush2.bf16.msra.mxu0 0
        %2440 = vmatprep.subr.bf16.mxu0 0
        %2441 = vmatpush2.bf16.msra.mxu0 0
        %2442 = vmatprep.subr.bf16.mxu0 0
        %2443 = vmatpush2.bf16.msra.mxu0 0
        %2444 = vmatprep.subr.bf16.mxu0 0
        %2445 = vmatpush2.bf16.msra.mxu0 0
        %2446 = vmatprep.subr.bf16.mxu0 0
        %2447 = vmatpush2.bf16.msra.mxu0 0
        %2448 = vmatprep.subr.bf16.mxu0 0
        %2449 = vmatpush2.bf16.msra.mxu0 0
        %2450 = vmatprep.subr.bf16.mxu0 0
        %2451 = vmatpush2.bf16.msra.mxu0 0
        %2452 = vmatprep.subr.bf16.mxu0 0
        %2453 = vmatpush2.bf16.msra.mxu0 0
        %2454 = vmatprep.mubr.bf16.mxu0 0
        %2455 = vmatmul.mubr.bf16.gmra.mxu0 %v2417
        %v2456 = vpop.f32.mrf.mxu0
        %v2457 = vadd.f32 0.0, %v2456
        %v2458 = vpop.f32.mrf.mxu0
        %v2459 = vpop.f32.mrf.mxu0
        %v2460 = vpop.f32.mrf.mxu0
        %2461 = vdwg.mxu0
        %v2462 = vpack.c.bf16 %v2457, %v2457
        %v2467 = vunpack.c.l.b16 %v1850
        %v2468 = vunpack.c.l.b16 %v1851
        %v2469 = vunpack.c.l.b16 %v1852
        %v2470 = vunpack.c.l.b16 %v1853
        %v2471 = vpack.c.b16 %v2468, %v2467
        %v2472 = vpack.c.b16 %v2470, %v2469
        %v2476 = vsel %vm885, %v2462, 0
        %2478 = vmatprep.subr.bf16.mxu0 0
        %2479 = vmatpush1.bf16.msra.mxu0 0
        %2480 = vmatprep.subr.bf16.mxu0 0
        %2481 = vmatpush1.bf16.msra.mxu0 0
        %2482 = vmatprep.subr.bf16.mxu0 0
        %2483 = vmatpush1.bf16.msra.mxu0 0
        %2484 = vmatprep.subr.bf16.mxu0 0
        %2485 = vmatpush1.bf16.msra.mxu0 0
        %2486 = vmatprep.subr.bf16.mxu0 0
        %2487 = vmatpush1.bf16.msra.mxu0 0
        %2488 = vmatprep.subr.bf16.mxu0 0
        %2489 = vmatpush1.bf16.msra.mxu0 0
        %2490 = vmatprep.subr.bf16.mxu0 0
        %2491 = vmatpush1.bf16.msra.mxu0 %v2472
        %2492 = vmatprep.subr.bf16.mxu0 0
        %2493 = vmatpush1.bf16.msra.mxu0 %v2471
        %2494 = vmatprep.subr.bf16.mxu0 0
        %2495 = vmatpush2.bf16.msra.mxu0 0
        %2496 = vmatprep.subr.bf16.mxu0 0
        %2497 = vmatpush2.bf16.msra.mxu0 0
        %2498 = vmatprep.subr.bf16.mxu0 0
        %2499 = vmatpush2.bf16.msra.mxu0 0
        %2500 = vmatprep.subr.bf16.mxu0 0
        %2501 = vmatpush2.bf16.msra.mxu0 0
        %2502 = vmatprep.subr.bf16.mxu0 0
        %2503 = vmatpush2.bf16.msra.mxu0 0
        %2504 = vmatprep.subr.bf16.mxu0 0
        %2505 = vmatpush2.bf16.msra.mxu0 0
        %2506 = vmatprep.subr.bf16.mxu0 0
        %2507 = vmatpush2.bf16.msra.mxu0 0
        %2508 = vmatprep.subr.bf16.mxu0 0
        %2509 = vmatpush2.bf16.msra.mxu0 0
        %2510 = vmatprep.mubr.bf16.mxu0 0
        %2511 = vmatmul.mubr.bf16.gmra.mxu0 %v2476
        %v2512 = vpop.f32.mrf.mxu0
        %v2513 = vadd.f32 0.0, %v2512
        %v2514 = vpop.f32.mrf.mxu0
        %v2515 = vpop.f32.mrf.mxu0
        %v2516 = vpop.f32.mrf.mxu0
        %2517 = vdwg.mxu0
        %v2518 = vadd.f32 %v2351, %v2513
        %v2519 = vlaneseq
        %v2520 = vshrl.u32 %v2519, 7
        %v2521 = vsub.s32 4, %v2520
        %v2522 = vrot.slane %v607, %v2521
        %v2523 = vadd.f32 %v2518, %v2522
        %v2524 = vadd.f32 %v1578, %v2523
        %2525 = vadd.xlane.f32.xlu0 %v2524
        %v2526 = vpop.xlane.xlu0 %2525
        %v2527 = vmul.f32 %v2526, %v1559
        %v2528 = vsub.f32 %v2524, %v2527
        %v2529 = vmul.f32 %v2528, %v2528
        %2530 = vadd.xlane.f32.xlu0 %v2529
        %v2531 = vpop.xlane.xlu0 %2530
        %v2532 = vmul.f32 %v2531, %v1559
        %v2533 = vadd.f32 %v2532, 1e-05
        %v2534 = vrsqrt.pop %v2533
        %v2535 = vmul.f32 %v2528, %v2534
        %v2536 = vlaneseq
        %v2537 = vshrl.u32 %v2536, 7
        %v2538 = vsub.s32 1, %v2537
        %v2539 = vrot.slane %v610, %v2538
        %v2540 = vmul.f32 %v2535, %v2539
        %v2541 = vlaneseq
        %v2542 = vshrl.u32 %v2541, 7
        %v2543 = vsub.s32 2, %v2542
        %v2544 = vrot.slane %v610, %v2543
        %v2545 = vadd.f32 %v2540, %v2544
        %v2546 = vpack.c.bf16 %v2545, %v2545
        %v2547 = vld [vmem:[%s587] sm:$0xff]
        %v2548 = vld [vmem:[%s587 + $0x8] sm:$0xff]
        %v2549 = vld [vmem:[%s587 + $0x10] sm:$0xff]
        %v2550 = vld [vmem:[%s587 + $0x18] sm:$0xff]
        %v2551 = vld [vmem:[%s587 + $0x20] sm:$0xff]
        %v2552 = vld [vmem:[%s587 + $0x28] sm:$0xff]
        %v2553 = vld [vmem:[%s587 + $0x30] sm:$0xff]
        %v2554 = vld [vmem:[%s587 + $0x38] sm:$0xff]
        %v2555 = vld [vmem:[%s587 + $0x40] sm:$0xff]
        %v2556 = vld [vmem:[%s587 + $0x48] sm:$0xff]
        %v2557 = vld [vmem:[%s587 + $0x50] sm:$0xff]
        %v2558 = vld [vmem:[%s587 + $0x58] sm:$0xff]
        %v2559 = vld [vmem:[%s587 + $0x60] sm:$0xff]
        %v2560 = vld [vmem:[%s587 + $0x68] sm:$0xff]
        %v2561 = vld [vmem:[%s587 + $0x70] sm:$0xff]
        %v2562 = vld [vmem:[%s587 + $0x78] sm:$0xff]
        %v2563 = vlaneseq
        %v2564 = vshrl.u32 %v2563, 7
        %v2565 = vsub.s32 5, %v2564
        %v2566 = vrot.slane %v607, %v2565
        %v2567 = vlaneseq
        %v2568 = vshrl.u32 %v2567, 7
        %v2569 = vsub.s32 5, %v2568
        %v2570 = vrot.slane %v608, %v2569
        %v2587 = vunpack.c.l.b16 %v2547
        %v2588 = vunpack.c.h.b16 %v2547
        %v2589 = vunpack.c.l.b16 %v2548
        %v2590 = vunpack.c.h.b16 %v2548
        %v2591 = vunpack.c.l.b16 %v2549
        %v2592 = vunpack.c.h.b16 %v2549
        %v2593 = vunpack.c.l.b16 %v2550
        %v2594 = vunpack.c.h.b16 %v2550
        %v2595 = vunpack.c.l.b16 %v2551
        %v2596 = vunpack.c.h.b16 %v2551
        %v2597 = vunpack.c.l.b16 %v2552
        %v2598 = vunpack.c.h.b16 %v2552
        %v2599 = vunpack.c.l.b16 %v2553
        %v2600 = vunpack.c.h.b16 %v2553
        %v2601 = vunpack.c.l.b16 %v2554
        %v2602 = vunpack.c.h.b16 %v2554
        %v2603 = vunpack.c.l.b16 %v2555
        %v2604 = vunpack.c.h.b16 %v2555
        %v2605 = vunpack.c.l.b16 %v2556
        %v2606 = vunpack.c.h.b16 %v2556
        %v2607 = vunpack.c.l.b16 %v2557
        %v2608 = vunpack.c.h.b16 %v2557
        %v2609 = vunpack.c.l.b16 %v2558
        %v2610 = vunpack.c.h.b16 %v2558
        %v2611 = vunpack.c.l.b16 %v2559
        %v2612 = vunpack.c.h.b16 %v2559
        %v2613 = vunpack.c.l.b16 %v2560
        %v2614 = vunpack.c.h.b16 %v2560
        %v2615 = vunpack.c.l.b16 %v2561
        %v2616 = vunpack.c.h.b16 %v2561
        %v2617 = vunpack.c.l.b16 %v2562
        %v2618 = vunpack.c.h.b16 %v2562
        %v2619 = vpack.c.b16 %v2589, %v2587
        %v2620 = vpack.c.b16 %v2590, %v2588
        %v2621 = vpack.c.b16 %v2593, %v2591
        %v2622 = vpack.c.b16 %v2594, %v2592
        %v2623 = vpack.c.b16 %v2597, %v2595
        %v2624 = vpack.c.b16 %v2598, %v2596
        %v2625 = vpack.c.b16 %v2601, %v2599
        %v2626 = vpack.c.b16 %v2602, %v2600
        %v2627 = vpack.c.b16 %v2605, %v2603
        %v2628 = vpack.c.b16 %v2606, %v2604
        %v2629 = vpack.c.b16 %v2609, %v2607
        %v2630 = vpack.c.b16 %v2610, %v2608
        %v2631 = vpack.c.b16 %v2613, %v2611
        %v2632 = vpack.c.b16 %v2614, %v2612
        %v2633 = vpack.c.b16 %v2617, %v2615
        %v2634 = vpack.c.b16 %v2618, %v2616
        %2651 = vmatprep.subr.bf16.mxu0 %v2634
        %2652 = vmatpush1.bf16.msra.mxu0 %v2633
        %2653 = vmatprep.subr.bf16.mxu0 %v2632
        %2654 = vmatpush1.bf16.msra.mxu0 %v2631
        %2655 = vmatprep.subr.bf16.mxu0 %v2630
        %2656 = vmatpush1.bf16.msra.mxu0 %v2629
        %2657 = vmatprep.subr.bf16.mxu0 %v2628
        %2658 = vmatpush1.bf16.msra.mxu0 %v2627
        %2659 = vmatprep.subr.bf16.mxu0 %v2626
        %2660 = vmatpush1.bf16.msra.mxu0 %v2625
        %2661 = vmatprep.subr.bf16.mxu0 %v2624
        %2662 = vmatpush1.bf16.msra.mxu0 %v2623
        %2663 = vmatprep.subr.bf16.mxu0 %v2622
        %2664 = vmatpush1.bf16.msra.mxu0 %v2621
        %2665 = vmatprep.subr.bf16.mxu0 %v2620
        %2666 = vmatpush1.bf16.msra.mxu0 %v2619
        %2667 = vmatprep.subr.bf16.mxu0 0
        %2668 = vmatpush2.bf16.msra.mxu0 0
        %2669 = vmatprep.subr.bf16.mxu0 0
        %2670 = vmatpush2.bf16.msra.mxu0 0
        %2671 = vmatprep.subr.bf16.mxu0 0
        %2672 = vmatpush2.bf16.msra.mxu0 0
        %2673 = vmatprep.subr.bf16.mxu0 0
        %2674 = vmatpush2.bf16.msra.mxu0 0
        %2675 = vmatprep.subr.bf16.mxu0 0
        %2676 = vmatpush2.bf16.msra.mxu0 0
        %2677 = vmatprep.subr.bf16.mxu0 0
        %2678 = vmatpush2.bf16.msra.mxu0 0
        %2679 = vmatprep.subr.bf16.mxu0 0
        %2680 = vmatpush2.bf16.msra.mxu0 0
        %2681 = vmatprep.subr.bf16.mxu0 0
        %2682 = vmatpush2.bf16.msra.mxu0 0
        %2683 = vmatprep.mubr.bf16.mxu0 0
        %2684 = vmatmul.mubr.bf16.gmra.mxu0 %v2546
        %v2685 = vpop.f32.mrf.mxu0
        %v2686 = vadd.f32 %v2566, %v2685
        %v2687 = vpop.f32.mrf.mxu0
        %v2688 = vadd.f32 %v2570, %v2687
        %v2689 = vpop.f32.mrf.mxu0
        %v2690 = vpop.f32.mrf.mxu0
        %2691 = vdwg.mxu0
        %v2692 = vmax.f32 %v2686, 0.0
        %v2693 = vmax.f32 %v2688, 0.0
        %v2694 = vpack.c.bf16 %v2692, %v2692
        %v2695 = vpack.c.bf16 %v2693, %v2693
        %v2696 = vld [vmem:[%s592] sm:$0xf]
        %v2697 = vld [vmem:[%s592 + $0x4] sm:$0xf]
        %v2698 = vld [vmem:[%s592 + $0x8] sm:$0xf]
        %v2699 = vld [vmem:[%s592 + $0xc] sm:$0xf]
        %v2700 = vld [vmem:[%s592 + $0x10] sm:$0xf]
        %v2701 = vld [vmem:[%s592 + $0x14] sm:$0xf]
        %v2702 = vld [vmem:[%s592 + $0x18] sm:$0xf]
        %v2703 = vld [vmem:[%s592 + $0x1c] sm:$0xf]
        %v2704 = vld [vmem:[%s592 + $0x20] sm:$0xf]
        %v2705 = vld [vmem:[%s592 + $0x24] sm:$0xf]
        %v2706 = vld [vmem:[%s592 + $0x28] sm:$0xf]
        %v2707 = vld [vmem:[%s592 + $0x2c] sm:$0xf]
        %v2708 = vld [vmem:[%s592 + $0x30] sm:$0xf]
        %v2709 = vld [vmem:[%s592 + $0x34] sm:$0xf]
        %v2710 = vld [vmem:[%s592 + $0x38] sm:$0xf]
        %v2711 = vld [vmem:[%s592 + $0x3c] sm:$0xf]
        %v2712 = vld [vmem:[%s592 + $0x40] sm:$0xf]
        %v2713 = vld [vmem:[%s592 + $0x44] sm:$0xf]
        %v2714 = vld [vmem:[%s592 + $0x48] sm:$0xf]
        %v2715 = vld [vmem:[%s592 + $0x4c] sm:$0xf]
        %v2716 = vld [vmem:[%s592 + $0x50] sm:$0xf]
        %v2717 = vld [vmem:[%s592 + $0x54] sm:$0xf]
        %v2718 = vld [vmem:[%s592 + $0x58] sm:$0xf]
        %v2719 = vld [vmem:[%s592 + $0x5c] sm:$0xf]
        %v2720 = vld [vmem:[%s592 + $0x60] sm:$0xf]
        %v2721 = vld [vmem:[%s592 + $0x64] sm:$0xf]
        %v2722 = vld [vmem:[%s592 + $0x68] sm:$0xf]
        %v2723 = vld [vmem:[%s592 + $0x6c] sm:$0xf]
        %v2724 = vld [vmem:[%s592 + $0x70] sm:$0xf]
        %v2725 = vld [vmem:[%s592 + $0x74] sm:$0xf]
        %v2726 = vld [vmem:[%s592 + $0x78] sm:$0xf]
        %v2727 = vld [vmem:[%s592 + $0x7c] sm:$0xf]
        %v2728 = vlaneseq
        %v2729 = vshrl.u32 %v2728, 7
        %v2730 = vsub.s32 6, %v2729
        %v2731 = vrot.slane %v607, %v2730
        %v2764 = vunpack.c.l.b16 %v2696
        %v2765 = vunpack.c.l.b16 %v2697
        %v2766 = vunpack.c.l.b16 %v2698
        %v2767 = vunpack.c.l.b16 %v2699
        %v2768 = vunpack.c.l.b16 %v2700
        %v2769 = vunpack.c.l.b16 %v2701
        %v2770 = vunpack.c.l.b16 %v2702
        %v2771 = vunpack.c.l.b16 %v2703
        %v2772 = vunpack.c.l.b16 %v2704
        %v2773 = vunpack.c.l.b16 %v2705
        %v2774 = vunpack.c.l.b16 %v2706
        %v2775 = vunpack.c.l.b16 %v2707
        %v2776 = vunpack.c.l.b16 %v2708
        %v2777 = vunpack.c.l.b16 %v2709
        %v2778 = vunpack.c.l.b16 %v2710
        %v2779 = vunpack.c.l.b16 %v2711
        %v2780 = vunpack.c.l.b16 %v2712
        %v2781 = vunpack.c.l.b16 %v2713
        %v2782 = vunpack.c.l.b16 %v2714
        %v2783 = vunpack.c.l.b16 %v2715
        %v2784 = vunpack.c.l.b16 %v2716
        %v2785 = vunpack.c.l.b16 %v2717
        %v2786 = vunpack.c.l.b16 %v2718
        %v2787 = vunpack.c.l.b16 %v2719
        %v2788 = vunpack.c.l.b16 %v2720
        %v2789 = vunpack.c.l.b16 %v2721
        %v2790 = vunpack.c.l.b16 %v2722
        %v2791 = vunpack.c.l.b16 %v2723
        %v2792 = vunpack.c.l.b16 %v2724
        %v2793 = vunpack.c.l.b16 %v2725
        %v2794 = vunpack.c.l.b16 %v2726
        %v2795 = vunpack.c.l.b16 %v2727
        %v2796 = vpack.c.b16 %v2765, %v2764
        %v2797 = vpack.c.b16 %v2767, %v2766
        %v2798 = vpack.c.b16 %v2769, %v2768
        %v2799 = vpack.c.b16 %v2771, %v2770
        %v2800 = vpack.c.b16 %v2773, %v2772
        %v2801 = vpack.c.b16 %v2775, %v2774
        %v2802 = vpack.c.b16 %v2777, %v2776
        %v2803 = vpack.c.b16 %v2779, %v2778
        %v2804 = vpack.c.b16 %v2781, %v2780
        %v2805 = vpack.c.b16 %v2783, %v2782
        %v2806 = vpack.c.b16 %v2785, %v2784
        %v2807 = vpack.c.b16 %v2787, %v2786
        %v2808 = vpack.c.b16 %v2789, %v2788
        %v2809 = vpack.c.b16 %v2791, %v2790
        %v2810 = vpack.c.b16 %v2793, %v2792
        %v2811 = vpack.c.b16 %v2795, %v2794
        %2828 = vmatprep.subr.bf16.mxu0 0
        %2829 = vmatpush1.bf16.msra.mxu0 %v2803
        %2830 = vmatprep.subr.bf16.mxu0 0
        %2831 = vmatpush1.bf16.msra.mxu0 %v2802
        %2832 = vmatprep.subr.bf16.mxu0 0
        %2833 = vmatpush1.bf16.msra.mxu0 %v2801
        %2834 = vmatprep.subr.bf16.mxu0 0
        %2835 = vmatpush1.bf16.msra.mxu0 %v2800
        %2836 = vmatprep.subr.bf16.mxu0 0
        %2837 = vmatpush1.bf16.msra.mxu0 %v2799
        %2838 = vmatprep.subr.bf16.mxu0 0
        %2839 = vmatpush1.bf16.msra.mxu0 %v2798
        %2840 = vmatprep.subr.bf16.mxu0 0
        %2841 = vmatpush1.bf16.msra.mxu0 %v2797
        %2842 = vmatprep.subr.bf16.mxu0 0
        %2843 = vmatpush1.bf16.msra.mxu0 %v2796
        %2844 = vmatprep.subr.bf16.mxu0 0
        %2845 = vmatpush2.bf16.msra.mxu0 %v2811
        %2846 = vmatprep.subr.bf16.mxu0 0
        %2847 = vmatpush2.bf16.msra.mxu0 %v2810
        %2848 = vmatprep.subr.bf16.mxu0 0
        %2849 = vmatpush2.bf16.msra.mxu0 %v2809
        %2850 = vmatprep.subr.bf16.mxu0 0
        %2851 = vmatpush2.bf16.msra.mxu0 %v2808
        %2852 = vmatprep.subr.bf16.mxu0 0
        %2853 = vmatpush2.bf16.msra.mxu0 %v2807
        %2854 = vmatprep.subr.bf16.mxu0 0
        %2855 = vmatpush2.bf16.msra.mxu0 %v2806
        %2856 = vmatprep.subr.bf16.mxu0 0
        %2857 = vmatpush2.bf16.msra.mxu0 %v2805
        %2858 = vmatprep.subr.bf16.mxu0 0
        %2859 = vmatpush2.bf16.msra.mxu0 %v2804
        %2860 = vmatprep.mubr.bf16.mxu0 %v2695
        %2861 = vmatmul.mubr.bf16.gmra.mxu0 %v2694
        %v2862 = vpop.f32.mrf.mxu0
        %v2863 = vadd.f32 %v2731, %v2862
        %v2864 = vpop.f32.mrf.mxu0
        %v2865 = vpop.f32.mrf.mxu0
        %v2866 = vpop.f32.mrf.mxu0
        %2867 = vdwg.mxu0
        %v2868 = vadd.f32 %v2545, %v2863
        %v2869 = vmul.f32 %v610, 0.0
        %v2871 = vrot.slane %v610, 2
        %v2873 = vadd.f32 %v2869, %v2871
        %2874 = vadd.xlane.f32.xlu0 %v2868
        %v2875 = vpop.xlane.xlu0 %2874
        %v2876 = vmul.f32 %v2875, %v1559
        %v2877 = vsub.f32 %v2868, %v2876
        %v2878 = vmul.f32 %v2877, %v2877
        %2879 = vadd.xlane.f32.xlu0 %v2878
        %v2880 = vpop.xlane.xlu0 %2879
        %v2881 = vmul.f32 %v2880, %v1559
        %v2882 = vadd.f32 %v2881, 1e-05
        %v2883 = vrsqrt.pop %v2882
        %v2884 = vmul.f32 %v2877, %v2883
        %v2885 = vlaneseq
        %v2886 = vshrl.u32 %v2885, 7
        %v2887 = vsub.s32 1, %v2886
        %v2888 = vrot.slane %v2873, %v2887
        %v2889 = vmul.f32 %v2884, %v2888
        %v2890 = vlaneseq
        %v2891 = vshrl.u32 %v2890, 7
        %v2892 = vsub.s32 4, %v2891
        %v2893 = vrot.slane %v610, %v2892
        %v2894 = vadd.f32 %v2889, %v2893
        %2895 = vst [vmem:[#allocation2] sm:$0xff] %v2894
        %p2896 = scmp.eq.s32.totalorder %s31, 1
        // Predicated region
        $region73: #{multimodal_forward.7} parent=67 // pred_check
          %p2897 = pneg %p2896
        $region74: #{multimodal_forward.7} parent=67 // pred_check_branch
          %2899 = sbr.rel (%p2897) target = $region76
        $region75: #{multimodal_forward.7} parent=67 // pred_region
          %v2900 = vpack.c.bf16 %v2894, %v2894
          %v2901 = vld [vmem:[%s10] sm:$0xff]
          %v2902 = vld [vmem:[%s10 + $0x8] sm:$0xff]
          %v2903 = vld [vmem:[%s10 + $0x10] sm:$0xff]
          %v2904 = vld [vmem:[%s10 + $0x18] sm:$0xff]
          %v2905 = vld [vmem:[%s10 + $0x20] sm:$0xff]
          %v2906 = vld [vmem:[%s10 + $0x28] sm:$0xff]
          %v2907 = vld [vmem:[%s10 + $0x30] sm:$0xff]
          %v2908 = vld [vmem:[%s10 + $0x38] sm:$0xff]
          %v2909 = vld [vmem:[%s10 + $0x40] sm:$0xff]
          %v2910 = vld [vmem:[%s10 + $0x48] sm:$0xff]
          %v2911 = vld [vmem:[%s10 + $0x50] sm:$0xff]
          %v2912 = vld [vmem:[%s10 + $0x58] sm:$0xff]
          %v2913 = vld [vmem:[%s10 + $0x60] sm:$0xff]
          %v2914 = vld [vmem:[%s10 + $0x68] sm:$0xff]
          %v2915 = vld [vmem:[%s10 + $0x70] sm:$0xff]
          %v2916 = vld [vmem:[%s10 + $0x78] sm:$0xff]
          %v2917 = vld [vmem:[%s10 + $0x80] sm:$0xff]
          %v2918 = vld [vmem:[%s10 + $0x88] sm:$0xff]
          %v2919 = vld [vmem:[%s10 + $0x90] sm:$0xff]
          %v2920 = vld [vmem:[%s10 + $0x98] sm:$0xff]
          %v2921 = vld [vmem:[%s10 + $0xa0] sm:$0xff]
          %v2922 = vld [vmem:[%s10 + $0xa8] sm:$0xff]
          %v2923 = vld [vmem:[%s10 + $0xb0] sm:$0xff]
          %v2924 = vld [vmem:[%s10 + $0xb8] sm:$0xff]
          %v2925 = vld [vmem:[%s10 + $0xc0] sm:$0xff]
          %v2926 = vld [vmem:[%s10 + $0xc8] sm:$0xff]
          %v2927 = vld [vmem:[%s10 + $0xd0] sm:$0xff]
          %v2928 = vld [vmem:[%s10 + $0xd8] sm:$0xff]
          %v2929 = vld [vmem:[%s10 + $0xe0] sm:$0xff]
          %v2930 = vld [vmem:[%s10 + $0xe8] sm:$0xff]
          %v2931 = vld [vmem:[%s10 + $0xf0] sm:$0xff]
          %v2932 = vld [vmem:[%s10 + $0xf8] sm:$0xff]
          %v2933 = vld [vmem:[%s11] sm:$0xf]
          %v2935 = vlaneseq
          %v2936 = vshrl.u32 %v2935, 7
          %v2937 = vsub.s32 0, %v2936
          %v2938 = vrot.slane %v2933, %v2937
          %v2939 = vlaneseq
          %v2940 = vshrl.u32 %v2939, 7
          %v2941 = vsub.s32 1, %v2940
          %v2942 = vrot.slane %v2933, %v2941
          %v2943 = vlaneseq
          %v2944 = vshrl.u32 %v2943, 7
          %v2945 = vsub.s32 2, %v2944
          %v2946 = vrot.slane %v2933, %v2945
          %v2947 = vlaneseq
          %v2948 = vshrl.u32 %v2947, 7
          %v2949 = vsub.s32 3, %v2948
          %v2950 = vrot.slane %v2933, %v2949
          %v2987 = vunpack.c.l.b16 %v2901
          %v2988 = vunpack.c.h.b16 %v2901
          %v2989 = vunpack.c.l.b16 %v2902
          %v2990 = vunpack.c.h.b16 %v2902
          %v2991 = vunpack.c.l.b16 %v2903
          %v2992 = vunpack.c.h.b16 %v2903
          %v2993 = vunpack.c.l.b16 %v2904
          %v2994 = vunpack.c.h.b16 %v2904
          %v2995 = vunpack.c.l.b16 %v2905
          %v2996 = vunpack.c.h.b16 %v2905
          %v2997 = vunpack.c.l.b16 %v2906
          %v2998 = vunpack.c.h.b16 %v2906
          %v2999 = vunpack.c.l.b16 %v2907
          %v3000 = vunpack.c.h.b16 %v2907
          %v3001 = vunpack.c.l.b16 %v2908
          %v3002 = vunpack.c.h.b16 %v2908
          %v3003 = vunpack.c.l.b16 %v2909
          %v3004 = vunpack.c.h.b16 %v2909
          %v3005 = vunpack.c.l.b16 %v2910
          %v3006 = vunpack.c.h.b16 %v2910
          %v3007 = vunpack.c.l.b16 %v2911
          %v3008 = vunpack.c.h.b16 %v2911
          %v3009 = vunpack.c.l.b16 %v2912
          %v3010 = vunpack.c.h.b16 %v2912
          %v3011 = vunpack.c.l.b16 %v2913
          %v3012 = vunpack.c.h.b16 %v2913
          %v3013 = vunpack.c.l.b16 %v2914
          %v3014 = vunpack.c.h.b16 %v2914
          %v3015 = vunpack.c.l.b16 %v2915
          %v3016 = vunpack.c.h.b16 %v2915
          %v3017 = vunpack.c.l.b16 %v2916
          %v3018 = vunpack.c.h.b16 %v2916
          %v3019 = vunpack.c.l.b16 %v2917
          %v3020 = vunpack.c.h.b16 %v2917
          %v3021 = vunpack.c.l.b16 %v2918
          %v3022 = vunpack.c.h.b16 %v2918
          %v3023 = vunpack.c.l.b16 %v2919
          %v3024 = vunpack.c.h.b16 %v2919
          %v3025 = vunpack.c.l.b16 %v2920
          %v3026 = vunpack.c.h.b16 %v2920
          %v3027 = vunpack.c.l.b16 %v2921
          %v3028 = vunpack.c.h.b16 %v2921
          %v3029 = vunpack.c.l.b16 %v2922
          %v3030 = vunpack.c.h.b16 %v2922
          %v3031 = vunpack.c.l.b16 %v2923
          %v3032 = vunpack.c.h.b16 %v2923
          %v3033 = vunpack.c.l.b16 %v2924
          %v3034 = vunpack.c.h.b16 %v2924
          %v3035 = vunpack.c.l.b16 %v2925
          %v3036 = vunpack.c.h.b16 %v2925
          %v3037 = vunpack.c.l.b16 %v2926
          %v3038 = vunpack.c.h.b16 %v2926
          %v3039 = vunpack.c.l.b16 %v2927
          %v3040 = vunpack.c.h.b16 %v2927
          %v3041 = vunpack.c.l.b16 %v2928
          %v3042 = vunpack.c.h.b16 %v2928
          %v3043 = vunpack.c.l.b16 %v2929
          %v3044 = vunpack.c.h.b16 %v2929
          %v3045 = vunpack.c.l.b16 %v2930
          %v3046 = vunpack.c.h.b16 %v2930
          %v3047 = vunpack.c.l.b16 %v2931
          %v3048 = vunpack.c.h.b16 %v2931
          %v3049 = vunpack.c.l.b16 %v2932
          %v3050 = vunpack.c.h.b16 %v2932
          %v3051 = vpack.c.b16 %v2991, %v2987
          %v3052 = vpack.c.b16 %v2992, %v2988
          %v3053 = vpack.c.b16 %v2993, %v2989
          %v3054 = vpack.c.b16 %v2994, %v2990
          %v3055 = vpack.c.b16 %v2999, %v2995
          %v3056 = vpack.c.b16 %v3000, %v2996
          %v3057 = vpack.c.b16 %v3001, %v2997
          %v3058 = vpack.c.b16 %v3002, %v2998
          %v3059 = vpack.c.b16 %v3007, %v3003
          %v3060 = vpack.c.b16 %v3008, %v3004
          %v3061 = vpack.c.b16 %v3009, %v3005
          %v3062 = vpack.c.b16 %v3010, %v3006
          %v3063 = vpack.c.b16 %v3015, %v3011
          %v3064 = vpack.c.b16 %v3016, %v3012
          %v3065 = vpack.c.b16 %v3017, %v3013
          %v3066 = vpack.c.b16 %v3018, %v3014
          %v3067 = vpack.c.b16 %v3023, %v3019
          %v3068 = vpack.c.b16 %v3024, %v3020
          %v3069 = vpack.c.b16 %v3025, %v3021
          %v3070 = vpack.c.b16 %v3026, %v3022
          %v3071 = vpack.c.b16 %v3031, %v3027
          %v3072 = vpack.c.b16 %v3032, %v3028
          %v3073 = vpack.c.b16 %v3033, %v3029
          %v3074 = vpack.c.b16 %v3034, %v3030
          %v3075 = vpack.c.b16 %v3039, %v3035
          %v3076 = vpack.c.b16 %v3040, %v3036
          %v3077 = vpack.c.b16 %v3041, %v3037
          %v3078 = vpack.c.b16 %v3042, %v3038
          %v3079 = vpack.c.b16 %v3047, %v3043
          %v3080 = vpack.c.b16 %v3048, %v3044
          %v3081 = vpack.c.b16 %v3049, %v3045
          %v3082 = vpack.c.b16 %v3050, %v3046
          %3115 = vmatprep.subr.bf16.mxu0 %v3080
          %3116 = vmatpush1.bf16.msra.mxu0 %v3079
          %3117 = vmatprep.subr.bf16.mxu0 %v3076
          %3118 = vmatpush1.bf16.msra.mxu0 %v3075
          %3119 = vmatprep.subr.bf16.mxu0 %v3072
          %3120 = vmatpush1.bf16.msra.mxu0 %v3071
          %3121 = vmatprep.subr.bf16.mxu0 %v3068
          %3122 = vmatpush1.bf16.msra.mxu0 %v3067
          %3123 = vmatprep.subr.bf16.mxu0 %v3064
          %3124 = vmatpush1.bf16.msra.mxu0 %v3063
          %3125 = vmatprep.subr.bf16.mxu0 %v3060
          %3126 = vmatpush1.bf16.msra.mxu0 %v3059
          %3127 = vmatprep.subr.bf16.mxu0 %v3056
          %3128 = vmatpush1.bf16.msra.mxu0 %v3055
          %3129 = vmatprep.subr.bf16.mxu0 %v3052
          %3130 = vmatpush1.bf16.msra.mxu0 %v3051
          %3131 = vmatprep.subr.bf16.mxu0 0
          %3132 = vmatpush2.bf16.msra.mxu0 0
          %3133 = vmatprep.subr.bf16.mxu0 0
          %3134 = vmatpush2.bf16.msra.mxu0 0
          %3135 = vmatprep.subr.bf16.mxu0 0
          %3136 = vmatpush2.bf16.msra.mxu0 0
          %3137 = vmatprep.subr.bf16.mxu0 0
          %3138 = vmatpush2.bf16.msra.mxu0 0
          %3139 = vmatprep.subr.bf16.mxu0 0
          %3140 = vmatpush2.bf16.msra.mxu0 0
          %3141 = vmatprep.subr.bf16.mxu0 0
          %3142 = vmatpush2.bf16.msra.mxu0 0
          %3143 = vmatprep.subr.bf16.mxu0 0
          %3144 = vmatpush2.bf16.msra.mxu0 0
          %3145 = vmatprep.subr.bf16.mxu0 0
          %3146 = vmatpush2.bf16.msra.mxu0 0
          %3147 = vmatprep.mubr.bf16.mxu0 0
          %3148 = vmatmul.mubr.bf16.gmra.mxu0 %v2900
          %v3149 = vpop.f32.mrf.mxu0
          %v3150 = vadd.f32 %v2938, %v3149
          %v3151 = vpop.f32.mrf.mxu0
          %v3152 = vadd.f32 %v2942, %v3151
          %v3153 = vpop.f32.mrf.mxu0
          %v3154 = vpop.f32.mrf.mxu0
          %3155 = vdwg.mxu0
          %3156 = vmatprep.subr.bf16.mxu0 %v3082
          %3157 = vmatpush1.bf16.msra.mxu0 %v3081
          %3158 = vmatprep.subr.bf16.mxu0 %v3078
          %3159 = vmatpush1.bf16.msra.mxu0 %v3077
          %3160 = vmatprep.subr.bf16.mxu0 %v3074
          %3161 = vmatpush1.bf16.msra.mxu0 %v3073
          %3162 = vmatprep.subr.bf16.mxu0 %v3070
          %3163 = vmatpush1.bf16.msra.mxu0 %v3069
          %3164 = vmatprep.subr.bf16.mxu0 %v3066
          %3165 = vmatpush1.bf16.msra.mxu0 %v3065
          %3166 = vmatprep.subr.bf16.mxu0 %v3062
          %3167 = vmatpush1.bf16.msra.mxu0 %v3061
          %3168 = vmatprep.subr.bf16.mxu0 %v3058
          %3169 = vmatpush1.bf16.msra.mxu0 %v3057
          %3170 = vmatprep.subr.bf16.mxu0 %v3054
          %3171 = vmatpush1.bf16.msra.mxu0 %v3053
          %3172 = vmatprep.subr.bf16.mxu0 0
          %3173 = vmatpush2.bf16.msra.mxu0 0
          %3174 = vmatprep.subr.bf16.mxu0 0
          %3175 = vmatpush2.bf16.msra.mxu0 0
          %3176 = vmatprep.subr.bf16.mxu0 0
          %3177 = vmatpush2.bf16.msra.mxu0 0
          %3178 = vmatprep.subr.bf16.mxu0 0
          %3179 = vmatpush2.bf16.msra.mxu0 0
          %3180 = vmatprep.subr.bf16.mxu0 0
          %3181 = vmatpush2.bf16.msra.mxu0 0
          %3182 = vmatprep.subr.bf16.mxu0 0
          %3183 = vmatpush2.bf16.msra.mxu0 0
          %3184 = vmatprep.subr.bf16.mxu0 0
          %3185 = vmatpush2.bf16.msra.mxu0 0
          %3186 = vmatprep.subr.bf16.mxu0 0
          %3187 = vmatpush2.bf16.msra.mxu0 0
          %3188 = vmatprep.mubr.bf16.mxu0 0
          %3189 = vmatmul.mubr.bf16.gmra.mxu0 %v2900
          %v3190 = vpop.f32.mrf.mxu0
          %v3191 = vadd.f32 %v2946, %v3190
          %v3192 = vpop.f32.mrf.mxu0
          %v3193 = vadd.f32 %v2950, %v3192
          %v3194 = vpop.f32.mrf.mxu0
          %v3195 = vpop.f32.mrf.mxu0
          %3196 = vdwg.mxu0
          %3197 = vst [vmem:[%s549] sm:$0xff] %v3150
          %3198 = vst [vmem:[%s549 + $0x8] sm:$0xff] %v3152
          %3199 = vst [vmem:[%s549 + $0x10] sm:$0xff] %v3191
          %3200 = vst [vmem:[%s549 + $0x18] sm:$0xff] %v3193
        $region76: #{multimodal_forward.7} parent=67 // pred_fallthru
          _
        %s3201 = sand.u32 %s348, 1
        %s3202 = scalar_lea.sflag [#allocation4], %s3201
        %s3203 = sand.u32 %s348, 1
        %s3204 = smul.addr %s3203, 32
        %s3205 = scalar_lea.vmem [#allocation3], %s3204
        // Predicated region
        $region77: #{multimodal_forward.7} parent=67 // pred_check
          %p3206 = pneg %p358
        $region78: #{multimodal_forward.7} parent=67 // pred_check_branch
          %3208 = sbr.rel (%p3206) target = $region80
        $region79: #{multimodal_forward.7} parent=67 // pred_region
          %s3210 = ssub.s32 512, 512
          %3211 = vsyncadd %s3202, %s3210
          %s3212 = smul.addr %s30, 4
          %s3213 = smul.addr %s3212, 128
          %s3214 = scalar_lea.hbm %s12, %s3213
          %s3216 = sshll.u32 %s3205, 4
          %s3217 = int_to_ptr.vmem [resolvable:$true] %s3216
          %3219 = dma.vmem_to_hbm [thread:$0]  %s3217, 512, %s3214, %s3202
        $region80: #{multimodal_forward.7} parent=67 // pred_fallthru
          _
      $region68: #{multimodal_forward.7} parent=5 // pred_fallthru
        _
      %p3220 = scmp.le.s32.totalorder 2, %s21
      // Predicated region
      $region81: #{multimodal_forward.7} parent=5 // pred_check
        %p3221 = pneg %p3220
      $region82: #{multimodal_forward.7} parent=5 // pred_check_branch
        %3223 = sbr.rel (%p3221) target = $region84
      $region83: #{multimodal_forward.7} parent=5 // pred_region
        %s3224 = ssub.s32 %s21, 2
        // Predicated region
        $region85: #{multimodal_forward.7} parent=83 // pred_check
          %p3225 = pneg %p364
        $region86: #{multimodal_forward.7} parent=83 // pred_check_branch
          %3227 = sbr.rel (%p3225) target = $region88
        $region87: #{multimodal_forward.7} parent=83 // pred_region
          %s3228 = sand.u32 %s349, 1
          %s3229 = scalar_lea.sflag [#allocation4], %s3228
          %s3230 = sand.u32 %s349, 1
          %s3231 = smul.addr %s3230, 32
          %s3232 = scalar_lea.vmem [#allocation3], %s3231
          %3233 = dma.done %s3229, 512
        $region88: #{multimodal_forward.7} parent=83 // pred_fallthru
          _
      $region84: #{multimodal_forward.7} parent=5 // pred_fallthru
        _
    $region6: #{multimodal_forward.7} parent=1 // loop_footer
      %s25 = sadd.s32 1, %s21
    $region7: #{multimodal_forward.7} parent=1 // loop_footer_branch
      %20 = sbr.rel target = $region3
    $region8: #{multimodal_forward.7} parent=1 // loop_exit
      _
    %3234 = vsyncpa [#allocation4], 1
    %s3235 = scalar_lea.sflag [#allocation4], 1
    %3236 = vsyncpa %s3235, 1

</llo_original>
